<compile_context>
chip_gen: v5e
topology: v5e:2x2
jax: 0.10.0
libtpu: 0.0.40
codegen_flags: <defaults>
</compile_context>

<pallas_src>
import math

import jax
import jax.numpy as jnp
from jax import lax
from jax.experimental import pallas as pl
from jax.experimental.pallas import tpu as pltpu

LN_EPS = 1e-5  # nn.LayerNorm default


def _gelu(x):
    # tanh-approximate GELU runs on the EUP (separate VLIW slot next to MXU work).
    return jax.nn.gelu(x, approximate=True)


def mixer_kernel(x_ref, rowp_ref, colp_ref,
                 wt1_ref, wt2_ref, wc1_ref, wc2_ref, out_ref):
    N, D = x_ref.shape                 # N = bblk * P  (flattened slab rows)
    TB = wt1_ref.shape[0]              # bblk * T
    C = wc1_ref.shape[1]

    # ---- small params (f32); used once per grid step (no inner loop) ----
    gamma = rowp_ref[0:1, 0:D]         # (1, D)
    beta = rowp_ref[1:2, 0:D]          # (1, D)
    bc1 = rowp_ref[2:3, 0:C]           # (1, C)
    bc2 = rowp_ref[3:4, 0:D]           # (1, D)
    bt1 = colp_ref[0:TB, :]            # (TB, 1)  tiled token bias 1
    bt2 = colp_ref[TB:TB + N, :]       # (N, 1)   tiled token bias 2

    # ---- bf16 weights (block-diagonal token weights, pre-oriented channel) ----
    wt1 = wt1_ref[...]                 # (TB, N)  = kron(I, Wt1)
    wt2 = wt2_ref[...]                 # (N, TB)  = kron(I, Wt2)
    wc1 = wc1_ref[...]                 # (D, C)
    wc2 = wc2_ref[...]                 # (C, D)

    def ln(v):                         # LayerNorm over D, f32 math (shared affine)
        mu = jnp.mean(v, axis=-1, keepdims=True)
        var = jnp.mean((v - mu) * (v - mu), axis=-1, keepdims=True)
        return (v - mu) * lax.rsqrt(var + LN_EPS) * gamma + beta

    x = x_ref[...].astype(jnp.float32)                               # (N, D)

    # ---- LayerNorm #1 + token-mixing MLP (transpose folded; block-diag batch) ----
    z = ln(x).astype(jnp.bfloat16)
    h = jnp.dot(wt1, z, preferred_element_type=jnp.float32)          # (TB, D)
    h = _gelu(h + bt1).astype(jnp.bfloat16)
    y = jnp.dot(wt2, h, preferred_element_type=jnp.float32)          # (N, D)
    x2 = x + y + bt2                                                 # residual #1

    # ---- LayerNorm #2 (same gamma/beta, as in the module) + channel-mixing ----
    z2 = ln(x2).astype(jnp.bfloat16)
    h2 = jnp.dot(z2, wc1, preferred_element_type=jnp.float32)        # (N, C)
    h2 = _gelu(h2 + bc1).astype(jnp.bfloat16)
    y2 = jnp.dot(h2, wc2, preferred_element_type=jnp.float32)        # (N, D)

    out_ref[...] = (x2 + y2 + bc2).astype(out_ref.dtype)             # residual #2


def _mixer_call(x2d, rowp, colp, wt1_bd, wt2_bd, wc1, wc2, *,
                n_rows, d, vmem_limit, cost, single_buffer_consts):
    grid_b = x2d.shape[0] // n_rows

    def const_spec(a):
        zeros = (0,) * a.ndim
        if single_buffer_consts:
            # Loop-invariant block: one buffer is enough (it is never re-fetched).
            return pl.BlockSpec(a.shape, lambda i: zeros,
                                pipeline_mode=pl.Buffered(1))
        return pl.BlockSpec(a.shape, lambda i: zeros)

    return pl.pallas_call(
        mixer_kernel,
        out_shape=jax.ShapeDtypeStruct(x2d.shape, x2d.dtype),
        grid_spec=pltpu.PrefetchScalarGridSpec(
            num_scalar_prefetch=0,
            grid=(grid_b,),
            in_specs=[
                pl.BlockSpec((n_rows, d), lambda i: (i, 0)),   # x slab
                const_spec(rowp), const_spec(colp),
                const_spec(wt1_bd), const_spec(wt2_bd),
                const_spec(wc1), const_spec(wc2),
            ],
            out_specs=pl.BlockSpec((n_rows, d), lambda i: (i, 0)),
        ),
        compiler_params=pltpu.CompilerParams(
            dimension_semantics=("parallel",),
            vmem_limit_bytes=vmem_limit),
        cost_estimate=cost,
    )(x2d, rowp, colp, wt1_bd, wt2_bd, wc1, wc2)


def mixer_block(x, params, bblk=None):
    """x: (B, P, D) float32. params: torch-layout weights (see __main__)."""
    B, P, D = x.shape
    T = params["wt1"].shape[0]
    C = params["Wc1"].shape[0]

    # ---- block-size choice: as big as is sensible while keeping >= 2 grid steps ----
    if bblk is None:
        bblk = max(1, B // 2)          # >= 2 grid steps (v7x megacore) when B >= 2
    bblk = max(1, min(bblk, B))
    # keep the fused f32 slab temps (~(5D + C)*4 bytes/row) to a few MiB
    while bblk > 1 and bblk * P > 4096:
        bblk -= 1

    grid_b = pl.cdiv(B, bblk)
    B_pad = grid_b * bblk
    if B_pad != B:                      # pad the batch instead of shrinking bblk to 1
        x = jnp.pad(x, ((0, B_pad - B), (0, 0), (0, 0)))

    N = bblk * P                        # slab rows per grid step
    TB = bblk * T

    # ---- weights: bf16 MXU feeds; token weights made block-diagonal so the whole
    #      (bblk*P, D) slab is mixed with ONE dense 2-D dot (transpose folded) ----
    eye = jnp.eye(bblk, dtype=jnp.float32)
    wt1_bd = jnp.kron(eye, params["wt1"]).astype(jnp.bfloat16)   # (bblk*T, bblk*P)
    wt2_bd = jnp.kron(eye, params["wt2"]).astype(jnp.bfloat16)   # (bblk*P, bblk*T)
    wc1 = params["Wc1"].T.astype(jnp.bfloat16)                   # (D, C)
    wc2 = params["Wc2"].T.astype(jnp.bfloat16)                   # (C, D)

    # ---- small vectors packed into two arrays (lane rows + one sublane column) ----
    Wr = max(D, C)
    rowp = jnp.zeros((4, Wr), jnp.float32)
    rowp = rowp.at[0, :D].set(params["gamma"])
    rowp = rowp.at[1, :D].set(params["beta"])
    rowp = rowp.at[2, :C].set(params["bc1"])
    rowp = rowp.at[3, :D].set(params["bc2"])
    colp = jnp.concatenate([jnp.tile(params["bt1"], bblk),
                            jnp.tile(params["bt2"], bblk)])[:, None]   # (TB+N, 1)

    # ---- generation-aware scoped-VMEM budget (leave headroom for compiler scratch) ----
    try:
        info = pltpu.get_tpu_info()
        vmem_cap = int(getattr(info, "vmem_capacity_bytes", 64 * 1024 * 1024))
    except Exception:
        vmem_cap = 64 * 1024 * 1024
    vmem_cap_scoped = vmem_cap - vmem_cap // 8      # ~112 MiB v5e/v6e, ~56 MiB v7x

    blk_bytes = N * D * 4                                             # one f32 slab
    w_bytes = 2 * (wt1_bd.size + wt2_bd.size + wc1.size + wc2.size)   # bf16
    p_bytes = 4 * rowp.size + 4 * colp.shape[0] * 128                 # lane-padded col
    live_bytes = 4 * (N * (5 * D + C) + TB * D)                       # f32 slab temps
    est = 4 * blk_bytes + 2 * (w_bytes + p_bytes) + live_bytes
    vmem_limit = int(min(max(2 * est, 32 * 1024 * 1024), vmem_cap_scoped))

    cost = pl.CostEstimate(
        flops=int(B_pad * (4 * P * T * D + 4 * P * D * C)),
        transcendentals=int(B_pad * (T * D + P * C)),
        bytes_accessed=int(2 * B_pad * P * D * 4 + w_bytes + p_bytes),
    )

    x2d = x.reshape(B_pad * P, D)       # free layout collapse; kernel works on 2-D slabs

    call_kwargs = dict(n_rows=N, d=D, vmem_limit=vmem_limit, cost=cost)
    try:
        out2d = _mixer_call(x2d, rowp, colp, wt1_bd, wt2_bd, wc1, wc2,
                            single_buffer_consts=True, **call_kwargs)
        out2d = jax.block_until_ready(out2d)
    except Exception:
        # pipeline_mode / pl.Buffered(1) not accepted by this build -> default specs.
        out2d = _mixer_call(x2d, rowp, colp, wt1_bd, wt2_bd, wc1, wc2,
                            single_buffer_consts=False, **call_kwargs)
        out2d = jax.block_until_ready(out2d)

    return out2d.reshape(B_pad, P, D)[:B]


def mixer_block_ref(x, params):
    """Pure-JAX reference mirroring the PyTorch forward (and the kernel's
    bf16-operand / f32-accumulate matmul precision and tanh GELU)."""
    gamma, beta = params["gamma"], params["beta"]

    def ln(v):
        mu = jnp.mean(v, axis=-1, keepdims=True)
        var = jnp.mean((v - mu) ** 2, axis=-1, keepdims=True)
        return (v - mu) * lax.rsqrt(var + LN_EPS) * gamma + beta

    wt1 = params["wt1"].astype(jnp.bfloat16)
    wt2 = params["wt2"].astype(jnp.bfloat16)
    wc1 = params["Wc1"].T.astype(jnp.bfloat16)
    wc2 = params["Wc2"].T.astype(jnp.bfloat16)

    # token mixing (transpose folded into einsum orientation)
    z = ln(x).astype(jnp.bfloat16)                                          # (B,P,D)
    h = jnp.einsum("tp,bpd->btd", wt1, z, preferred_element_type=jnp.float32)
    h = _gelu(h + params["bt1"][None, :, None]).astype(jnp.bfloat16)
    y = jnp.einsum("pt,btd->bpd", wt2, h, preferred_element_type=jnp.float32)
    x2 = x + y + params["bt2"][None, :, None]

    # channel mixing
    z2 = ln(x2).astype(jnp.bfloat16)
    h2 = jnp.einsum("bpd,dc->bpc", z2, wc1, preferred_element_type=jnp.float32)
    h2 = _gelu(h2 + params["bc1"]).astype(jnp.bfloat16)
    y2 = jnp.einsum("bpc,cd->bpd", h2, wc2, preferred_element_type=jnp.float32)
    return x2 + y2 + params["bc2"]


if __name__ == "__main__":
    # Small but lane-dense shapes: batch=8, n_patches=64 (8x8), dim=128,
    # token_mlp_dim=64, channel_mlp_dim=256, dropout=0.0 (identity).
    B, P, D = 8, 64, 128
    T, C = 64, 256

    key = jax.random.PRNGKey(0)
    ks = jax.random.split(key, 10)
    x = jax.random.normal(ks[0], (B, P, D), dtype=jnp.float32)

    def init(k, shape, fan_in):
        bound = 1.0 / math.sqrt(fan_in)
        return jax.random.uniform(k, shape, jnp.float32, -bound, bound)

    params = {
        # single LayerNorm shared between both norm applications, as in the module
        "gamma": jnp.ones((D,), jnp.float32),
        "beta": jnp.zeros((D,), jnp.float32),
        # token-mixing MLPBlock: Linear(P->T), Linear(T->P); torch (out,in) layout
        "wt1": init(ks[1], (T, P), P), "bt1": init(ks[2], (T,), P),
        "wt2": init(ks[3], (P, T), T), "bt2": init(ks[4], (P,), T),
        # channel-mixing MLPBlock: Linear(D->C), Linear(C->D); torch (out,in) layout
        "Wc1": init(ks[5], (C, D), D), "bc1": init(ks[6], (C,), D),
        "Wc2": init(ks[7], (D, C), C), "bc2": init(ks[8], (D,), C),
    }

    out = jax.block_until_ready(mixer_block(x, params))
    ref = mixer_block_ref(x, params)

    assert out.shape == (B, P, D)
    max_err = float(jnp.max(jnp.abs(out - ref)))
    assert jnp.allclose(out, ref, atol=2e-2, rtol=2e-2), max_err

    print("KERNEL_OK")
</pallas_src>

<mosaic_0001>
module attributes {stable_mosaic.version = 11 : i64} {
  func.func @mixer_kernel(%arg0: i32, %arg1: memref<256x128xf32, #tpu.memory_space<vmem>>, %arg2: memref<4x256xf32, #tpu.memory_space<vmem>>, %arg3: memref<512x1xf32, #tpu.memory_space<vmem>>, %arg4: memref<256x256xbf16, #tpu.memory_space<vmem>>, %arg5: memref<256x256xbf16, #tpu.memory_space<vmem>>, %arg6: memref<128x256xbf16, #tpu.memory_space<vmem>>, %arg7: memref<256x128xbf16, #tpu.memory_space<vmem>>, %arg8: memref<256x128xf32, #tpu.memory_space<vmem>>) attributes {dimension_semantics = [#tpu.dimension_semantics<parallel>], iteration_bounds = array<i64: 2>, scalar_prefetch = 0 : i64, scratch_operands = 0 : i64, tpu.core_type = #tpu.core_type<tc>, window_params = [{transform_indices = @transform_0, window_bounds = array<i64: 256, 128>}, {pipeline_mode = #tpu.pipeline_mode<synchronous>, transform_indices = @transform_1, window_bounds = array<i64: 4, 256>}, {pipeline_mode = #tpu.pipeline_mode<synchronous>, transform_indices = @transform_2, window_bounds = array<i64: 512, 1>}, {pipeline_mode = #tpu.pipeline_mode<synchronous>, transform_indices = @transform_3, window_bounds = array<i64: 256, 256>}, {pipeline_mode = #tpu.pipeline_mode<synchronous>, transform_indices = @transform_4, window_bounds = array<i64: 256, 256>}, {pipeline_mode = #tpu.pipeline_mode<synchronous>, transform_indices = @transform_5, window_bounds = array<i64: 128, 256>}, {pipeline_mode = #tpu.pipeline_mode<synchronous>, transform_indices = @transform_6, window_bounds = array<i64: 256, 128>}, {transform_indices = @transform_7, window_bounds = array<i64: 256, 128>}]} {
    %c0 = arith.constant 0 : index
    %c0_0 = arith.constant 0 : index
    %0 = vector.load %arg2[%c0, %c0_0] : memref<4x256xf32, #tpu.memory_space<vmem>>, vector<1x128xf32>
    %c1 = arith.constant 1 : index
    %c0_1 = arith.constant 0 : index
    %1 = vector.load %arg2[%c1, %c0_1] : memref<4x256xf32, #tpu.memory_space<vmem>>, vector<1x128xf32>
    %c2 = arith.constant 2 : index
    %c0_2 = arith.constant 0 : index
    %2 = vector.load %arg2[%c2, %c0_2] : memref<4x256xf32, #tpu.memory_space<vmem>>, vector<1x256xf32>
    %c3 = arith.constant 3 : index
    %c0_3 = arith.constant 0 : index
    %3 = vector.load %arg2[%c3, %c0_3] : memref<4x256xf32, #tpu.memory_space<vmem>>, vector<1x128xf32>
    %c0_4 = arith.constant 0 : index
    %c0_5 = arith.constant 0 : index
    %4 = vector.load %arg3[%c0_4, %c0_5] : memref<512x1xf32, #tpu.memory_space<vmem>>, vector<256x1xf32>
    %c256 = arith.constant 256 : index
    %c0_6 = arith.constant 0 : index
    %5 = vector.load %arg3[%c256, %c0_6] : memref<512x1xf32, #tpu.memory_space<vmem>>, vector<256x1xf32>
    %c0_7 = arith.constant 0 : index
    %c0_8 = arith.constant 0 : index
    %6 = vector.load %arg4[%c0_7, %c0_8] : memref<256x256xbf16, #tpu.memory_space<vmem>>, vector<256x256xbf16>
    %c0_9 = arith.constant 0 : index
    %c0_10 = arith.constant 0 : index
    %7 = vector.load %arg5[%c0_9, %c0_10] : memref<256x256xbf16, #tpu.memory_space<vmem>>, vector<256x256xbf16>
    %c0_11 = arith.constant 0 : index
    %c0_12 = arith.constant 0 : index
    %8 = vector.load %arg6[%c0_11, %c0_12] : memref<128x256xbf16, #tpu.memory_space<vmem>>, vector<128x256xbf16>
    %c0_13 = arith.constant 0 : index
    %c0_14 = arith.constant 0 : index
    %9 = vector.load %arg7[%c0_13, %c0_14] : memref<256x128xbf16, #tpu.memory_space<vmem>>, vector<256x128xbf16>
    %c0_15 = arith.constant 0 : index
    %c0_16 = arith.constant 0 : index
    %10 = vector.load %arg1[%c0_15, %c0_16] : memref<256x128xf32, #tpu.memory_space<vmem>>, vector<256x128xf32>
    %cst = arith.constant dense<0.000000e+00> : vector<256xf32>
    %11 = vector.multi_reduction <add>, %10, %cst [1] : vector<256x128xf32> to vector<256xf32>
    %12 = vector.shape_cast %11 : vector<256xf32> to vector<256x1xf32>
    %cst_17 = arith.constant 1.280000e+02 : f32
    %13 = vector.broadcast %cst_17 : f32 to vector<256x1xf32>
    %14 = arith.divf %12, %13 : vector<256x1xf32>
    %15 = vector.broadcast %14 : vector<256x1xf32> to vector<256x128xf32>
    %16 = arith.subf %10, %15 : vector<256x128xf32>
    %17 = vector.broadcast %14 : vector<256x1xf32> to vector<256x128xf32>
    %18 = arith.subf %10, %17 : vector<256x128xf32>
    %19 = arith.mulf %16, %18 : vector<256x128xf32>
    %cst_18 = arith.constant dense<0.000000e+00> : vector<256xf32>
    %20 = vector.multi_reduction <add>, %19, %cst_18 [1] : vector<256x128xf32> to vector<256xf32>
    %21 = vector.shape_cast %20 : vector<256xf32> to vector<256x1xf32>
    %cst_19 = arith.constant 1.280000e+02 : f32
    %22 = vector.broadcast %cst_19 : f32 to vector<256x1xf32>
    %23 = arith.divf %21, %22 : vector<256x1xf32>
    %24 = vector.broadcast %14 : vector<256x1xf32> to vector<256x128xf32>
    %25 = arith.subf %10, %24 : vector<256x128xf32>
    %cst_20 = arith.constant 9.99999974E-6 : f32
    %26 = vector.broadcast %cst_20 : f32 to vector<256x1xf32>
    %27 = arith.addf %23, %26 : vector<256x1xf32>
    %28 = math.rsqrt %27 : vector<256x1xf32>
    %29 = vector.broadcast %28 : vector<256x1xf32> to vector<256x128xf32>
    %30 = arith.mulf %25, %29 : vector<256x128xf32>
    %31 = vector.broadcast %0 : vector<1x128xf32> to vector<256x128xf32>
    %32 = arith.mulf %30, %31 : vector<256x128xf32>
    %33 = vector.broadcast %1 : vector<1x128xf32> to vector<256x128xf32>
    %34 = arith.addf %32, %33 : vector<256x128xf32>
    %35 = arith.truncf %34 : vector<256x128xf32> to vector<256x128xbf16>
    %cst_21 = arith.constant dense<0.000000e+00> : vector<256x128xf32>
    %36 = tpu.matmul %6, %35, %cst_21 {dimension_numbers = #tpu.dot_dimension_numbers<[1], [0], [0], [1], [0, 0, 1, 1], [], []>} : vector<256x256xbf16>, vector<256x128xbf16>, vector<256x128xf32> -> vector<256x128xf32>
    %37 = vector.broadcast %4 : vector<256x1xf32> to vector<256x128xf32>
    %38 = arith.addf %36, %37 : vector<256x128xf32>
    %39 = arith.mulf %38, %38 : vector<256x128xf32>
    %40 = arith.mulf %38, %39 : vector<256x128xf32>
    %cst_22 = arith.constant 4.471500e-02 : f32
    %41 = vector.broadcast %cst_22 : f32 to vector<256x128xf32>
    %42 = arith.mulf %41, %40 : vector<256x128xf32>
    %43 = arith.addf %38, %42 : vector<256x128xf32>
    %cst_23 = arith.constant 0.797884583 : f32
    %44 = vector.broadcast %cst_23 : f32 to vector<256x128xf32>
    %45 = arith.mulf %44, %43 : vector<256x128xf32>
    %46 = math.tanh %45 : vector<256x128xf32>
    %cst_24 = arith.constant 1.000000e+00 : f32
    %47 = vector.broadcast %cst_24 : f32 to vector<256x128xf32>
    %48 = arith.addf %47, %46 : vector<256x128xf32>
    %cst_25 = arith.constant 5.000000e-01 : f32
    %49 = vector.broadcast %cst_25 : f32 to vector<256x128xf32>
    %50 = arith.mulf %49, %48 : vector<256x128xf32>
    %51 = arith.mulf %38, %50 : vector<256x128xf32>
    %52 = arith.truncf %51 : vector<256x128xf32> to vector<256x128xbf16>
    %cst_26 = arith.constant dense<0.000000e+00> : vector<256x128xf32>
    %53 = tpu.matmul %7, %52, %cst_26 {dimension_numbers = #tpu.dot_dimension_numbers<[1], [0], [0], [1], [0, 0, 1, 1], [], []>} : vector<256x256xbf16>, vector<256x128xbf16>, vector<256x128xf32> -> vector<256x128xf32>
    %54 = arith.addf %10, %53 : vector<256x128xf32>
    %55 = vector.broadcast %5 : vector<256x1xf32> to vector<256x128xf32>
    %56 = arith.addf %54, %55 : vector<256x128xf32>
    %cst_27 = arith.constant dense<0.000000e+00> : vector<256xf32>
    %57 = vector.multi_reduction <add>, %56, %cst_27 [1] : vector<256x128xf32> to vector<256xf32>
    %58 = vector.shape_cast %57 : vector<256xf32> to vector<256x1xf32>
    %cst_28 = arith.constant 1.280000e+02 : f32
    %59 = vector.broadcast %cst_28 : f32 to vector<256x1xf32>
    %60 = arith.divf %58, %59 : vector<256x1xf32>
    %61 = vector.broadcast %60 : vector<256x1xf32> to vector<256x128xf32>
    %62 = arith.subf %56, %61 : vector<256x128xf32>
    %63 = vector.broadcast %60 : vector<256x1xf32> to vector<256x128xf32>
    %64 = arith.subf %56, %63 : vector<256x128xf32>
    %65 = arith.mulf %62, %64 : vector<256x128xf32>
    %cst_29 = arith.constant dense<0.000000e+00> : vector<256xf32>
    %66 = vector.multi_reduction <add>, %65, %cst_29 [1] : vector<256x128xf32> to vector<256xf32>
    %67 = vector.shape_cast %66 : vector<256xf32> to vector<256x1xf32>
    %cst_30 = arith.constant 1.280000e+02 : f32
    %68 = vector.broadcast %cst_30 : f32 to vector<256x1xf32>
    %69 = arith.divf %67, %68 : vector<256x1xf32>
    %70 = vector.broadcast %60 : vector<256x1xf32> to vector<256x128xf32>
    %71 = arith.subf %56, %70 : vector<256x128xf32>
    %cst_31 = arith.constant 9.99999974E-6 : f32
    %72 = vector.broadcast %cst_31 : f32 to vector<256x1xf32>
    %73 = arith.addf %69, %72 : vector<256x1xf32>
    %74 = math.rsqrt %73 : vector<256x1xf32>
    %75 = vector.broadcast %74 : vector<256x1xf32> to vector<256x128xf32>
    %76 = arith.mulf %71, %75 : vector<256x128xf32>
    %77 = vector.broadcast %0 : vector<1x128xf32> to vector<256x128xf32>
    %78 = arith.mulf %76, %77 : vector<256x128xf32>
    %79 = vector.broadcast %1 : vector<1x128xf32> to vector<256x128xf32>
    %80 = arith.addf %78, %79 : vector<256x128xf32>
    %81 = arith.truncf %80 : vector<256x128xf32> to vector<256x128xbf16>
    %cst_32 = arith.constant dense<0.000000e+00> : vector<256x256xf32>
    %82 = tpu.matmul %81, %8, %cst_32 {dimension_numbers = #tpu.dot_dimension_numbers<[1], [0], [0], [1], [0, 0, 1, 1], [], []>} : vector<256x128xbf16>, vector<128x256xbf16>, vector<256x256xf32> -> vector<256x256xf32>
    %83 = vector.broadcast %2 : vector<1x256xf32> to vector<256x256xf32>
    %84 = arith.addf %82, %83 : vector<256x256xf32>
    %85 = arith.mulf %84, %84 : vector<256x256xf32>
    %86 = arith.mulf %84, %85 : vector<256x256xf32>
    %cst_33 = arith.constant 4.471500e-02 : f32
    %87 = vector.broadcast %cst_33 : f32 to vector<256x256xf32>
    %88 = arith.mulf %87, %86 : vector<256x256xf32>
    %89 = arith.addf %84, %88 : vector<256x256xf32>
    %cst_34 = arith.constant 0.797884583 : f32
    %90 = vector.broadcast %cst_34 : f32 to vector<256x256xf32>
    %91 = arith.mulf %90, %89 : vector<256x256xf32>
    %92 = math.tanh %91 : vector<256x256xf32>
    %cst_35 = arith.constant 1.000000e+00 : f32
    %93 = vector.broadcast %cst_35 : f32 to vector<256x256xf32>
    %94 = arith.addf %93, %92 : vector<256x256xf32>
    %cst_36 = arith.constant 5.000000e-01 : f32
    %95 = vector.broadcast %cst_36 : f32 to vector<256x256xf32>
    %96 = arith.mulf %95, %94 : vector<256x256xf32>
    %97 = arith.mulf %84, %96 : vector<256x256xf32>
    %98 = arith.truncf %97 : vector<256x256xf32> to vector<256x256xbf16>
    %cst_37 = arith.constant dense<0.000000e+00> : vector<256x128xf32>
    %99 = tpu.matmul %98, %9, %cst_37 {dimension_numbers = #tpu.dot_dimension_numbers<[1], [0], [0], [1], [0, 0, 1, 1], [], []>} : vector<256x256xbf16>, vector<256x128xbf16>, vector<256x128xf32> -> vector<256x128xf32>
    %100 = arith.addf %56, %99 : vector<256x128xf32>
    %101 = vector.broadcast %3 : vector<1x128xf32> to vector<256x128xf32>
    %102 = arith.addf %100, %101 : vector<256x128xf32>
    %c0_38 = arith.constant 0 : index
    %c0_39 = arith.constant 0 : index
    %103 = vector.load %arg8[%c0_38, %c0_39] : memref<256x128xf32, #tpu.memory_space<vmem>>, vector<256x128xf32>
    tpu.vector_store %arg8[%c0_38, %c0_39], %102 {strides = array<i32>} : memref<256x128xf32, #tpu.memory_space<vmem>>, vector<256x128xf32>,
    return
  }
  func.func @transform_0(%arg0: i32) -> (i32, i32) {
    %c0_i32 = arith.constant 0 : i32
    %c0_i32_0 = arith.constant 0 : i32
    return %arg0, %c0_i32 : i32, i32
  }
  func.func @transform_1(%arg0: i32) -> (i32, i32) {
    %c0_i32 = arith.constant 0 : i32
    %c0_i32_0 = arith.constant 0 : i32
    %c0_i32_1 = arith.constant 0 : i32
    return %c0_i32, %c0_i32_0 : i32, i32
  }
  func.func @transform_2(%arg0: i32) -> (i32, i32) {
    %c0_i32 = arith.constant 0 : i32
    %c0_i32_0 = arith.constant 0 : i32
    %c0_i32_1 = arith.constant 0 : i32
    return %c0_i32, %c0_i32_0 : i32, i32
  }
  func.func @transform_3(%arg0: i32) -> (i32, i32) {
    %c0_i32 = arith.constant 0 : i32
    %c0_i32_0 = arith.constant 0 : i32
    %c0_i32_1 = arith.constant 0 : i32
    return %c0_i32, %c0_i32_0 : i32, i32
  }
  func.func @transform_4(%arg0: i32) -> (i32, i32) {
    %c0_i32 = arith.constant 0 : i32
    %c0_i32_0 = arith.constant 0 : i32
    %c0_i32_1 = arith.constant 0 : i32
    return %c0_i32, %c0_i32_0 : i32, i32
  }
  func.func @transform_5(%arg0: i32) -> (i32, i32) {
    %c0_i32 = arith.constant 0 : i32
    %c0_i32_0 = arith.constant 0 : i32
    %c0_i32_1 = arith.constant 0 : i32
    return %c0_i32, %c0_i32_0 : i32, i32
  }
  func.func @transform_6(%arg0: i32) -> (i32, i32) {
    %c0_i32 = arith.constant 0 : i32
    %c0_i32_0 = arith.constant 0 : i32
    %c0_i32_1 = arith.constant 0 : i32
    return %c0_i32, %c0_i32_0 : i32, i32
  }
  func.func @transform_7(%arg0: i32) -> (i32, i32) {
    %c0_i32 = arith.constant 0 : i32
    %c0_i32_0 = arith.constant 0 : i32
    return %arg0, %c0_i32 : i32, i32
  }
}

module attributes {stable_mosaic.version = 11 : i64} {
  func.func @mixer_kernel(%arg0: i32, %arg1: memref<256x128xf32, #tpu.memory_space<vmem>>, %arg2: memref<4x256xf32, #tpu.memory_space<vmem>>, %arg3: memref<512x1xf32, #tpu.memory_space<vmem>>, %arg4: memref<256x256xbf16, #tpu.memory_space<vmem>>, %arg5: memref<256x256xbf16, #tpu.memory_space<vmem>>, %arg6: memref<128x256xbf16, #tpu.memory_space<vmem>>, %arg7: memref<256x128xbf16, #tpu.memory_space<vmem>>, %arg8: memref<256x128xf32, #tpu.memory_space<vmem>>) attributes {dimension_semantics = [#tpu.dimension_semantics<parallel>], iteration_bounds = array<i64: 2>, scalar_prefetch = 0 : i64, scratch_operands = 0 : i64, tpu.core_type = #tpu.core_type<tc>, window_params = [{transform_indices = @transform_0, window_bounds = array<i64: 256, 128>}, {pipeline_mode = #tpu.pipeline_mode<synchronous>, transform_indices = @transform_1, window_bounds = array<i64: 4, 256>}, {pipeline_mode = #tpu.pipeline_mode<synchronous>, transform_indices = @transform_2, window_bounds = array<i64: 512, 1>}, {pipeline_mode = #tpu.pipeline_mode<synchronous>, transform_indices = @transform_3, window_bounds = array<i64: 256, 256>}, {pipeline_mode = #tpu.pipeline_mode<synchronous>, transform_indices = @transform_4, window_bounds = array<i64: 256, 256>}, {pipeline_mode = #tpu.pipeline_mode<synchronous>, transform_indices = @transform_5, window_bounds = array<i64: 128, 256>}, {pipeline_mode = #tpu.pipeline_mode<synchronous>, transform_indices = @transform_6, window_bounds = array<i64: 256, 128>}, {transform_indices = @transform_7, window_bounds = array<i64: 256, 128>}]} {
    %c0 = arith.constant 0 : index
    %c0_0 = arith.constant 0 : index
    %0 = vector.load %arg2[%c0, %c0_0] : memref<4x256xf32, #tpu.memory_space<vmem>>, vector<1x128xf32>
    %c1 = arith.constant 1 : index
    %c0_1 = arith.constant 0 : index
    %1 = vector.load %arg2[%c1, %c0_1] : memref<4x256xf32, #tpu.memory_space<vmem>>, vector<1x128xf32>
    %c2 = arith.constant 2 : index
    %c0_2 = arith.constant 0 : index
    %2 = vector.load %arg2[%c2, %c0_2] : memref<4x256xf32, #tpu.memory_space<vmem>>, vector<1x256xf32>
    %c3 = arith.constant 3 : index
    %c0_3 = arith.constant 0 : index
    %3 = vector.load %arg2[%c3, %c0_3] : memref<4x256xf32, #tpu.memory_space<vmem>>, vector<1x128xf32>
    %c0_4 = arith.constant 0 : index
    %c0_5 = arith.constant 0 : index
    %4 = vector.load %arg3[%c0_4, %c0_5] : memref<512x1xf32, #tpu.memory_space<vmem>>, vector<256x1xf32>
    %c256 = arith.constant 256 : index
    %c0_6 = arith.constant 0 : index
    %5 = vector.load %arg3[%c256, %c0_6] : memref<512x1xf32, #tpu.memory_space<vmem>>, vector<256x1xf32>
    %c0_7 = arith.constant 0 : index
    %c0_8 = arith.constant 0 : index
    %6 = vector.load %arg4[%c0_7, %c0_8] : memref<256x256xbf16, #tpu.memory_space<vmem>>, vector<256x256xbf16>
    %c0_9 = arith.constant 0 : index
    %c0_10 = arith.constant 0 : index
    %7 = vector.load %arg5[%c0_9, %c0_10] : memref<256x256xbf16, #tpu.memory_space<vmem>>, vector<256x256xbf16>
    %c0_11 = arith.constant 0 : index
    %c0_12 = arith.constant 0 : index
    %8 = vector.load %arg6[%c0_11, %c0_12] : memref<128x256xbf16, #tpu.memory_space<vmem>>, vector<128x256xbf16>
    %c0_13 = arith.constant 0 : index
    %c0_14 = arith.constant 0 : index
    %9 = vector.load %arg7[%c0_13, %c0_14] : memref<256x128xbf16, #tpu.memory_space<vmem>>, vector<256x128xbf16>
    %c0_15 = arith.constant 0 : index
    %c0_16 = arith.constant 0 : index
    %10 = vector.load %arg1[%c0_15, %c0_16] : memref<256x128xf32, #tpu.memory_space<vmem>>, vector<256x128xf32>
    %cst = arith.constant dense<0.000000e+00> : vector<256xf32>
    %11 = vector.multi_reduction <add>, %10, %cst [1] : vector<256x128xf32> to vector<256xf32>
    %12 = vector.shape_cast %11 : vector<256xf32> to vector<256x1xf32>
    %cst_17 = arith.constant 1.280000e+02 : f32
    %13 = vector.broadcast %cst_17 : f32 to vector<256x1xf32>
    %14 = arith.divf %12, %13 : vector<256x1xf32>
    %15 = vector.broadcast %14 : vector<256x1xf32> to vector<256x128xf32>
    %16 = arith.subf %10, %15 : vector<256x128xf32>
    %17 = vector.broadcast %14 : vector<256x1xf32> to vector<256x128xf32>
    %18 = arith.subf %10, %17 : vector<256x128xf32>
    %19 = arith.mulf %16, %18 : vector<256x128xf32>
    %cst_18 = arith.constant dense<0.000000e+00> : vector<256xf32>
    %20 = vector.multi_reduction <add>, %19, %cst_18 [1] : vector<256x128xf32> to vector<256xf32>
    %21 = vector.shape_cast %20 : vector<256xf32> to vector<256x1xf32>
    %cst_19 = arith.constant 1.280000e+02 : f32
    %22 = vector.broadcast %cst_19 : f32 to vector<256x1xf32>
    %23 = arith.divf %21, %22 : vector<256x1xf32>
    %24 = vector.broadcast %14 : vector<256x1xf32> to vector<256x128xf32>
    %25 = arith.subf %10, %24 : vector<256x128xf32>
    %cst_20 = arith.constant 9.99999974E-6 : f32
    %26 = vector.broadcast %cst_20 : f32 to vector<256x1xf32>
    %27 = arith.addf %23, %26 : vector<256x1xf32>
    %28 = math.rsqrt %27 : vector<256x1xf32>
    %29 = vector.broadcast %28 : vector<256x1xf32> to vector<256x128xf32>
    %30 = arith.mulf %25, %29 : vector<256x128xf32>
    %31 = vector.broadcast %0 : vector<1x128xf32> to vector<256x128xf32>
    %32 = arith.mulf %30, %31 : vector<256x128xf32>
    %33 = vector.broadcast %1 : vector<1x128xf32> to vector<256x128xf32>
    %34 = arith.addf %32, %33 : vector<256x128xf32>
    %35 = arith.truncf %34 : vector<256x128xf32> to vector<256x128xbf16>
    %cst_21 = arith.constant dense<0.000000e+00> : vector<256x128xf32>
    %36 = tpu.matmul %6, %35, %cst_21 {dimension_numbers = #tpu.dot_dimension_numbers<[1], [0], [0], [1], [0, 0, 1, 1], [], []>} : vector<256x256xbf16>, vector<256x128xbf16>, vector<256x128xf32> -> vector<256x128xf32>
    %37 = vector.broadcast %4 : vector<256x1xf32> to vector<256x128xf32>
    %38 = arith.addf %36, %37 : vector<256x128xf32>
    %39 = arith.mulf %38, %38 : vector<256x128xf32>
    %40 = arith.mulf %38, %39 : vector<256x128xf32>
    %cst_22 = arith.constant 4.471500e-02 : f32
    %41 = vector.broadcast %cst_22 : f32 to vector<256x128xf32>
    %42 = arith.mulf %41, %40 : vector<256x128xf32>
    %43 = arith.addf %38, %42 : vector<256x128xf32>
    %cst_23 = arith.constant 0.797884583 : f32
    %44 = vector.broadcast %cst_23 : f32 to vector<256x128xf32>
    %45 = arith.mulf %44, %43 : vector<256x128xf32>
    %46 = math.tanh %45 : vector<256x128xf32>
    %cst_24 = arith.constant 1.000000e+00 : f32
    %47 = vector.broadcast %cst_24 : f32 to vector<256x128xf32>
    %48 = arith.addf %47, %46 : vector<256x128xf32>
    %cst_25 = arith.constant 5.000000e-01 : f32
    %49 = vector.broadcast %cst_25 : f32 to vector<256x128xf32>
    %50 = arith.mulf %49, %48 : vector<256x128xf32>
    %51 = arith.mulf %38, %50 : vector<256x128xf32>
    %52 = arith.truncf %51 : vector<256x128xf32> to vector<256x128xbf16>
    %cst_26 = arith.constant dense<0.000000e+00> : vector<256x128xf32>
    %53 = tpu.matmul %7, %52, %cst_26 {dimension_numbers = #tpu.dot_dimension_numbers<[1], [0], [0], [1], [0, 0, 1, 1], [], []>} : vector<256x256xbf16>, vector<256x128xbf16>, vector<256x128xf32> -> vector<256x128xf32>
    %54 = arith.addf %10, %53 : vector<256x128xf32>
    %55 = vector.broadcast %5 : vector<256x1xf32> to vector<256x128xf32>
    %56 = arith.addf %54, %55 : vector<256x128xf32>
    %cst_27 = arith.constant dense<0.000000e+00> : vector<256xf32>
    %57 = vector.multi_reduction <add>, %56, %cst_27 [1] : vector<256x128xf32> to vector<256xf32>
    %58 = vector.shape_cast %57 : vector<256xf32> to vector<256x1xf32>
    %cst_28 = arith.constant 1.280000e+02 : f32
    %59 = vector.broadcast %cst_28 : f32 to vector<256x1xf32>
    %60 = arith.divf %58, %59 : vector<256x1xf32>
    %61 = vector.broadcast %60 : vector<256x1xf32> to vector<256x128xf32>
    %62 = arith.subf %56, %61 : vector<256x128xf32>
    %63 = vector.broadcast %60 : vector<256x1xf32> to vector<256x128xf32>
    %64 = arith.subf %56, %63 : vector<256x128xf32>
    %65 = arith.mulf %62, %64 : vector<256x128xf32>
    %cst_29 = arith.constant dense<0.000000e+00> : vector<256xf32>
    %66 = vector.multi_reduction <add>, %65, %cst_29 [1] : vector<256x128xf32> to vector<256xf32>
    %67 = vector.shape_cast %66 : vector<256xf32> to vector<256x1xf32>
    %cst_30 = arith.constant 1.280000e+02 : f32
    %68 = vector.broadcast %cst_30 : f32 to vector<256x1xf32>
    %69 = arith.divf %67, %68 : vector<256x1xf32>
    %70 = vector.broadcast %60 : vector<256x1xf32> to vector<256x128xf32>
    %71 = arith.subf %56, %70 : vector<256x128xf32>
    %cst_31 = arith.constant 9.99999974E-6 : f32
    %72 = vector.broadcast %cst_31 : f32 to vector<256x1xf32>
    %73 = arith.addf %69, %72 : vector<256x1xf32>
    %74 = math.rsqrt %73 : vector<256x1xf32>
    %75 = vector.broadcast %74 : vector<256x1xf32> to vector<256x128xf32>
    %76 = arith.mulf %71, %75 : vector<256x128xf32>
    %77 = vector.broadcast %0 : vector<1x128xf32> to vector<256x128xf32>
    %78 = arith.mulf %76, %77 : vector<256x128xf32>
    %79 = vector.broadcast %1 : vector<1x128xf32> to vector<256x128xf32>
    %80 = arith.addf %78, %79 : vector<256x128xf32>
    %81 = arith.truncf %80 : vector<256x128xf32> to vector<256x128xbf16>
    %cst_32 = arith.constant dense<0.000000e+00> : vector<256x256xf32>
    %82 = tpu.matmul %81, %8, %cst_32 {dimension_numbers = #tpu.dot_dimension_numbers<[1], [0], [0], [1], [0, 0, 1, 1], [], []>} : vector<256x128xbf16>, vector<128x256xbf16>, vector<256x256xf32> -> vector<256x256xf32>
    %83 = vector.broadcast %2 : vector<1x256xf32> to vector<256x256xf32>
    %84 = arith.addf %82, %83 : vector<256x256xf32>
    %85 = arith.mulf %84, %84 : vector<256x256xf32>
    %86 = arith.mulf %84, %85 : vector<256x256xf32>
    %cst_33 = arith.constant 4.471500e-02 : f32
    %87 = vector.broadcast %cst_33 : f32 to vector<256x256xf32>
    %88 = arith.mulf %87, %86 : vector<256x256xf32>
    %89 = arith.addf %84, %88 : vector<256x256xf32>
    %cst_34 = arith.constant 0.797884583 : f32
    %90 = vector.broadcast %cst_34 : f32 to vector<256x256xf32>
    %91 = arith.mulf %90, %89 : vector<256x256xf32>
    %92 = math.tanh %91 : vector<256x256xf32>
    %cst_35 = arith.constant 1.000000e+00 : f32
    %93 = vector.broadcast %cst_35 : f32 to vector<256x256xf32>
    %94 = arith.addf %93, %92 : vector<256x256xf32>
    %cst_36 = arith.constant 5.000000e-01 : f32
    %95 = vector.broadcast %cst_36 : f32 to vector<256x256xf32>
    %96 = arith.mulf %95, %94 : vector<256x256xf32>
    %97 = arith.mulf %84, %96 : vector<256x256xf32>
    %98 = arith.truncf %97 : vector<256x256xf32> to vector<256x256xbf16>
    %cst_37 = arith.constant dense<0.000000e+00> : vector<256x128xf32>
    %99 = tpu.matmul %98, %9, %cst_37 {dimension_numbers = #tpu.dot_dimension_numbers<[1], [0], [0], [1], [0, 0, 1, 1], [], []>} : vector<256x256xbf16>, vector<256x128xbf16>, vector<256x128xf32> -> vector<256x128xf32>
    %100 = arith.addf %56, %99 : vector<256x128xf32>
    %101 = vector.broadcast %3 : vector<1x128xf32> to vector<256x128xf32>
    %102 = arith.addf %100, %101 : vector<256x128xf32>
    %c0_38 = arith.constant 0 : index
    %c0_39 = arith.constant 0 : index
    %103 = vector.load %arg8[%c0_38, %c0_39] : memref<256x128xf32, #tpu.memory_space<vmem>>, vector<256x128xf32>
    tpu.vector_store %arg8[%c0_38, %c0_39], %102 {strides = array<i32>} : memref<256x128xf32, #tpu.memory_space<vmem>>, vector<256x128xf32>,
    return
  }
  func.func @transform_0(%arg0: i32) -> (i32, i32) {
    %c0_i32 = arith.constant 0 : i32
    %c0_i32_0 = arith.constant 0 : i32
    return %arg0, %c0_i32 : i32, i32
  }
  func.func @transform_1(%arg0: i32) -> (i32, i32) {
    %c0_i32 = arith.constant 0 : i32
    %c0_i32_0 = arith.constant 0 : i32
    %c0_i32_1 = arith.constant 0 : i32
    return %c0_i32, %c0_i32_0 : i32, i32
  }
  func.func @transform_2(%arg0: i32) -> (i32, i32) {
    %c0_i32 = arith.constant 0 : i32
    %c0_i32_0 = arith.constant 0 : i32
    %c0_i32_1 = arith.constant 0 : i32
    return %c0_i32, %c0_i32_0 : i32, i32
  }
  func.func @transform_3(%arg0: i32) -> (i32, i32) {
    %c0_i32 = arith.constant 0 : i32
    %c0_i32_0 = arith.constant 0 : i32
    %c0_i32_1 = arith.constant 0 : i32
    return %c0_i32, %c0_i32_0 : i32, i32
  }
  func.func @transform_4(%arg0: i32) -> (i32, i32) {
    %c0_i32 = arith.constant 0 : i32
    %c0_i32_0 = arith.constant 0 : i32
    %c0_i32_1 = arith.constant 0 : i32
    return %c0_i32, %c0_i32_0 : i32, i32
  }
  func.func @transform_5(%arg0: i32) -> (i32, i32) {
    %c0_i32 = arith.constant 0 : i32
    %c0_i32_0 = arith.constant 0 : i32
    %c0_i32_1 = arith.constant 0 : i32
    return %c0_i32, %c0_i32_0 : i32, i32
  }
  func.func @transform_6(%arg0: i32) -> (i32, i32) {
    %c0_i32 = arith.constant 0 : i32
    %c0_i32_0 = arith.constant 0 : i32
    %c0_i32_1 = arith.constant 0 : i32
    return %c0_i32, %c0_i32_0 : i32, i32
  }
  func.func @transform_7(%arg0: i32) -> (i32, i32) {
    %c0_i32 = arith.constant 0 : i32
    %c0_i32_0 = arith.constant 0 : i32
    return %arg0, %c0_i32 : i32, i32
  }
}

</mosaic_0001>

<llo_original>
// kernel: tpu_custom_call.1
$region0: #{tpu_custom_call.1}
  #allocation0 [shape = 'u32[]', space=smem, size = 0x4, offset = 0x4, fixed_abs, tag = 'smem constant byte address 0x4 - core index']
  #allocation1 [shape = 'u32[72,128]{1,0:T(1,128)}', space=vmem, size = 0x9000, scoped, tag = 'internal scratch']
  %s0 = inlined_call_operand.vmem [shape: f32[512,128], index: 0, kind: input, shape index: {}]
  %s1 = inlined_call_operand.hbm [shape: f32[4,256], index: 1, kind: input, shape index: {}]
  %s2 = inlined_call_operand.vmem [shape: f32[512,1], index: 2, kind: input, shape index: {}]
  %s3 = inlined_call_operand.hbm [shape: bf16[256,256], index: 3, kind: input, shape index: {}]
  %s4 = inlined_call_operand.hbm [shape: bf16[256,256], index: 4, kind: input, shape index: {}]
  %s5 = inlined_call_operand.hbm [shape: bf16[128,256], index: 5, kind: input, shape index: {}]
  %s6 = inlined_call_operand.hbm [shape: bf16[256,128], index: 6, kind: input, shape index: {}]
  %s7 = inlined_call_operand.hbm [shape: f32[512,128], index: 7, kind: output, shape index: {}]
  %s8 = sld [smem:[#allocation0]]
  $region81: #{tpu_custom_call.1} parent=0
    _
  %s10 = ssub.s32 1, %s8
  %s11 = scalar_select 0, %s10, %s8
  $region1: #{tpu_custom_call.1} parent=0
    #allocation2 [shape = 'u8[4096]{0}', space=vmem, size = 0x1000, scoped, tag = 'input window, operand 1, single buffered']
    #allocation3 [shape = 's32[2]{0}', space=sflag, size = 0x8, scoped, tag = 'scoped memory for tpu_custom_call.1']
    #allocation4 [shape = 's32[2]{0}', space=sflag, size = 0x8, scoped, tag = 'scoped memory for tpu_custom_call.1']
    #allocation5 [shape = 'u8[131072]{0}', space=vmem, size = 0x20000, scoped, tag = 'input window, operand 3, single buffered']
    #allocation6 [shape = 's32[1]{0}', space=sflag, size = 0x4, scoped, tag = 'scoped memory for tpu_custom_call.1']
    #allocation7 [shape = 'u8[131072]{0}', space=vmem, size = 0x20000, scoped, tag = 'input window, operand 4, single buffered']
    #allocation8 [shape = 'u8[65536]{0}', space=vmem, size = 0x10000, scoped, tag = 'input window, operand 5, single buffered']
    #allocation9 [shape = 's32[1]{0}', space=sflag, size = 0x4, scoped, tag = 'scoped memory for tpu_custom_call.1']
    #allocation10 [shape = 'u8[65536]{0}', space=vmem, size = 0x10000, scoped, tag = 'input window, operand 6, single buffered']
    #allocation11 [shape = 'u8[262144]{0}', space=vmem, size = 0x40000, scoped, tag = 'output window, operand 0']
    %12 = vsyncpa [#allocation3], 0
    %13 = vsyncpa [#allocation6], 0
    %14 = vsyncpa [#allocation9], 0
    %15 = vsyncpa [#allocation4], 0
    %s16 = scalar_lea.sflag [#allocation4], 1
    %17 = vsyncpa %s16, 0
    loop: start=0, step=1, limit=4
    $region2: #{tpu_custom_call.1} parent=1 // loop_pre_header
      _
    $region3: #{tpu_custom_call.1} parent=1 // loop_header
      %s19 = sphi 0, %s23
      %p20 = scmp.ge.s32.totalorder %s19, 4
      %s29 = sphi 0, %s31
      %s32 = sphi 0, %s29
      %s33 = sphi 0, %s32
      %s49 = sphi 0, %s33
      %s53 = sphi 0, %s53
      %s55 = sphi 0, %s53
      %s56 = sphi 0, %s55
      %s70 = sphi 0, %s56
      %s74 = sphi 0, %s74
      %s76 = sphi 0, %s74
      %s77 = sphi 0, %s76
      %s91 = sphi 0, %s77
      %s95 = sphi 0, %s95
      %s97 = sphi 0, %s95
      %s98 = sphi 0, %s97
      %s112 = sphi 0, %s98
      %s116 = sphi 0, %s116
      %s118 = sphi 0, %s116
      %s119 = sphi 0, %s118
      %s133 = sphi 0, %s119
      %s137 = sphi 0, %s137
      %s139 = sphi 0, %s137
      %s140 = sphi 0, %s139
      %s154 = sphi 0, %s140
      %s158 = sphi 0, %s158
      %s160 = sphi 0, %s158
      %s161 = sphi 0, %s160
      %s175 = sphi 0, %s161
      %s181 = sphi 0, %s183
      %s184 = sphi 0, %s181
      %s185 = sphi 0, %s184
      %s201 = sphi 0, %s185
    $region4: #{tpu_custom_call.1} parent=1 // loop_header_branch
      %22 = sbr.rel (%p20) target = $region8
    $region5: #{tpu_custom_call.1} parent=1 // loop_body
      %s24 = ssub.s32 %s19, 1
      %s25 = ssub.s32 %s19, 2
      %s26 = sadd.s32 %s19, 1
      %s27 = ssub.s32 %s19, %s26
      %p28 = scmp.eq.s32.totalorder %s27, 0
      %s30 = sadd.s32 %s29, 1
      %s31 = scalar_select %p28, %s29, %s30
      %p34 = pneg %p28
      %p35 = scmp.eq.s32.totalorder %s19, 1
      %p36 = por %p34, %p35
      %p37 = scmp.ne.s32.totalorder %s29, %s32
      %p38 = scmp.eq.s32.totalorder %s19, 0
      %p39 = por %p37, %p38
      %p40 = scmp.ne.s32.totalorder %s29, %s32
      %p41 = scmp.eq.s32.totalorder %s24, 1
      %p42 = por %p40, %p41
      %p43 = scmp.ne.s32.totalorder %s32, %s33
      %p44 = scmp.eq.s32.totalorder %s24, 0
      %p45 = por %p43, %p44
      %p46 = scmp.ne.s32.totalorder %s32, %s33
      %p47 = scmp.eq.s32.totalorder %s25, 1
      %p48 = por %p46, %p47
      %p50 = scmp.ne.s32.totalorder %s33, %s49
      %p51 = scmp.eq.s32.totalorder %s25, 0
      %p52 = por %p50, %p51
      %s54 = sadd.s32 %s53, 1
      %p57 = scmp.eq.s32.totalorder %s19, 1
      %p58 = scmp.ne.s32.totalorder %s53, %s55
      %p59 = scmp.eq.s32.totalorder %s19, 0
      %p60 = por %p58, %p59
      %p61 = scmp.ne.s32.totalorder %s53, %s55
      %p62 = scmp.eq.s32.totalorder %s24, 1
      %p63 = por %p61, %p62
      %p64 = scmp.ne.s32.totalorder %s55, %s56
      %p65 = scmp.eq.s32.totalorder %s24, 0
      %p66 = por %p64, %p65
      %p67 = scmp.ne.s32.totalorder %s55, %s56
      %p68 = scmp.eq.s32.totalorder %s25, 1
      %p69 = por %p67, %p68
      %p71 = scmp.ne.s32.totalorder %s56, %s70
      %p72 = scmp.eq.s32.totalorder %s25, 0
      %p73 = por %p71, %p72
      %s75 = sadd.s32 %s74, 1
      %p78 = scmp.eq.s32.totalorder %s19, 1
      %p79 = scmp.ne.s32.totalorder %s74, %s76
      %p80 = scmp.eq.s32.totalorder %s19, 0
      %p81 = por %p79, %p80
      %p82 = scmp.ne.s32.totalorder %s74, %s76
      %p83 = scmp.eq.s32.totalorder %s24, 1
      %p84 = por %p82, %p83
      %p85 = scmp.ne.s32.totalorder %s76, %s77
      %p86 = scmp.eq.s32.totalorder %s24, 0
      %p87 = por %p85, %p86
      %p88 = scmp.ne.s32.totalorder %s76, %s77
      %p89 = scmp.eq.s32.totalorder %s25, 1
      %p90 = por %p88, %p89
      %p92 = scmp.ne.s32.totalorder %s77, %s91
      %p93 = scmp.eq.s32.totalorder %s25, 0
      %p94 = por %p92, %p93
      %s96 = sadd.s32 %s95, 1
      %p99 = scmp.eq.s32.totalorder %s19, 1
      %p100 = scmp.ne.s32.totalorder %s95, %s97
      %p101 = scmp.eq.s32.totalorder %s19, 0
      %p102 = por %p100, %p101
      %p103 = scmp.ne.s32.totalorder %s95, %s97
      %p104 = scmp.eq.s32.totalorder %s24, 1
      %p105 = por %p103, %p104
      %p106 = scmp.ne.s32.totalorder %s97, %s98
      %p107 = scmp.eq.s32.totalorder %s24, 0
      %p108 = por %p106, %p107
      %p109 = scmp.ne.s32.totalorder %s97, %s98
      %p110 = scmp.eq.s32.totalorder %s25, 1
      %p111 = por %p109, %p110
      %p113 = scmp.ne.s32.totalorder %s98, %s112
      %p114 = scmp.eq.s32.totalorder %s25, 0
      %p115 = por %p113, %p114
      %s117 = sadd.s32 %s116, 1
      %p120 = scmp.eq.s32.totalorder %s19, 1
      %p121 = scmp.ne.s32.totalorder %s116, %s118
      %p122 = scmp.eq.s32.totalorder %s19, 0
      %p123 = por %p121, %p122
      %p124 = scmp.ne.s32.totalorder %s116, %s118
      %p125 = scmp.eq.s32.totalorder %s24, 1
      %p126 = por %p124, %p125
      %p127 = scmp.ne.s32.totalorder %s118, %s119
      %p128 = scmp.eq.s32.totalorder %s24, 0
      %p129 = por %p127, %p128
      %p130 = scmp.ne.s32.totalorder %s118, %s119
      %p131 = scmp.eq.s32.totalorder %s25, 1
      %p132 = por %p130, %p131
      %p134 = scmp.ne.s32.totalorder %s119, %s133
      %p135 = scmp.eq.s32.totalorder %s25, 0
      %p136 = por %p134, %p135
      %s138 = sadd.s32 %s137, 1
      %p141 = scmp.eq.s32.totalorder %s19, 1
      %p142 = scmp.ne.s32.totalorder %s137, %s139
      %p143 = scmp.eq.s32.totalorder %s19, 0
      %p144 = por %p142, %p143
      %p145 = scmp.ne.s32.totalorder %s137, %s139
      %p146 = scmp.eq.s32.totalorder %s24, 1
      %p147 = por %p145, %p146
      %p148 = scmp.ne.s32.totalorder %s139, %s140
      %p149 = scmp.eq.s32.totalorder %s24, 0
      %p150 = por %p148, %p149
      %p151 = scmp.ne.s32.totalorder %s139, %s140
      %p152 = scmp.eq.s32.totalorder %s25, 1
      %p153 = por %p151, %p152
      %p155 = scmp.ne.s32.totalorder %s140, %s154
      %p156 = scmp.eq.s32.totalorder %s25, 0
      %p157 = por %p155, %p156
      %s159 = sadd.s32 %s158, 1
      %p162 = scmp.eq.s32.totalorder %s19, 1
      %p163 = scmp.ne.s32.totalorder %s158, %s160
      %p164 = scmp.eq.s32.totalorder %s19, 0
      %p165 = por %p163, %p164
      %p166 = scmp.ne.s32.totalorder %s158, %s160
      %p167 = scmp.eq.s32.totalorder %s24, 1
      %p168 = por %p166, %p167
      %p169 = scmp.ne.s32.totalorder %s160, %s161
      %p170 = scmp.eq.s32.totalorder %s24, 0
      %p171 = por %p169, %p170
      %p172 = scmp.ne.s32.totalorder %s160, %s161
      %p173 = scmp.eq.s32.totalorder %s25, 1
      %p174 = por %p172, %p173
      %p176 = scmp.ne.s32.totalorder %s161, %s175
      %p177 = scmp.eq.s32.totalorder %s25, 0
      %p178 = por %p176, %p177
      %s179 = ssub.s32 %s19, %s26
      %p180 = scmp.eq.s32.totalorder %s179, 0
      %s182 = sadd.s32 %s181, 1
      %s183 = scalar_select %p180, %s181, %s182
      %p186 = pneg %p180
      %p187 = scmp.eq.s32.totalorder %s19, 1
      %p188 = por %p186, %p187
      %p189 = scmp.ne.s32.totalorder %s181, %s184
      %p190 = scmp.eq.s32.totalorder %s19, 0
      %p191 = por %p189, %p190
      %p192 = scmp.ne.s32.totalorder %s181, %s184
      %p193 = scmp.eq.s32.totalorder %s24, 1
      %p194 = por %p192, %p193
      %p195 = scmp.ne.s32.totalorder %s184, %s185
      %p196 = scmp.eq.s32.totalorder %s24, 0
      %p197 = por %p195, %p196
      %p198 = scmp.ne.s32.totalorder %s184, %s185
      %p199 = scmp.eq.s32.totalorder %s25, 1
      %p200 = por %p198, %p199
      %p202 = scmp.ne.s32.totalorder %s185, %s201
      %p203 = scmp.eq.s32.totalorder %s25, 0
      %p204 = por %p202, %p203
      %p205 = scmp.le.s32.totalorder 1, %s19
      %p206 = scmp.lt.s32.totalorder %s19, 3
      %p207 = pnand %p205, %p206
      %p208 = pneg %p207
      // Predicated region
      $region9: #{tpu_custom_call.1} parent=5 // pred_check
        _
      $region10: #{tpu_custom_call.1} parent=5 // pred_check_branch
        %210 = sbr.rel (%p207) target = $region12
      $region11: #{tpu_custom_call.1} parent=5 // pred_region
        %s211 = ssub.s32 %s19, 1
        // Predicated region
        $region13: #{tpu_custom_call.1} parent=11 // pred_check
          %p212 = pneg %p66
        $region14: #{tpu_custom_call.1} parent=11 // pred_check_branch
          %214 = sbr.rel (%p212) target = $region16
        $region15: #{tpu_custom_call.1} parent=11 // pred_region
          %216 = vsyncadd [#allocation3], 0
          %s218 = sshll.u32 %s1, 4
          %s219 = int_to_ptr.hbm [resolvable:$true] %s218
          %s220 = sshll.u32 [#allocation2], 4
          %s221 = int_to_ptr.vmem [resolvable:$true] %s220
          %223 = dma.hbm_to_vmem [thread:$0]  %s219, 128, %s221, [#allocation3]
        $region16: #{tpu_custom_call.1} parent=11 // pred_fallthru
          _
        // Predicated region
        $region17: #{tpu_custom_call.1} parent=11 // pred_check
          %p224 = pneg %p87
        $region18: #{tpu_custom_call.1} parent=11 // pred_check_branch
          %226 = sbr.rel (%p224) target = $region20
        $region19: #{tpu_custom_call.1} parent=11 // pred_region
          _
        $region20: #{tpu_custom_call.1} parent=11 // pred_fallthru
          _
        // Predicated region
        $region21: #{tpu_custom_call.1} parent=11 // pred_check
          %p227 = pneg %p108
        $region22: #{tpu_custom_call.1} parent=11 // pred_check_branch
          %229 = sbr.rel (%p227) target = $region24
        $region23: #{tpu_custom_call.1} parent=11 // pred_region
          %231 = vsyncadd [#allocation6], 0
          %s232 = sshll.u32 %s3, 4
          %s233 = int_to_ptr.hbm [resolvable:$true] %s232
          %s234 = sshll.u32 [#allocation5], 4
          %s235 = int_to_ptr.vmem [resolvable:$true] %s234
          %240 = dma.hbm_to_vmem [thread:$0]  %s233, 4096, %s235, [#allocation6], 128, 128, 8
        $region24: #{tpu_custom_call.1} parent=11 // pred_fallthru
          _
        // Predicated region
        $region25: #{tpu_custom_call.1} parent=11 // pred_check
          %p241 = pneg %p129
        $region26: #{tpu_custom_call.1} parent=11 // pred_check_branch
          %243 = sbr.rel (%p241) target = $region28
        $region27: #{tpu_custom_call.1} parent=11 // pred_region
          %245 = vsyncadd [#allocation6], 0
          %s246 = sshll.u32 %s4, 4
          %s247 = int_to_ptr.hbm [resolvable:$true] %s246
          %s248 = sshll.u32 [#allocation7], 4
          %s249 = int_to_ptr.vmem [resolvable:$true] %s248
          %254 = dma.hbm_to_vmem [thread:$0]  %s247, 4096, %s249, [#allocation6], 128, 128, 8
        $region28: #{tpu_custom_call.1} parent=11 // pred_fallthru
          _
        // Predicated region
        $region29: #{tpu_custom_call.1} parent=11 // pred_check
          %p255 = pneg %p150
        $region30: #{tpu_custom_call.1} parent=11 // pred_check_branch
          %257 = sbr.rel (%p255) target = $region32
        $region31: #{tpu_custom_call.1} parent=11 // pred_region
          %259 = vsyncadd [#allocation9], 0
          %s260 = sshll.u32 %s5, 4
          %s261 = int_to_ptr.hbm [resolvable:$true] %s260
          %s262 = sshll.u32 [#allocation8], 4
          %s263 = int_to_ptr.vmem [resolvable:$true] %s262
          %268 = dma.hbm_to_vmem [thread:$0]  %s261, 2048, %s263, [#allocation9], 128, 128, 8
        $region32: #{tpu_custom_call.1} parent=11 // pred_fallthru
          _
        // Predicated region
        $region33: #{tpu_custom_call.1} parent=11 // pred_check
          %p269 = pneg %p171
        $region34: #{tpu_custom_call.1} parent=11 // pred_check_branch
          %271 = sbr.rel (%p269) target = $region36
        $region35: #{tpu_custom_call.1} parent=11 // pred_region
          %273 = vsyncadd [#allocation9], 0
          %s274 = sshll.u32 %s6, 4
          %s275 = int_to_ptr.hbm [resolvable:$true] %s274
          %s276 = sshll.u32 [#allocation10], 4
          %s277 = int_to_ptr.vmem [resolvable:$true] %s276
          %282 = dma.hbm_to_vmem [thread:$0]  %s275, 2048, %s277, [#allocation9], 64, 64, 4
        $region36: #{tpu_custom_call.1} parent=11 // pred_fallthru
          _
      $region12: #{tpu_custom_call.1} parent=5 // pred_fallthru
        _
      %p283 = scmp.lt.s32.totalorder %s19, 2
      // Predicated region
      $region37: #{tpu_custom_call.1} parent=5 // pred_check
        %p284 = pneg %p283
      $region38: #{tpu_custom_call.1} parent=5 // pred_check_branch
        %286 = sbr.rel (%p284) target = $region40
      $region39: #{tpu_custom_call.1} parent=5 // pred_region
        // Predicated region
        $region41: #{tpu_custom_call.1} parent=39 // pred_check
          %p287 = pneg %p39
        $region42: #{tpu_custom_call.1} parent=39 // pred_check_branch
          %289 = sbr.rel (%p287) target = $region44
        $region43: #{tpu_custom_call.1} parent=39 // pred_region
          %s290 = smul.u32 32, %s19
          %p291 = scmp.lt.s32.totalorder %s290, 63
          %s292 = scalar_select %p291, %s290, 63
          %s293 = smul.addr %s292, 8
          %s294 = scalar_lea.vmem %s0, %s293
          %s295 = smul.u32 32, %s19
        $region44: #{tpu_custom_call.1} parent=39 // pred_fallthru
          _
      $region40: #{tpu_custom_call.1} parent=5 // pred_fallthru
        _
      %p296 = scmp.le.s32.totalorder 1, %s19
      %p297 = scmp.lt.s32.totalorder %s19, 3
      %p298 = pnand %p296, %p297
      %p299 = pneg %p298
      // Predicated region
      $region45: #{tpu_custom_call.1} parent=5 // pred_check
        _
      $region46: #{tpu_custom_call.1} parent=5 // pred_check_branch
        %301 = sbr.rel (%p298) target = $region48
      $region47: #{tpu_custom_call.1} parent=5 // pred_region
        %s302 = ssub.s32 %s19, 1
        // Predicated region
        $region49: #{tpu_custom_call.1} parent=47 // pred_check
          %p303 = pneg %p66
        $region50: #{tpu_custom_call.1} parent=47 // pred_check_branch
          %305 = sbr.rel (%p303) target = $region52
        $region51: #{tpu_custom_call.1} parent=47 // pred_region
          %307 = dma.done [#allocation3], 128
        $region52: #{tpu_custom_call.1} parent=47 // pred_fallthru
          _
        // Predicated region
        $region53: #{tpu_custom_call.1} parent=47 // pred_check
          %p308 = pneg %p108
        $region54: #{tpu_custom_call.1} parent=47 // pred_check_branch
          %310 = sbr.rel (%p308) target = $region56
        $region55: #{tpu_custom_call.1} parent=47 // pred_region
          %312 = dma.done [#allocation6], 4096
        $region56: #{tpu_custom_call.1} parent=47 // pred_fallthru
          _
        // Predicated region
        $region57: #{tpu_custom_call.1} parent=47 // pred_check
          %p313 = pneg %p129
        $region58: #{tpu_custom_call.1} parent=47 // pred_check_branch
          %315 = sbr.rel (%p313) target = $region60
        $region59: #{tpu_custom_call.1} parent=47 // pred_region
          %317 = dma.done [#allocation6], 4096
        $region60: #{tpu_custom_call.1} parent=47 // pred_fallthru
          _
        // Predicated region
        $region61: #{tpu_custom_call.1} parent=47 // pred_check
          %p318 = pneg %p150
        $region62: #{tpu_custom_call.1} parent=47 // pred_check_branch
          %320 = sbr.rel (%p318) target = $region64
        $region63: #{tpu_custom_call.1} parent=47 // pred_region
          %322 = dma.done [#allocation9], 2048
        $region64: #{tpu_custom_call.1} parent=47 // pred_fallthru
          _
        // Predicated region
        $region65: #{tpu_custom_call.1} parent=47 // pred_check
          %p323 = pneg %p171
        $region66: #{tpu_custom_call.1} parent=47 // pred_check_branch
          %325 = sbr.rel (%p323) target = $region68
        $region67: #{tpu_custom_call.1} parent=47 // pred_region
          %327 = dma.done [#allocation9], 2048
        $region68: #{tpu_custom_call.1} parent=47 // pred_fallthru
          _
        %s328 = smul.u32 32, %s24
        %p329 = scmp.lt.s32.totalorder %s328, 63
        %s330 = scalar_select %p329, %s328, 63
        %s331 = smul.addr %s330, 8
        %s332 = scalar_lea.vmem %s0, %s331
        %p333 = pneg %p45
        %p334 = pneg %p42
        %p335 = pneg %p66
        %p336 = pneg %p63
        %p337 = pneg %p87
        %p338 = pneg %p84
        %p339 = pneg %p108
        %p340 = pneg %p105
        %p341 = pneg %p129
        %p342 = pneg %p126
        %p343 = pneg %p150
        %p344 = pneg %p147
        %p345 = pneg %p171
        %p346 = pneg %p168
        %p347 = pneg %p197
        %p348 = pneg %p194
        %s349 = sand.u32 %s184, 1
        %s350 = scalar_lea.sflag [#allocation4], %s349
        %s351 = sand.u32 %s184, 1
        %s352 = smul.addr %s351, 256
        %s353 = scalar_lea.vmem [#allocation11], %s352
        %s354 = smul.u32 32, %s24
        %p355 = scmp.lt.s32.totalorder %s354, 63
        %s356 = scalar_select %p355, %s354, 63
        %s357 = smul.addr %s356, 8
        %s358 = scalar_lea.vmem %s0, %s357
        %s359 = smul.u32 32, %s24
        %s360 = smul.u32 32, %s24
        %v361 = vld [vmem:[#allocation2] sm:$0x1]
        %v362 = vld [vmem:[#allocation2 + $0x1] sm:$0x1]
        %s363 = scalar_lea.vmem [#allocation2], 2
        %v364 = vld [vmem:[%s363] ss:$4 sm:$0x3]
        %v365 = vld [vmem:[#allocation2 + $0x3] sm:$0x1]
        %v366 = vld [vmem:[%s2] sm:$0xff]
        %v367 = vld [vmem:[%s2 + $0x8] sm:$0xff]
        %v368 = vld [vmem:[%s2 + $0x10] sm:$0xff]
        %v369 = vld [vmem:[%s2 + $0x18] sm:$0xff]
        %v370 = vld [vmem:[%s2 + $0x20] sm:$0xff]
        %v371 = vld [vmem:[%s2 + $0x28] sm:$0xff]
        %v372 = vld [vmem:[%s2 + $0x30] sm:$0xff]
        %v373 = vld [vmem:[%s2 + $0x38] sm:$0xff]
        %v374 = vld [vmem:[%s2 + $0x40] sm:$0xff]
        %v375 = vld [vmem:[%s2 + $0x48] sm:$0xff]
        %v376 = vld [vmem:[%s2 + $0x50] sm:$0xff]
        %v377 = vld [vmem:[%s2 + $0x58] sm:$0xff]
        %v378 = vld [vmem:[%s2 + $0x60] sm:$0xff]
        %v379 = vld [vmem:[%s2 + $0x68] sm:$0xff]
        %v380 = vld [vmem:[%s2 + $0x70] sm:$0xff]
        %v381 = vld [vmem:[%s2 + $0x78] sm:$0xff]
        %v382 = vld [vmem:[%s2 + $0x80] sm:$0xff]
        %v383 = vld [vmem:[%s2 + $0x88] sm:$0xff]
        %v384 = vld [vmem:[%s2 + $0x90] sm:$0xff]
        %v385 = vld [vmem:[%s2 + $0x98] sm:$0xff]
        %v386 = vld [vmem:[%s2 + $0xa0] sm:$0xff]
        %v387 = vld [vmem:[%s2 + $0xa8] sm:$0xff]
        %v388 = vld [vmem:[%s2 + $0xb0] sm:$0xff]
        %v389 = vld [vmem:[%s2 + $0xb8] sm:$0xff]
        %v390 = vld [vmem:[%s2 + $0xc0] sm:$0xff]
        %v391 = vld [vmem:[%s2 + $0xc8] sm:$0xff]
        %v392 = vld [vmem:[%s2 + $0xd0] sm:$0xff]
        %v393 = vld [vmem:[%s2 + $0xd8] sm:$0xff]
        %v394 = vld [vmem:[%s2 + $0xe0] sm:$0xff]
        %v395 = vld [vmem:[%s2 + $0xe8] sm:$0xff]
        %v396 = vld [vmem:[%s2 + $0xf0] sm:$0xff]
        %v397 = vld [vmem:[%s2 + $0xf8] sm:$0xff]
        %v398 = vld [vmem:[%s2 + $0x100] sm:$0xff]
        %v399 = vld [vmem:[%s2 + $0x108] sm:$0xff]
        %v400 = vld [vmem:[%s2 + $0x110] sm:$0xff]
        %v401 = vld [vmem:[%s2 + $0x118] sm:$0xff]
        %v402 = vld [vmem:[%s2 + $0x120] sm:$0xff]
        %v403 = vld [vmem:[%s2 + $0x128] sm:$0xff]
        %v404 = vld [vmem:[%s2 + $0x130] sm:$0xff]
        %v405 = vld [vmem:[%s2 + $0x138] sm:$0xff]
        %v406 = vld [vmem:[%s2 + $0x140] sm:$0xff]
        %v407 = vld [vmem:[%s2 + $0x148] sm:$0xff]
        %v408 = vld [vmem:[%s2 + $0x150] sm:$0xff]
        %v409 = vld [vmem:[%s2 + $0x158] sm:$0xff]
        %v410 = vld [vmem:[%s2 + $0x160] sm:$0xff]
        %v411 = vld [vmem:[%s2 + $0x168] sm:$0xff]
        %v412 = vld [vmem:[%s2 + $0x170] sm:$0xff]
        %v413 = vld [vmem:[%s2 + $0x178] sm:$0xff]
        %v414 = vld [vmem:[%s2 + $0x180] sm:$0xff]
        %v415 = vld [vmem:[%s2 + $0x188] sm:$0xff]
        %v416 = vld [vmem:[%s2 + $0x190] sm:$0xff]
        %v417 = vld [vmem:[%s2 + $0x198] sm:$0xff]
        %v418 = vld [vmem:[%s2 + $0x1a0] sm:$0xff]
        %v419 = vld [vmem:[%s2 + $0x1a8] sm:$0xff]
        %v420 = vld [vmem:[%s2 + $0x1b0] sm:$0xff]
        %v421 = vld [vmem:[%s2 + $0x1b8] sm:$0xff]
        %v422 = vld [vmem:[%s2 + $0x1c0] sm:$0xff]
        %v423 = vld [vmem:[%s2 + $0x1c8] sm:$0xff]
        %v424 = vld [vmem:[%s2 + $0x1d0] sm:$0xff]
        %v425 = vld [vmem:[%s2 + $0x1d8] sm:$0xff]
        %v426 = vld [vmem:[%s2 + $0x1e0] sm:$0xff]
        %v427 = vld [vmem:[%s2 + $0x1e8] sm:$0xff]
        %v428 = vld [vmem:[%s2 + $0x1f0] sm:$0xff]
        %v429 = vld [vmem:[%s2 + $0x1f8] sm:$0xff]
        %v430 = vld [vmem:[#allocation5] sm:$0xff]
        %v431 = vld [vmem:[#allocation5 + $0x8] sm:$0xff]
        %v432 = vld [vmem:[#allocation5 + $0x10] sm:$0xff]
        %v433 = vld [vmem:[#allocation5 + $0x18] sm:$0xff]
        %v434 = vld [vmem:[#allocation5 + $0x20] sm:$0xff]
        %v435 = vld [vmem:[#allocation5 + $0x28] sm:$0xff]
        %v436 = vld [vmem:[#allocation5 + $0x30] sm:$0xff]
        %v437 = vld [vmem:[#allocation5 + $0x38] sm:$0xff]
        %v438 = vld [vmem:[#allocation5 + $0x40] sm:$0xff]
        %v439 = vld [vmem:[#allocation5 + $0x48] sm:$0xff]
        %v440 = vld [vmem:[#allocation5 + $0x50] sm:$0xff]
        %v441 = vld [vmem:[#allocation5 + $0x58] sm:$0xff]
        %v442 = vld [vmem:[#allocation5 + $0x60] sm:$0xff]
        %v443 = vld [vmem:[#allocation5 + $0x68] sm:$0xff]
        %v444 = vld [vmem:[#allocation5 + $0x70] sm:$0xff]
        %v445 = vld [vmem:[#allocation5 + $0x78] sm:$0xff]
        %v446 = vld [vmem:[#allocation5 + $0x80] sm:$0xff]
        %v447 = vld [vmem:[#allocation5 + $0x88] sm:$0xff]
        %v448 = vld [vmem:[#allocation5 + $0x90] sm:$0xff]
        %v449 = vld [vmem:[#allocation5 + $0x98] sm:$0xff]
        %v450 = vld [vmem:[#allocation5 + $0xa0] sm:$0xff]
        %v451 = vld [vmem:[#allocation5 + $0xa8] sm:$0xff]
        %v452 = vld [vmem:[#allocation5 + $0xb0] sm:$0xff]
        %v453 = vld [vmem:[#allocation5 + $0xb8] sm:$0xff]
        %v454 = vld [vmem:[#allocation5 + $0xc0] sm:$0xff]
        %v455 = vld [vmem:[#allocation5 + $0xc8] sm:$0xff]
        %v456 = vld [vmem:[#allocation5 + $0xd0] sm:$0xff]
        %v457 = vld [vmem:[#allocation5 + $0xd8] sm:$0xff]
        %v458 = vld [vmem:[#allocation5 + $0xe0] sm:$0xff]
        %v459 = vld [vmem:[#allocation5 + $0xe8] sm:$0xff]
        %v460 = vld [vmem:[#allocation5 + $0xf0] sm:$0xff]
        %v461 = vld [vmem:[#allocation5 + $0xf8] sm:$0xff]
        %v462 = vld [vmem:[#allocation7] sm:$0xff]
        %v463 = vld [vmem:[#allocation7 + $0x8] sm:$0xff]
        %v464 = vld [vmem:[#allocation7 + $0x10] sm:$0xff]
        %v465 = vld [vmem:[#allocation7 + $0x18] sm:$0xff]
        %v466 = vld [vmem:[#allocation7 + $0x20] sm:$0xff]
        %v467 = vld [vmem:[#allocation7 + $0x28] sm:$0xff]
        %v468 = vld [vmem:[#allocation7 + $0x30] sm:$0xff]
        %v469 = vld [vmem:[#allocation7 + $0x38] sm:$0xff]
        %v470 = vld [vmem:[#allocation7 + $0x40] sm:$0xff]
        %v471 = vld [vmem:[#allocation7 + $0x48] sm:$0xff]
        %v472 = vld [vmem:[#allocation7 + $0x50] sm:$0xff]
        %v473 = vld [vmem:[#allocation7 + $0x58] sm:$0xff]
        %v474 = vld [vmem:[#allocation7 + $0x60] sm:$0xff]
        %v475 = vld [vmem:[#allocation7 + $0x68] sm:$0xff]
        %v476 = vld [vmem:[#allocation7 + $0x70] sm:$0xff]
        %v477 = vld [vmem:[#allocation7 + $0x78] sm:$0xff]
        %v478 = vld [vmem:[#allocation7 + $0x80] sm:$0xff]
        %v479 = vld [vmem:[#allocation7 + $0x88] sm:$0xff]
        %v480 = vld [vmem:[#allocation7 + $0x90] sm:$0xff]
        %v481 = vld [vmem:[#allocation7 + $0x98] sm:$0xff]
        %v482 = vld [vmem:[#allocation7 + $0xa0] sm:$0xff]
        %v483 = vld [vmem:[#allocation7 + $0xa8] sm:$0xff]
        %v484 = vld [vmem:[#allocation7 + $0xb0] sm:$0xff]
        %v485 = vld [vmem:[#allocation7 + $0xb8] sm:$0xff]
        %v486 = vld [vmem:[#allocation7 + $0xc0] sm:$0xff]
        %v487 = vld [vmem:[#allocation7 + $0xc8] sm:$0xff]
        %v488 = vld [vmem:[#allocation7 + $0xd0] sm:$0xff]
        %v489 = vld [vmem:[#allocation7 + $0xd8] sm:$0xff]
        %v490 = vld [vmem:[#allocation7 + $0xe0] sm:$0xff]
        %v491 = vld [vmem:[#allocation7 + $0xe8] sm:$0xff]
        %v492 = vld [vmem:[#allocation7 + $0xf0] sm:$0xff]
        %v493 = vld [vmem:[#allocation7 + $0xf8] sm:$0xff]
        %v494 = vld [vmem:[#allocation8] sm:$0xff]
        %v495 = vld [vmem:[#allocation8 + $0x8] sm:$0xff]
        %v496 = vld [vmem:[#allocation8 + $0x10] sm:$0xff]
        %v497 = vld [vmem:[#allocation8 + $0x18] sm:$0xff]
        %v498 = vld [vmem:[#allocation8 + $0x20] sm:$0xff]
        %v499 = vld [vmem:[#allocation8 + $0x28] sm:$0xff]
        %v500 = vld [vmem:[#allocation8 + $0x30] sm:$0xff]
        %v501 = vld [vmem:[#allocation8 + $0x38] sm:$0xff]
        %v502 = vld [vmem:[#allocation8 + $0x40] sm:$0xff]
        %v503 = vld [vmem:[#allocation8 + $0x48] sm:$0xff]
        %v504 = vld [vmem:[#allocation8 + $0x50] sm:$0xff]
        %v505 = vld [vmem:[#allocation8 + $0x58] sm:$0xff]
        %v506 = vld [vmem:[#allocation8 + $0x60] sm:$0xff]
        %v507 = vld [vmem:[#allocation8 + $0x68] sm:$0xff]
        %v508 = vld [vmem:[#allocation8 + $0x70] sm:$0xff]
        %v509 = vld [vmem:[#allocation8 + $0x78] sm:$0xff]
        %v510 = vld [vmem:[#allocation10] sm:$0xf]
        %v511 = vld [vmem:[#allocation10 + $0x4] sm:$0xf]
        %v512 = vld [vmem:[#allocation10 + $0x8] sm:$0xf]
        %v513 = vld [vmem:[#allocation10 + $0xc] sm:$0xf]
        %v514 = vld [vmem:[#allocation10 + $0x10] sm:$0xf]
        %v515 = vld [vmem:[#allocation10 + $0x14] sm:$0xf]
        %v516 = vld [vmem:[#allocation10 + $0x18] sm:$0xf]
        %v517 = vld [vmem:[#allocation10 + $0x1c] sm:$0xf]
        %v518 = vld [vmem:[#allocation10 + $0x20] sm:$0xf]
        %v519 = vld [vmem:[#allocation10 + $0x24] sm:$0xf]
        %v520 = vld [vmem:[#allocation10 + $0x28] sm:$0xf]
        %v521 = vld [vmem:[#allocation10 + $0x2c] sm:$0xf]
        %v522 = vld [vmem:[#allocation10 + $0x30] sm:$0xf]
        %v523 = vld [vmem:[#allocation10 + $0x34] sm:$0xf]
        %v524 = vld [vmem:[#allocation10 + $0x38] sm:$0xf]
        %v525 = vld [vmem:[#allocation10 + $0x3c] sm:$0xf]
        %v526 = vld [vmem:[#allocation10 + $0x40] sm:$0xf]
        %v527 = vld [vmem:[#allocation10 + $0x44] sm:$0xf]
        %v528 = vld [vmem:[#allocation10 + $0x48] sm:$0xf]
        %v529 = vld [vmem:[#allocation10 + $0x4c] sm:$0xf]
        %v530 = vld [vmem:[#allocation10 + $0x50] sm:$0xf]
        %v531 = vld [vmem:[#allocation10 + $0x54] sm:$0xf]
        %v532 = vld [vmem:[#allocation10 + $0x58] sm:$0xf]
        %v533 = vld [vmem:[#allocation10 + $0x5c] sm:$0xf]
        %v534 = vld [vmem:[#allocation10 + $0x60] sm:$0xf]
        %v535 = vld [vmem:[#allocation10 + $0x64] sm:$0xf]
        %v536 = vld [vmem:[#allocation10 + $0x68] sm:$0xf]
        %v537 = vld [vmem:[#allocation10 + $0x6c] sm:$0xf]
        %v538 = vld [vmem:[#allocation10 + $0x70] sm:$0xf]
        %v539 = vld [vmem:[#allocation10 + $0x74] sm:$0xf]
        %v540 = vld [vmem:[#allocation10 + $0x78] sm:$0xf]
        %v541 = vld [vmem:[#allocation10 + $0x7c] sm:$0xf]
        %v542 = vld [vmem:[%s358] sm:$0xff]
        %v543 = vld [vmem:[%s358 + $0x8] sm:$0xff]
        %v544 = vld [vmem:[%s358 + $0x10] sm:$0xff]
        %v545 = vld [vmem:[%s358 + $0x18] sm:$0xff]
        %v546 = vld [vmem:[%s358 + $0x20] sm:$0xff]
        %v547 = vld [vmem:[%s358 + $0x28] sm:$0xff]
        %v548 = vld [vmem:[%s358 + $0x30] sm:$0xff]
        %v549 = vld [vmem:[%s358 + $0x38] sm:$0xff]
        %v550 = vld [vmem:[%s358 + $0x40] sm:$0xff]
        %v551 = vld [vmem:[%s358 + $0x48] sm:$0xff]
        %v552 = vld [vmem:[%s358 + $0x50] sm:$0xff]
        %v553 = vld [vmem:[%s358 + $0x58] sm:$0xff]
        %v554 = vld [vmem:[%s358 + $0x60] sm:$0xff]
        %v555 = vld [vmem:[%s358 + $0x68] sm:$0xff]
        %v556 = vld [vmem:[%s358 + $0x70] sm:$0xff]
        %v557 = vld [vmem:[%s358 + $0x78] sm:$0xff]
        %v558 = vld [vmem:[%s358 + $0x80] sm:$0xff]
        %v559 = vld [vmem:[%s358 + $0x88] sm:$0xff]
        %v560 = vld [vmem:[%s358 + $0x90] sm:$0xff]
        %v561 = vld [vmem:[%s358 + $0x98] sm:$0xff]
        %v562 = vld [vmem:[%s358 + $0xa0] sm:$0xff]
        %v563 = vld [vmem:[%s358 + $0xa8] sm:$0xff]
        %v564 = vld [vmem:[%s358 + $0xb0] sm:$0xff]
        %v565 = vld [vmem:[%s358 + $0xb8] sm:$0xff]
        %v566 = vld [vmem:[%s358 + $0xc0] sm:$0xff]
        %v567 = vld [vmem:[%s358 + $0xc8] sm:$0xff]
        %v568 = vld [vmem:[%s358 + $0xd0] sm:$0xff]
        %v569 = vld [vmem:[%s358 + $0xd8] sm:$0xff]
        %v570 = vld [vmem:[%s358 + $0xe0] sm:$0xff]
        %v571 = vld [vmem:[%s358 + $0xe8] sm:$0xff]
        %v572 = vld [vmem:[%s358 + $0xf0] sm:$0xff]
        %v573 = vld [vmem:[%s358 + $0xf8] sm:$0xff]
        %574 = vadd.xlane.f32.xlu0 %v542
        %v575 = vpop.xlane.xlu0 %574
        %576 = vadd.xlane.f32.xlu0 %v543
        %v577 = vpop.xlane.xlu0 %576
        %578 = vadd.xlane.f32.xlu0 %v544
        %v579 = vpop.xlane.xlu0 %578
        %580 = vadd.xlane.f32.xlu0 %v545
        %v581 = vpop.xlane.xlu0 %580
        %582 = vadd.xlane.f32.xlu0 %v546
        %v583 = vpop.xlane.xlu0 %582
        %584 = vadd.xlane.f32.xlu0 %v547
        %v585 = vpop.xlane.xlu0 %584
        %586 = vadd.xlane.f32.xlu0 %v548
        %v587 = vpop.xlane.xlu0 %586
        %588 = vadd.xlane.f32.xlu0 %v549
        %v589 = vpop.xlane.xlu0 %588
        %590 = vadd.xlane.f32.xlu0 %v550
        %v591 = vpop.xlane.xlu0 %590
        %592 = vadd.xlane.f32.xlu0 %v551
        %v593 = vpop.xlane.xlu0 %592
        %594 = vadd.xlane.f32.xlu0 %v552
        %v595 = vpop.xlane.xlu0 %594
        %596 = vadd.xlane.f32.xlu0 %v553
        %v597 = vpop.xlane.xlu0 %596
        %598 = vadd.xlane.f32.xlu0 %v554
        %v599 = vpop.xlane.xlu0 %598
        %600 = vadd.xlane.f32.xlu0 %v555
        %v601 = vpop.xlane.xlu0 %600
        %602 = vadd.xlane.f32.xlu0 %v556
        %v603 = vpop.xlane.xlu0 %602
        %604 = vadd.xlane.f32.xlu0 %v557
        %v605 = vpop.xlane.xlu0 %604
        %606 = vadd.xlane.f32.xlu0 %v558
        %v607 = vpop.xlane.xlu0 %606
        %608 = vadd.xlane.f32.xlu0 %v559
        %v609 = vpop.xlane.xlu0 %608
        %610 = vadd.xlane.f32.xlu0 %v560
        %v611 = vpop.xlane.xlu0 %610
        %612 = vadd.xlane.f32.xlu0 %v561
        %v613 = vpop.xlane.xlu0 %612
        %614 = vadd.xlane.f32.xlu0 %v562
        %v615 = vpop.xlane.xlu0 %614
        %616 = vadd.xlane.f32.xlu0 %v563
        %v617 = vpop.xlane.xlu0 %616
        %618 = vadd.xlane.f32.xlu0 %v564
        %v619 = vpop.xlane.xlu0 %618
        %620 = vadd.xlane.f32.xlu0 %v565
        %v621 = vpop.xlane.xlu0 %620
        %622 = vadd.xlane.f32.xlu0 %v566
        %v623 = vpop.xlane.xlu0 %622
        %624 = vadd.xlane.f32.xlu0 %v567
        %v625 = vpop.xlane.xlu0 %624
        %626 = vadd.xlane.f32.xlu0 %v568
        %v627 = vpop.xlane.xlu0 %626
        %628 = vadd.xlane.f32.xlu0 %v569
        %v629 = vpop.xlane.xlu0 %628
        %630 = vadd.xlane.f32.xlu0 %v570
        %v631 = vpop.xlane.xlu0 %630
        %632 = vadd.xlane.f32.xlu0 %v571
        %v633 = vpop.xlane.xlu0 %632
        %634 = vadd.xlane.f32.xlu0 %v572
        %v635 = vpop.xlane.xlu0 %634
        %636 = vadd.xlane.f32.xlu0 %v573
        %v637 = vpop.xlane.xlu0 %636
        %v638 = vrcp.pop 128.0
        %v639 = vmul.f32 128.0, %v638
        %v640 = vsub.f32 1.0, %v639
        %v641 = vmul.f32 %v638, %v640
        %v642 = vadd.f32 %v638, %v641
        %vm643 = vweird.f32 %v638
        %v644 = vsel %vm643, %v638, %v642
        %v645 = vmul.f32 %v575, %v644
        %v646 = vmul.f32 %v577, %v644
        %v647 = vmul.f32 %v579, %v644
        %v648 = vmul.f32 %v581, %v644
        %v649 = vmul.f32 %v583, %v644
        %v650 = vmul.f32 %v585, %v644
        %v651 = vmul.f32 %v587, %v644
        %v652 = vmul.f32 %v589, %v644
        %v653 = vmul.f32 %v591, %v644
        %v654 = vmul.f32 %v593, %v644
        %v655 = vmul.f32 %v595, %v644
        %v656 = vmul.f32 %v597, %v644
        %v657 = vmul.f32 %v599, %v644
        %v658 = vmul.f32 %v601, %v644
        %v659 = vmul.f32 %v603, %v644
        %v660 = vmul.f32 %v605, %v644
        %v661 = vmul.f32 %v607, %v644
        %v662 = vmul.f32 %v609, %v644
        %v663 = vmul.f32 %v611, %v644
        %v664 = vmul.f32 %v613, %v644
        %v665 = vmul.f32 %v615, %v644
        %v666 = vmul.f32 %v617, %v644
        %v667 = vmul.f32 %v619, %v644
        %v668 = vmul.f32 %v621, %v644
        %v669 = vmul.f32 %v623, %v644
        %v670 = vmul.f32 %v625, %v644
        %v671 = vmul.f32 %v627, %v644
        %v672 = vmul.f32 %v629, %v644
        %v673 = vmul.f32 %v631, %v644
        %v674 = vmul.f32 %v633, %v644
        %v675 = vmul.f32 %v635, %v644
        %v676 = vmul.f32 %v637, %v644
        %v677 = vsub.f32 %v542, %v645
        %v678 = vsub.f32 %v543, %v646
        %v679 = vsub.f32 %v544, %v647
        %v680 = vsub.f32 %v545, %v648
        %v681 = vsub.f32 %v546, %v649
        %v682 = vsub.f32 %v547, %v650
        %v683 = vsub.f32 %v548, %v651
        %v684 = vsub.f32 %v549, %v652
        %v685 = vsub.f32 %v550, %v653
        %v686 = vsub.f32 %v551, %v654
        %v687 = vsub.f32 %v552, %v655
        %v688 = vsub.f32 %v553, %v656
        %v689 = vsub.f32 %v554, %v657
        %v690 = vsub.f32 %v555, %v658
        %v691 = vsub.f32 %v556, %v659
        %v692 = vsub.f32 %v557, %v660
        %v693 = vsub.f32 %v558, %v661
        %v694 = vsub.f32 %v559, %v662
        %v695 = vsub.f32 %v560, %v663
        %v696 = vsub.f32 %v561, %v664
        %v697 = vsub.f32 %v562, %v665
        %v698 = vsub.f32 %v563, %v666
        %v699 = vsub.f32 %v564, %v667
        %v700 = vsub.f32 %v565, %v668
        %v701 = vsub.f32 %v566, %v669
        %v702 = vsub.f32 %v567, %v670
        %v703 = vsub.f32 %v568, %v671
        %v704 = vsub.f32 %v569, %v672
        %v705 = vsub.f32 %v570, %v673
        %v706 = vsub.f32 %v571, %v674
        %v707 = vsub.f32 %v572, %v675
        %v708 = vsub.f32 %v573, %v676
        %v709 = vmul.f32 %v677, %v677
        %v710 = vmul.f32 %v678, %v678
        %v711 = vmul.f32 %v679, %v679
        %v712 = vmul.f32 %v680, %v680
        %v713 = vmul.f32 %v681, %v681
        %v714 = vmul.f32 %v682, %v682
        %v715 = vmul.f32 %v683, %v683
        %v716 = vmul.f32 %v684, %v684
        %v717 = vmul.f32 %v685, %v685
        %v718 = vmul.f32 %v686, %v686
        %v719 = vmul.f32 %v687, %v687
        %v720 = vmul.f32 %v688, %v688
        %v721 = vmul.f32 %v689, %v689
        %v722 = vmul.f32 %v690, %v690
        %v723 = vmul.f32 %v691, %v691
        %v724 = vmul.f32 %v692, %v692
        %v725 = vmul.f32 %v693, %v693
        %v726 = vmul.f32 %v694, %v694
        %v727 = vmul.f32 %v695, %v695
        %v728 = vmul.f32 %v696, %v696
        %v729 = vmul.f32 %v697, %v697
        %v730 = vmul.f32 %v698, %v698
        %v731 = vmul.f32 %v699, %v699
        %v732 = vmul.f32 %v700, %v700
        %v733 = vmul.f32 %v701, %v701
        %v734 = vmul.f32 %v702, %v702
        %v735 = vmul.f32 %v703, %v703
        %v736 = vmul.f32 %v704, %v704
        %v737 = vmul.f32 %v705, %v705
        %v738 = vmul.f32 %v706, %v706
        %v739 = vmul.f32 %v707, %v707
        %v740 = vmul.f32 %v708, %v708
        %741 = vadd.xlane.f32.xlu0 %v709
        %v742 = vpop.xlane.xlu0 %741
        %743 = vadd.xlane.f32.xlu0 %v710
        %v744 = vpop.xlane.xlu0 %743
        %745 = vadd.xlane.f32.xlu0 %v711
        %v746 = vpop.xlane.xlu0 %745
        %747 = vadd.xlane.f32.xlu0 %v712
        %v748 = vpop.xlane.xlu0 %747
        %749 = vadd.xlane.f32.xlu0 %v713
        %v750 = vpop.xlane.xlu0 %749
        %751 = vadd.xlane.f32.xlu0 %v714
        %v752 = vpop.xlane.xlu0 %751
        %753 = vadd.xlane.f32.xlu0 %v715
        %v754 = vpop.xlane.xlu0 %753
        %755 = vadd.xlane.f32.xlu0 %v716
        %v756 = vpop.xlane.xlu0 %755
        %757 = vadd.xlane.f32.xlu0 %v717
        %v758 = vpop.xlane.xlu0 %757
        %759 = vadd.xlane.f32.xlu0 %v718
        %v760 = vpop.xlane.xlu0 %759
        %761 = vadd.xlane.f32.xlu0 %v719
        %v762 = vpop.xlane.xlu0 %761
        %763 = vadd.xlane.f32.xlu0 %v720
        %v764 = vpop.xlane.xlu0 %763
        %765 = vadd.xlane.f32.xlu0 %v721
        %v766 = vpop.xlane.xlu0 %765
        %767 = vadd.xlane.f32.xlu0 %v722
        %v768 = vpop.xlane.xlu0 %767
        %769 = vadd.xlane.f32.xlu0 %v723
        %v770 = vpop.xlane.xlu0 %769
        %771 = vadd.xlane.f32.xlu0 %v724
        %v772 = vpop.xlane.xlu0 %771
        %773 = vadd.xlane.f32.xlu0 %v725
        %v774 = vpop.xlane.xlu0 %773
        %775 = vadd.xlane.f32.xlu0 %v726
        %v776 = vpop.xlane.xlu0 %775
        %777 = vadd.xlane.f32.xlu0 %v727
        %v778 = vpop.xlane.xlu0 %777
        %779 = vadd.xlane.f32.xlu0 %v728
        %v780 = vpop.xlane.xlu0 %779
        %781 = vadd.xlane.f32.xlu0 %v729
        %v782 = vpop.xlane.xlu0 %781
        %783 = vadd.xlane.f32.xlu0 %v730
        %v784 = vpop.xlane.xlu0 %783
        %785 = vadd.xlane.f32.xlu0 %v731
        %v786 = vpop.xlane.xlu0 %785
        %787 = vadd.xlane.f32.xlu0 %v732
        %v788 = vpop.xlane.xlu0 %787
        %789 = vadd.xlane.f32.xlu0 %v733
        %v790 = vpop.xlane.xlu0 %789
        %791 = vadd.xlane.f32.xlu0 %v734
        %v792 = vpop.xlane.xlu0 %791
        %793 = vadd.xlane.f32.xlu0 %v735
        %v794 = vpop.xlane.xlu0 %793
        %795 = vadd.xlane.f32.xlu0 %v736
        %v796 = vpop.xlane.xlu0 %795
        %797 = vadd.xlane.f32.xlu0 %v737
        %v798 = vpop.xlane.xlu0 %797
        %799 = vadd.xlane.f32.xlu0 %v738
        %v800 = vpop.xlane.xlu0 %799
        %801 = vadd.xlane.f32.xlu0 %v739
        %v802 = vpop.xlane.xlu0 %801
        %803 = vadd.xlane.f32.xlu0 %v740
        %v804 = vpop.xlane.xlu0 %803
        %v805 = vmul.f32 %v742, %v644
        %v806 = vmul.f32 %v744, %v644
        %v807 = vmul.f32 %v746, %v644
        %v808 = vmul.f32 %v748, %v644
        %v809 = vmul.f32 %v750, %v644
        %v810 = vmul.f32 %v752, %v644
        %v811 = vmul.f32 %v754, %v644
        %v812 = vmul.f32 %v756, %v644
        %v813 = vmul.f32 %v758, %v644
        %v814 = vmul.f32 %v760, %v644
        %v815 = vmul.f32 %v762, %v644
        %v816 = vmul.f32 %v764, %v644
        %v817 = vmul.f32 %v766, %v644
        %v818 = vmul.f32 %v768, %v644
        %v819 = vmul.f32 %v770, %v644
        %v820 = vmul.f32 %v772, %v644
        %v821 = vmul.f32 %v774, %v644
        %v822 = vmul.f32 %v776, %v644
        %v823 = vmul.f32 %v778, %v644
        %v824 = vmul.f32 %v780, %v644
        %v825 = vmul.f32 %v782, %v644
        %v826 = vmul.f32 %v784, %v644
        %v827 = vmul.f32 %v786, %v644
        %v828 = vmul.f32 %v788, %v644
        %v829 = vmul.f32 %v790, %v644
        %v830 = vmul.f32 %v792, %v644
        %v831 = vmul.f32 %v794, %v644
        %v832 = vmul.f32 %v796, %v644
        %v833 = vmul.f32 %v798, %v644
        %v834 = vmul.f32 %v800, %v644
        %v835 = vmul.f32 %v802, %v644
        %v836 = vmul.f32 %v804, %v644
        %v837 = vadd.f32 %v805, 1e-05
        %v838 = vadd.f32 %v806, 1e-05
        %v839 = vadd.f32 %v807, 1e-05
        %v840 = vadd.f32 %v808, 1e-05
        %v841 = vadd.f32 %v809, 1e-05
        %v842 = vadd.f32 %v810, 1e-05
        %v843 = vadd.f32 %v811, 1e-05
        %v844 = vadd.f32 %v812, 1e-05
        %v845 = vadd.f32 %v813, 1e-05
        %v846 = vadd.f32 %v814, 1e-05
        %v847 = vadd.f32 %v815, 1e-05
        %v848 = vadd.f32 %v816, 1e-05
        %v849 = vadd.f32 %v817, 1e-05
        %v850 = vadd.f32 %v818, 1e-05
        %v851 = vadd.f32 %v819, 1e-05
        %v852 = vadd.f32 %v820, 1e-05
        %v853 = vadd.f32 %v821, 1e-05
        %v854 = vadd.f32 %v822, 1e-05
        %v855 = vadd.f32 %v823, 1e-05
        %v856 = vadd.f32 %v824, 1e-05
        %v857 = vadd.f32 %v825, 1e-05
        %v858 = vadd.f32 %v826, 1e-05
        %v859 = vadd.f32 %v827, 1e-05
        %v860 = vadd.f32 %v828, 1e-05
        %v861 = vadd.f32 %v829, 1e-05
        %v862 = vadd.f32 %v830, 1e-05
        %v863 = vadd.f32 %v831, 1e-05
        %v864 = vadd.f32 %v832, 1e-05
        %v865 = vadd.f32 %v833, 1e-05
        %v866 = vadd.f32 %v834, 1e-05
        %v867 = vadd.f32 %v835, 1e-05
        %v868 = vadd.f32 %v836, 1e-05
        %v869 = vrsqrt.pop %v837
        %v870 = vmul.f32 %v869, %v837
        %v871 = vmul.f32 %v870, %v869
        %v872 = vmul.f32 0.5, %v871
        %v873 = vsub.f32 1.5, %v872
        %v874 = vmul.f32 %v869, %v873
        %vm875 = vweird.f32 %v837
        %vm876 = vweird.f32 %v869
        %vm877 = vmor %vm875, %vm876
        %v878 = vsel %vm877, %v869, %v874
        %v879 = vrsqrt.pop %v838
        %v880 = vmul.f32 %v879, %v838
        %v881 = vmul.f32 %v880, %v879
        %v882 = vmul.f32 0.5, %v881
        %v883 = vsub.f32 1.5, %v882
        %v884 = vmul.f32 %v879, %v883
        %vm885 = vweird.f32 %v838
        %vm886 = vweird.f32 %v879
        %vm887 = vmor %vm885, %vm886
        %v888 = vsel %vm887, %v879, %v884
        %v889 = vrsqrt.pop %v839
        %v890 = vmul.f32 %v889, %v839
        %v891 = vmul.f32 %v890, %v889
        %v892 = vmul.f32 0.5, %v891
        %v893 = vsub.f32 1.5, %v892
        %v894 = vmul.f32 %v889, %v893
        %vm895 = vweird.f32 %v839
        %vm896 = vweird.f32 %v889
        %vm897 = vmor %vm895, %vm896
        %v898 = vsel %vm897, %v889, %v894
        %v899 = vrsqrt.pop %v840
        %v900 = vmul.f32 %v899, %v840
        %v901 = vmul.f32 %v900, %v899
        %v902 = vmul.f32 0.5, %v901
        %v903 = vsub.f32 1.5, %v902
        %v904 = vmul.f32 %v899, %v903
        %vm905 = vweird.f32 %v840
        %vm906 = vweird.f32 %v899
        %vm907 = vmor %vm905, %vm906
        %v908 = vsel %vm907, %v899, %v904
        %v909 = vrsqrt.pop %v841
        %v910 = vmul.f32 %v909, %v841
        %v911 = vmul.f32 %v910, %v909
        %v912 = vmul.f32 0.5, %v911
        %v913 = vsub.f32 1.5, %v912
        %v914 = vmul.f32 %v909, %v913
        %vm915 = vweird.f32 %v841
        %vm916 = vweird.f32 %v909
        %vm917 = vmor %vm915, %vm916
        %v918 = vsel %vm917, %v909, %v914
        %v919 = vrsqrt.pop %v842
        %v920 = vmul.f32 %v919, %v842
        %v921 = vmul.f32 %v920, %v919
        %v922 = vmul.f32 0.5, %v921
        %v923 = vsub.f32 1.5, %v922
        %v924 = vmul.f32 %v919, %v923
        %vm925 = vweird.f32 %v842
        %vm926 = vweird.f32 %v919
        %vm927 = vmor %vm925, %vm926
        %v928 = vsel %vm927, %v919, %v924
        %v929 = vrsqrt.pop %v843
        %v930 = vmul.f32 %v929, %v843
        %v931 = vmul.f32 %v930, %v929
        %v932 = vmul.f32 0.5, %v931
        %v933 = vsub.f32 1.5, %v932
        %v934 = vmul.f32 %v929, %v933
        %vm935 = vweird.f32 %v843
        %vm936 = vweird.f32 %v929
        %vm937 = vmor %vm935, %vm936
        %v938 = vsel %vm937, %v929, %v934
        %v939 = vrsqrt.pop %v844
        %v940 = vmul.f32 %v939, %v844
        %v941 = vmul.f32 %v940, %v939
        %v942 = vmul.f32 0.5, %v941
        %v943 = vsub.f32 1.5, %v942
        %v944 = vmul.f32 %v939, %v943
        %vm945 = vweird.f32 %v844
        %vm946 = vweird.f32 %v939
        %vm947 = vmor %vm945, %vm946
        %v948 = vsel %vm947, %v939, %v944
        %v949 = vrsqrt.pop %v845
        %v950 = vmul.f32 %v949, %v845
        %v951 = vmul.f32 %v950, %v949
        %v952 = vmul.f32 0.5, %v951
        %v953 = vsub.f32 1.5, %v952
        %v954 = vmul.f32 %v949, %v953
        %vm955 = vweird.f32 %v845
        %vm956 = vweird.f32 %v949
        %vm957 = vmor %vm955, %vm956
        %v958 = vsel %vm957, %v949, %v954
        %v959 = vrsqrt.pop %v846
        %v960 = vmul.f32 %v959, %v846
        %v961 = vmul.f32 %v960, %v959
        %v962 = vmul.f32 0.5, %v961
        %v963 = vsub.f32 1.5, %v962
        %v964 = vmul.f32 %v959, %v963
        %vm965 = vweird.f32 %v846
        %vm966 = vweird.f32 %v959
        %vm967 = vmor %vm965, %vm966
        %v968 = vsel %vm967, %v959, %v964
        %v969 = vrsqrt.pop %v847
        %v970 = vmul.f32 %v969, %v847
        %v971 = vmul.f32 %v970, %v969
        %v972 = vmul.f32 0.5, %v971
        %v973 = vsub.f32 1.5, %v972
        %v974 = vmul.f32 %v969, %v973
        %vm975 = vweird.f32 %v847
        %vm976 = vweird.f32 %v969
        %vm977 = vmor %vm975, %vm976
        %v978 = vsel %vm977, %v969, %v974
        %v979 = vrsqrt.pop %v848
        %v980 = vmul.f32 %v979, %v848
        %v981 = vmul.f32 %v980, %v979
        %v982 = vmul.f32 0.5, %v981
        %v983 = vsub.f32 1.5, %v982
        %v984 = vmul.f32 %v979, %v983
        %vm985 = vweird.f32 %v848
        %vm986 = vweird.f32 %v979
        %vm987 = vmor %vm985, %vm986
        %v988 = vsel %vm987, %v979, %v984
        %v989 = vrsqrt.pop %v849
        %v990 = vmul.f32 %v989, %v849
        %v991 = vmul.f32 %v990, %v989
        %v992 = vmul.f32 0.5, %v991
        %v993 = vsub.f32 1.5, %v992
        %v994 = vmul.f32 %v989, %v993
        %vm995 = vweird.f32 %v849
        %vm996 = vweird.f32 %v989
        %vm997 = vmor %vm995, %vm996
        %v998 = vsel %vm997, %v989, %v994
        %v999 = vrsqrt.pop %v850
        %v1000 = vmul.f32 %v999, %v850
        %v1001 = vmul.f32 %v1000, %v999
        %v1002 = vmul.f32 0.5, %v1001
        %v1003 = vsub.f32 1.5, %v1002
        %v1004 = vmul.f32 %v999, %v1003
        %vm1005 = vweird.f32 %v850
        %vm1006 = vweird.f32 %v999
        %vm1007 = vmor %vm1005, %vm1006
        %v1008 = vsel %vm1007, %v999, %v1004
        %v1009 = vrsqrt.pop %v851
        %v1010 = vmul.f32 %v1009, %v851
        %v1011 = vmul.f32 %v1010, %v1009
        %v1012 = vmul.f32 0.5, %v1011
        %v1013 = vsub.f32 1.5, %v1012
        %v1014 = vmul.f32 %v1009, %v1013
        %vm1015 = vweird.f32 %v851
        %vm1016 = vweird.f32 %v1009
        %vm1017 = vmor %vm1015, %vm1016
        %v1018 = vsel %vm1017, %v1009, %v1014
        %v1019 = vrsqrt.pop %v852
        %v1020 = vmul.f32 %v1019, %v852
        %v1021 = vmul.f32 %v1020, %v1019
        %v1022 = vmul.f32 0.5, %v1021
        %v1023 = vsub.f32 1.5, %v1022
        %v1024 = vmul.f32 %v1019, %v1023
        %vm1025 = vweird.f32 %v852
        %vm1026 = vweird.f32 %v1019
        %vm1027 = vmor %vm1025, %vm1026
        %v1028 = vsel %vm1027, %v1019, %v1024
        %v1029 = vrsqrt.pop %v853
        %v1030 = vmul.f32 %v1029, %v853
        %v1031 = vmul.f32 %v1030, %v1029
        %v1032 = vmul.f32 0.5, %v1031
        %v1033 = vsub.f32 1.5, %v1032
        %v1034 = vmul.f32 %v1029, %v1033
        %vm1035 = vweird.f32 %v853
        %vm1036 = vweird.f32 %v1029
        %vm1037 = vmor %vm1035, %vm1036
        %v1038 = vsel %vm1037, %v1029, %v1034
        %v1039 = vrsqrt.pop %v854
        %v1040 = vmul.f32 %v1039, %v854
        %v1041 = vmul.f32 %v1040, %v1039
        %v1042 = vmul.f32 0.5, %v1041
        %v1043 = vsub.f32 1.5, %v1042
        %v1044 = vmul.f32 %v1039, %v1043
        %vm1045 = vweird.f32 %v854
        %vm1046 = vweird.f32 %v1039
        %vm1047 = vmor %vm1045, %vm1046
        %v1048 = vsel %vm1047, %v1039, %v1044
        %v1049 = vrsqrt.pop %v855
        %v1050 = vmul.f32 %v1049, %v855
        %v1051 = vmul.f32 %v1050, %v1049
        %v1052 = vmul.f32 0.5, %v1051
        %v1053 = vsub.f32 1.5, %v1052
        %v1054 = vmul.f32 %v1049, %v1053
        %vm1055 = vweird.f32 %v855
        %vm1056 = vweird.f32 %v1049
        %vm1057 = vmor %vm1055, %vm1056
        %v1058 = vsel %vm1057, %v1049, %v1054
        %v1059 = vrsqrt.pop %v856
        %v1060 = vmul.f32 %v1059, %v856
        %v1061 = vmul.f32 %v1060, %v1059
        %v1062 = vmul.f32 0.5, %v1061
        %v1063 = vsub.f32 1.5, %v1062
        %v1064 = vmul.f32 %v1059, %v1063
        %vm1065 = vweird.f32 %v856
        %vm1066 = vweird.f32 %v1059
        %vm1067 = vmor %vm1065, %vm1066
        %v1068 = vsel %vm1067, %v1059, %v1064
        %v1069 = vrsqrt.pop %v857
        %v1070 = vmul.f32 %v1069, %v857
        %v1071 = vmul.f32 %v1070, %v1069
        %v1072 = vmul.f32 0.5, %v1071
        %v1073 = vsub.f32 1.5, %v1072
        %v1074 = vmul.f32 %v1069, %v1073
        %vm1075 = vweird.f32 %v857
        %vm1076 = vweird.f32 %v1069
        %vm1077 = vmor %vm1075, %vm1076
        %v1078 = vsel %vm1077, %v1069, %v1074
        %v1079 = vrsqrt.pop %v858
        %v1080 = vmul.f32 %v1079, %v858
        %v1081 = vmul.f32 %v1080, %v1079
        %v1082 = vmul.f32 0.5, %v1081
        %v1083 = vsub.f32 1.5, %v1082
        %v1084 = vmul.f32 %v1079, %v1083
        %vm1085 = vweird.f32 %v858
        %vm1086 = vweird.f32 %v1079
        %vm1087 = vmor %vm1085, %vm1086
        %v1088 = vsel %vm1087, %v1079, %v1084
        %v1089 = vrsqrt.pop %v859
        %v1090 = vmul.f32 %v1089, %v859
        %v1091 = vmul.f32 %v1090, %v1089
        %v1092 = vmul.f32 0.5, %v1091
        %v1093 = vsub.f32 1.5, %v1092
        %v1094 = vmul.f32 %v1089, %v1093
        %vm1095 = vweird.f32 %v859
        %vm1096 = vweird.f32 %v1089
        %vm1097 = vmor %vm1095, %vm1096
        %v1098 = vsel %vm1097, %v1089, %v1094
        %v1099 = vrsqrt.pop %v860
        %v1100 = vmul.f32 %v1099, %v860
        %v1101 = vmul.f32 %v1100, %v1099
        %v1102 = vmul.f32 0.5, %v1101
        %v1103 = vsub.f32 1.5, %v1102
        %v1104 = vmul.f32 %v1099, %v1103
        %vm1105 = vweird.f32 %v860
        %vm1106 = vweird.f32 %v1099
        %vm1107 = vmor %vm1105, %vm1106
        %v1108 = vsel %vm1107, %v1099, %v1104
        %v1109 = vrsqrt.pop %v861
        %v1110 = vmul.f32 %v1109, %v861
        %v1111 = vmul.f32 %v1110, %v1109
        %v1112 = vmul.f32 0.5, %v1111
        %v1113 = vsub.f32 1.5, %v1112
        %v1114 = vmul.f32 %v1109, %v1113
        %vm1115 = vweird.f32 %v861
        %vm1116 = vweird.f32 %v1109
        %vm1117 = vmor %vm1115, %vm1116
        %v1118 = vsel %vm1117, %v1109, %v1114
        %v1119 = vrsqrt.pop %v862
        %v1120 = vmul.f32 %v1119, %v862
        %v1121 = vmul.f32 %v1120, %v1119
        %v1122 = vmul.f32 0.5, %v1121
        %v1123 = vsub.f32 1.5, %v1122
        %v1124 = vmul.f32 %v1119, %v1123
        %vm1125 = vweird.f32 %v862
        %vm1126 = vweird.f32 %v1119
        %vm1127 = vmor %vm1125, %vm1126
        %v1128 = vsel %vm1127, %v1119, %v1124
        %v1129 = vrsqrt.pop %v863
        %v1130 = vmul.f32 %v1129, %v863
        %v1131 = vmul.f32 %v1130, %v1129
        %v1132 = vmul.f32 0.5, %v1131
        %v1133 = vsub.f32 1.5, %v1132
        %v1134 = vmul.f32 %v1129, %v1133
        %vm1135 = vweird.f32 %v863
        %vm1136 = vweird.f32 %v1129
        %vm1137 = vmor %vm1135, %vm1136
        %v1138 = vsel %vm1137, %v1129, %v1134
        %v1139 = vrsqrt.pop %v864
        %v1140 = vmul.f32 %v1139, %v864
        %v1141 = vmul.f32 %v1140, %v1139
        %v1142 = vmul.f32 0.5, %v1141
        %v1143 = vsub.f32 1.5, %v1142
        %v1144 = vmul.f32 %v1139, %v1143
        %vm1145 = vweird.f32 %v864
        %vm1146 = vweird.f32 %v1139
        %vm1147 = vmor %vm1145, %vm1146
        %v1148 = vsel %vm1147, %v1139, %v1144
        %v1149 = vrsqrt.pop %v865
        %v1150 = vmul.f32 %v1149, %v865
        %v1151 = vmul.f32 %v1150, %v1149
        %v1152 = vmul.f32 0.5, %v1151
        %v1153 = vsub.f32 1.5, %v1152
        %v1154 = vmul.f32 %v1149, %v1153
        %vm1155 = vweird.f32 %v865
        %vm1156 = vweird.f32 %v1149
        %vm1157 = vmor %vm1155, %vm1156
        %v1158 = vsel %vm1157, %v1149, %v1154
        %v1159 = vrsqrt.pop %v866
        %v1160 = vmul.f32 %v1159, %v866
        %v1161 = vmul.f32 %v1160, %v1159
        %v1162 = vmul.f32 0.5, %v1161
        %v1163 = vsub.f32 1.5, %v1162
        %v1164 = vmul.f32 %v1159, %v1163
        %vm1165 = vweird.f32 %v866
        %vm1166 = vweird.f32 %v1159
        %vm1167 = vmor %vm1165, %vm1166
        %v1168 = vsel %vm1167, %v1159, %v1164
        %v1169 = vrsqrt.pop %v867
        %v1170 = vmul.f32 %v1169, %v867
        %v1171 = vmul.f32 %v1170, %v1169
        %v1172 = vmul.f32 0.5, %v1171
        %v1173 = vsub.f32 1.5, %v1172
        %v1174 = vmul.f32 %v1169, %v1173
        %vm1175 = vweird.f32 %v867
        %vm1176 = vweird.f32 %v1169
        %vm1177 = vmor %vm1175, %vm1176
        %v1178 = vsel %vm1177, %v1169, %v1174
        %v1179 = vrsqrt.pop %v868
        %v1180 = vmul.f32 %v1179, %v868
        %v1181 = vmul.f32 %v1180, %v1179
        %v1182 = vmul.f32 0.5, %v1181
        %v1183 = vsub.f32 1.5, %v1182
        %v1184 = vmul.f32 %v1179, %v1183
        %vm1185 = vweird.f32 %v868
        %vm1186 = vweird.f32 %v1179
        %vm1187 = vmor %vm1185, %vm1186
        %v1188 = vsel %vm1187, %v1179, %v1184
        %v1189 = vmul.f32 %v677, %v878
        %v1190 = vmul.f32 %v678, %v888
        %v1191 = vmul.f32 %v679, %v898
        %v1192 = vmul.f32 %v680, %v908
        %v1193 = vmul.f32 %v681, %v918
        %v1194 = vmul.f32 %v682, %v928
        %v1195 = vmul.f32 %v683, %v938
        %v1196 = vmul.f32 %v684, %v948
        %v1197 = vmul.f32 %v685, %v958
        %v1198 = vmul.f32 %v686, %v968
        %v1199 = vmul.f32 %v687, %v978
        %v1200 = vmul.f32 %v688, %v988
        %v1201 = vmul.f32 %v689, %v998
        %v1202 = vmul.f32 %v690, %v1008
        %v1203 = vmul.f32 %v691, %v1018
        %v1204 = vmul.f32 %v692, %v1028
        %v1205 = vmul.f32 %v693, %v1038
        %v1206 = vmul.f32 %v694, %v1048
        %v1207 = vmul.f32 %v695, %v1058
        %v1208 = vmul.f32 %v696, %v1068
        %v1209 = vmul.f32 %v697, %v1078
        %v1210 = vmul.f32 %v698, %v1088
        %v1211 = vmul.f32 %v699, %v1098
        %v1212 = vmul.f32 %v700, %v1108
        %v1213 = vmul.f32 %v701, %v1118
        %v1214 = vmul.f32 %v702, %v1128
        %v1215 = vmul.f32 %v703, %v1138
        %v1216 = vmul.f32 %v704, %v1148
        %v1217 = vmul.f32 %v705, %v1158
        %v1218 = vmul.f32 %v706, %v1168
        %v1219 = vmul.f32 %v707, %v1178
        %v1220 = vmul.f32 %v708, %v1188
        %v1221 = vperm.slane %v361, 0
        %v1222 = vmul.f32 %v1189, %v1221
        %v1223 = vmul.f32 %v1190, %v1221
        %v1224 = vmul.f32 %v1191, %v1221
        %v1225 = vmul.f32 %v1192, %v1221
        %v1226 = vmul.f32 %v1193, %v1221
        %v1227 = vmul.f32 %v1194, %v1221
        %v1228 = vmul.f32 %v1195, %v1221
        %v1229 = vmul.f32 %v1196, %v1221
        %v1230 = vmul.f32 %v1197, %v1221
        %v1231 = vmul.f32 %v1198, %v1221
        %v1232 = vmul.f32 %v1199, %v1221
        %v1233 = vmul.f32 %v1200, %v1221
        %v1234 = vmul.f32 %v1201, %v1221
        %v1235 = vmul.f32 %v1202, %v1221
        %v1236 = vmul.f32 %v1203, %v1221
        %v1237 = vmul.f32 %v1204, %v1221
        %v1238 = vmul.f32 %v1205, %v1221
        %v1239 = vmul.f32 %v1206, %v1221
        %v1240 = vmul.f32 %v1207, %v1221
        %v1241 = vmul.f32 %v1208, %v1221
        %v1242 = vmul.f32 %v1209, %v1221
        %v1243 = vmul.f32 %v1210, %v1221
        %v1244 = vmul.f32 %v1211, %v1221
        %v1245 = vmul.f32 %v1212, %v1221
        %v1246 = vmul.f32 %v1213, %v1221
        %v1247 = vmul.f32 %v1214, %v1221
        %v1248 = vmul.f32 %v1215, %v1221
        %v1249 = vmul.f32 %v1216, %v1221
        %v1250 = vmul.f32 %v1217, %v1221
        %v1251 = vmul.f32 %v1218, %v1221
        %v1252 = vmul.f32 %v1219, %v1221
        %v1253 = vmul.f32 %v1220, %v1221
        %v1254 = vperm.slane %v362, 0
        %v1255 = vadd.f32 %v1222, %v1254
        %v1256 = vadd.f32 %v1223, %v1254
        %v1257 = vadd.f32 %v1224, %v1254
        %v1258 = vadd.f32 %v1225, %v1254
        %v1259 = vadd.f32 %v1226, %v1254
        %v1260 = vadd.f32 %v1227, %v1254
        %v1261 = vadd.f32 %v1228, %v1254
        %v1262 = vadd.f32 %v1229, %v1254
        %v1263 = vadd.f32 %v1230, %v1254
        %v1264 = vadd.f32 %v1231, %v1254
        %v1265 = vadd.f32 %v1232, %v1254
        %v1266 = vadd.f32 %v1233, %v1254
        %v1267 = vadd.f32 %v1234, %v1254
        %v1268 = vadd.f32 %v1235, %v1254
        %v1269 = vadd.f32 %v1236, %v1254
        %v1270 = vadd.f32 %v1237, %v1254
        %v1271 = vadd.f32 %v1238, %v1254
        %v1272 = vadd.f32 %v1239, %v1254
        %v1273 = vadd.f32 %v1240, %v1254
        %v1274 = vadd.f32 %v1241, %v1254
        %v1275 = vadd.f32 %v1242, %v1254
        %v1276 = vadd.f32 %v1243, %v1254
        %v1277 = vadd.f32 %v1244, %v1254
        %v1278 = vadd.f32 %v1245, %v1254
        %v1279 = vadd.f32 %v1246, %v1254
        %v1280 = vadd.f32 %v1247, %v1254
        %v1281 = vadd.f32 %v1248, %v1254
        %v1282 = vadd.f32 %v1249, %v1254
        %v1283 = vadd.f32 %v1250, %v1254
        %v1284 = vadd.f32 %v1251, %v1254
        %v1285 = vadd.f32 %v1252, %v1254
        %v1286 = vadd.f32 %v1253, %v1254
        %v1287 = vpack.c.bf16 %v1256, %v1255
        %v1288 = vpack.c.bf16 %v1258, %v1257
        %v1289 = vpack.c.bf16 %v1260, %v1259
        %v1290 = vpack.c.bf16 %v1262, %v1261
        %v1291 = vpack.c.bf16 %v1264, %v1263
        %v1292 = vpack.c.bf16 %v1266, %v1265
        %v1293 = vpack.c.bf16 %v1268, %v1267
        %v1294 = vpack.c.bf16 %v1270, %v1269
        %v1295 = vpack.c.bf16 %v1272, %v1271
        %v1296 = vpack.c.bf16 %v1274, %v1273
        %v1297 = vpack.c.bf16 %v1276, %v1275
        %v1298 = vpack.c.bf16 %v1278, %v1277
        %v1299 = vpack.c.bf16 %v1280, %v1279
        %v1300 = vpack.c.bf16 %v1282, %v1281
        %v1301 = vpack.c.bf16 %v1284, %v1283
        %v1302 = vpack.c.bf16 %v1286, %v1285
        %1304 = vset.pattern.permute.xlu0 0
        %1305 = vperm.xlu0 %1304, %v366
        %v1306 = vpop.permute.xlu0 %1305
        %1309 = vset.pattern.permute.xlu0 0
        %1310 = vperm.xlu0 %1309, %v367
        %v1311 = vpop.permute.xlu0 %1310
        %1314 = vset.pattern.permute.xlu0 0
        %1315 = vperm.xlu0 %1314, %v368
        %v1316 = vpop.permute.xlu0 %1315
        %1319 = vset.pattern.permute.xlu0 0
        %1320 = vperm.xlu0 %1319, %v369
        %v1321 = vpop.permute.xlu0 %1320
        %1324 = vset.pattern.permute.xlu0 0
        %1325 = vperm.xlu0 %1324, %v370
        %v1326 = vpop.permute.xlu0 %1325
        %1329 = vset.pattern.permute.xlu0 0
        %1330 = vperm.xlu0 %1329, %v371
        %v1331 = vpop.permute.xlu0 %1330
        %1334 = vset.pattern.permute.xlu0 0
        %1335 = vperm.xlu0 %1334, %v372
        %v1336 = vpop.permute.xlu0 %1335
        %1339 = vset.pattern.permute.xlu0 0
        %1340 = vperm.xlu0 %1339, %v373
        %v1341 = vpop.permute.xlu0 %1340
        %1344 = vset.pattern.permute.xlu0 0
        %1345 = vperm.xlu0 %1344, %v374
        %v1346 = vpop.permute.xlu0 %1345
        %1349 = vset.pattern.permute.xlu0 0
        %1350 = vperm.xlu0 %1349, %v375
        %v1351 = vpop.permute.xlu0 %1350
        %1354 = vset.pattern.permute.xlu0 0
        %1355 = vperm.xlu0 %1354, %v376
        %v1356 = vpop.permute.xlu0 %1355
        %1359 = vset.pattern.permute.xlu0 0
        %1360 = vperm.xlu0 %1359, %v377
        %v1361 = vpop.permute.xlu0 %1360
        %1364 = vset.pattern.permute.xlu0 0
        %1365 = vperm.xlu0 %1364, %v378
        %v1366 = vpop.permute.xlu0 %1365
        %1369 = vset.pattern.permute.xlu0 0
        %1370 = vperm.xlu0 %1369, %v379
        %v1371 = vpop.permute.xlu0 %1370
        %1374 = vset.pattern.permute.xlu0 0
        %1375 = vperm.xlu0 %1374, %v380
        %v1376 = vpop.permute.xlu0 %1375
        %1379 = vset.pattern.permute.xlu0 0
        %1380 = vperm.xlu0 %1379, %v381
        %v1381 = vpop.permute.xlu0 %1380
        %1384 = vset.pattern.permute.xlu0 0
        %1385 = vperm.xlu0 %1384, %v382
        %v1386 = vpop.permute.xlu0 %1385
        %1389 = vset.pattern.permute.xlu0 0
        %1390 = vperm.xlu0 %1389, %v383
        %v1391 = vpop.permute.xlu0 %1390
        %1394 = vset.pattern.permute.xlu0 0
        %1395 = vperm.xlu0 %1394, %v384
        %v1396 = vpop.permute.xlu0 %1395
        %1399 = vset.pattern.permute.xlu0 0
        %1400 = vperm.xlu0 %1399, %v385
        %v1401 = vpop.permute.xlu0 %1400
        %1404 = vset.pattern.permute.xlu0 0
        %1405 = vperm.xlu0 %1404, %v386
        %v1406 = vpop.permute.xlu0 %1405
        %1409 = vset.pattern.permute.xlu0 0
        %1410 = vperm.xlu0 %1409, %v387
        %v1411 = vpop.permute.xlu0 %1410
        %1414 = vset.pattern.permute.xlu0 0
        %1415 = vperm.xlu0 %1414, %v388
        %v1416 = vpop.permute.xlu0 %1415
        %1419 = vset.pattern.permute.xlu0 0
        %1420 = vperm.xlu0 %1419, %v389
        %v1421 = vpop.permute.xlu0 %1420
        %1424 = vset.pattern.permute.xlu0 0
        %1425 = vperm.xlu0 %1424, %v390
        %v1426 = vpop.permute.xlu0 %1425
        %1429 = vset.pattern.permute.xlu0 0
        %1430 = vperm.xlu0 %1429, %v391
        %v1431 = vpop.permute.xlu0 %1430
        %1434 = vset.pattern.permute.xlu0 0
        %1435 = vperm.xlu0 %1434, %v392
        %v1436 = vpop.permute.xlu0 %1435
        %1439 = vset.pattern.permute.xlu0 0
        %1440 = vperm.xlu0 %1439, %v393
        %v1441 = vpop.permute.xlu0 %1440
        %1444 = vset.pattern.permute.xlu0 0
        %1445 = vperm.xlu0 %1444, %v394
        %v1446 = vpop.permute.xlu0 %1445
        %1449 = vset.pattern.permute.xlu0 0
        %1450 = vperm.xlu0 %1449, %v395
        %v1451 = vpop.permute.xlu0 %1450
        %1454 = vset.pattern.permute.xlu0 0
        %1455 = vperm.xlu0 %1454, %v396
        %v1456 = vpop.permute.xlu0 %1455
        %1459 = vset.pattern.permute.xlu0 0
        %1460 = vperm.xlu0 %1459, %v397
        %v1461 = vpop.permute.xlu0 %1460
        %v1495 = vunpack.c.l.b16 %v430
        %v1496 = vunpack.c.h.b16 %v430
        %v1497 = vunpack.c.l.b16 %v431
        %v1498 = vunpack.c.h.b16 %v431
        %v1499 = vunpack.c.l.b16 %v432
        %v1500 = vunpack.c.h.b16 %v432
        %v1501 = vunpack.c.l.b16 %v433
        %v1502 = vunpack.c.h.b16 %v433
        %v1503 = vunpack.c.l.b16 %v434
        %v1504 = vunpack.c.h.b16 %v434
        %v1505 = vunpack.c.l.b16 %v435
        %v1506 = vunpack.c.h.b16 %v435
        %v1507 = vunpack.c.l.b16 %v436
        %v1508 = vunpack.c.h.b16 %v436
        %v1509 = vunpack.c.l.b16 %v437
        %v1510 = vunpack.c.h.b16 %v437
        %v1511 = vunpack.c.l.b16 %v438
        %v1512 = vunpack.c.h.b16 %v438
        %v1513 = vunpack.c.l.b16 %v439
        %v1514 = vunpack.c.h.b16 %v439
        %v1515 = vunpack.c.l.b16 %v440
        %v1516 = vunpack.c.h.b16 %v440
        %v1517 = vunpack.c.l.b16 %v441
        %v1518 = vunpack.c.h.b16 %v441
        %v1519 = vunpack.c.l.b16 %v442
        %v1520 = vunpack.c.h.b16 %v442
        %v1521 = vunpack.c.l.b16 %v443
        %v1522 = vunpack.c.h.b16 %v443
        %v1523 = vunpack.c.l.b16 %v444
        %v1524 = vunpack.c.h.b16 %v444
        %v1525 = vunpack.c.l.b16 %v445
        %v1526 = vunpack.c.h.b16 %v445
        %v1527 = vunpack.c.l.b16 %v446
        %v1528 = vunpack.c.h.b16 %v446
        %v1529 = vunpack.c.l.b16 %v447
        %v1530 = vunpack.c.h.b16 %v447
        %v1531 = vunpack.c.l.b16 %v448
        %v1532 = vunpack.c.h.b16 %v448
        %v1533 = vunpack.c.l.b16 %v449
        %v1534 = vunpack.c.h.b16 %v449
        %v1535 = vunpack.c.l.b16 %v450
        %v1536 = vunpack.c.h.b16 %v450
        %v1537 = vunpack.c.l.b16 %v451
        %v1538 = vunpack.c.h.b16 %v451
        %v1539 = vunpack.c.l.b16 %v452
        %v1540 = vunpack.c.h.b16 %v452
        %v1541 = vunpack.c.l.b16 %v453
        %v1542 = vunpack.c.h.b16 %v453
        %v1543 = vunpack.c.l.b16 %v454
        %v1544 = vunpack.c.h.b16 %v454
        %v1545 = vunpack.c.l.b16 %v455
        %v1546 = vunpack.c.h.b16 %v455
        %v1547 = vunpack.c.l.b16 %v456
        %v1548 = vunpack.c.h.b16 %v456
        %v1549 = vunpack.c.l.b16 %v457
        %v1550 = vunpack.c.h.b16 %v457
        %v1551 = vunpack.c.l.b16 %v458
        %v1552 = vunpack.c.h.b16 %v458
        %v1553 = vunpack.c.l.b16 %v459
        %v1554 = vunpack.c.h.b16 %v459
        %v1555 = vunpack.c.l.b16 %v460
        %v1556 = vunpack.c.h.b16 %v460
        %v1557 = vunpack.c.l.b16 %v461
        %v1558 = vunpack.c.h.b16 %v461
        %v1559 = vpack.c.b16 %v1497, %v1495
        %v1560 = vpack.c.b16 %v1498, %v1496
        %v1561 = vpack.c.b16 %v1501, %v1499
        %v1562 = vpack.c.b16 %v1502, %v1500
        %v1563 = vpack.c.b16 %v1505, %v1503
        %v1564 = vpack.c.b16 %v1506, %v1504
        %v1565 = vpack.c.b16 %v1509, %v1507
        %v1566 = vpack.c.b16 %v1510, %v1508
        %v1567 = vpack.c.b16 %v1513, %v1511
        %v1568 = vpack.c.b16 %v1514, %v1512
        %v1569 = vpack.c.b16 %v1517, %v1515
        %v1570 = vpack.c.b16 %v1518, %v1516
        %v1571 = vpack.c.b16 %v1521, %v1519
        %v1572 = vpack.c.b16 %v1522, %v1520
        %v1573 = vpack.c.b16 %v1525, %v1523
        %v1574 = vpack.c.b16 %v1526, %v1524
        %v1575 = vpack.c.b16 %v1529, %v1527
        %v1576 = vpack.c.b16 %v1530, %v1528
        %v1577 = vpack.c.b16 %v1533, %v1531
        %v1578 = vpack.c.b16 %v1534, %v1532
        %v1579 = vpack.c.b16 %v1537, %v1535
        %v1580 = vpack.c.b16 %v1538, %v1536
        %v1581 = vpack.c.b16 %v1541, %v1539
        %v1582 = vpack.c.b16 %v1542, %v1540
        %v1583 = vpack.c.b16 %v1545, %v1543
        %v1584 = vpack.c.b16 %v1546, %v1544
        %v1585 = vpack.c.b16 %v1549, %v1547
        %v1586 = vpack.c.b16 %v1550, %v1548
        %v1587 = vpack.c.b16 %v1553, %v1551
        %v1588 = vpack.c.b16 %v1554, %v1552
        %v1589 = vpack.c.b16 %v1557, %v1555
        %v1590 = vpack.c.b16 %v1558, %v1556
        %1623 = vmatpush.bf16.msra.mxu0 %v1294
        %1624 = vmatpush.bf16.msra.mxu0 %v1293
        %1625 = vmatpush.bf16.msra.mxu0 %v1292
        %1626 = vmatpush.bf16.msra.mxu0 %v1291
        %1627 = vmatpush.bf16.msra.mxu0 %v1290
        %1628 = vmatpush.bf16.msra.mxu0 %v1289
        %1629 = vmatpush.bf16.msra.mxu0 %v1288
        %1630 = vmatpush.bf16.msra.mxu0 %v1287
        %1631 = vmatmul.bf16.gmra.mxu0 %v1559
        %v1632 = vpop.f32.mrf.mxu0
        %v1633 = vadd.f32 %v1306, %v1632
        %v1634 = vpop.f32.mrf.mxu0
        %v1635 = vadd.f32 %v1311, %v1634
        %1636 = vmatmul.bf16.gmra.mxu0 %v1561
        %v1637 = vpop.f32.mrf.mxu0
        %v1638 = vadd.f32 %v1316, %v1637
        %v1639 = vpop.f32.mrf.mxu0
        %v1640 = vadd.f32 %v1321, %v1639
        %1641 = vmatmul.bf16.gmra.mxu0 %v1563
        %v1642 = vpop.f32.mrf.mxu0
        %v1643 = vadd.f32 %v1326, %v1642
        %v1644 = vpop.f32.mrf.mxu0
        %v1645 = vadd.f32 %v1331, %v1644
        %1646 = vmatmul.bf16.gmra.mxu0 %v1565
        %v1647 = vpop.f32.mrf.mxu0
        %v1648 = vadd.f32 %v1336, %v1647
        %v1649 = vpop.f32.mrf.mxu0
        %v1650 = vadd.f32 %v1341, %v1649
        %1651 = vmatmul.bf16.gmra.mxu0 %v1567
        %v1652 = vpop.f32.mrf.mxu0
        %v1653 = vadd.f32 %v1346, %v1652
        %v1654 = vpop.f32.mrf.mxu0
        %v1655 = vadd.f32 %v1351, %v1654
        %1656 = vmatmul.bf16.gmra.mxu0 %v1569
        %v1657 = vpop.f32.mrf.mxu0
        %v1658 = vadd.f32 %v1356, %v1657
        %v1659 = vpop.f32.mrf.mxu0
        %v1660 = vadd.f32 %v1361, %v1659
        %1661 = vmatmul.bf16.gmra.mxu0 %v1571
        %v1662 = vpop.f32.mrf.mxu0
        %v1663 = vadd.f32 %v1366, %v1662
        %v1664 = vpop.f32.mrf.mxu0
        %v1665 = vadd.f32 %v1371, %v1664
        %1666 = vmatmul.bf16.gmra.mxu0 %v1573
        %v1667 = vpop.f32.mrf.mxu0
        %v1668 = vadd.f32 %v1376, %v1667
        %v1669 = vpop.f32.mrf.mxu0
        %v1670 = vadd.f32 %v1381, %v1669
        %1671 = vmatmul.bf16.gmra.mxu0 %v1575
        %v1672 = vpop.f32.mrf.mxu0
        %v1673 = vadd.f32 %v1386, %v1672
        %v1674 = vpop.f32.mrf.mxu0
        %v1675 = vadd.f32 %v1391, %v1674
        %1676 = vmatmul.bf16.gmra.mxu0 %v1577
        %v1677 = vpop.f32.mrf.mxu0
        %v1678 = vadd.f32 %v1396, %v1677
        %v1679 = vpop.f32.mrf.mxu0
        %v1680 = vadd.f32 %v1401, %v1679
        %1681 = vmatmul.bf16.gmra.mxu0 %v1579
        %v1682 = vpop.f32.mrf.mxu0
        %v1683 = vadd.f32 %v1406, %v1682
        %v1684 = vpop.f32.mrf.mxu0
        %v1685 = vadd.f32 %v1411, %v1684
        %1686 = vmatmul.bf16.gmra.mxu0 %v1581
        %v1687 = vpop.f32.mrf.mxu0
        %v1688 = vadd.f32 %v1416, %v1687
        %v1689 = vpop.f32.mrf.mxu0
        %v1690 = vadd.f32 %v1421, %v1689
        %1691 = vmatmul.bf16.gmra.mxu0 %v1583
        %v1692 = vpop.f32.mrf.mxu0
        %v1693 = vadd.f32 %v1426, %v1692
        %v1694 = vpop.f32.mrf.mxu0
        %v1695 = vadd.f32 %v1431, %v1694
        %1696 = vmatmul.bf16.gmra.mxu0 %v1585
        %v1697 = vpop.f32.mrf.mxu0
        %v1698 = vadd.f32 %v1436, %v1697
        %v1699 = vpop.f32.mrf.mxu0
        %v1700 = vadd.f32 %v1441, %v1699
        %1701 = vmatmul.bf16.gmra.mxu0 %v1587
        %v1702 = vpop.f32.mrf.mxu0
        %v1703 = vadd.f32 %v1446, %v1702
        %v1704 = vpop.f32.mrf.mxu0
        %v1705 = vadd.f32 %v1451, %v1704
        %1706 = vmatmul.bf16.gmra.mxu0 %v1589
        %v1707 = vpop.f32.mrf.mxu0
        %v1708 = vadd.f32 %v1456, %v1707
        %v1709 = vpop.f32.mrf.mxu0
        %v1710 = vadd.f32 %v1461, %v1709
        %1711 = vdwg.mxu0
        %1712 = vmatpush.bf16.msra.mxu0 %v1302
        %1713 = vmatpush.bf16.msra.mxu0 %v1301
        %1714 = vmatpush.bf16.msra.mxu0 %v1300
        %1715 = vmatpush.bf16.msra.mxu0 %v1299
        %1716 = vmatpush.bf16.msra.mxu0 %v1298
        %1717 = vmatpush.bf16.msra.mxu0 %v1297
        %1718 = vmatpush.bf16.msra.mxu0 %v1296
        %1719 = vmatpush.bf16.msra.mxu0 %v1295
        %1720 = vmatmul.bf16.gmra.mxu0 %v1560
        %v1721 = vpop.f32.mrf.mxu0
        %v1722 = vadd.f32 %v1633, %v1721
        %v1723 = vpop.f32.mrf.mxu0
        %v1724 = vadd.f32 %v1635, %v1723
        %1725 = vmatmul.bf16.gmra.mxu0 %v1562
        %v1726 = vpop.f32.mrf.mxu0
        %v1727 = vadd.f32 %v1638, %v1726
        %v1728 = vpop.f32.mrf.mxu0
        %v1729 = vadd.f32 %v1640, %v1728
        %1730 = vmatmul.bf16.gmra.mxu0 %v1564
        %v1731 = vpop.f32.mrf.mxu0
        %v1732 = vadd.f32 %v1643, %v1731
        %v1733 = vpop.f32.mrf.mxu0
        %v1734 = vadd.f32 %v1645, %v1733
        %1735 = vmatmul.bf16.gmra.mxu0 %v1566
        %v1736 = vpop.f32.mrf.mxu0
        %v1737 = vadd.f32 %v1648, %v1736
        %v1738 = vpop.f32.mrf.mxu0
        %v1739 = vadd.f32 %v1650, %v1738
        %1740 = vmatmul.bf16.gmra.mxu0 %v1568
        %v1741 = vpop.f32.mrf.mxu0
        %v1742 = vadd.f32 %v1653, %v1741
        %v1743 = vpop.f32.mrf.mxu0
        %v1744 = vadd.f32 %v1655, %v1743
        %1745 = vmatmul.bf16.gmra.mxu0 %v1570
        %v1746 = vpop.f32.mrf.mxu0
        %v1747 = vadd.f32 %v1658, %v1746
        %v1748 = vpop.f32.mrf.mxu0
        %v1749 = vadd.f32 %v1660, %v1748
        %1750 = vmatmul.bf16.gmra.mxu0 %v1572
        %v1751 = vpop.f32.mrf.mxu0
        %v1752 = vadd.f32 %v1663, %v1751
        %v1753 = vpop.f32.mrf.mxu0
        %v1754 = vadd.f32 %v1665, %v1753
        %1755 = vmatmul.bf16.gmra.mxu0 %v1574
        %v1756 = vpop.f32.mrf.mxu0
        %v1757 = vadd.f32 %v1668, %v1756
        %v1758 = vpop.f32.mrf.mxu0
        %v1759 = vadd.f32 %v1670, %v1758
        %1760 = vmatmul.bf16.gmra.mxu0 %v1576
        %v1761 = vpop.f32.mrf.mxu0
        %v1762 = vadd.f32 %v1673, %v1761
        %v1763 = vpop.f32.mrf.mxu0
        %v1764 = vadd.f32 %v1675, %v1763
        %1765 = vmatmul.bf16.gmra.mxu0 %v1578
        %v1766 = vpop.f32.mrf.mxu0
        %v1767 = vadd.f32 %v1678, %v1766
        %v1768 = vpop.f32.mrf.mxu0
        %v1769 = vadd.f32 %v1680, %v1768
        %1770 = vmatmul.bf16.gmra.mxu0 %v1580
        %v1771 = vpop.f32.mrf.mxu0
        %v1772 = vadd.f32 %v1683, %v1771
        %v1773 = vpop.f32.mrf.mxu0
        %v1774 = vadd.f32 %v1685, %v1773
        %1775 = vmatmul.bf16.gmra.mxu0 %v1582
        %v1776 = vpop.f32.mrf.mxu0
        %v1777 = vadd.f32 %v1688, %v1776
        %v1778 = vpop.f32.mrf.mxu0
        %v1779 = vadd.f32 %v1690, %v1778
        %1780 = vmatmul.bf16.gmra.mxu0 %v1584
        %v1781 = vpop.f32.mrf.mxu0
        %v1782 = vadd.f32 %v1693, %v1781
        %v1783 = vpop.f32.mrf.mxu0
        %v1784 = vadd.f32 %v1695, %v1783
        %1785 = vmatmul.bf16.gmra.mxu0 %v1586
        %v1786 = vpop.f32.mrf.mxu0
        %v1787 = vadd.f32 %v1698, %v1786
        %v1788 = vpop.f32.mrf.mxu0
        %v1789 = vadd.f32 %v1700, %v1788
        %1790 = vmatmul.bf16.gmra.mxu0 %v1588
        %v1791 = vpop.f32.mrf.mxu0
        %v1792 = vadd.f32 %v1703, %v1791
        %v1793 = vpop.f32.mrf.mxu0
        %v1794 = vadd.f32 %v1705, %v1793
        %1795 = vmatmul.bf16.gmra.mxu0 %v1590
        %v1796 = vpop.f32.mrf.mxu0
        %v1797 = vadd.f32 %v1708, %v1796
        %v1798 = vpop.f32.mrf.mxu0
        %v1799 = vadd.f32 %v1710, %v1798
        %1800 = vdwg.mxu0
        %v1801 = vmul.f32 %v1722, %v1722
        %v1802 = vmul.f32 %v1724, %v1724
        %v1803 = vmul.f32 %v1727, %v1727
        %v1804 = vmul.f32 %v1729, %v1729
        %v1805 = vmul.f32 %v1732, %v1732
        %v1806 = vmul.f32 %v1734, %v1734
        %v1807 = vmul.f32 %v1737, %v1737
        %v1808 = vmul.f32 %v1739, %v1739
        %v1809 = vmul.f32 %v1742, %v1742
        %v1810 = vmul.f32 %v1744, %v1744
        %v1811 = vmul.f32 %v1747, %v1747
        %v1812 = vmul.f32 %v1749, %v1749
        %v1813 = vmul.f32 %v1752, %v1752
        %v1814 = vmul.f32 %v1754, %v1754
        %v1815 = vmul.f32 %v1757, %v1757
        %v1816 = vmul.f32 %v1759, %v1759
        %v1817 = vmul.f32 %v1762, %v1762
        %v1818 = vmul.f32 %v1764, %v1764
        %v1819 = vmul.f32 %v1767, %v1767
        %v1820 = vmul.f32 %v1769, %v1769
        %v1821 = vmul.f32 %v1772, %v1772
        %v1822 = vmul.f32 %v1774, %v1774
        %v1823 = vmul.f32 %v1777, %v1777
        %v1824 = vmul.f32 %v1779, %v1779
        %v1825 = vmul.f32 %v1782, %v1782
        %v1826 = vmul.f32 %v1784, %v1784
        %v1827 = vmul.f32 %v1787, %v1787
        %v1828 = vmul.f32 %v1789, %v1789
        %v1829 = vmul.f32 %v1792, %v1792
        %v1830 = vmul.f32 %v1794, %v1794
        %v1831 = vmul.f32 %v1797, %v1797
        %v1832 = vmul.f32 %v1799, %v1799
        %v1833 = vmul.f32 %v1722, %v1801
        %v1834 = vmul.f32 %v1724, %v1802
        %v1835 = vmul.f32 %v1727, %v1803
        %v1836 = vmul.f32 %v1729, %v1804
        %v1837 = vmul.f32 %v1732, %v1805
        %v1838 = vmul.f32 %v1734, %v1806
        %v1839 = vmul.f32 %v1737, %v1807
        %v1840 = vmul.f32 %v1739, %v1808
        %v1841 = vmul.f32 %v1742, %v1809
        %v1842 = vmul.f32 %v1744, %v1810
        %v1843 = vmul.f32 %v1747, %v1811
        %v1844 = vmul.f32 %v1749, %v1812
        %v1845 = vmul.f32 %v1752, %v1813
        %v1846 = vmul.f32 %v1754, %v1814
        %v1847 = vmul.f32 %v1757, %v1815
        %v1848 = vmul.f32 %v1759, %v1816
        %v1849 = vmul.f32 %v1762, %v1817
        %v1850 = vmul.f32 %v1764, %v1818
        %v1851 = vmul.f32 %v1767, %v1819
        %v1852 = vmul.f32 %v1769, %v1820
        %v1853 = vmul.f32 %v1772, %v1821
        %v1854 = vmul.f32 %v1774, %v1822
        %v1855 = vmul.f32 %v1777, %v1823
        %v1856 = vmul.f32 %v1779, %v1824
        %v1857 = vmul.f32 %v1782, %v1825
        %v1858 = vmul.f32 %v1784, %v1826
        %v1859 = vmul.f32 %v1787, %v1827
        %v1860 = vmul.f32 %v1789, %v1828
        %v1861 = vmul.f32 %v1792, %v1829
        %v1862 = vmul.f32 %v1794, %v1830
        %v1863 = vmul.f32 %v1797, %v1831
        %v1864 = vmul.f32 %v1799, %v1832
        %v1865 = vmul.f32 %v1833, 0.044715
        %v1866 = vmul.f32 %v1834, 0.044715
        %v1867 = vmul.f32 %v1835, 0.044715
        %v1868 = vmul.f32 %v1836, 0.044715
        %v1869 = vmul.f32 %v1837, 0.044715
        %v1870 = vmul.f32 %v1838, 0.044715
        %v1871 = vmul.f32 %v1839, 0.044715
        %v1872 = vmul.f32 %v1840, 0.044715
        %v1873 = vmul.f32 %v1841, 0.044715
        %v1874 = vmul.f32 %v1842, 0.044715
        %v1875 = vmul.f32 %v1843, 0.044715
        %v1876 = vmul.f32 %v1844, 0.044715
        %v1877 = vmul.f32 %v1845, 0.044715
        %v1878 = vmul.f32 %v1846, 0.044715
        %v1879 = vmul.f32 %v1847, 0.044715
        %v1880 = vmul.f32 %v1848, 0.044715
        %v1881 = vmul.f32 %v1849, 0.044715
        %v1882 = vmul.f32 %v1850, 0.044715
        %v1883 = vmul.f32 %v1851, 0.044715
        %v1884 = vmul.f32 %v1852, 0.044715
        %v1885 = vmul.f32 %v1853, 0.044715
        %v1886 = vmul.f32 %v1854, 0.044715
        %v1887 = vmul.f32 %v1855, 0.044715
        %v1888 = vmul.f32 %v1856, 0.044715
        %v1889 = vmul.f32 %v1857, 0.044715
        %v1890 = vmul.f32 %v1858, 0.044715
        %v1891 = vmul.f32 %v1859, 0.044715
        %v1892 = vmul.f32 %v1860, 0.044715
        %v1893 = vmul.f32 %v1861, 0.044715
        %v1894 = vmul.f32 %v1862, 0.044715
        %v1895 = vmul.f32 %v1863, 0.044715
        %v1896 = vmul.f32 %v1864, 0.044715
        %v1897 = vadd.f32 %v1722, %v1865
        %v1898 = vadd.f32 %v1724, %v1866
        %v1899 = vadd.f32 %v1727, %v1867
        %v1900 = vadd.f32 %v1729, %v1868
        %v1901 = vadd.f32 %v1732, %v1869
        %v1902 = vadd.f32 %v1734, %v1870
        %v1903 = vadd.f32 %v1737, %v1871
        %v1904 = vadd.f32 %v1739, %v1872
        %v1905 = vadd.f32 %v1742, %v1873
        %v1906 = vadd.f32 %v1744, %v1874
        %v1907 = vadd.f32 %v1747, %v1875
        %v1908 = vadd.f32 %v1749, %v1876
        %v1909 = vadd.f32 %v1752, %v1877
        %v1910 = vadd.f32 %v1754, %v1878
        %v1911 = vadd.f32 %v1757, %v1879
        %v1912 = vadd.f32 %v1759, %v1880
        %v1913 = vadd.f32 %v1762, %v1881
        %v1914 = vadd.f32 %v1764, %v1882
        %v1915 = vadd.f32 %v1767, %v1883
        %v1916 = vadd.f32 %v1769, %v1884
        %v1917 = vadd.f32 %v1772, %v1885
        %v1918 = vadd.f32 %v1774, %v1886
        %v1919 = vadd.f32 %v1777, %v1887
        %v1920 = vadd.f32 %v1779, %v1888
        %v1921 = vadd.f32 %v1782, %v1889
        %v1922 = vadd.f32 %v1784, %v1890
        %v1923 = vadd.f32 %v1787, %v1891
        %v1924 = vadd.f32 %v1789, %v1892
        %v1925 = vadd.f32 %v1792, %v1893
        %v1926 = vadd.f32 %v1794, %v1894
        %v1927 = vadd.f32 %v1797, %v1895
        %v1928 = vadd.f32 %v1799, %v1896
        %v1929 = vmul.f32 %v1897, 0.7978846
        %v1930 = vmul.f32 %v1898, 0.7978846
        %v1931 = vmul.f32 %v1899, 0.7978846
        %v1932 = vmul.f32 %v1900, 0.7978846
        %v1933 = vmul.f32 %v1901, 0.7978846
        %v1934 = vmul.f32 %v1902, 0.7978846
        %v1935 = vmul.f32 %v1903, 0.7978846
        %v1936 = vmul.f32 %v1904, 0.7978846
        %v1937 = vmul.f32 %v1905, 0.7978846
        %v1938 = vmul.f32 %v1906, 0.7978846
        %v1939 = vmul.f32 %v1907, 0.7978846
        %v1940 = vmul.f32 %v1908, 0.7978846
        %v1941 = vmul.f32 %v1909, 0.7978846
        %v1942 = vmul.f32 %v1910, 0.7978846
        %v1943 = vmul.f32 %v1911, 0.7978846
        %v1944 = vmul.f32 %v1912, 0.7978846
        %v1945 = vmul.f32 %v1913, 0.7978846
        %v1946 = vmul.f32 %v1914, 0.7978846
        %v1947 = vmul.f32 %v1915, 0.7978846
        %v1948 = vmul.f32 %v1916, 0.7978846
        %v1949 = vmul.f32 %v1917, 0.7978846
        %v1950 = vmul.f32 %v1918, 0.7978846
        %v1951 = vmul.f32 %v1919, 0.7978846
        %v1952 = vmul.f32 %v1920, 0.7978846
        %v1953 = vmul.f32 %v1921, 0.7978846
        %v1954 = vmul.f32 %v1922, 0.7978846
        %v1955 = vmul.f32 %v1923, 0.7978846
        %v1956 = vmul.f32 %v1924, 0.7978846
        %v1957 = vmul.f32 %v1925, 0.7978846
        %v1958 = vmul.f32 %v1926, 0.7978846
        %v1959 = vmul.f32 %v1927, 0.7978846
        %v1960 = vmul.f32 %v1928, 0.7978846
        %v1961 = vtanh.pop %v1929
        %v1962 = vtanh.pop %v1930
        %v1963 = vtanh.pop %v1931
        %v1964 = vtanh.pop %v1932
        %v1965 = vtanh.pop %v1933
        %v1966 = vtanh.pop %v1934
        %v1967 = vtanh.pop %v1935
        %v1968 = vtanh.pop %v1936
        %v1969 = vtanh.pop %v1937
        %v1970 = vtanh.pop %v1938
        %v1971 = vtanh.pop %v1939
        %v1972 = vtanh.pop %v1940
        %v1973 = vtanh.pop %v1941
        %v1974 = vtanh.pop %v1942
        %v1975 = vtanh.pop %v1943
        %v1976 = vtanh.pop %v1944
        %v1977 = vtanh.pop %v1945
        %v1978 = vtanh.pop %v1946
        %v1979 = vtanh.pop %v1947
        %v1980 = vtanh.pop %v1948
        %v1981 = vtanh.pop %v1949
        %v1982 = vtanh.pop %v1950
        %v1983 = vtanh.pop %v1951
        %v1984 = vtanh.pop %v1952
        %v1985 = vtanh.pop %v1953
        %v1986 = vtanh.pop %v1954
        %v1987 = vtanh.pop %v1955
        %v1988 = vtanh.pop %v1956
        %v1989 = vtanh.pop %v1957
        %v1990 = vtanh.pop %v1958
        %v1991 = vtanh.pop %v1959
        %v1992 = vtanh.pop %v1960
        %v1993 = vadd.f32 %v1961, 1.0
        %v1994 = vadd.f32 %v1962, 1.0
        %v1995 = vadd.f32 %v1963, 1.0
        %v1996 = vadd.f32 %v1964, 1.0
        %v1997 = vadd.f32 %v1965, 1.0
        %v1998 = vadd.f32 %v1966, 1.0
        %v1999 = vadd.f32 %v1967, 1.0
        %v2000 = vadd.f32 %v1968, 1.0
        %v2001 = vadd.f32 %v1969, 1.0
        %v2002 = vadd.f32 %v1970, 1.0
        %v2003 = vadd.f32 %v1971, 1.0
        %v2004 = vadd.f32 %v1972, 1.0
        %v2005 = vadd.f32 %v1973, 1.0
        %v2006 = vadd.f32 %v1974, 1.0
        %v2007 = vadd.f32 %v1975, 1.0
        %v2008 = vadd.f32 %v1976, 1.0
        %v2009 = vadd.f32 %v1977, 1.0
        %v2010 = vadd.f32 %v1978, 1.0
        %v2011 = vadd.f32 %v1979, 1.0
        %v2012 = vadd.f32 %v1980, 1.0
        %v2013 = vadd.f32 %v1981, 1.0
        %v2014 = vadd.f32 %v1982, 1.0
        %v2015 = vadd.f32 %v1983, 1.0
        %v2016 = vadd.f32 %v1984, 1.0
        %v2017 = vadd.f32 %v1985, 1.0
        %v2018 = vadd.f32 %v1986, 1.0
        %v2019 = vadd.f32 %v1987, 1.0
        %v2020 = vadd.f32 %v1988, 1.0
        %v2021 = vadd.f32 %v1989, 1.0
        %v2022 = vadd.f32 %v1990, 1.0
        %v2023 = vadd.f32 %v1991, 1.0
        %v2024 = vadd.f32 %v1992, 1.0
        %v2025 = vmul.f32 %v1993, 0.5
        %v2026 = vmul.f32 %v1994, 0.5
        %v2027 = vmul.f32 %v1995, 0.5
        %v2028 = vmul.f32 %v1996, 0.5
        %v2029 = vmul.f32 %v1997, 0.5
        %v2030 = vmul.f32 %v1998, 0.5
        %v2031 = vmul.f32 %v1999, 0.5
        %v2032 = vmul.f32 %v2000, 0.5
        %v2033 = vmul.f32 %v2001, 0.5
        %v2034 = vmul.f32 %v2002, 0.5
        %v2035 = vmul.f32 %v2003, 0.5
        %v2036 = vmul.f32 %v2004, 0.5
        %v2037 = vmul.f32 %v2005, 0.5
        %v2038 = vmul.f32 %v2006, 0.5
        %v2039 = vmul.f32 %v2007, 0.5
        %v2040 = vmul.f32 %v2008, 0.5
        %v2041 = vmul.f32 %v2009, 0.5
        %v2042 = vmul.f32 %v2010, 0.5
        %v2043 = vmul.f32 %v2011, 0.5
        %v2044 = vmul.f32 %v2012, 0.5
        %v2045 = vmul.f32 %v2013, 0.5
        %v2046 = vmul.f32 %v2014, 0.5
        %v2047 = vmul.f32 %v2015, 0.5
        %v2048 = vmul.f32 %v2016, 0.5
        %v2049 = vmul.f32 %v2017, 0.5
        %v2050 = vmul.f32 %v2018, 0.5
        %v2051 = vmul.f32 %v2019, 0.5
        %v2052 = vmul.f32 %v2020, 0.5
        %v2053 = vmul.f32 %v2021, 0.5
        %v2054 = vmul.f32 %v2022, 0.5
        %v2055 = vmul.f32 %v2023, 0.5
        %v2056 = vmul.f32 %v2024, 0.5
        %v2057 = vmul.f32 %v1722, %v2025
        %v2058 = vmul.f32 %v1724, %v2026
        %v2059 = vmul.f32 %v1727, %v2027
        %v2060 = vmul.f32 %v1729, %v2028
        %v2061 = vmul.f32 %v1732, %v2029
        %v2062 = vmul.f32 %v1734, %v2030
        %v2063 = vmul.f32 %v1737, %v2031
        %v2064 = vmul.f32 %v1739, %v2032
        %v2065 = vmul.f32 %v1742, %v2033
        %v2066 = vmul.f32 %v1744, %v2034
        %v2067 = vmul.f32 %v1747, %v2035
        %v2068 = vmul.f32 %v1749, %v2036
        %v2069 = vmul.f32 %v1752, %v2037
        %v2070 = vmul.f32 %v1754, %v2038
        %v2071 = vmul.f32 %v1757, %v2039
        %v2072 = vmul.f32 %v1759, %v2040
        %v2073 = vmul.f32 %v1762, %v2041
        %v2074 = vmul.f32 %v1764, %v2042
        %v2075 = vmul.f32 %v1767, %v2043
        %v2076 = vmul.f32 %v1769, %v2044
        %v2077 = vmul.f32 %v1772, %v2045
        %v2078 = vmul.f32 %v1774, %v2046
        %v2079 = vmul.f32 %v1777, %v2047
        %v2080 = vmul.f32 %v1779, %v2048
        %v2081 = vmul.f32 %v1782, %v2049
        %v2082 = vmul.f32 %v1784, %v2050
        %v2083 = vmul.f32 %v1787, %v2051
        %v2084 = vmul.f32 %v1789, %v2052
        %v2085 = vmul.f32 %v1792, %v2053
        %v2086 = vmul.f32 %v1794, %v2054
        %v2087 = vmul.f32 %v1797, %v2055
        %v2088 = vmul.f32 %v1799, %v2056
        %v2089 = vpack.c.bf16 %v2058, %v2057
        %v2090 = vpack.c.bf16 %v2060, %v2059
        %v2091 = vpack.c.bf16 %v2062, %v2061
        %v2092 = vpack.c.bf16 %v2064, %v2063
        %v2093 = vpack.c.bf16 %v2066, %v2065
        %v2094 = vpack.c.bf16 %v2068, %v2067
        %v2095 = vpack.c.bf16 %v2070, %v2069
        %v2096 = vpack.c.bf16 %v2072, %v2071
        %v2097 = vpack.c.bf16 %v2074, %v2073
        %v2098 = vpack.c.bf16 %v2076, %v2075
        %v2099 = vpack.c.bf16 %v2078, %v2077
        %v2100 = vpack.c.bf16 %v2080, %v2079
        %v2101 = vpack.c.bf16 %v2082, %v2081
        %v2102 = vpack.c.bf16 %v2084, %v2083
        %v2103 = vpack.c.bf16 %v2086, %v2085
        %v2104 = vpack.c.bf16 %v2088, %v2087
        %v2137 = vunpack.c.l.b16 %v462
        %v2138 = vunpack.c.h.b16 %v462
        %v2139 = vunpack.c.l.b16 %v463
        %v2140 = vunpack.c.h.b16 %v463
        %v2141 = vunpack.c.l.b16 %v464
        %v2142 = vunpack.c.h.b16 %v464
        %v2143 = vunpack.c.l.b16 %v465
        %v2144 = vunpack.c.h.b16 %v465
        %v2145 = vunpack.c.l.b16 %v466
        %v2146 = vunpack.c.h.b16 %v466
        %v2147 = vunpack.c.l.b16 %v467
        %v2148 = vunpack.c.h.b16 %v467
        %v2149 = vunpack.c.l.b16 %v468
        %v2150 = vunpack.c.h.b16 %v468
        %v2151 = vunpack.c.l.b16 %v469
        %v2152 = vunpack.c.h.b16 %v469
        %v2153 = vunpack.c.l.b16 %v470
        %v2154 = vunpack.c.h.b16 %v470
        %v2155 = vunpack.c.l.b16 %v471
        %v2156 = vunpack.c.h.b16 %v471
        %v2157 = vunpack.c.l.b16 %v472
        %v2158 = vunpack.c.h.b16 %v472
        %v2159 = vunpack.c.l.b16 %v473
        %v2160 = vunpack.c.h.b16 %v473
        %v2161 = vunpack.c.l.b16 %v474
        %v2162 = vunpack.c.h.b16 %v474
        %v2163 = vunpack.c.l.b16 %v475
        %v2164 = vunpack.c.h.b16 %v475
        %v2165 = vunpack.c.l.b16 %v476
        %v2166 = vunpack.c.h.b16 %v476
        %v2167 = vunpack.c.l.b16 %v477
        %v2168 = vunpack.c.h.b16 %v477
        %v2169 = vunpack.c.l.b16 %v478
        %v2170 = vunpack.c.h.b16 %v478
        %v2171 = vunpack.c.l.b16 %v479
        %v2172 = vunpack.c.h.b16 %v479
        %v2173 = vunpack.c.l.b16 %v480
        %v2174 = vunpack.c.h.b16 %v480
        %v2175 = vunpack.c.l.b16 %v481
        %v2176 = vunpack.c.h.b16 %v481
        %v2177 = vunpack.c.l.b16 %v482
        %v2178 = vunpack.c.h.b16 %v482
        %v2179 = vunpack.c.l.b16 %v483
        %v2180 = vunpack.c.h.b16 %v483
        %v2181 = vunpack.c.l.b16 %v484
        %v2182 = vunpack.c.h.b16 %v484
        %v2183 = vunpack.c.l.b16 %v485
        %v2184 = vunpack.c.h.b16 %v485
        %v2185 = vunpack.c.l.b16 %v486
        %v2186 = vunpack.c.h.b16 %v486
        %v2187 = vunpack.c.l.b16 %v487
        %v2188 = vunpack.c.h.b16 %v487
        %v2189 = vunpack.c.l.b16 %v488
        %v2190 = vunpack.c.h.b16 %v488
        %v2191 = vunpack.c.l.b16 %v489
        %v2192 = vunpack.c.h.b16 %v489
        %v2193 = vunpack.c.l.b16 %v490
        %v2194 = vunpack.c.h.b16 %v490
        %v2195 = vunpack.c.l.b16 %v491
        %v2196 = vunpack.c.h.b16 %v491
        %v2197 = vunpack.c.l.b16 %v492
        %v2198 = vunpack.c.h.b16 %v492
        %v2199 = vunpack.c.l.b16 %v493
        %v2200 = vunpack.c.h.b16 %v493
        %v2201 = vpack.c.b16 %v2139, %v2137
        %v2202 = vpack.c.b16 %v2140, %v2138
        %v2203 = vpack.c.b16 %v2143, %v2141
        %v2204 = vpack.c.b16 %v2144, %v2142
        %v2205 = vpack.c.b16 %v2147, %v2145
        %v2206 = vpack.c.b16 %v2148, %v2146
        %v2207 = vpack.c.b16 %v2151, %v2149
        %v2208 = vpack.c.b16 %v2152, %v2150
        %v2209 = vpack.c.b16 %v2155, %v2153
        %v2210 = vpack.c.b16 %v2156, %v2154
        %v2211 = vpack.c.b16 %v2159, %v2157
        %v2212 = vpack.c.b16 %v2160, %v2158
        %v2213 = vpack.c.b16 %v2163, %v2161
        %v2214 = vpack.c.b16 %v2164, %v2162
        %v2215 = vpack.c.b16 %v2167, %v2165
        %v2216 = vpack.c.b16 %v2168, %v2166
        %v2217 = vpack.c.b16 %v2171, %v2169
        %v2218 = vpack.c.b16 %v2172, %v2170
        %v2219 = vpack.c.b16 %v2175, %v2173
        %v2220 = vpack.c.b16 %v2176, %v2174
        %v2221 = vpack.c.b16 %v2179, %v2177
        %v2222 = vpack.c.b16 %v2180, %v2178
        %v2223 = vpack.c.b16 %v2183, %v2181
        %v2224 = vpack.c.b16 %v2184, %v2182
        %v2225 = vpack.c.b16 %v2187, %v2185
        %v2226 = vpack.c.b16 %v2188, %v2186
        %v2227 = vpack.c.b16 %v2191, %v2189
        %v2228 = vpack.c.b16 %v2192, %v2190
        %v2229 = vpack.c.b16 %v2195, %v2193
        %v2230 = vpack.c.b16 %v2196, %v2194
        %v2231 = vpack.c.b16 %v2199, %v2197
        %v2232 = vpack.c.b16 %v2200, %v2198
        %2265 = vmatpush.bf16.msra.mxu0 %v2096
        %2266 = vmatpush.bf16.msra.mxu0 %v2095
        %2267 = vmatpush.bf16.msra.mxu0 %v2094
        %2268 = vmatpush.bf16.msra.mxu0 %v2093
        %2269 = vmatpush.bf16.msra.mxu0 %v2092
        %2270 = vmatpush.bf16.msra.mxu0 %v2091
        %2271 = vmatpush.bf16.msra.mxu0 %v2090
        %2272 = vmatpush.bf16.msra.mxu0 %v2089
        %2273 = vmatmul.bf16.gmra.mxu0 %v2201
        %v2274 = vpop.f32.mrf.mxu0
        %v2275 = vadd.f32 0.0, %v2274
        %v2276 = vpop.f32.mrf.mxu0
        %v2277 = vadd.f32 0.0, %v2276
        %2278 = vmatmul.bf16.gmra.mxu0 %v2203
        %v2279 = vpop.f32.mrf.mxu0
        %v2280 = vadd.f32 0.0, %v2279
        %v2281 = vpop.f32.mrf.mxu0
        %v2282 = vadd.f32 0.0, %v2281
        %2283 = vmatmul.bf16.gmra.mxu0 %v2205
        %v2284 = vpop.f32.mrf.mxu0
        %v2285 = vadd.f32 0.0, %v2284
        %v2286 = vpop.f32.mrf.mxu0
        %v2287 = vadd.f32 0.0, %v2286
        %2288 = vmatmul.bf16.gmra.mxu0 %v2207
        %v2289 = vpop.f32.mrf.mxu0
        %v2290 = vadd.f32 0.0, %v2289
        %v2291 = vpop.f32.mrf.mxu0
        %v2292 = vadd.f32 0.0, %v2291
        %2293 = vmatmul.bf16.gmra.mxu0 %v2209
        %v2294 = vpop.f32.mrf.mxu0
        %v2295 = vadd.f32 0.0, %v2294
        %v2296 = vpop.f32.mrf.mxu0
        %v2297 = vadd.f32 0.0, %v2296
        %2298 = vmatmul.bf16.gmra.mxu0 %v2211
        %v2299 = vpop.f32.mrf.mxu0
        %v2300 = vadd.f32 0.0, %v2299
        %v2301 = vpop.f32.mrf.mxu0
        %v2302 = vadd.f32 0.0, %v2301
        %2303 = vmatmul.bf16.gmra.mxu0 %v2213
        %v2304 = vpop.f32.mrf.mxu0
        %v2305 = vadd.f32 0.0, %v2304
        %v2306 = vpop.f32.mrf.mxu0
        %v2307 = vadd.f32 0.0, %v2306
        %2308 = vmatmul.bf16.gmra.mxu0 %v2215
        %v2309 = vpop.f32.mrf.mxu0
        %v2310 = vadd.f32 0.0, %v2309
        %v2311 = vpop.f32.mrf.mxu0
        %v2312 = vadd.f32 0.0, %v2311
        %2313 = vmatmul.bf16.gmra.mxu0 %v2217
        %v2314 = vpop.f32.mrf.mxu0
        %v2315 = vadd.f32 0.0, %v2314
        %v2316 = vpop.f32.mrf.mxu0
        %v2317 = vadd.f32 0.0, %v2316
        %2318 = vmatmul.bf16.gmra.mxu0 %v2219
        %v2319 = vpop.f32.mrf.mxu0
        %v2320 = vadd.f32 0.0, %v2319
        %v2321 = vpop.f32.mrf.mxu0
        %v2322 = vadd.f32 0.0, %v2321
        %2323 = vmatmul.bf16.gmra.mxu0 %v2221
        %v2324 = vpop.f32.mrf.mxu0
        %v2325 = vadd.f32 0.0, %v2324
        %v2326 = vpop.f32.mrf.mxu0
        %v2327 = vadd.f32 0.0, %v2326
        %2328 = vmatmul.bf16.gmra.mxu0 %v2223
        %v2329 = vpop.f32.mrf.mxu0
        %v2330 = vadd.f32 0.0, %v2329
        %v2331 = vpop.f32.mrf.mxu0
        %v2332 = vadd.f32 0.0, %v2331
        %2333 = vmatmul.bf16.gmra.mxu0 %v2225
        %v2334 = vpop.f32.mrf.mxu0
        %v2335 = vadd.f32 0.0, %v2334
        %v2336 = vpop.f32.mrf.mxu0
        %v2337 = vadd.f32 0.0, %v2336
        %2338 = vmatmul.bf16.gmra.mxu0 %v2227
        %v2339 = vpop.f32.mrf.mxu0
        %v2340 = vadd.f32 0.0, %v2339
        %v2341 = vpop.f32.mrf.mxu0
        %v2342 = vadd.f32 0.0, %v2341
        %2343 = vmatmul.bf16.gmra.mxu0 %v2229
        %v2344 = vpop.f32.mrf.mxu0
        %v2345 = vadd.f32 0.0, %v2344
        %v2346 = vpop.f32.mrf.mxu0
        %v2347 = vadd.f32 0.0, %v2346
        %2348 = vmatmul.bf16.gmra.mxu0 %v2231
        %v2349 = vpop.f32.mrf.mxu0
        %v2350 = vadd.f32 0.0, %v2349
        %v2351 = vpop.f32.mrf.mxu0
        %v2352 = vadd.f32 0.0, %v2351
        %2353 = vdwg.mxu0
        %2354 = vmatpush.bf16.msra.mxu0 %v2104
        %2355 = vmatpush.bf16.msra.mxu0 %v2103
        %2356 = vmatpush.bf16.msra.mxu0 %v2102
        %2357 = vmatpush.bf16.msra.mxu0 %v2101
        %2358 = vmatpush.bf16.msra.mxu0 %v2100
        %2359 = vmatpush.bf16.msra.mxu0 %v2099
        %2360 = vmatpush.bf16.msra.mxu0 %v2098
        %2361 = vmatpush.bf16.msra.mxu0 %v2097
        %2362 = vmatmul.bf16.gmra.mxu0 %v2202
        %v2363 = vpop.f32.mrf.mxu0
        %v2364 = vadd.f32 %v2275, %v2363
        %v2365 = vpop.f32.mrf.mxu0
        %v2366 = vadd.f32 %v2277, %v2365
        %2367 = vmatmul.bf16.gmra.mxu0 %v2204
        %v2368 = vpop.f32.mrf.mxu0
        %v2369 = vadd.f32 %v2280, %v2368
        %v2370 = vpop.f32.mrf.mxu0
        %v2371 = vadd.f32 %v2282, %v2370
        %2372 = vmatmul.bf16.gmra.mxu0 %v2206
        %v2373 = vpop.f32.mrf.mxu0
        %v2374 = vadd.f32 %v2285, %v2373
        %v2375 = vpop.f32.mrf.mxu0
        %v2376 = vadd.f32 %v2287, %v2375
        %2377 = vmatmul.bf16.gmra.mxu0 %v2208
        %v2378 = vpop.f32.mrf.mxu0
        %v2379 = vadd.f32 %v2290, %v2378
        %v2380 = vpop.f32.mrf.mxu0
        %v2381 = vadd.f32 %v2292, %v2380
        %2382 = vmatmul.bf16.gmra.mxu0 %v2210
        %v2383 = vpop.f32.mrf.mxu0
        %v2384 = vadd.f32 %v2295, %v2383
        %v2385 = vpop.f32.mrf.mxu0
        %v2386 = vadd.f32 %v2297, %v2385
        %2387 = vmatmul.bf16.gmra.mxu0 %v2212
        %v2388 = vpop.f32.mrf.mxu0
        %v2389 = vadd.f32 %v2300, %v2388
        %v2390 = vpop.f32.mrf.mxu0
        %v2391 = vadd.f32 %v2302, %v2390
        %2392 = vmatmul.bf16.gmra.mxu0 %v2214
        %v2393 = vpop.f32.mrf.mxu0
        %v2394 = vadd.f32 %v2305, %v2393
        %v2395 = vpop.f32.mrf.mxu0
        %v2396 = vadd.f32 %v2307, %v2395
        %2397 = vmatmul.bf16.gmra.mxu0 %v2216
        %v2398 = vpop.f32.mrf.mxu0
        %v2399 = vadd.f32 %v2310, %v2398
        %v2400 = vpop.f32.mrf.mxu0
        %v2401 = vadd.f32 %v2312, %v2400
        %2402 = vmatmul.bf16.gmra.mxu0 %v2218
        %v2403 = vpop.f32.mrf.mxu0
        %v2404 = vadd.f32 %v2315, %v2403
        %v2405 = vpop.f32.mrf.mxu0
        %v2406 = vadd.f32 %v2317, %v2405
        %2407 = vmatmul.bf16.gmra.mxu0 %v2220
        %v2408 = vpop.f32.mrf.mxu0
        %v2409 = vadd.f32 %v2320, %v2408
        %v2410 = vpop.f32.mrf.mxu0
        %v2411 = vadd.f32 %v2322, %v2410
        %2412 = vmatmul.bf16.gmra.mxu0 %v2222
        %v2413 = vpop.f32.mrf.mxu0
        %v2414 = vadd.f32 %v2325, %v2413
        %v2415 = vpop.f32.mrf.mxu0
        %v2416 = vadd.f32 %v2327, %v2415
        %2417 = vmatmul.bf16.gmra.mxu0 %v2224
        %v2418 = vpop.f32.mrf.mxu0
        %v2419 = vadd.f32 %v2330, %v2418
        %v2420 = vpop.f32.mrf.mxu0
        %v2421 = vadd.f32 %v2332, %v2420
        %2422 = vmatmul.bf16.gmra.mxu0 %v2226
        %v2423 = vpop.f32.mrf.mxu0
        %v2424 = vadd.f32 %v2335, %v2423
        %v2425 = vpop.f32.mrf.mxu0
        %v2426 = vadd.f32 %v2337, %v2425
        %2427 = vmatmul.bf16.gmra.mxu0 %v2228
        %v2428 = vpop.f32.mrf.mxu0
        %v2429 = vadd.f32 %v2340, %v2428
        %v2430 = vpop.f32.mrf.mxu0
        %v2431 = vadd.f32 %v2342, %v2430
        %2432 = vmatmul.bf16.gmra.mxu0 %v2230
        %v2433 = vpop.f32.mrf.mxu0
        %v2434 = vadd.f32 %v2345, %v2433
        %v2435 = vpop.f32.mrf.mxu0
        %v2436 = vadd.f32 %v2347, %v2435
        %2437 = vmatmul.bf16.gmra.mxu0 %v2232
        %v2438 = vpop.f32.mrf.mxu0
        %v2439 = vadd.f32 %v2350, %v2438
        %v2440 = vpop.f32.mrf.mxu0
        %v2441 = vadd.f32 %v2352, %v2440
        %2442 = vdwg.mxu0
        %v2443 = vadd.f32 %v542, %v2364
        %v2444 = vadd.f32 %v543, %v2366
        %v2445 = vadd.f32 %v544, %v2369
        %v2446 = vadd.f32 %v545, %v2371
        %v2447 = vadd.f32 %v546, %v2374
        %v2448 = vadd.f32 %v547, %v2376
        %v2449 = vadd.f32 %v548, %v2379
        %v2450 = vadd.f32 %v549, %v2381
        %v2451 = vadd.f32 %v550, %v2384
        %v2452 = vadd.f32 %v551, %v2386
        %v2453 = vadd.f32 %v552, %v2389
        %v2454 = vadd.f32 %v553, %v2391
        %v2455 = vadd.f32 %v554, %v2394
        %v2456 = vadd.f32 %v555, %v2396
        %v2457 = vadd.f32 %v556, %v2399
        %v2458 = vadd.f32 %v557, %v2401
        %v2459 = vadd.f32 %v558, %v2404
        %v2460 = vadd.f32 %v559, %v2406
        %v2461 = vadd.f32 %v560, %v2409
        %v2462 = vadd.f32 %v561, %v2411
        %v2463 = vadd.f32 %v562, %v2414
        %v2464 = vadd.f32 %v563, %v2416
        %v2465 = vadd.f32 %v564, %v2419
        %v2466 = vadd.f32 %v565, %v2421
        %v2467 = vadd.f32 %v566, %v2424
        %v2468 = vadd.f32 %v567, %v2426
        %v2469 = vadd.f32 %v568, %v2429
        %v2470 = vadd.f32 %v569, %v2431
        %v2471 = vadd.f32 %v570, %v2434
        %v2472 = vadd.f32 %v571, %v2436
        %v2473 = vadd.f32 %v572, %v2439
        %v2474 = vadd.f32 %v573, %v2441
        %2476 = vset.pattern.permute.xlu0 0
        %2477 = vperm.xlu0 %2476, %v398
        %v2478 = vpop.permute.xlu0 %2477
        %2481 = vset.pattern.permute.xlu0 0
        %2482 = vperm.xlu0 %2481, %v399
        %v2483 = vpop.permute.xlu0 %2482
        %2486 = vset.pattern.permute.xlu0 0
        %2487 = vperm.xlu0 %2486, %v400
        %v2488 = vpop.permute.xlu0 %2487
        %2491 = vset.pattern.permute.xlu0 0
        %2492 = vperm.xlu0 %2491, %v401
        %v2493 = vpop.permute.xlu0 %2492
        %2496 = vset.pattern.permute.xlu0 0
        %2497 = vperm.xlu0 %2496, %v402
        %v2498 = vpop.permute.xlu0 %2497
        %2501 = vset.pattern.permute.xlu0 0
        %2502 = vperm.xlu0 %2501, %v403
        %v2503 = vpop.permute.xlu0 %2502
        %2506 = vset.pattern.permute.xlu0 0
        %2507 = vperm.xlu0 %2506, %v404
        %v2508 = vpop.permute.xlu0 %2507
        %2511 = vset.pattern.permute.xlu0 0
        %2512 = vperm.xlu0 %2511, %v405
        %v2513 = vpop.permute.xlu0 %2512
        %2516 = vset.pattern.permute.xlu0 0
        %2517 = vperm.xlu0 %2516, %v406
        %v2518 = vpop.permute.xlu0 %2517
        %2521 = vset.pattern.permute.xlu0 0
        %2522 = vperm.xlu0 %2521, %v407
        %v2523 = vpop.permute.xlu0 %2522
        %2526 = vset.pattern.permute.xlu0 0
        %2527 = vperm.xlu0 %2526, %v408
        %v2528 = vpop.permute.xlu0 %2527
        %2531 = vset.pattern.permute.xlu0 0
        %2532 = vperm.xlu0 %2531, %v409
        %v2533 = vpop.permute.xlu0 %2532
        %2536 = vset.pattern.permute.xlu0 0
        %2537 = vperm.xlu0 %2536, %v410
        %v2538 = vpop.permute.xlu0 %2537
        %2541 = vset.pattern.permute.xlu0 0
        %2542 = vperm.xlu0 %2541, %v411
        %v2543 = vpop.permute.xlu0 %2542
        %2546 = vset.pattern.permute.xlu0 0
        %2547 = vperm.xlu0 %2546, %v412
        %v2548 = vpop.permute.xlu0 %2547
        %2551 = vset.pattern.permute.xlu0 0
        %2552 = vperm.xlu0 %2551, %v413
        %v2553 = vpop.permute.xlu0 %2552
        %2556 = vset.pattern.permute.xlu0 0
        %2557 = vperm.xlu0 %2556, %v414
        %v2558 = vpop.permute.xlu0 %2557
        %2561 = vset.pattern.permute.xlu0 0
        %2562 = vperm.xlu0 %2561, %v415
        %v2563 = vpop.permute.xlu0 %2562
        %2566 = vset.pattern.permute.xlu0 0
        %2567 = vperm.xlu0 %2566, %v416
        %v2568 = vpop.permute.xlu0 %2567
        %2571 = vset.pattern.permute.xlu0 0
        %2572 = vperm.xlu0 %2571, %v417
        %v2573 = vpop.permute.xlu0 %2572
        %2576 = vset.pattern.permute.xlu0 0
        %2577 = vperm.xlu0 %2576, %v418
        %v2578 = vpop.permute.xlu0 %2577
        %2581 = vset.pattern.permute.xlu0 0
        %2582 = vperm.xlu0 %2581, %v419
        %v2583 = vpop.permute.xlu0 %2582
        %2586 = vset.pattern.permute.xlu0 0
        %2587 = vperm.xlu0 %2586, %v420
        %v2588 = vpop.permute.xlu0 %2587
        %2591 = vset.pattern.permute.xlu0 0
        %2592 = vperm.xlu0 %2591, %v421
        %v2593 = vpop.permute.xlu0 %2592
        %2596 = vset.pattern.permute.xlu0 0
        %2597 = vperm.xlu0 %2596, %v422
        %v2598 = vpop.permute.xlu0 %2597
        %2601 = vset.pattern.permute.xlu0 0
        %2602 = vperm.xlu0 %2601, %v423
        %v2603 = vpop.permute.xlu0 %2602
        %2606 = vset.pattern.permute.xlu0 0
        %2607 = vperm.xlu0 %2606, %v424
        %v2608 = vpop.permute.xlu0 %2607
        %2611 = vset.pattern.permute.xlu0 0
        %2612 = vperm.xlu0 %2611, %v425
        %v2613 = vpop.permute.xlu0 %2612
        %2616 = vset.pattern.permute.xlu0 0
        %2617 = vperm.xlu0 %2616, %v426
        %v2618 = vpop.permute.xlu0 %2617
        %2621 = vset.pattern.permute.xlu0 0
        %2622 = vperm.xlu0 %2621, %v427
        %v2623 = vpop.permute.xlu0 %2622
        %2626 = vset.pattern.permute.xlu0 0
        %2627 = vperm.xlu0 %2626, %v428
        %v2628 = vpop.permute.xlu0 %2627
        %2631 = vset.pattern.permute.xlu0 0
        %2632 = vperm.xlu0 %2631, %v429
        %v2633 = vpop.permute.xlu0 %2632
        %v2635 = vadd.f32 %v2443, %v2478
        %v2636 = vadd.f32 %v2444, %v2483
        %v2637 = vadd.f32 %v2445, %v2488
        %v2638 = vadd.f32 %v2446, %v2493
        %v2639 = vadd.f32 %v2447, %v2498
        %v2640 = vadd.f32 %v2448, %v2503
        %v2641 = vadd.f32 %v2449, %v2508
        %v2642 = vadd.f32 %v2450, %v2513
        %v2643 = vadd.f32 %v2451, %v2518
        %v2644 = vadd.f32 %v2452, %v2523
        %v2645 = vadd.f32 %v2453, %v2528
        %v2646 = vadd.f32 %v2454, %v2533
        %v2647 = vadd.f32 %v2455, %v2538
        %v2648 = vadd.f32 %v2456, %v2543
        %v2649 = vadd.f32 %v2457, %v2548
        %v2650 = vadd.f32 %v2458, %v2553
        %v2651 = vadd.f32 %v2459, %v2558
        %v2652 = vadd.f32 %v2460, %v2563
        %v2653 = vadd.f32 %v2461, %v2568
        %v2654 = vadd.f32 %v2462, %v2573
        %v2655 = vadd.f32 %v2463, %v2578
        %v2656 = vadd.f32 %v2464, %v2583
        %v2657 = vadd.f32 %v2465, %v2588
        %v2658 = vadd.f32 %v2466, %v2593
        %v2659 = vadd.f32 %v2467, %v2598
        %v2660 = vadd.f32 %v2468, %v2603
        %v2661 = vadd.f32 %v2469, %v2608
        %v2662 = vadd.f32 %v2470, %v2613
        %v2663 = vadd.f32 %v2471, %v2618
        %v2664 = vadd.f32 %v2472, %v2623
        %v2665 = vadd.f32 %v2473, %v2628
        %v2666 = vadd.f32 %v2474, %v2633
        %2667 = vadd.xlane.f32.xlu0 %v2635
        %v2668 = vpop.xlane.xlu0 %2667
        %2669 = vadd.xlane.f32.xlu0 %v2636
        %v2670 = vpop.xlane.xlu0 %2669
        %2671 = vadd.xlane.f32.xlu0 %v2637
        %v2672 = vpop.xlane.xlu0 %2671
        %2673 = vadd.xlane.f32.xlu0 %v2638
        %v2674 = vpop.xlane.xlu0 %2673
        %2675 = vadd.xlane.f32.xlu0 %v2639
        %v2676 = vpop.xlane.xlu0 %2675
        %2677 = vadd.xlane.f32.xlu0 %v2640
        %v2678 = vpop.xlane.xlu0 %2677
        %2679 = vadd.xlane.f32.xlu0 %v2641
        %v2680 = vpop.xlane.xlu0 %2679
        %2681 = vadd.xlane.f32.xlu0 %v2642
        %v2682 = vpop.xlane.xlu0 %2681
        %2683 = vadd.xlane.f32.xlu0 %v2643
        %v2684 = vpop.xlane.xlu0 %2683
        %2685 = vadd.xlane.f32.xlu0 %v2644
        %v2686 = vpop.xlane.xlu0 %2685
        %2687 = vadd.xlane.f32.xlu0 %v2645
        %v2688 = vpop.xlane.xlu0 %2687
        %2689 = vadd.xlane.f32.xlu0 %v2646
        %v2690 = vpop.xlane.xlu0 %2689
        %2691 = vadd.xlane.f32.xlu0 %v2647
        %v2692 = vpop.xlane.xlu0 %2691
        %2693 = vadd.xlane.f32.xlu0 %v2648
        %v2694 = vpop.xlane.xlu0 %2693
        %2695 = vadd.xlane.f32.xlu0 %v2649
        %v2696 = vpop.xlane.xlu0 %2695
        %2697 = vadd.xlane.f32.xlu0 %v2650
        %v2698 = vpop.xlane.xlu0 %2697
        %2699 = vadd.xlane.f32.xlu0 %v2651
        %v2700 = vpop.xlane.xlu0 %2699
        %2701 = vadd.xlane.f32.xlu0 %v2652
        %v2702 = vpop.xlane.xlu0 %2701
        %2703 = vadd.xlane.f32.xlu0 %v2653
        %v2704 = vpop.xlane.xlu0 %2703
        %2705 = vadd.xlane.f32.xlu0 %v2654
        %v2706 = vpop.xlane.xlu0 %2705
        %2707 = vadd.xlane.f32.xlu0 %v2655
        %v2708 = vpop.xlane.xlu0 %2707
        %2709 = vadd.xlane.f32.xlu0 %v2656
        %v2710 = vpop.xlane.xlu0 %2709
        %2711 = vadd.xlane.f32.xlu0 %v2657
        %v2712 = vpop.xlane.xlu0 %2711
        %2713 = vadd.xlane.f32.xlu0 %v2658
        %v2714 = vpop.xlane.xlu0 %2713
        %2715 = vadd.xlane.f32.xlu0 %v2659
        %v2716 = vpop.xlane.xlu0 %2715
        %2717 = vadd.xlane.f32.xlu0 %v2660
        %v2718 = vpop.xlane.xlu0 %2717
        %2719 = vadd.xlane.f32.xlu0 %v2661
        %v2720 = vpop.xlane.xlu0 %2719
        %2721 = vadd.xlane.f32.xlu0 %v2662
        %v2722 = vpop.xlane.xlu0 %2721
        %2723 = vadd.xlane.f32.xlu0 %v2663
        %v2724 = vpop.xlane.xlu0 %2723
        %2725 = vadd.xlane.f32.xlu0 %v2664
        %v2726 = vpop.xlane.xlu0 %2725
        %2727 = vadd.xlane.f32.xlu0 %v2665
        %v2728 = vpop.xlane.xlu0 %2727
        %2729 = vadd.xlane.f32.xlu0 %v2666
        %v2730 = vpop.xlane.xlu0 %2729
        %v2731 = vmul.f32 %v2668, %v644
        %v2732 = vmul.f32 %v2670, %v644
        %v2733 = vmul.f32 %v2672, %v644
        %v2734 = vmul.f32 %v2674, %v644
        %v2735 = vmul.f32 %v2676, %v644
        %v2736 = vmul.f32 %v2678, %v644
        %v2737 = vmul.f32 %v2680, %v644
        %v2738 = vmul.f32 %v2682, %v644
        %v2739 = vmul.f32 %v2684, %v644
        %v2740 = vmul.f32 %v2686, %v644
        %v2741 = vmul.f32 %v2688, %v644
        %v2742 = vmul.f32 %v2690, %v644
        %v2743 = vmul.f32 %v2692, %v644
        %v2744 = vmul.f32 %v2694, %v644
        %v2745 = vmul.f32 %v2696, %v644
        %v2746 = vmul.f32 %v2698, %v644
        %v2747 = vmul.f32 %v2700, %v644
        %v2748 = vmul.f32 %v2702, %v644
        %v2749 = vmul.f32 %v2704, %v644
        %v2750 = vmul.f32 %v2706, %v644
        %v2751 = vmul.f32 %v2708, %v644
        %v2752 = vmul.f32 %v2710, %v644
        %v2753 = vmul.f32 %v2712, %v644
        %v2754 = vmul.f32 %v2714, %v644
        %v2755 = vmul.f32 %v2716, %v644
        %v2756 = vmul.f32 %v2718, %v644
        %v2757 = vmul.f32 %v2720, %v644
        %v2758 = vmul.f32 %v2722, %v644
        %v2759 = vmul.f32 %v2724, %v644
        %v2760 = vmul.f32 %v2726, %v644
        %v2761 = vmul.f32 %v2728, %v644
        %v2762 = vmul.f32 %v2730, %v644
        %v2763 = vsub.f32 %v2635, %v2731
        %v2764 = vsub.f32 %v2636, %v2732
        %v2765 = vsub.f32 %v2637, %v2733
        %v2766 = vsub.f32 %v2638, %v2734
        %v2767 = vsub.f32 %v2639, %v2735
        %v2768 = vsub.f32 %v2640, %v2736
        %v2769 = vsub.f32 %v2641, %v2737
        %v2770 = vsub.f32 %v2642, %v2738
        %v2771 = vsub.f32 %v2643, %v2739
        %v2772 = vsub.f32 %v2644, %v2740
        %v2773 = vsub.f32 %v2645, %v2741
        %v2774 = vsub.f32 %v2646, %v2742
        %v2775 = vsub.f32 %v2647, %v2743
        %v2776 = vsub.f32 %v2648, %v2744
        %v2777 = vsub.f32 %v2649, %v2745
        %v2778 = vsub.f32 %v2650, %v2746
        %v2779 = vsub.f32 %v2651, %v2747
        %v2780 = vsub.f32 %v2652, %v2748
        %v2781 = vsub.f32 %v2653, %v2749
        %v2782 = vsub.f32 %v2654, %v2750
        %v2783 = vsub.f32 %v2655, %v2751
        %v2784 = vsub.f32 %v2656, %v2752
        %v2785 = vsub.f32 %v2657, %v2753
        %v2786 = vsub.f32 %v2658, %v2754
        %v2787 = vsub.f32 %v2659, %v2755
        %v2788 = vsub.f32 %v2660, %v2756
        %v2789 = vsub.f32 %v2661, %v2757
        %v2790 = vsub.f32 %v2662, %v2758
        %v2791 = vsub.f32 %v2663, %v2759
        %v2792 = vsub.f32 %v2664, %v2760
        %v2793 = vsub.f32 %v2665, %v2761
        %v2794 = vsub.f32 %v2666, %v2762
        %v2795 = vmul.f32 %v2763, %v2763
        %v2796 = vmul.f32 %v2764, %v2764
        %v2797 = vmul.f32 %v2765, %v2765
        %v2798 = vmul.f32 %v2766, %v2766
        %v2799 = vmul.f32 %v2767, %v2767
        %v2800 = vmul.f32 %v2768, %v2768
        %v2801 = vmul.f32 %v2769, %v2769
        %v2802 = vmul.f32 %v2770, %v2770
        %v2803 = vmul.f32 %v2771, %v2771
        %v2804 = vmul.f32 %v2772, %v2772
        %v2805 = vmul.f32 %v2773, %v2773
        %v2806 = vmul.f32 %v2774, %v2774
        %v2807 = vmul.f32 %v2775, %v2775
        %v2808 = vmul.f32 %v2776, %v2776
        %v2809 = vmul.f32 %v2777, %v2777
        %v2810 = vmul.f32 %v2778, %v2778
        %v2811 = vmul.f32 %v2779, %v2779
        %v2812 = vmul.f32 %v2780, %v2780
        %v2813 = vmul.f32 %v2781, %v2781
        %v2814 = vmul.f32 %v2782, %v2782
        %v2815 = vmul.f32 %v2783, %v2783
        %v2816 = vmul.f32 %v2784, %v2784
        %v2817 = vmul.f32 %v2785, %v2785
        %v2818 = vmul.f32 %v2786, %v2786
        %v2819 = vmul.f32 %v2787, %v2787
        %v2820 = vmul.f32 %v2788, %v2788
        %v2821 = vmul.f32 %v2789, %v2789
        %v2822 = vmul.f32 %v2790, %v2790
        %v2823 = vmul.f32 %v2791, %v2791
        %v2824 = vmul.f32 %v2792, %v2792
        %v2825 = vmul.f32 %v2793, %v2793
        %v2826 = vmul.f32 %v2794, %v2794
        %2827 = vadd.xlane.f32.xlu0 %v2795
        %v2828 = vpop.xlane.xlu0 %2827
        %2829 = vadd.xlane.f32.xlu0 %v2796
        %v2830 = vpop.xlane.xlu0 %2829
        %2831 = vadd.xlane.f32.xlu0 %v2797
        %v2832 = vpop.xlane.xlu0 %2831
        %2833 = vadd.xlane.f32.xlu0 %v2798
        %v2834 = vpop.xlane.xlu0 %2833
        %2835 = vadd.xlane.f32.xlu0 %v2799
        %v2836 = vpop.xlane.xlu0 %2835
        %2837 = vadd.xlane.f32.xlu0 %v2800
        %v2838 = vpop.xlane.xlu0 %2837
        %2839 = vadd.xlane.f32.xlu0 %v2801
        %v2840 = vpop.xlane.xlu0 %2839
        %2841 = vadd.xlane.f32.xlu0 %v2802
        %v2842 = vpop.xlane.xlu0 %2841
        %2843 = vadd.xlane.f32.xlu0 %v2803
        %v2844 = vpop.xlane.xlu0 %2843
        %2845 = vadd.xlane.f32.xlu0 %v2804
        %v2846 = vpop.xlane.xlu0 %2845
        %2847 = vadd.xlane.f32.xlu0 %v2805
        %v2848 = vpop.xlane.xlu0 %2847
        %2849 = vadd.xlane.f32.xlu0 %v2806
        %v2850 = vpop.xlane.xlu0 %2849
        %2851 = vadd.xlane.f32.xlu0 %v2807
        %v2852 = vpop.xlane.xlu0 %2851
        %2853 = vadd.xlane.f32.xlu0 %v2808
        %v2854 = vpop.xlane.xlu0 %2853
        %2855 = vadd.xlane.f32.xlu0 %v2809
        %v2856 = vpop.xlane.xlu0 %2855
        %2857 = vadd.xlane.f32.xlu0 %v2810
        %v2858 = vpop.xlane.xlu0 %2857
        %2859 = vadd.xlane.f32.xlu0 %v2811
        %v2860 = vpop.xlane.xlu0 %2859
        %2861 = vadd.xlane.f32.xlu0 %v2812
        %v2862 = vpop.xlane.xlu0 %2861
        %2863 = vadd.xlane.f32.xlu0 %v2813
        %v2864 = vpop.xlane.xlu0 %2863
        %2865 = vadd.xlane.f32.xlu0 %v2814
        %v2866 = vpop.xlane.xlu0 %2865
        %2867 = vadd.xlane.f32.xlu0 %v2815
        %v2868 = vpop.xlane.xlu0 %2867
        %2869 = vadd.xlane.f32.xlu0 %v2816
        %v2870 = vpop.xlane.xlu0 %2869
        %2871 = vadd.xlane.f32.xlu0 %v2817
        %v2872 = vpop.xlane.xlu0 %2871
        %2873 = vadd.xlane.f32.xlu0 %v2818
        %v2874 = vpop.xlane.xlu0 %2873
        %2875 = vadd.xlane.f32.xlu0 %v2819
        %v2876 = vpop.xlane.xlu0 %2875
        %2877 = vadd.xlane.f32.xlu0 %v2820
        %v2878 = vpop.xlane.xlu0 %2877
        %2879 = vadd.xlane.f32.xlu0 %v2821
        %v2880 = vpop.xlane.xlu0 %2879
        %2881 = vadd.xlane.f32.xlu0 %v2822
        %v2882 = vpop.xlane.xlu0 %2881
        %2883 = vadd.xlane.f32.xlu0 %v2823
        %v2884 = vpop.xlane.xlu0 %2883
        %2885 = vadd.xlane.f32.xlu0 %v2824
        %v2886 = vpop.xlane.xlu0 %2885
        %2887 = vadd.xlane.f32.xlu0 %v2825
        %v2888 = vpop.xlane.xlu0 %2887
        %2889 = vadd.xlane.f32.xlu0 %v2826
        %v2890 = vpop.xlane.xlu0 %2889
        %v2891 = vmul.f32 %v2828, %v644
        %v2892 = vmul.f32 %v2830, %v644
        %v2893 = vmul.f32 %v2832, %v644
        %v2894 = vmul.f32 %v2834, %v644
        %v2895 = vmul.f32 %v2836, %v644
        %v2896 = vmul.f32 %v2838, %v644
        %v2897 = vmul.f32 %v2840, %v644
        %v2898 = vmul.f32 %v2842, %v644
        %v2899 = vmul.f32 %v2844, %v644
        %v2900 = vmul.f32 %v2846, %v644
        %v2901 = vmul.f32 %v2848, %v644
        %v2902 = vmul.f32 %v2850, %v644
        %v2903 = vmul.f32 %v2852, %v644
        %v2904 = vmul.f32 %v2854, %v644
        %v2905 = vmul.f32 %v2856, %v644
        %v2906 = vmul.f32 %v2858, %v644
        %v2907 = vmul.f32 %v2860, %v644
        %v2908 = vmul.f32 %v2862, %v644
        %v2909 = vmul.f32 %v2864, %v644
        %v2910 = vmul.f32 %v2866, %v644
        %v2911 = vmul.f32 %v2868, %v644
        %v2912 = vmul.f32 %v2870, %v644
        %v2913 = vmul.f32 %v2872, %v644
        %v2914 = vmul.f32 %v2874, %v644
        %v2915 = vmul.f32 %v2876, %v644
        %v2916 = vmul.f32 %v2878, %v644
        %v2917 = vmul.f32 %v2880, %v644
        %v2918 = vmul.f32 %v2882, %v644
        %v2919 = vmul.f32 %v2884, %v644
        %v2920 = vmul.f32 %v2886, %v644
        %v2921 = vmul.f32 %v2888, %v644
        %v2922 = vmul.f32 %v2890, %v644
        %v2923 = vadd.f32 %v2891, 1e-05
        %v2924 = vadd.f32 %v2892, 1e-05
        %v2925 = vadd.f32 %v2893, 1e-05
        %v2926 = vadd.f32 %v2894, 1e-05
        %v2927 = vadd.f32 %v2895, 1e-05
        %v2928 = vadd.f32 %v2896, 1e-05
        %v2929 = vadd.f32 %v2897, 1e-05
        %v2930 = vadd.f32 %v2898, 1e-05
        %v2931 = vadd.f32 %v2899, 1e-05
        %v2932 = vadd.f32 %v2900, 1e-05
        %v2933 = vadd.f32 %v2901, 1e-05
        %v2934 = vadd.f32 %v2902, 1e-05
        %v2935 = vadd.f32 %v2903, 1e-05
        %v2936 = vadd.f32 %v2904, 1e-05
        %v2937 = vadd.f32 %v2905, 1e-05
        %v2938 = vadd.f32 %v2906, 1e-05
        %v2939 = vadd.f32 %v2907, 1e-05
        %v2940 = vadd.f32 %v2908, 1e-05
        %v2941 = vadd.f32 %v2909, 1e-05
        %v2942 = vadd.f32 %v2910, 1e-05
        %v2943 = vadd.f32 %v2911, 1e-05
        %v2944 = vadd.f32 %v2912, 1e-05
        %v2945 = vadd.f32 %v2913, 1e-05
        %v2946 = vadd.f32 %v2914, 1e-05
        %v2947 = vadd.f32 %v2915, 1e-05
        %v2948 = vadd.f32 %v2916, 1e-05
        %v2949 = vadd.f32 %v2917, 1e-05
        %v2950 = vadd.f32 %v2918, 1e-05
        %v2951 = vadd.f32 %v2919, 1e-05
        %v2952 = vadd.f32 %v2920, 1e-05
        %v2953 = vadd.f32 %v2921, 1e-05
        %v2954 = vadd.f32 %v2922, 1e-05
        %v2955 = vrsqrt.pop %v2923
        %v2956 = vmul.f32 %v2955, %v2923
        %v2957 = vmul.f32 %v2956, %v2955
        %v2958 = vmul.f32 0.5, %v2957
        %v2959 = vsub.f32 1.5, %v2958
        %v2960 = vmul.f32 %v2955, %v2959
        %vm2961 = vweird.f32 %v2923
        %vm2962 = vweird.f32 %v2955
        %vm2963 = vmor %vm2961, %vm2962
        %v2964 = vsel %vm2963, %v2955, %v2960
        %v2965 = vrsqrt.pop %v2924
        %v2966 = vmul.f32 %v2965, %v2924
        %v2967 = vmul.f32 %v2966, %v2965
        %v2968 = vmul.f32 0.5, %v2967
        %v2969 = vsub.f32 1.5, %v2968
        %v2970 = vmul.f32 %v2965, %v2969
        %vm2971 = vweird.f32 %v2924
        %vm2972 = vweird.f32 %v2965
        %vm2973 = vmor %vm2971, %vm2972
        %v2974 = vsel %vm2973, %v2965, %v2970
        %v2975 = vrsqrt.pop %v2925
        %v2976 = vmul.f32 %v2975, %v2925
        %v2977 = vmul.f32 %v2976, %v2975
        %v2978 = vmul.f32 0.5, %v2977
        %v2979 = vsub.f32 1.5, %v2978
        %v2980 = vmul.f32 %v2975, %v2979
        %vm2981 = vweird.f32 %v2925
        %vm2982 = vweird.f32 %v2975
        %vm2983 = vmor %vm2981, %vm2982
        %v2984 = vsel %vm2983, %v2975, %v2980
        %v2985 = vrsqrt.pop %v2926
        %v2986 = vmul.f32 %v2985, %v2926
        %v2987 = vmul.f32 %v2986, %v2985
        %v2988 = vmul.f32 0.5, %v2987
        %v2989 = vsub.f32 1.5, %v2988
        %v2990 = vmul.f32 %v2985, %v2989
        %vm2991 = vweird.f32 %v2926
        %vm2992 = vweird.f32 %v2985
        %vm2993 = vmor %vm2991, %vm2992
        %v2994 = vsel %vm2993, %v2985, %v2990
        %v2995 = vrsqrt.pop %v2927
        %v2996 = vmul.f32 %v2995, %v2927
        %v2997 = vmul.f32 %v2996, %v2995
        %v2998 = vmul.f32 0.5, %v2997
        %v2999 = vsub.f32 1.5, %v2998
        %v3000 = vmul.f32 %v2995, %v2999
        %vm3001 = vweird.f32 %v2927
        %vm3002 = vweird.f32 %v2995
        %vm3003 = vmor %vm3001, %vm3002
        %v3004 = vsel %vm3003, %v2995, %v3000
        %v3005 = vrsqrt.pop %v2928
        %v3006 = vmul.f32 %v3005, %v2928
        %v3007 = vmul.f32 %v3006, %v3005
        %v3008 = vmul.f32 0.5, %v3007
        %v3009 = vsub.f32 1.5, %v3008
        %v3010 = vmul.f32 %v3005, %v3009
        %vm3011 = vweird.f32 %v2928
        %vm3012 = vweird.f32 %v3005
        %vm3013 = vmor %vm3011, %vm3012
        %v3014 = vsel %vm3013, %v3005, %v3010
        %v3015 = vrsqrt.pop %v2929
        %v3016 = vmul.f32 %v3015, %v2929
        %v3017 = vmul.f32 %v3016, %v3015
        %v3018 = vmul.f32 0.5, %v3017
        %v3019 = vsub.f32 1.5, %v3018
        %v3020 = vmul.f32 %v3015, %v3019
        %vm3021 = vweird.f32 %v2929
        %vm3022 = vweird.f32 %v3015
        %vm3023 = vmor %vm3021, %vm3022
        %v3024 = vsel %vm3023, %v3015, %v3020
        %v3025 = vrsqrt.pop %v2930
        %v3026 = vmul.f32 %v3025, %v2930
        %v3027 = vmul.f32 %v3026, %v3025
        %v3028 = vmul.f32 0.5, %v3027
        %v3029 = vsub.f32 1.5, %v3028
        %v3030 = vmul.f32 %v3025, %v3029
        %vm3031 = vweird.f32 %v2930
        %vm3032 = vweird.f32 %v3025
        %vm3033 = vmor %vm3031, %vm3032
        %v3034 = vsel %vm3033, %v3025, %v3030
        %v3035 = vrsqrt.pop %v2931
        %v3036 = vmul.f32 %v3035, %v2931
        %v3037 = vmul.f32 %v3036, %v3035
        %v3038 = vmul.f32 0.5, %v3037
        %v3039 = vsub.f32 1.5, %v3038
        %v3040 = vmul.f32 %v3035, %v3039
        %vm3041 = vweird.f32 %v2931
        %vm3042 = vweird.f32 %v3035
        %vm3043 = vmor %vm3041, %vm3042
        %v3044 = vsel %vm3043, %v3035, %v3040
        %v3045 = vrsqrt.pop %v2932
        %v3046 = vmul.f32 %v3045, %v2932
        %v3047 = vmul.f32 %v3046, %v3045
        %v3048 = vmul.f32 0.5, %v3047
        %v3049 = vsub.f32 1.5, %v3048
        %v3050 = vmul.f32 %v3045, %v3049
        %vm3051 = vweird.f32 %v2932
        %vm3052 = vweird.f32 %v3045
        %vm3053 = vmor %vm3051, %vm3052
        %v3054 = vsel %vm3053, %v3045, %v3050
        %v3055 = vrsqrt.pop %v2933
        %v3056 = vmul.f32 %v3055, %v2933
        %v3057 = vmul.f32 %v3056, %v3055
        %v3058 = vmul.f32 0.5, %v3057
        %v3059 = vsub.f32 1.5, %v3058
        %v3060 = vmul.f32 %v3055, %v3059
        %vm3061 = vweird.f32 %v2933
        %vm3062 = vweird.f32 %v3055
        %vm3063 = vmor %vm3061, %vm3062
        %v3064 = vsel %vm3063, %v3055, %v3060
        %v3065 = vrsqrt.pop %v2934
        %v3066 = vmul.f32 %v3065, %v2934
        %v3067 = vmul.f32 %v3066, %v3065
        %v3068 = vmul.f32 0.5, %v3067
        %v3069 = vsub.f32 1.5, %v3068
        %v3070 = vmul.f32 %v3065, %v3069
        %vm3071 = vweird.f32 %v2934
        %vm3072 = vweird.f32 %v3065
        %vm3073 = vmor %vm3071, %vm3072
        %v3074 = vsel %vm3073, %v3065, %v3070
        %v3075 = vrsqrt.pop %v2935
        %v3076 = vmul.f32 %v3075, %v2935
        %v3077 = vmul.f32 %v3076, %v3075
        %v3078 = vmul.f32 0.5, %v3077
        %v3079 = vsub.f32 1.5, %v3078
        %v3080 = vmul.f32 %v3075, %v3079
        %vm3081 = vweird.f32 %v2935
        %vm3082 = vweird.f32 %v3075
        %vm3083 = vmor %vm3081, %vm3082
        %v3084 = vsel %vm3083, %v3075, %v3080
        %v3085 = vrsqrt.pop %v2936
        %v3086 = vmul.f32 %v3085, %v2936
        %v3087 = vmul.f32 %v3086, %v3085
        %v3088 = vmul.f32 0.5, %v3087
        %v3089 = vsub.f32 1.5, %v3088
        %v3090 = vmul.f32 %v3085, %v3089
        %vm3091 = vweird.f32 %v2936
        %vm3092 = vweird.f32 %v3085
        %vm3093 = vmor %vm3091, %vm3092
        %v3094 = vsel %vm3093, %v3085, %v3090
        %v3095 = vrsqrt.pop %v2937
        %v3096 = vmul.f32 %v3095, %v2937
        %v3097 = vmul.f32 %v3096, %v3095
        %v3098 = vmul.f32 0.5, %v3097
        %v3099 = vsub.f32 1.5, %v3098
        %v3100 = vmul.f32 %v3095, %v3099
        %vm3101 = vweird.f32 %v2937
        %vm3102 = vweird.f32 %v3095
        %vm3103 = vmor %vm3101, %vm3102
        %v3104 = vsel %vm3103, %v3095, %v3100
        %v3105 = vrsqrt.pop %v2938
        %v3106 = vmul.f32 %v3105, %v2938
        %v3107 = vmul.f32 %v3106, %v3105
        %v3108 = vmul.f32 0.5, %v3107
        %v3109 = vsub.f32 1.5, %v3108
        %v3110 = vmul.f32 %v3105, %v3109
        %vm3111 = vweird.f32 %v2938
        %vm3112 = vweird.f32 %v3105
        %vm3113 = vmor %vm3111, %vm3112
        %v3114 = vsel %vm3113, %v3105, %v3110
        %v3115 = vrsqrt.pop %v2939
        %v3116 = vmul.f32 %v3115, %v2939
        %v3117 = vmul.f32 %v3116, %v3115
        %v3118 = vmul.f32 0.5, %v3117
        %v3119 = vsub.f32 1.5, %v3118
        %v3120 = vmul.f32 %v3115, %v3119
        %vm3121 = vweird.f32 %v2939
        %vm3122 = vweird.f32 %v3115
        %vm3123 = vmor %vm3121, %vm3122
        %v3124 = vsel %vm3123, %v3115, %v3120
        %v3125 = vrsqrt.pop %v2940
        %v3126 = vmul.f32 %v3125, %v2940
        %v3127 = vmul.f32 %v3126, %v3125
        %v3128 = vmul.f32 0.5, %v3127
        %v3129 = vsub.f32 1.5, %v3128
        %v3130 = vmul.f32 %v3125, %v3129
        %vm3131 = vweird.f32 %v2940
        %vm3132 = vweird.f32 %v3125
        %vm3133 = vmor %vm3131, %vm3132
        %v3134 = vsel %vm3133, %v3125, %v3130
        %v3135 = vrsqrt.pop %v2941
        %v3136 = vmul.f32 %v3135, %v2941
        %v3137 = vmul.f32 %v3136, %v3135
        %v3138 = vmul.f32 0.5, %v3137
        %v3139 = vsub.f32 1.5, %v3138
        %v3140 = vmul.f32 %v3135, %v3139
        %vm3141 = vweird.f32 %v2941
        %vm3142 = vweird.f32 %v3135
        %vm3143 = vmor %vm3141, %vm3142
        %v3144 = vsel %vm3143, %v3135, %v3140
        %v3145 = vrsqrt.pop %v2942
        %v3146 = vmul.f32 %v3145, %v2942
        %v3147 = vmul.f32 %v3146, %v3145
        %v3148 = vmul.f32 0.5, %v3147
        %v3149 = vsub.f32 1.5, %v3148
        %v3150 = vmul.f32 %v3145, %v3149
        %vm3151 = vweird.f32 %v2942
        %vm3152 = vweird.f32 %v3145
        %vm3153 = vmor %vm3151, %vm3152
        %v3154 = vsel %vm3153, %v3145, %v3150
        %v3155 = vrsqrt.pop %v2943
        %v3156 = vmul.f32 %v3155, %v2943
        %v3157 = vmul.f32 %v3156, %v3155
        %v3158 = vmul.f32 0.5, %v3157
        %v3159 = vsub.f32 1.5, %v3158
        %v3160 = vmul.f32 %v3155, %v3159
        %vm3161 = vweird.f32 %v2943
        %vm3162 = vweird.f32 %v3155
        %vm3163 = vmor %vm3161, %vm3162
        %v3164 = vsel %vm3163, %v3155, %v3160
        %v3165 = vrsqrt.pop %v2944
        %v3166 = vmul.f32 %v3165, %v2944
        %v3167 = vmul.f32 %v3166, %v3165
        %v3168 = vmul.f32 0.5, %v3167
        %v3169 = vsub.f32 1.5, %v3168
        %v3170 = vmul.f32 %v3165, %v3169
        %vm3171 = vweird.f32 %v2944
        %vm3172 = vweird.f32 %v3165
        %vm3173 = vmor %vm3171, %vm3172
        %v3174 = vsel %vm3173, %v3165, %v3170
        %v3175 = vrsqrt.pop %v2945
        %v3176 = vmul.f32 %v3175, %v2945
        %v3177 = vmul.f32 %v3176, %v3175
        %v3178 = vmul.f32 0.5, %v3177
        %v3179 = vsub.f32 1.5, %v3178
        %v3180 = vmul.f32 %v3175, %v3179
        %vm3181 = vweird.f32 %v2945
        %vm3182 = vweird.f32 %v3175
        %vm3183 = vmor %vm3181, %vm3182
        %v3184 = vsel %vm3183, %v3175, %v3180
        %v3185 = vrsqrt.pop %v2946
        %v3186 = vmul.f32 %v3185, %v2946
        %v3187 = vmul.f32 %v3186, %v3185
        %v3188 = vmul.f32 0.5, %v3187
        %v3189 = vsub.f32 1.5, %v3188
        %v3190 = vmul.f32 %v3185, %v3189
        %vm3191 = vweird.f32 %v2946
        %vm3192 = vweird.f32 %v3185
        %vm3193 = vmor %vm3191, %vm3192
        %v3194 = vsel %vm3193, %v3185, %v3190
        %v3195 = vrsqrt.pop %v2947
        %v3196 = vmul.f32 %v3195, %v2947
        %v3197 = vmul.f32 %v3196, %v3195
        %v3198 = vmul.f32 0.5, %v3197
        %v3199 = vsub.f32 1.5, %v3198
        %v3200 = vmul.f32 %v3195, %v3199
        %vm3201 = vweird.f32 %v2947
        %vm3202 = vweird.f32 %v3195
        %vm3203 = vmor %vm3201, %vm3202
        %v3204 = vsel %vm3203, %v3195, %v3200
        %v3205 = vrsqrt.pop %v2948
        %v3206 = vmul.f32 %v3205, %v2948
        %v3207 = vmul.f32 %v3206, %v3205
        %v3208 = vmul.f32 0.5, %v3207
        %v3209 = vsub.f32 1.5, %v3208
        %v3210 = vmul.f32 %v3205, %v3209
        %vm3211 = vweird.f32 %v2948
        %vm3212 = vweird.f32 %v3205
        %vm3213 = vmor %vm3211, %vm3212
        %v3214 = vsel %vm3213, %v3205, %v3210
        %v3215 = vrsqrt.pop %v2949
        %v3216 = vmul.f32 %v3215, %v2949
        %v3217 = vmul.f32 %v3216, %v3215
        %v3218 = vmul.f32 0.5, %v3217
        %v3219 = vsub.f32 1.5, %v3218
        %v3220 = vmul.f32 %v3215, %v3219
        %vm3221 = vweird.f32 %v2949
        %vm3222 = vweird.f32 %v3215
        %vm3223 = vmor %vm3221, %vm3222
        %v3224 = vsel %vm3223, %v3215, %v3220
        %v3225 = vrsqrt.pop %v2950
        %v3226 = vmul.f32 %v3225, %v2950
        %v3227 = vmul.f32 %v3226, %v3225
        %v3228 = vmul.f32 0.5, %v3227
        %v3229 = vsub.f32 1.5, %v3228
        %v3230 = vmul.f32 %v3225, %v3229
        %vm3231 = vweird.f32 %v2950
        %vm3232 = vweird.f32 %v3225
        %vm3233 = vmor %vm3231, %vm3232
        %v3234 = vsel %vm3233, %v3225, %v3230
        %v3235 = vrsqrt.pop %v2951
        %v3236 = vmul.f32 %v3235, %v2951
        %v3237 = vmul.f32 %v3236, %v3235
        %v3238 = vmul.f32 0.5, %v3237
        %v3239 = vsub.f32 1.5, %v3238
        %v3240 = vmul.f32 %v3235, %v3239
        %vm3241 = vweird.f32 %v2951
        %vm3242 = vweird.f32 %v3235
        %vm3243 = vmor %vm3241, %vm3242
        %v3244 = vsel %vm3243, %v3235, %v3240
        %v3245 = vrsqrt.pop %v2952
        %v3246 = vmul.f32 %v3245, %v2952
        %v3247 = vmul.f32 %v3246, %v3245
        %v3248 = vmul.f32 0.5, %v3247
        %v3249 = vsub.f32 1.5, %v3248
        %v3250 = vmul.f32 %v3245, %v3249
        %vm3251 = vweird.f32 %v2952
        %vm3252 = vweird.f32 %v3245
        %vm3253 = vmor %vm3251, %vm3252
        %v3254 = vsel %vm3253, %v3245, %v3250
        %v3255 = vrsqrt.pop %v2953
        %v3256 = vmul.f32 %v3255, %v2953
        %v3257 = vmul.f32 %v3256, %v3255
        %v3258 = vmul.f32 0.5, %v3257
        %v3259 = vsub.f32 1.5, %v3258
        %v3260 = vmul.f32 %v3255, %v3259
        %vm3261 = vweird.f32 %v2953
        %vm3262 = vweird.f32 %v3255
        %vm3263 = vmor %vm3261, %vm3262
        %v3264 = vsel %vm3263, %v3255, %v3260
        %v3265 = vrsqrt.pop %v2954
        %v3266 = vmul.f32 %v3265, %v2954
        %v3267 = vmul.f32 %v3266, %v3265
        %v3268 = vmul.f32 0.5, %v3267
        %v3269 = vsub.f32 1.5, %v3268
        %v3270 = vmul.f32 %v3265, %v3269
        %vm3271 = vweird.f32 %v2954
        %vm3272 = vweird.f32 %v3265
        %vm3273 = vmor %vm3271, %vm3272
        %v3274 = vsel %vm3273, %v3265, %v3270
        %v3275 = vmul.f32 %v2763, %v2964
        %v3276 = vmul.f32 %v2764, %v2974
        %v3277 = vmul.f32 %v2765, %v2984
        %v3278 = vmul.f32 %v2766, %v2994
        %v3279 = vmul.f32 %v2767, %v3004
        %v3280 = vmul.f32 %v2768, %v3014
        %v3281 = vmul.f32 %v2769, %v3024
        %v3282 = vmul.f32 %v2770, %v3034
        %v3283 = vmul.f32 %v2771, %v3044
        %v3284 = vmul.f32 %v2772, %v3054
        %v3285 = vmul.f32 %v2773, %v3064
        %v3286 = vmul.f32 %v2774, %v3074
        %v3287 = vmul.f32 %v2775, %v3084
        %v3288 = vmul.f32 %v2776, %v3094
        %v3289 = vmul.f32 %v2777, %v3104
        %v3290 = vmul.f32 %v2778, %v3114
        %v3291 = vmul.f32 %v2779, %v3124
        %v3292 = vmul.f32 %v2780, %v3134
        %v3293 = vmul.f32 %v2781, %v3144
        %v3294 = vmul.f32 %v2782, %v3154
        %v3295 = vmul.f32 %v2783, %v3164
        %v3296 = vmul.f32 %v2784, %v3174
        %v3297 = vmul.f32 %v2785, %v3184
        %v3298 = vmul.f32 %v2786, %v3194
        %v3299 = vmul.f32 %v2787, %v3204
        %v3300 = vmul.f32 %v2788, %v3214
        %v3301 = vmul.f32 %v2789, %v3224
        %v3302 = vmul.f32 %v2790, %v3234
        %v3303 = vmul.f32 %v2791, %v3244
        %v3304 = vmul.f32 %v2792, %v3254
        %v3305 = vmul.f32 %v2793, %v3264
        %v3306 = vmul.f32 %v2794, %v3274
        %v3307 = vmul.f32 %v3275, %v1221
        %v3308 = vmul.f32 %v3276, %v1221
        %v3309 = vmul.f32 %v3277, %v1221
        %v3310 = vmul.f32 %v3278, %v1221
        %v3311 = vmul.f32 %v3279, %v1221
        %v3312 = vmul.f32 %v3280, %v1221
        %v3313 = vmul.f32 %v3281, %v1221
        %v3314 = vmul.f32 %v3282, %v1221
        %v3315 = vmul.f32 %v3283, %v1221
        %v3316 = vmul.f32 %v3284, %v1221
        %v3317 = vmul.f32 %v3285, %v1221
        %v3318 = vmul.f32 %v3286, %v1221
        %v3319 = vmul.f32 %v3287, %v1221
        %v3320 = vmul.f32 %v3288, %v1221
        %v3321 = vmul.f32 %v3289, %v1221
        %v3322 = vmul.f32 %v3290, %v1221
        %v3323 = vmul.f32 %v3291, %v1221
        %v3324 = vmul.f32 %v3292, %v1221
        %v3325 = vmul.f32 %v3293, %v1221
        %v3326 = vmul.f32 %v3294, %v1221
        %v3327 = vmul.f32 %v3295, %v1221
        %v3328 = vmul.f32 %v3296, %v1221
        %v3329 = vmul.f32 %v3297, %v1221
        %v3330 = vmul.f32 %v3298, %v1221
        %v3331 = vmul.f32 %v3299, %v1221
        %v3332 = vmul.f32 %v3300, %v1221
        %v3333 = vmul.f32 %v3301, %v1221
        %v3334 = vmul.f32 %v3302, %v1221
        %v3335 = vmul.f32 %v3303, %v1221
        %v3336 = vmul.f32 %v3304, %v1221
        %v3337 = vmul.f32 %v3305, %v1221
        %v3338 = vmul.f32 %v3306, %v1221
        %v3339 = vadd.f32 %v3307, %v1254
        %v3340 = vadd.f32 %v3308, %v1254
        %v3341 = vadd.f32 %v3309, %v1254
        %v3342 = vadd.f32 %v3310, %v1254
        %v3343 = vadd.f32 %v3311, %v1254
        %v3344 = vadd.f32 %v3312, %v1254
        %v3345 = vadd.f32 %v3313, %v1254
        %v3346 = vadd.f32 %v3314, %v1254
        %v3347 = vadd.f32 %v3315, %v1254
        %v3348 = vadd.f32 %v3316, %v1254
        %v3349 = vadd.f32 %v3317, %v1254
        %v3350 = vadd.f32 %v3318, %v1254
        %v3351 = vadd.f32 %v3319, %v1254
        %v3352 = vadd.f32 %v3320, %v1254
        %v3353 = vadd.f32 %v3321, %v1254
        %v3354 = vadd.f32 %v3322, %v1254
        %v3355 = vadd.f32 %v3323, %v1254
        %v3356 = vadd.f32 %v3324, %v1254
        %v3357 = vadd.f32 %v3325, %v1254
        %v3358 = vadd.f32 %v3326, %v1254
        %v3359 = vadd.f32 %v3327, %v1254
        %v3360 = vadd.f32 %v3328, %v1254
        %v3361 = vadd.f32 %v3329, %v1254
        %v3362 = vadd.f32 %v3330, %v1254
        %v3363 = vadd.f32 %v3331, %v1254
        %v3364 = vadd.f32 %v3332, %v1254
        %v3365 = vadd.f32 %v3333, %v1254
        %v3366 = vadd.f32 %v3334, %v1254
        %v3367 = vadd.f32 %v3335, %v1254
        %v3368 = vadd.f32 %v3336, %v1254
        %v3369 = vadd.f32 %v3337, %v1254
        %v3370 = vadd.f32 %v3338, %v1254
        %v3371 = vpack.c.bf16 %v3340, %v3339
        %v3372 = vpack.c.bf16 %v3342, %v3341
        %v3373 = vpack.c.bf16 %v3344, %v3343
        %v3374 = vpack.c.bf16 %v3346, %v3345
        %v3375 = vpack.c.bf16 %v3348, %v3347
        %v3376 = vpack.c.bf16 %v3350, %v3349
        %v3377 = vpack.c.bf16 %v3352, %v3351
        %v3378 = vpack.c.bf16 %v3354, %v3353
        %v3379 = vpack.c.bf16 %v3356, %v3355
        %v3380 = vpack.c.bf16 %v3358, %v3357
        %v3381 = vpack.c.bf16 %v3360, %v3359
        %v3382 = vpack.c.bf16 %v3362, %v3361
        %v3383 = vpack.c.bf16 %v3364, %v3363
        %v3384 = vpack.c.bf16 %v3366, %v3365
        %v3385 = vpack.c.bf16 %v3368, %v3367
        %v3386 = vpack.c.bf16 %v3370, %v3369
        %v3388 = vperm.slane %v364, 0
        %v3389 = vperm.slane %v364, 1
        %v3408 = vunpack.c.l.b16 %v494
        %v3409 = vunpack.c.h.b16 %v494
        %v3410 = vunpack.c.l.b16 %v495
        %v3411 = vunpack.c.h.b16 %v495
        %v3412 = vunpack.c.l.b16 %v496
        %v3413 = vunpack.c.h.b16 %v496
        %v3414 = vunpack.c.l.b16 %v497
        %v3415 = vunpack.c.h.b16 %v497
        %v3416 = vunpack.c.l.b16 %v498
        %v3417 = vunpack.c.h.b16 %v498
        %v3418 = vunpack.c.l.b16 %v499
        %v3419 = vunpack.c.h.b16 %v499
        %v3420 = vunpack.c.l.b16 %v500
        %v3421 = vunpack.c.h.b16 %v500
        %v3422 = vunpack.c.l.b16 %v501
        %v3423 = vunpack.c.h.b16 %v501
        %v3424 = vunpack.c.l.b16 %v502
        %v3425 = vunpack.c.h.b16 %v502
        %v3426 = vunpack.c.l.b16 %v503
        %v3427 = vunpack.c.h.b16 %v503
        %v3428 = vunpack.c.l.b16 %v504
        %v3429 = vunpack.c.h.b16 %v504
        %v3430 = vunpack.c.l.b16 %v505
        %v3431 = vunpack.c.h.b16 %v505
        %v3432 = vunpack.c.l.b16 %v506
        %v3433 = vunpack.c.h.b16 %v506
        %v3434 = vunpack.c.l.b16 %v507
        %v3435 = vunpack.c.h.b16 %v507
        %v3436 = vunpack.c.l.b16 %v508
        %v3437 = vunpack.c.h.b16 %v508
        %v3438 = vunpack.c.l.b16 %v509
        %v3439 = vunpack.c.h.b16 %v509
        %v3440 = vpack.c.b16 %v3410, %v3408
        %v3441 = vpack.c.b16 %v3411, %v3409
        %v3442 = vpack.c.b16 %v3414, %v3412
        %v3443 = vpack.c.b16 %v3415, %v3413
        %v3444 = vpack.c.b16 %v3418, %v3416
        %v3445 = vpack.c.b16 %v3419, %v3417
        %v3446 = vpack.c.b16 %v3422, %v3420
        %v3447 = vpack.c.b16 %v3423, %v3421
        %v3448 = vpack.c.b16 %v3426, %v3424
        %v3449 = vpack.c.b16 %v3427, %v3425
        %v3450 = vpack.c.b16 %v3430, %v3428
        %v3451 = vpack.c.b16 %v3431, %v3429
        %v3452 = vpack.c.b16 %v3434, %v3432
        %v3453 = vpack.c.b16 %v3435, %v3433
        %v3454 = vpack.c.b16 %v3438, %v3436
        %v3455 = vpack.c.b16 %v3439, %v3437
        %3472 = vmatpush.bf16.msra.mxu0 %v3454
        %3473 = vmatpush.bf16.msra.mxu0 %v3452
        %3474 = vmatpush.bf16.msra.mxu0 %v3450
        %3475 = vmatpush.bf16.msra.mxu0 %v3448
        %3476 = vmatpush.bf16.msra.mxu0 %v3446
        %3477 = vmatpush.bf16.msra.mxu0 %v3444
        %3478 = vmatpush.bf16.msra.mxu0 %v3442
        %3479 = vmatpush.bf16.msra.mxu0 %v3440
        %3480 = vmatmul.bf16.gmra.mxu0 %v3371
        %v3481 = vpop.f32.mrf.mxu0
        %v3482 = vadd.f32 %v3388, %v3481
        %v3483 = vpop.f32.mrf.mxu0
        %v3484 = vadd.f32 %v3388, %v3483
        %3485 = vmatmul.bf16.gmra.mxu0 %v3372
        %v3486 = vpop.f32.mrf.mxu0
        %v3487 = vadd.f32 %v3388, %v3486
        %v3488 = vpop.f32.mrf.mxu0
        %v3489 = vadd.f32 %v3388, %v3488
        %3490 = vmatmul.bf16.gmra.mxu0 %v3373
        %v3491 = vpop.f32.mrf.mxu0
        %v3492 = vadd.f32 %v3388, %v3491
        %v3493 = vpop.f32.mrf.mxu0
        %v3494 = vadd.f32 %v3388, %v3493
        %3495 = vmatmul.bf16.gmra.mxu0 %v3374
        %v3496 = vpop.f32.mrf.mxu0
        %v3497 = vadd.f32 %v3388, %v3496
        %v3498 = vpop.f32.mrf.mxu0
        %v3499 = vadd.f32 %v3388, %v3498
        %3500 = vmatmul.bf16.gmra.mxu0 %v3375
        %v3501 = vpop.f32.mrf.mxu0
        %v3502 = vadd.f32 %v3388, %v3501
        %v3503 = vpop.f32.mrf.mxu0
        %v3504 = vadd.f32 %v3388, %v3503
        %3505 = vmatmul.bf16.gmra.mxu0 %v3376
        %v3506 = vpop.f32.mrf.mxu0
        %v3507 = vadd.f32 %v3388, %v3506
        %v3508 = vpop.f32.mrf.mxu0
        %v3509 = vadd.f32 %v3388, %v3508
        %3510 = vmatmul.bf16.gmra.mxu0 %v3377
        %v3511 = vpop.f32.mrf.mxu0
        %v3512 = vadd.f32 %v3388, %v3511
        %v3513 = vpop.f32.mrf.mxu0
        %v3514 = vadd.f32 %v3388, %v3513
        %3515 = vmatmul.bf16.gmra.mxu0 %v3378
        %v3516 = vpop.f32.mrf.mxu0
        %v3517 = vadd.f32 %v3388, %v3516
        %v3518 = vpop.f32.mrf.mxu0
        %v3519 = vadd.f32 %v3388, %v3518
        %3520 = vmatmul.bf16.gmra.mxu0 %v3379
        %v3521 = vpop.f32.mrf.mxu0
        %v3522 = vadd.f32 %v3388, %v3521
        %v3523 = vpop.f32.mrf.mxu0
        %v3524 = vadd.f32 %v3388, %v3523
        %3525 = vmatmul.bf16.gmra.mxu0 %v3380
        %v3526 = vpop.f32.mrf.mxu0
        %v3527 = vadd.f32 %v3388, %v3526
        %v3528 = vpop.f32.mrf.mxu0
        %v3529 = vadd.f32 %v3388, %v3528
        %3530 = vmatmul.bf16.gmra.mxu0 %v3381
        %v3531 = vpop.f32.mrf.mxu0
        %v3532 = vadd.f32 %v3388, %v3531
        %v3533 = vpop.f32.mrf.mxu0
        %v3534 = vadd.f32 %v3388, %v3533
        %3535 = vmatmul.bf16.gmra.mxu0 %v3382
        %v3536 = vpop.f32.mrf.mxu0
        %v3537 = vadd.f32 %v3388, %v3536
        %v3538 = vpop.f32.mrf.mxu0
        %v3539 = vadd.f32 %v3388, %v3538
        %3540 = vmatmul.bf16.gmra.mxu0 %v3383
        %v3541 = vpop.f32.mrf.mxu0
        %v3542 = vadd.f32 %v3388, %v3541
        %v3543 = vpop.f32.mrf.mxu0
        %v3544 = vadd.f32 %v3388, %v3543
        %3545 = vmatmul.bf16.gmra.mxu0 %v3384
        %v3546 = vpop.f32.mrf.mxu0
        %v3547 = vadd.f32 %v3388, %v3546
        %v3548 = vpop.f32.mrf.mxu0
        %v3549 = vadd.f32 %v3388, %v3548
        %3550 = vmatmul.bf16.gmra.mxu0 %v3385
        %v3551 = vpop.f32.mrf.mxu0
        %v3552 = vadd.f32 %v3388, %v3551
        %v3553 = vpop.f32.mrf.mxu0
        %v3554 = vadd.f32 %v3388, %v3553
        %3555 = vmatmul.bf16.gmra.mxu0 %v3386
        %v3556 = vpop.f32.mrf.mxu0
        %v3557 = vadd.f32 %v3388, %v3556
        %v3558 = vpop.f32.mrf.mxu0
        %v3559 = vadd.f32 %v3388, %v3558
        %3560 = vdwg.mxu0
        %3561 = vmatpush.bf16.msra.mxu0 %v3455
        %3562 = vmatpush.bf16.msra.mxu0 %v3453
        %3563 = vmatpush.bf16.msra.mxu0 %v3451
        %3564 = vmatpush.bf16.msra.mxu0 %v3449
        %3565 = vmatpush.bf16.msra.mxu0 %v3447
        %3566 = vmatpush.bf16.msra.mxu0 %v3445
        %3567 = vmatpush.bf16.msra.mxu0 %v3443
        %3568 = vmatpush.bf16.msra.mxu0 %v3441
        %3569 = vmatmul.bf16.gmra.mxu0 %v3371
        %v3570 = vpop.f32.mrf.mxu0
        %v3571 = vadd.f32 %v3389, %v3570
        %v3572 = vpop.f32.mrf.mxu0
        %v3573 = vadd.f32 %v3389, %v3572
        %3574 = vmatmul.bf16.gmra.mxu0 %v3372
        %v3575 = vpop.f32.mrf.mxu0
        %v3576 = vadd.f32 %v3389, %v3575
        %v3577 = vpop.f32.mrf.mxu0
        %v3578 = vadd.f32 %v3389, %v3577
        %3579 = vmatmul.bf16.gmra.mxu0 %v3373
        %v3580 = vpop.f32.mrf.mxu0
        %v3581 = vadd.f32 %v3389, %v3580
        %v3582 = vpop.f32.mrf.mxu0
        %v3583 = vadd.f32 %v3389, %v3582
        %3584 = vmatmul.bf16.gmra.mxu0 %v3374
        %v3585 = vpop.f32.mrf.mxu0
        %v3586 = vadd.f32 %v3389, %v3585
        %v3587 = vpop.f32.mrf.mxu0
        %v3588 = vadd.f32 %v3389, %v3587
        %3589 = vmatmul.bf16.gmra.mxu0 %v3375
        %v3590 = vpop.f32.mrf.mxu0
        %v3591 = vadd.f32 %v3389, %v3590
        %v3592 = vpop.f32.mrf.mxu0
        %v3593 = vadd.f32 %v3389, %v3592
        %3594 = vmatmul.bf16.gmra.mxu0 %v3376
        %v3595 = vpop.f32.mrf.mxu0
        %v3596 = vadd.f32 %v3389, %v3595
        %v3597 = vpop.f32.mrf.mxu0
        %v3598 = vadd.f32 %v3389, %v3597
        %3599 = vmatmul.bf16.gmra.mxu0 %v3377
        %v3600 = vpop.f32.mrf.mxu0
        %v3601 = vadd.f32 %v3389, %v3600
        %v3602 = vpop.f32.mrf.mxu0
        %v3603 = vadd.f32 %v3389, %v3602
        %3604 = vmatmul.bf16.gmra.mxu0 %v3378
        %v3605 = vpop.f32.mrf.mxu0
        %v3606 = vadd.f32 %v3389, %v3605
        %v3607 = vpop.f32.mrf.mxu0
        %v3608 = vadd.f32 %v3389, %v3607
        %3609 = vmatmul.bf16.gmra.mxu0 %v3379
        %v3610 = vpop.f32.mrf.mxu0
        %v3611 = vadd.f32 %v3389, %v3610
        %v3612 = vpop.f32.mrf.mxu0
        %v3613 = vadd.f32 %v3389, %v3612
        %3614 = vmatmul.bf16.gmra.mxu0 %v3380
        %v3615 = vpop.f32.mrf.mxu0
        %v3616 = vadd.f32 %v3389, %v3615
        %v3617 = vpop.f32.mrf.mxu0
        %v3618 = vadd.f32 %v3389, %v3617
        %3619 = vmatmul.bf16.gmra.mxu0 %v3381
        %v3620 = vpop.f32.mrf.mxu0
        %v3621 = vadd.f32 %v3389, %v3620
        %v3622 = vpop.f32.mrf.mxu0
        %v3623 = vadd.f32 %v3389, %v3622
        %3624 = vmatmul.bf16.gmra.mxu0 %v3382
        %v3625 = vpop.f32.mrf.mxu0
        %v3626 = vadd.f32 %v3389, %v3625
        %v3627 = vpop.f32.mrf.mxu0
        %v3628 = vadd.f32 %v3389, %v3627
        %3629 = vmatmul.bf16.gmra.mxu0 %v3383
        %v3630 = vpop.f32.mrf.mxu0
        %v3631 = vadd.f32 %v3389, %v3630
        %v3632 = vpop.f32.mrf.mxu0
        %v3633 = vadd.f32 %v3389, %v3632
        %3634 = vmatmul.bf16.gmra.mxu0 %v3384
        %v3635 = vpop.f32.mrf.mxu0
        %v3636 = vadd.f32 %v3389, %v3635
        %v3637 = vpop.f32.mrf.mxu0
        %v3638 = vadd.f32 %v3389, %v3637
        %3639 = vmatmul.bf16.gmra.mxu0 %v3385
        %v3640 = vpop.f32.mrf.mxu0
        %v3641 = vadd.f32 %v3389, %v3640
        %v3642 = vpop.f32.mrf.mxu0
        %v3643 = vadd.f32 %v3389, %v3642
        %3644 = vmatmul.bf16.gmra.mxu0 %v3386
        %v3645 = vpop.f32.mrf.mxu0
        %v3646 = vadd.f32 %v3389, %v3645
        %v3647 = vpop.f32.mrf.mxu0
        %v3648 = vadd.f32 %v3389, %v3647
        %3649 = vdwg.mxu0
        %v3650 = vmul.f32 %v3482, %v3482
        %v3651 = vmul.f32 %v3571, %v3571
        %v3652 = vmul.f32 %v3484, %v3484
        %v3653 = vmul.f32 %v3573, %v3573
        %v3654 = vmul.f32 %v3487, %v3487
        %v3655 = vmul.f32 %v3576, %v3576
        %v3656 = vmul.f32 %v3489, %v3489
        %v3657 = vmul.f32 %v3578, %v3578
        %v3658 = vmul.f32 %v3492, %v3492
        %v3659 = vmul.f32 %v3581, %v3581
        %v3660 = vmul.f32 %v3494, %v3494
        %v3661 = vmul.f32 %v3583, %v3583
        %v3662 = vmul.f32 %v3497, %v3497
        %v3663 = vmul.f32 %v3586, %v3586
        %v3664 = vmul.f32 %v3499, %v3499
        %v3665 = vmul.f32 %v3588, %v3588
        %v3666 = vmul.f32 %v3502, %v3502
        %v3667 = vmul.f32 %v3591, %v3591
        %v3668 = vmul.f32 %v3504, %v3504
        %v3669 = vmul.f32 %v3593, %v3593
        %v3670 = vmul.f32 %v3507, %v3507
        %v3671 = vmul.f32 %v3596, %v3596
        %v3672 = vmul.f32 %v3509, %v3509
        %v3673 = vmul.f32 %v3598, %v3598
        %v3674 = vmul.f32 %v3512, %v3512
        %v3675 = vmul.f32 %v3601, %v3601
        %v3676 = vmul.f32 %v3514, %v3514
        %v3677 = vmul.f32 %v3603, %v3603
        %v3678 = vmul.f32 %v3517, %v3517
        %v3679 = vmul.f32 %v3606, %v3606
        %v3680 = vmul.f32 %v3519, %v3519
        %v3681 = vmul.f32 %v3608, %v3608
        %v3682 = vmul.f32 %v3522, %v3522
        %v3683 = vmul.f32 %v3611, %v3611
        %v3684 = vmul.f32 %v3524, %v3524
        %v3685 = vmul.f32 %v3613, %v3613
        %v3686 = vmul.f32 %v3527, %v3527
        %v3687 = vmul.f32 %v3616, %v3616
        %v3688 = vmul.f32 %v3529, %v3529
        %v3689 = vmul.f32 %v3618, %v3618
        %v3690 = vmul.f32 %v3532, %v3532
        %v3691 = vmul.f32 %v3621, %v3621
        %v3692 = vmul.f32 %v3534, %v3534
        %v3693 = vmul.f32 %v3623, %v3623
        %v3694 = vmul.f32 %v3537, %v3537
        %v3695 = vmul.f32 %v3626, %v3626
        %v3696 = vmul.f32 %v3539, %v3539
        %v3697 = vmul.f32 %v3628, %v3628
        %v3698 = vmul.f32 %v3542, %v3542
        %v3699 = vmul.f32 %v3631, %v3631
        %v3700 = vmul.f32 %v3544, %v3544
        %v3701 = vmul.f32 %v3633, %v3633
        %v3702 = vmul.f32 %v3547, %v3547
        %v3703 = vmul.f32 %v3636, %v3636
        %v3704 = vmul.f32 %v3549, %v3549
        %v3705 = vmul.f32 %v3638, %v3638
        %v3706 = vmul.f32 %v3552, %v3552
        %v3707 = vmul.f32 %v3641, %v3641
        %v3708 = vmul.f32 %v3554, %v3554
        %v3709 = vmul.f32 %v3643, %v3643
        %v3710 = vmul.f32 %v3557, %v3557
        %v3711 = vmul.f32 %v3646, %v3646
        %v3712 = vmul.f32 %v3559, %v3559
        %v3713 = vmul.f32 %v3648, %v3648
        %v3714 = vmul.f32 %v3482, %v3650
        %v3715 = vmul.f32 %v3571, %v3651
        %v3716 = vmul.f32 %v3484, %v3652
        %v3717 = vmul.f32 %v3573, %v3653
        %v3718 = vmul.f32 %v3487, %v3654
        %v3719 = vmul.f32 %v3576, %v3655
        %v3720 = vmul.f32 %v3489, %v3656
        %v3721 = vmul.f32 %v3578, %v3657
        %v3722 = vmul.f32 %v3492, %v3658
        %v3723 = vmul.f32 %v3581, %v3659
        %v3724 = vmul.f32 %v3494, %v3660
        %v3725 = vmul.f32 %v3583, %v3661
        %v3726 = vmul.f32 %v3497, %v3662
        %v3727 = vmul.f32 %v3586, %v3663
        %v3728 = vmul.f32 %v3499, %v3664
        %v3729 = vmul.f32 %v3588, %v3665
        %v3730 = vmul.f32 %v3502, %v3666
        %v3731 = vmul.f32 %v3591, %v3667
        %v3732 = vmul.f32 %v3504, %v3668
        %v3733 = vmul.f32 %v3593, %v3669
        %v3734 = vmul.f32 %v3507, %v3670
        %v3735 = vmul.f32 %v3596, %v3671
        %v3736 = vmul.f32 %v3509, %v3672
        %v3737 = vmul.f32 %v3598, %v3673
        %v3738 = vmul.f32 %v3512, %v3674
        %v3739 = vmul.f32 %v3601, %v3675
        %v3740 = vmul.f32 %v3514, %v3676
        %v3741 = vmul.f32 %v3603, %v3677
        %v3742 = vmul.f32 %v3517, %v3678
        %v3743 = vmul.f32 %v3606, %v3679
        %v3744 = vmul.f32 %v3519, %v3680
        %v3745 = vmul.f32 %v3608, %v3681
        %v3746 = vmul.f32 %v3522, %v3682
        %v3747 = vmul.f32 %v3611, %v3683
        %v3748 = vmul.f32 %v3524, %v3684
        %v3749 = vmul.f32 %v3613, %v3685
        %v3750 = vmul.f32 %v3527, %v3686
        %v3751 = vmul.f32 %v3616, %v3687
        %v3752 = vmul.f32 %v3529, %v3688
        %v3753 = vmul.f32 %v3618, %v3689
        %v3754 = vmul.f32 %v3532, %v3690
        %v3755 = vmul.f32 %v3621, %v3691
        %v3756 = vmul.f32 %v3534, %v3692
        %v3757 = vmul.f32 %v3623, %v3693
        %v3758 = vmul.f32 %v3537, %v3694
        %v3759 = vmul.f32 %v3626, %v3695
        %v3760 = vmul.f32 %v3539, %v3696
        %v3761 = vmul.f32 %v3628, %v3697
        %v3762 = vmul.f32 %v3542, %v3698
        %v3763 = vmul.f32 %v3631, %v3699
        %v3764 = vmul.f32 %v3544, %v3700
        %v3765 = vmul.f32 %v3633, %v3701
        %v3766 = vmul.f32 %v3547, %v3702
        %v3767 = vmul.f32 %v3636, %v3703
        %v3768 = vmul.f32 %v3549, %v3704
        %v3769 = vmul.f32 %v3638, %v3705
        %v3770 = vmul.f32 %v3552, %v3706
        %v3771 = vmul.f32 %v3641, %v3707
        %v3772 = vmul.f32 %v3554, %v3708
        %v3773 = vmul.f32 %v3643, %v3709
        %v3774 = vmul.f32 %v3557, %v3710
        %v3775 = vmul.f32 %v3646, %v3711
        %v3776 = vmul.f32 %v3559, %v3712
        %v3777 = vmul.f32 %v3648, %v3713
        %v3778 = vmul.f32 %v3714, 0.044715
        %v3779 = vmul.f32 %v3715, 0.044715
        %v3780 = vmul.f32 %v3716, 0.044715
        %v3781 = vmul.f32 %v3717, 0.044715
        %v3782 = vmul.f32 %v3718, 0.044715
        %v3783 = vmul.f32 %v3719, 0.044715
        %v3784 = vmul.f32 %v3720, 0.044715
        %v3785 = vmul.f32 %v3721, 0.044715
        %v3786 = vmul.f32 %v3722, 0.044715
        %v3787 = vmul.f32 %v3723, 0.044715
        %v3788 = vmul.f32 %v3724, 0.044715
        %v3789 = vmul.f32 %v3725, 0.044715
        %v3790 = vmul.f32 %v3726, 0.044715
        %v3791 = vmul.f32 %v3727, 0.044715
        %v3792 = vmul.f32 %v3728, 0.044715
        %v3793 = vmul.f32 %v3729, 0.044715
        %v3794 = vmul.f32 %v3730, 0.044715
        %v3795 = vmul.f32 %v3731, 0.044715
        %v3796 = vmul.f32 %v3732, 0.044715
        %v3797 = vmul.f32 %v3733, 0.044715
        %v3798 = vmul.f32 %v3734, 0.044715
        %v3799 = vmul.f32 %v3735, 0.044715
        %v3800 = vmul.f32 %v3736, 0.044715
        %v3801 = vmul.f32 %v3737, 0.044715
        %v3802 = vmul.f32 %v3738, 0.044715
        %v3803 = vmul.f32 %v3739, 0.044715
        %v3804 = vmul.f32 %v3740, 0.044715
        %v3805 = vmul.f32 %v3741, 0.044715
        %v3806 = vmul.f32 %v3742, 0.044715
        %v3807 = vmul.f32 %v3743, 0.044715
        %v3808 = vmul.f32 %v3744, 0.044715
        %v3809 = vmul.f32 %v3745, 0.044715
        %v3810 = vmul.f32 %v3746, 0.044715
        %v3811 = vmul.f32 %v3747, 0.044715
        %v3812 = vmul.f32 %v3748, 0.044715
        %v3813 = vmul.f32 %v3749, 0.044715
        %v3814 = vmul.f32 %v3750, 0.044715
        %v3815 = vmul.f32 %v3751, 0.044715
        %v3816 = vmul.f32 %v3752, 0.044715
        %v3817 = vmul.f32 %v3753, 0.044715
        %v3818 = vmul.f32 %v3754, 0.044715
        %v3819 = vmul.f32 %v3755, 0.044715
        %v3820 = vmul.f32 %v3756, 0.044715
        %v3821 = vmul.f32 %v3757, 0.044715
        %v3822 = vmul.f32 %v3758, 0.044715
        %v3823 = vmul.f32 %v3759, 0.044715
        %v3824 = vmul.f32 %v3760, 0.044715
        %v3825 = vmul.f32 %v3761, 0.044715
        %v3826 = vmul.f32 %v3762, 0.044715
        %v3827 = vmul.f32 %v3763, 0.044715
        %v3828 = vmul.f32 %v3764, 0.044715
        %v3829 = vmul.f32 %v3765, 0.044715
        %v3830 = vmul.f32 %v3766, 0.044715
        %v3831 = vmul.f32 %v3767, 0.044715
        %v3832 = vmul.f32 %v3768, 0.044715
        %v3833 = vmul.f32 %v3769, 0.044715
        %v3834 = vmul.f32 %v3770, 0.044715
        %v3835 = vmul.f32 %v3771, 0.044715
        %v3836 = vmul.f32 %v3772, 0.044715
        %v3837 = vmul.f32 %v3773, 0.044715
        %v3838 = vmul.f32 %v3774, 0.044715
        %v3839 = vmul.f32 %v3775, 0.044715
        %v3840 = vmul.f32 %v3776, 0.044715
        %v3841 = vmul.f32 %v3777, 0.044715
        %v3842 = vadd.f32 %v3482, %v3778
        %v3843 = vadd.f32 %v3571, %v3779
        %v3844 = vadd.f32 %v3484, %v3780
        %v3845 = vadd.f32 %v3573, %v3781
        %v3846 = vadd.f32 %v3487, %v3782
        %v3847 = vadd.f32 %v3576, %v3783
        %v3848 = vadd.f32 %v3489, %v3784
        %v3849 = vadd.f32 %v3578, %v3785
        %v3850 = vadd.f32 %v3492, %v3786
        %v3851 = vadd.f32 %v3581, %v3787
        %v3852 = vadd.f32 %v3494, %v3788
        %v3853 = vadd.f32 %v3583, %v3789
        %v3854 = vadd.f32 %v3497, %v3790
        %v3855 = vadd.f32 %v3586, %v3791
        %v3856 = vadd.f32 %v3499, %v3792
        %v3857 = vadd.f32 %v3588, %v3793
        %v3858 = vadd.f32 %v3502, %v3794
        %v3859 = vadd.f32 %v3591, %v3795
        %v3860 = vadd.f32 %v3504, %v3796
        %v3861 = vadd.f32 %v3593, %v3797
        %v3862 = vadd.f32 %v3507, %v3798
        %v3863 = vadd.f32 %v3596, %v3799
        %v3864 = vadd.f32 %v3509, %v3800
        %v3865 = vadd.f32 %v3598, %v3801
        %v3866 = vadd.f32 %v3512, %v3802
        %v3867 = vadd.f32 %v3601, %v3803
        %v3868 = vadd.f32 %v3514, %v3804
        %v3869 = vadd.f32 %v3603, %v3805
        %v3870 = vadd.f32 %v3517, %v3806
        %v3871 = vadd.f32 %v3606, %v3807
        %v3872 = vadd.f32 %v3519, %v3808
        %v3873 = vadd.f32 %v3608, %v3809
        %v3874 = vadd.f32 %v3522, %v3810
        %v3875 = vadd.f32 %v3611, %v3811
        %v3876 = vadd.f32 %v3524, %v3812
        %v3877 = vadd.f32 %v3613, %v3813
        %v3878 = vadd.f32 %v3527, %v3814
        %v3879 = vadd.f32 %v3616, %v3815
        %v3880 = vadd.f32 %v3529, %v3816
        %v3881 = vadd.f32 %v3618, %v3817
        %v3882 = vadd.f32 %v3532, %v3818
        %v3883 = vadd.f32 %v3621, %v3819
        %v3884 = vadd.f32 %v3534, %v3820
        %v3885 = vadd.f32 %v3623, %v3821
        %v3886 = vadd.f32 %v3537, %v3822
        %v3887 = vadd.f32 %v3626, %v3823
        %v3888 = vadd.f32 %v3539, %v3824
        %v3889 = vadd.f32 %v3628, %v3825
        %v3890 = vadd.f32 %v3542, %v3826
        %v3891 = vadd.f32 %v3631, %v3827
        %v3892 = vadd.f32 %v3544, %v3828
        %v3893 = vadd.f32 %v3633, %v3829
        %v3894 = vadd.f32 %v3547, %v3830
        %v3895 = vadd.f32 %v3636, %v3831
        %v3896 = vadd.f32 %v3549, %v3832
        %v3897 = vadd.f32 %v3638, %v3833
        %v3898 = vadd.f32 %v3552, %v3834
        %v3899 = vadd.f32 %v3641, %v3835
        %v3900 = vadd.f32 %v3554, %v3836
        %v3901 = vadd.f32 %v3643, %v3837
        %v3902 = vadd.f32 %v3557, %v3838
        %v3903 = vadd.f32 %v3646, %v3839
        %v3904 = vadd.f32 %v3559, %v3840
        %v3905 = vadd.f32 %v3648, %v3841
        %v3906 = vmul.f32 %v3842, 0.7978846
        %v3907 = vmul.f32 %v3843, 0.7978846
        %v3908 = vmul.f32 %v3844, 0.7978846
        %v3909 = vmul.f32 %v3845, 0.7978846
        %v3910 = vmul.f32 %v3846, 0.7978846
        %v3911 = vmul.f32 %v3847, 0.7978846
        %v3912 = vmul.f32 %v3848, 0.7978846
        %v3913 = vmul.f32 %v3849, 0.7978846
        %v3914 = vmul.f32 %v3850, 0.7978846
        %v3915 = vmul.f32 %v3851, 0.7978846
        %v3916 = vmul.f32 %v3852, 0.7978846
        %v3917 = vmul.f32 %v3853, 0.7978846
        %v3918 = vmul.f32 %v3854, 0.7978846
        %v3919 = vmul.f32 %v3855, 0.7978846
        %v3920 = vmul.f32 %v3856, 0.7978846
        %v3921 = vmul.f32 %v3857, 0.7978846
        %v3922 = vmul.f32 %v3858, 0.7978846
        %v3923 = vmul.f32 %v3859, 0.7978846
        %v3924 = vmul.f32 %v3860, 0.7978846
        %v3925 = vmul.f32 %v3861, 0.7978846
        %v3926 = vmul.f32 %v3862, 0.7978846
        %v3927 = vmul.f32 %v3863, 0.7978846
        %v3928 = vmul.f32 %v3864, 0.7978846
        %v3929 = vmul.f32 %v3865, 0.7978846
        %v3930 = vmul.f32 %v3866, 0.7978846
        %v3931 = vmul.f32 %v3867, 0.7978846
        %v3932 = vmul.f32 %v3868, 0.7978846
        %v3933 = vmul.f32 %v3869, 0.7978846
        %v3934 = vmul.f32 %v3870, 0.7978846
        %v3935 = vmul.f32 %v3871, 0.7978846
        %v3936 = vmul.f32 %v3872, 0.7978846
        %v3937 = vmul.f32 %v3873, 0.7978846
        %v3938 = vmul.f32 %v3874, 0.7978846
        %v3939 = vmul.f32 %v3875, 0.7978846
        %v3940 = vmul.f32 %v3876, 0.7978846
        %v3941 = vmul.f32 %v3877, 0.7978846
        %v3942 = vmul.f32 %v3878, 0.7978846
        %v3943 = vmul.f32 %v3879, 0.7978846
        %v3944 = vmul.f32 %v3880, 0.7978846
        %v3945 = vmul.f32 %v3881, 0.7978846
        %v3946 = vmul.f32 %v3882, 0.7978846
        %v3947 = vmul.f32 %v3883, 0.7978846
        %v3948 = vmul.f32 %v3884, 0.7978846
        %v3949 = vmul.f32 %v3885, 0.7978846
        %v3950 = vmul.f32 %v3886, 0.7978846
        %v3951 = vmul.f32 %v3887, 0.7978846
        %v3952 = vmul.f32 %v3888, 0.7978846
        %v3953 = vmul.f32 %v3889, 0.7978846
        %v3954 = vmul.f32 %v3890, 0.7978846
        %v3955 = vmul.f32 %v3891, 0.7978846
        %v3956 = vmul.f32 %v3892, 0.7978846
        %v3957 = vmul.f32 %v3893, 0.7978846
        %v3958 = vmul.f32 %v3894, 0.7978846
        %v3959 = vmul.f32 %v3895, 0.7978846
        %v3960 = vmul.f32 %v3896, 0.7978846
        %v3961 = vmul.f32 %v3897, 0.7978846
        %v3962 = vmul.f32 %v3898, 0.7978846
        %v3963 = vmul.f32 %v3899, 0.7978846
        %v3964 = vmul.f32 %v3900, 0.7978846
        %v3965 = vmul.f32 %v3901, 0.7978846
        %v3966 = vmul.f32 %v3902, 0.7978846
        %v3967 = vmul.f32 %v3903, 0.7978846
        %v3968 = vmul.f32 %v3904, 0.7978846
        %v3969 = vmul.f32 %v3905, 0.7978846
        %v3970 = vtanh.pop %v3906
        %v3971 = vtanh.pop %v3907
        %v3972 = vtanh.pop %v3908
        %v3973 = vtanh.pop %v3909
        %v3974 = vtanh.pop %v3910
        %v3975 = vtanh.pop %v3911
        %v3976 = vtanh.pop %v3912
        %v3977 = vtanh.pop %v3913
        %v3978 = vtanh.pop %v3914
        %v3979 = vtanh.pop %v3915
        %v3980 = vtanh.pop %v3916
        %v3981 = vtanh.pop %v3917
        %v3982 = vtanh.pop %v3918
        %v3983 = vtanh.pop %v3919
        %v3984 = vtanh.pop %v3920
        %v3985 = vtanh.pop %v3921
        %v3986 = vtanh.pop %v3922
        %v3987 = vtanh.pop %v3923
        %v3988 = vtanh.pop %v3924
        %v3989 = vtanh.pop %v3925
        %v3990 = vtanh.pop %v3926
        %v3991 = vtanh.pop %v3927
        %v3992 = vtanh.pop %v3928
        %v3993 = vtanh.pop %v3929
        %v3994 = vtanh.pop %v3930
        %v3995 = vtanh.pop %v3931
        %v3996 = vtanh.pop %v3932
        %v3997 = vtanh.pop %v3933
        %v3998 = vtanh.pop %v3934
        %v3999 = vtanh.pop %v3935
        %v4000 = vtanh.pop %v3936
        %v4001 = vtanh.pop %v3937
        %v4002 = vtanh.pop %v3938
        %v4003 = vtanh.pop %v3939
        %v4004 = vtanh.pop %v3940
        %v4005 = vtanh.pop %v3941
        %v4006 = vtanh.pop %v3942
        %v4007 = vtanh.pop %v3943
        %v4008 = vtanh.pop %v3944
        %v4009 = vtanh.pop %v3945
        %v4010 = vtanh.pop %v3946
        %v4011 = vtanh.pop %v3947
        %v4012 = vtanh.pop %v3948
        %v4013 = vtanh.pop %v3949
        %v4014 = vtanh.pop %v3950
        %v4015 = vtanh.pop %v3951
        %v4016 = vtanh.pop %v3952
        %v4017 = vtanh.pop %v3953
        %v4018 = vtanh.pop %v3954
        %v4019 = vtanh.pop %v3955
        %v4020 = vtanh.pop %v3956
        %v4021 = vtanh.pop %v3957
        %v4022 = vtanh.pop %v3958
        %v4023 = vtanh.pop %v3959
        %v4024 = vtanh.pop %v3960
        %v4025 = vtanh.pop %v3961
        %v4026 = vtanh.pop %v3962
        %v4027 = vtanh.pop %v3963
        %v4028 = vtanh.pop %v3964
        %v4029 = vtanh.pop %v3965
        %v4030 = vtanh.pop %v3966
        %v4031 = vtanh.pop %v3967
        %v4032 = vtanh.pop %v3968
        %v4033 = vtanh.pop %v3969
        %v4034 = vadd.f32 %v3970, 1.0
        %v4035 = vadd.f32 %v3971, 1.0
        %v4036 = vadd.f32 %v3972, 1.0
        %v4037 = vadd.f32 %v3973, 1.0
        %v4038 = vadd.f32 %v3974, 1.0
        %v4039 = vadd.f32 %v3975, 1.0
        %v4040 = vadd.f32 %v3976, 1.0
        %v4041 = vadd.f32 %v3977, 1.0
        %v4042 = vadd.f32 %v3978, 1.0
        %v4043 = vadd.f32 %v3979, 1.0
        %v4044 = vadd.f32 %v3980, 1.0
        %v4045 = vadd.f32 %v3981, 1.0
        %v4046 = vadd.f32 %v3982, 1.0
        %v4047 = vadd.f32 %v3983, 1.0
        %v4048 = vadd.f32 %v3984, 1.0
        %v4049 = vadd.f32 %v3985, 1.0
        %v4050 = vadd.f32 %v3986, 1.0
        %v4051 = vadd.f32 %v3987, 1.0
        %v4052 = vadd.f32 %v3988, 1.0
        %v4053 = vadd.f32 %v3989, 1.0
        %v4054 = vadd.f32 %v3990, 1.0
        %v4055 = vadd.f32 %v3991, 1.0
        %v4056 = vadd.f32 %v3992, 1.0
        %v4057 = vadd.f32 %v3993, 1.0
        %v4058 = vadd.f32 %v3994, 1.0
        %v4059 = vadd.f32 %v3995, 1.0
        %v4060 = vadd.f32 %v3996, 1.0
        %v4061 = vadd.f32 %v3997, 1.0
        %v4062 = vadd.f32 %v3998, 1.0
        %v4063 = vadd.f32 %v3999, 1.0
        %v4064 = vadd.f32 %v4000, 1.0
        %v4065 = vadd.f32 %v4001, 1.0
        %v4066 = vadd.f32 %v4002, 1.0
        %v4067 = vadd.f32 %v4003, 1.0
        %v4068 = vadd.f32 %v4004, 1.0
        %v4069 = vadd.f32 %v4005, 1.0
        %v4070 = vadd.f32 %v4006, 1.0
        %v4071 = vadd.f32 %v4007, 1.0
        %v4072 = vadd.f32 %v4008, 1.0
        %v4073 = vadd.f32 %v4009, 1.0
        %v4074 = vadd.f32 %v4010, 1.0
        %v4075 = vadd.f32 %v4011, 1.0
        %v4076 = vadd.f32 %v4012, 1.0
        %v4077 = vadd.f32 %v4013, 1.0
        %v4078 = vadd.f32 %v4014, 1.0
        %v4079 = vadd.f32 %v4015, 1.0
        %v4080 = vadd.f32 %v4016, 1.0
        %v4081 = vadd.f32 %v4017, 1.0
        %v4082 = vadd.f32 %v4018, 1.0
        %v4083 = vadd.f32 %v4019, 1.0
        %v4084 = vadd.f32 %v4020, 1.0
        %v4085 = vadd.f32 %v4021, 1.0
        %v4086 = vadd.f32 %v4022, 1.0
        %v4087 = vadd.f32 %v4023, 1.0
        %v4088 = vadd.f32 %v4024, 1.0
        %v4089 = vadd.f32 %v4025, 1.0
        %v4090 = vadd.f32 %v4026, 1.0
        %v4091 = vadd.f32 %v4027, 1.0
        %v4092 = vadd.f32 %v4028, 1.0
        %v4093 = vadd.f32 %v4029, 1.0
        %v4094 = vadd.f32 %v4030, 1.0
        %v4095 = vadd.f32 %v4031, 1.0
        %v4096 = vadd.f32 %v4032, 1.0
        %v4097 = vadd.f32 %v4033, 1.0
        %v4098 = vmul.f32 %v4034, 0.5
        %v4099 = vmul.f32 %v4035, 0.5
        %v4100 = vmul.f32 %v4036, 0.5
        %v4101 = vmul.f32 %v4037, 0.5
        %v4102 = vmul.f32 %v4038, 0.5
        %v4103 = vmul.f32 %v4039, 0.5
        %v4104 = vmul.f32 %v4040, 0.5
        %v4105 = vmul.f32 %v4041, 0.5
        %v4106 = vmul.f32 %v4042, 0.5
        %v4107 = vmul.f32 %v4043, 0.5
        %v4108 = vmul.f32 %v4044, 0.5
        %v4109 = vmul.f32 %v4045, 0.5
        %v4110 = vmul.f32 %v4046, 0.5
        %v4111 = vmul.f32 %v4047, 0.5
        %v4112 = vmul.f32 %v4048, 0.5
        %v4113 = vmul.f32 %v4049, 0.5
        %v4114 = vmul.f32 %v4050, 0.5
        %v4115 = vmul.f32 %v4051, 0.5
        %v4116 = vmul.f32 %v4052, 0.5
        %v4117 = vmul.f32 %v4053, 0.5
        %v4118 = vmul.f32 %v4054, 0.5
        %v4119 = vmul.f32 %v4055, 0.5
        %v4120 = vmul.f32 %v4056, 0.5
        %v4121 = vmul.f32 %v4057, 0.5
        %v4122 = vmul.f32 %v4058, 0.5
        %v4123 = vmul.f32 %v4059, 0.5
        %v4124 = vmul.f32 %v4060, 0.5
        %v4125 = vmul.f32 %v4061, 0.5
        %v4126 = vmul.f32 %v4062, 0.5
        %v4127 = vmul.f32 %v4063, 0.5
        %v4128 = vmul.f32 %v4064, 0.5
        %v4129 = vmul.f32 %v4065, 0.5
        %v4130 = vmul.f32 %v4066, 0.5
        %v4131 = vmul.f32 %v4067, 0.5
        %v4132 = vmul.f32 %v4068, 0.5
        %v4133 = vmul.f32 %v4069, 0.5
        %v4134 = vmul.f32 %v4070, 0.5
        %v4135 = vmul.f32 %v4071, 0.5
        %v4136 = vmul.f32 %v4072, 0.5
        %v4137 = vmul.f32 %v4073, 0.5
        %v4138 = vmul.f32 %v4074, 0.5
        %v4139 = vmul.f32 %v4075, 0.5
        %v4140 = vmul.f32 %v4076, 0.5
        %v4141 = vmul.f32 %v4077, 0.5
        %v4142 = vmul.f32 %v4078, 0.5
        %v4143 = vmul.f32 %v4079, 0.5
        %v4144 = vmul.f32 %v4080, 0.5
        %v4145 = vmul.f32 %v4081, 0.5
        %v4146 = vmul.f32 %v4082, 0.5
        %v4147 = vmul.f32 %v4083, 0.5
        %v4148 = vmul.f32 %v4084, 0.5
        %v4149 = vmul.f32 %v4085, 0.5
        %v4150 = vmul.f32 %v4086, 0.5
        %v4151 = vmul.f32 %v4087, 0.5
        %v4152 = vmul.f32 %v4088, 0.5
        %v4153 = vmul.f32 %v4089, 0.5
        %v4154 = vmul.f32 %v4090, 0.5
        %v4155 = vmul.f32 %v4091, 0.5
        %v4156 = vmul.f32 %v4092, 0.5
        %v4157 = vmul.f32 %v4093, 0.5
        %v4158 = vmul.f32 %v4094, 0.5
        %v4159 = vmul.f32 %v4095, 0.5
        %v4160 = vmul.f32 %v4096, 0.5
        %v4161 = vmul.f32 %v4097, 0.5
        %v4162 = vmul.f32 %v3482, %v4098
        %v4163 = vmul.f32 %v3571, %v4099
        %v4164 = vmul.f32 %v3484, %v4100
        %v4165 = vmul.f32 %v3573, %v4101
        %v4166 = vmul.f32 %v3487, %v4102
        %v4167 = vmul.f32 %v3576, %v4103
        %v4168 = vmul.f32 %v3489, %v4104
        %v4169 = vmul.f32 %v3578, %v4105
        %v4170 = vmul.f32 %v3492, %v4106
        %v4171 = vmul.f32 %v3581, %v4107
        %v4172 = vmul.f32 %v3494, %v4108
        %v4173 = vmul.f32 %v3583, %v4109
        %v4174 = vmul.f32 %v3497, %v4110
        %v4175 = vmul.f32 %v3586, %v4111
        %v4176 = vmul.f32 %v3499, %v4112
        %v4177 = vmul.f32 %v3588, %v4113
        %v4178 = vmul.f32 %v3502, %v4114
        %v4179 = vmul.f32 %v3591, %v4115
        %v4180 = vmul.f32 %v3504, %v4116
        %v4181 = vmul.f32 %v3593, %v4117
        %v4182 = vmul.f32 %v3507, %v4118
        %v4183 = vmul.f32 %v3596, %v4119
        %v4184 = vmul.f32 %v3509, %v4120
        %v4185 = vmul.f32 %v3598, %v4121
        %v4186 = vmul.f32 %v3512, %v4122
        %v4187 = vmul.f32 %v3601, %v4123
        %v4188 = vmul.f32 %v3514, %v4124
        %v4189 = vmul.f32 %v3603, %v4125
        %v4190 = vmul.f32 %v3517, %v4126
        %v4191 = vmul.f32 %v3606, %v4127
        %v4192 = vmul.f32 %v3519, %v4128
        %v4193 = vmul.f32 %v3608, %v4129
        %v4194 = vmul.f32 %v3522, %v4130
        %v4195 = vmul.f32 %v3611, %v4131
        %v4196 = vmul.f32 %v3524, %v4132
        %v4197 = vmul.f32 %v3613, %v4133
        %v4198 = vmul.f32 %v3527, %v4134
        %v4199 = vmul.f32 %v3616, %v4135
        %v4200 = vmul.f32 %v3529, %v4136
        %v4201 = vmul.f32 %v3618, %v4137
        %v4202 = vmul.f32 %v3532, %v4138
        %v4203 = vmul.f32 %v3621, %v4139
        %v4204 = vmul.f32 %v3534, %v4140
        %v4205 = vmul.f32 %v3623, %v4141
        %v4206 = vmul.f32 %v3537, %v4142
        %v4207 = vmul.f32 %v3626, %v4143
        %v4208 = vmul.f32 %v3539, %v4144
        %v4209 = vmul.f32 %v3628, %v4145
        %v4210 = vmul.f32 %v3542, %v4146
        %v4211 = vmul.f32 %v3631, %v4147
        %v4212 = vmul.f32 %v3544, %v4148
        %v4213 = vmul.f32 %v3633, %v4149
        %v4214 = vmul.f32 %v3547, %v4150
        %v4215 = vmul.f32 %v3636, %v4151
        %v4216 = vmul.f32 %v3549, %v4152
        %v4217 = vmul.f32 %v3638, %v4153
        %v4218 = vmul.f32 %v3552, %v4154
        %v4219 = vmul.f32 %v3641, %v4155
        %v4220 = vmul.f32 %v3554, %v4156
        %v4221 = vmul.f32 %v3643, %v4157
        %v4222 = vmul.f32 %v3557, %v4158
        %v4223 = vmul.f32 %v3646, %v4159
        %v4224 = vmul.f32 %v3559, %v4160
        %v4225 = vmul.f32 %v3648, %v4161
        %v4226 = vpack.c.bf16 %v4164, %v4162
        %v4227 = vpack.c.bf16 %v4165, %v4163
        %v4228 = vpack.c.bf16 %v4168, %v4166
        %v4229 = vpack.c.bf16 %v4169, %v4167
        %v4230 = vpack.c.bf16 %v4172, %v4170
        %v4231 = vpack.c.bf16 %v4173, %v4171
        %v4232 = vpack.c.bf16 %v4176, %v4174
        %v4233 = vpack.c.bf16 %v4177, %v4175
        %v4234 = vpack.c.bf16 %v4180, %v4178
        %v4235 = vpack.c.bf16 %v4181, %v4179
        %v4236 = vpack.c.bf16 %v4184, %v4182
        %v4237 = vpack.c.bf16 %v4185, %v4183
        %v4238 = vpack.c.bf16 %v4188, %v4186
        %v4239 = vpack.c.bf16 %v4189, %v4187
        %v4240 = vpack.c.bf16 %v4192, %v4190
        %v4241 = vpack.c.bf16 %v4193, %v4191
        %v4242 = vpack.c.bf16 %v4196, %v4194
        %v4243 = vpack.c.bf16 %v4197, %v4195
        %v4244 = vpack.c.bf16 %v4200, %v4198
        %v4245 = vpack.c.bf16 %v4201, %v4199
        %v4246 = vpack.c.bf16 %v4204, %v4202
        %v4247 = vpack.c.bf16 %v4205, %v4203
        %v4248 = vpack.c.bf16 %v4208, %v4206
        %v4249 = vpack.c.bf16 %v4209, %v4207
        %v4250 = vpack.c.bf16 %v4212, %v4210
        %v4251 = vpack.c.bf16 %v4213, %v4211
        %v4252 = vpack.c.bf16 %v4216, %v4214
        %v4253 = vpack.c.bf16 %v4217, %v4215
        %v4254 = vpack.c.bf16 %v4220, %v4218
        %v4255 = vpack.c.bf16 %v4221, %v4219
        %v4256 = vpack.c.bf16 %v4224, %v4222
        %v4257 = vpack.c.bf16 %v4225, %v4223
        %v4290 = vunpack.c.l.b16 %v510
        %v4291 = vunpack.c.l.b16 %v511
        %v4292 = vunpack.c.l.b16 %v512
        %v4293 = vunpack.c.l.b16 %v513
        %v4294 = vunpack.c.l.b16 %v514
        %v4295 = vunpack.c.l.b16 %v515
        %v4296 = vunpack.c.l.b16 %v516
        %v4297 = vunpack.c.l.b16 %v517
        %v4298 = vunpack.c.l.b16 %v518
        %v4299 = vunpack.c.l.b16 %v519
        %v4300 = vunpack.c.l.b16 %v520
        %v4301 = vunpack.c.l.b16 %v521
        %v4302 = vunpack.c.l.b16 %v522
        %v4303 = vunpack.c.l.b16 %v523
        %v4304 = vunpack.c.l.b16 %v524
        %v4305 = vunpack.c.l.b16 %v525
        %v4306 = vunpack.c.l.b16 %v526
        %v4307 = vunpack.c.l.b16 %v527
        %v4308 = vunpack.c.l.b16 %v528
        %v4309 = vunpack.c.l.b16 %v529
        %v4310 = vunpack.c.l.b16 %v530
        %v4311 = vunpack.c.l.b16 %v531
        %v4312 = vunpack.c.l.b16 %v532
        %v4313 = vunpack.c.l.b16 %v533
        %v4314 = vunpack.c.l.b16 %v534
        %v4315 = vunpack.c.l.b16 %v535
        %v4316 = vunpack.c.l.b16 %v536
        %v4317 = vunpack.c.l.b16 %v537
        %v4318 = vunpack.c.l.b16 %v538
        %v4319 = vunpack.c.l.b16 %v539
        %v4320 = vunpack.c.l.b16 %v540
        %v4321 = vunpack.c.l.b16 %v541
        %v4322 = vpack.c.b16 %v4291, %v4290
        %v4323 = vpack.c.b16 %v4293, %v4292
        %v4324 = vpack.c.b16 %v4295, %v4294
        %v4325 = vpack.c.b16 %v4297, %v4296
        %v4326 = vpack.c.b16 %v4299, %v4298
        %v4327 = vpack.c.b16 %v4301, %v4300
        %v4328 = vpack.c.b16 %v4303, %v4302
        %v4329 = vpack.c.b16 %v4305, %v4304
        %v4330 = vpack.c.b16 %v4307, %v4306
        %v4331 = vpack.c.b16 %v4309, %v4308
        %v4332 = vpack.c.b16 %v4311, %v4310
        %v4333 = vpack.c.b16 %v4313, %v4312
        %v4334 = vpack.c.b16 %v4315, %v4314
        %v4335 = vpack.c.b16 %v4317, %v4316
        %v4336 = vpack.c.b16 %v4319, %v4318
        %v4337 = vpack.c.b16 %v4321, %v4320
        %4354 = vmatpush.bf16.msra.mxu0 %v4329
        %4355 = vmatpush.bf16.msra.mxu0 %v4328
        %4356 = vmatpush.bf16.msra.mxu0 %v4327
        %4357 = vmatpush.bf16.msra.mxu0 %v4326
        %4358 = vmatpush.bf16.msra.mxu0 %v4325
        %4359 = vmatpush.bf16.msra.mxu0 %v4324
        %4360 = vmatpush.bf16.msra.mxu0 %v4323
        %4361 = vmatpush.bf16.msra.mxu0 %v4322
        %4362 = vmatmul.bf16.gmra.mxu0 %v4226
        %v4363 = vpop.f32.mrf.mxu0
        %v4364 = vadd.f32 0.0, %v4363
        %v4365 = vpop.f32.mrf.mxu0
        %v4366 = vadd.f32 0.0, %v4365
        %4367 = vmatmul.bf16.gmra.mxu0 %v4228
        %v4368 = vpop.f32.mrf.mxu0
        %v4369 = vadd.f32 0.0, %v4368
        %v4370 = vpop.f32.mrf.mxu0
        %v4371 = vadd.f32 0.0, %v4370
        %4372 = vmatmul.bf16.gmra.mxu0 %v4230
        %v4373 = vpop.f32.mrf.mxu0
        %v4374 = vadd.f32 0.0, %v4373
        %v4375 = vpop.f32.mrf.mxu0
        %v4376 = vadd.f32 0.0, %v4375
        %4377 = vmatmul.bf16.gmra.mxu0 %v4232
        %v4378 = vpop.f32.mrf.mxu0
        %v4379 = vadd.f32 0.0, %v4378
        %v4380 = vpop.f32.mrf.mxu0
        %v4381 = vadd.f32 0.0, %v4380
        %4382 = vmatmul.bf16.gmra.mxu0 %v4234
        %v4383 = vpop.f32.mrf.mxu0
        %v4384 = vadd.f32 0.0, %v4383
        %v4385 = vpop.f32.mrf.mxu0
        %v4386 = vadd.f32 0.0, %v4385
        %4387 = vmatmul.bf16.gmra.mxu0 %v4236
        %v4388 = vpop.f32.mrf.mxu0
        %v4389 = vadd.f32 0.0, %v4388
        %v4390 = vpop.f32.mrf.mxu0
        %v4391 = vadd.f32 0.0, %v4390
        %4392 = vmatmul.bf16.gmra.mxu0 %v4238
        %v4393 = vpop.f32.mrf.mxu0
        %v4394 = vadd.f32 0.0, %v4393
        %v4395 = vpop.f32.mrf.mxu0
        %v4396 = vadd.f32 0.0, %v4395
        %4397 = vmatmul.bf16.gmra.mxu0 %v4240
        %v4398 = vpop.f32.mrf.mxu0
        %v4399 = vadd.f32 0.0, %v4398
        %v4400 = vpop.f32.mrf.mxu0
        %v4401 = vadd.f32 0.0, %v4400
        %4402 = vmatmul.bf16.gmra.mxu0 %v4242
        %v4403 = vpop.f32.mrf.mxu0
        %v4404 = vadd.f32 0.0, %v4403
        %v4405 = vpop.f32.mrf.mxu0
        %v4406 = vadd.f32 0.0, %v4405
        %4407 = vmatmul.bf16.gmra.mxu0 %v4244
        %v4408 = vpop.f32.mrf.mxu0
        %v4409 = vadd.f32 0.0, %v4408
        %v4410 = vpop.f32.mrf.mxu0
        %v4411 = vadd.f32 0.0, %v4410
        %4412 = vmatmul.bf16.gmra.mxu0 %v4246
        %v4413 = vpop.f32.mrf.mxu0
        %v4414 = vadd.f32 0.0, %v4413
        %v4415 = vpop.f32.mrf.mxu0
        %v4416 = vadd.f32 0.0, %v4415
        %4417 = vmatmul.bf16.gmra.mxu0 %v4248
        %v4418 = vpop.f32.mrf.mxu0
        %v4419 = vadd.f32 0.0, %v4418
        %v4420 = vpop.f32.mrf.mxu0
        %v4421 = vadd.f32 0.0, %v4420
        %4422 = vmatmul.bf16.gmra.mxu0 %v4250
        %v4423 = vpop.f32.mrf.mxu0
        %v4424 = vadd.f32 0.0, %v4423
        %v4425 = vpop.f32.mrf.mxu0
        %v4426 = vadd.f32 0.0, %v4425
        %4427 = vmatmul.bf16.gmra.mxu0 %v4252
        %v4428 = vpop.f32.mrf.mxu0
        %v4429 = vadd.f32 0.0, %v4428
        %v4430 = vpop.f32.mrf.mxu0
        %v4431 = vadd.f32 0.0, %v4430
        %4432 = vmatmul.bf16.gmra.mxu0 %v4254
        %v4433 = vpop.f32.mrf.mxu0
        %v4434 = vadd.f32 0.0, %v4433
        %v4435 = vpop.f32.mrf.mxu0
        %v4436 = vadd.f32 0.0, %v4435
        %4437 = vmatmul.bf16.gmra.mxu0 %v4256
        %v4438 = vpop.f32.mrf.mxu0
        %v4439 = vadd.f32 0.0, %v4438
        %v4440 = vpop.f32.mrf.mxu0
        %v4441 = vadd.f32 0.0, %v4440
        %4442 = vdwg.mxu0
        %4443 = vmatpush.bf16.msra.mxu0 %v4337
        %4444 = vmatpush.bf16.msra.mxu0 %v4336
        %4445 = vmatpush.bf16.msra.mxu0 %v4335
        %4446 = vmatpush.bf16.msra.mxu0 %v4334
        %4447 = vmatpush.bf16.msra.mxu0 %v4333
        %4448 = vmatpush.bf16.msra.mxu0 %v4332
        %4449 = vmatpush.bf16.msra.mxu0 %v4331
        %4450 = vmatpush.bf16.msra.mxu0 %v4330
        %4451 = vmatmul.bf16.gmra.mxu0 %v4227
        %v4452 = vpop.f32.mrf.mxu0
        %v4453 = vadd.f32 %v4364, %v4452
        %v4454 = vpop.f32.mrf.mxu0
        %v4455 = vadd.f32 %v4366, %v4454
        %4456 = vmatmul.bf16.gmra.mxu0 %v4229
        %v4457 = vpop.f32.mrf.mxu0
        %v4458 = vadd.f32 %v4369, %v4457
        %v4459 = vpop.f32.mrf.mxu0
        %v4460 = vadd.f32 %v4371, %v4459
        %4461 = vmatmul.bf16.gmra.mxu0 %v4231
        %v4462 = vpop.f32.mrf.mxu0
        %v4463 = vadd.f32 %v4374, %v4462
        %v4464 = vpop.f32.mrf.mxu0
        %v4465 = vadd.f32 %v4376, %v4464
        %4466 = vmatmul.bf16.gmra.mxu0 %v4233
        %v4467 = vpop.f32.mrf.mxu0
        %v4468 = vadd.f32 %v4379, %v4467
        %v4469 = vpop.f32.mrf.mxu0
        %v4470 = vadd.f32 %v4381, %v4469
        %4471 = vmatmul.bf16.gmra.mxu0 %v4235
        %v4472 = vpop.f32.mrf.mxu0
        %v4473 = vadd.f32 %v4384, %v4472
        %v4474 = vpop.f32.mrf.mxu0
        %v4475 = vadd.f32 %v4386, %v4474
        %4476 = vmatmul.bf16.gmra.mxu0 %v4237
        %v4477 = vpop.f32.mrf.mxu0
        %v4478 = vadd.f32 %v4389, %v4477
        %v4479 = vpop.f32.mrf.mxu0
        %v4480 = vadd.f32 %v4391, %v4479
        %4481 = vmatmul.bf16.gmra.mxu0 %v4239
        %v4482 = vpop.f32.mrf.mxu0
        %v4483 = vadd.f32 %v4394, %v4482
        %v4484 = vpop.f32.mrf.mxu0
        %v4485 = vadd.f32 %v4396, %v4484
        %4486 = vmatmul.bf16.gmra.mxu0 %v4241
        %v4487 = vpop.f32.mrf.mxu0
        %v4488 = vadd.f32 %v4399, %v4487
        %v4489 = vpop.f32.mrf.mxu0
        %v4490 = vadd.f32 %v4401, %v4489
        %4491 = vmatmul.bf16.gmra.mxu0 %v4243
        %v4492 = vpop.f32.mrf.mxu0
        %v4493 = vadd.f32 %v4404, %v4492
        %v4494 = vpop.f32.mrf.mxu0
        %v4495 = vadd.f32 %v4406, %v4494
        %4496 = vmatmul.bf16.gmra.mxu0 %v4245
        %v4497 = vpop.f32.mrf.mxu0
        %v4498 = vadd.f32 %v4409, %v4497
        %v4499 = vpop.f32.mrf.mxu0
        %v4500 = vadd.f32 %v4411, %v4499
        %4501 = vmatmul.bf16.gmra.mxu0 %v4247
        %v4502 = vpop.f32.mrf.mxu0
        %v4503 = vadd.f32 %v4414, %v4502
        %v4504 = vpop.f32.mrf.mxu0
        %v4505 = vadd.f32 %v4416, %v4504
        %4506 = vmatmul.bf16.gmra.mxu0 %v4249
        %v4507 = vpop.f32.mrf.mxu0
        %v4508 = vadd.f32 %v4419, %v4507
        %v4509 = vpop.f32.mrf.mxu0
        %v4510 = vadd.f32 %v4421, %v4509
        %4511 = vmatmul.bf16.gmra.mxu0 %v4251
        %v4512 = vpop.f32.mrf.mxu0
        %v4513 = vadd.f32 %v4424, %v4512
        %v4514 = vpop.f32.mrf.mxu0
        %v4515 = vadd.f32 %v4426, %v4514
        %4516 = vmatmul.bf16.gmra.mxu0 %v4253
        %v4517 = vpop.f32.mrf.mxu0
        %v4518 = vadd.f32 %v4429, %v4517
        %v4519 = vpop.f32.mrf.mxu0
        %v4520 = vadd.f32 %v4431, %v4519
        %4521 = vmatmul.bf16.gmra.mxu0 %v4255
        %v4522 = vpop.f32.mrf.mxu0
        %v4523 = vadd.f32 %v4434, %v4522
        %v4524 = vpop.f32.mrf.mxu0
        %v4525 = vadd.f32 %v4436, %v4524
        %4526 = vmatmul.bf16.gmra.mxu0 %v4257
        %v4527 = vpop.f32.mrf.mxu0
        %v4528 = vadd.f32 %v4439, %v4527
        %v4529 = vpop.f32.mrf.mxu0
        %v4530 = vadd.f32 %v4441, %v4529
        %4531 = vdwg.mxu0
        %v4532 = vadd.f32 %v2635, %v4453
        %v4533 = vadd.f32 %v2636, %v4455
        %v4534 = vadd.f32 %v2637, %v4458
        %v4535 = vadd.f32 %v2638, %v4460
        %v4536 = vadd.f32 %v2639, %v4463
        %v4537 = vadd.f32 %v2640, %v4465
        %v4538 = vadd.f32 %v2641, %v4468
        %v4539 = vadd.f32 %v2642, %v4470
        %v4540 = vadd.f32 %v2643, %v4473
        %v4541 = vadd.f32 %v2644, %v4475
        %v4542 = vadd.f32 %v2645, %v4478
        %v4543 = vadd.f32 %v2646, %v4480
        %v4544 = vadd.f32 %v2647, %v4483
        %v4545 = vadd.f32 %v2648, %v4485
        %v4546 = vadd.f32 %v2649, %v4488
        %v4547 = vadd.f32 %v2650, %v4490
        %v4548 = vadd.f32 %v2651, %v4493
        %v4549 = vadd.f32 %v2652, %v4495
        %v4550 = vadd.f32 %v2653, %v4498
        %v4551 = vadd.f32 %v2654, %v4500
        %v4552 = vadd.f32 %v2655, %v4503
        %v4553 = vadd.f32 %v2656, %v4505
        %v4554 = vadd.f32 %v2657, %v4508
        %v4555 = vadd.f32 %v2658, %v4510
        %v4556 = vadd.f32 %v2659, %v4513
        %v4557 = vadd.f32 %v2660, %v4515
        %v4558 = vadd.f32 %v2661, %v4518
        %v4559 = vadd.f32 %v2662, %v4520
        %v4560 = vadd.f32 %v2663, %v4523
        %v4561 = vadd.f32 %v2664, %v4525
        %v4562 = vadd.f32 %v2665, %v4528
        %v4563 = vadd.f32 %v2666, %v4530
        %v4564 = vperm.slane %v365, 0
        %v4565 = vadd.f32 %v4532, %v4564
        %v4566 = vadd.f32 %v4533, %v4564
        %v4567 = vadd.f32 %v4534, %v4564
        %v4568 = vadd.f32 %v4535, %v4564
        %v4569 = vadd.f32 %v4536, %v4564
        %v4570 = vadd.f32 %v4537, %v4564
        %v4571 = vadd.f32 %v4538, %v4564
        %v4572 = vadd.f32 %v4539, %v4564
        %v4573 = vadd.f32 %v4540, %v4564
        %v4574 = vadd.f32 %v4541, %v4564
        %v4575 = vadd.f32 %v4542, %v4564
        %v4576 = vadd.f32 %v4543, %v4564
        %v4577 = vadd.f32 %v4544, %v4564
        %v4578 = vadd.f32 %v4545, %v4564
        %v4579 = vadd.f32 %v4546, %v4564
        %v4580 = vadd.f32 %v4547, %v4564
        %v4581 = vadd.f32 %v4548, %v4564
        %v4582 = vadd.f32 %v4549, %v4564
        %v4583 = vadd.f32 %v4550, %v4564
        %v4584 = vadd.f32 %v4551, %v4564
        %v4585 = vadd.f32 %v4552, %v4564
        %v4586 = vadd.f32 %v4553, %v4564
        %v4587 = vadd.f32 %v4554, %v4564
        %v4588 = vadd.f32 %v4555, %v4564
        %v4589 = vadd.f32 %v4556, %v4564
        %v4590 = vadd.f32 %v4557, %v4564
        %v4591 = vadd.f32 %v4558, %v4564
        %v4592 = vadd.f32 %v4559, %v4564
        %v4593 = vadd.f32 %v4560, %v4564
        %v4594 = vadd.f32 %v4561, %v4564
        %v4595 = vadd.f32 %v4562, %v4564
        %v4596 = vadd.f32 %v4563, %v4564
        %4597 = vst [vmem:[%s353] sm:$0xff] %v4565
        %4598 = vst [vmem:[%s353 + $0x8] sm:$0xff] %v4566
        %4599 = vst [vmem:[%s353 + $0x10] sm:$0xff] %v4567
        %4600 = vst [vmem:[%s353 + $0x18] sm:$0xff] %v4568
        %4601 = vst [vmem:[%s353 + $0x20] sm:$0xff] %v4569
        %4602 = vst [vmem:[%s353 + $0x28] sm:$0xff] %v4570
        %4603 = vst [vmem:[%s353 + $0x30] sm:$0xff] %v4571
        %4604 = vst [vmem:[%s353 + $0x38] sm:$0xff] %v4572
        %4605 = vst [vmem:[%s353 + $0x40] sm:$0xff] %v4573
        %4606 = vst [vmem:[%s353 + $0x48] sm:$0xff] %v4574
        %4607 = vst [vmem:[%s353 + $0x50] sm:$0xff] %v4575
        %4608 = vst [vmem:[%s353 + $0x58] sm:$0xff] %v4576
        %4609 = vst [vmem:[%s353 + $0x60] sm:$0xff] %v4577
        %4610 = vst [vmem:[%s353 + $0x68] sm:$0xff] %v4578
        %4611 = vst [vmem:[%s353 + $0x70] sm:$0xff] %v4579
        %4612 = vst [vmem:[%s353 + $0x78] sm:$0xff] %v4580
        %4613 = vst [vmem:[%s353 + $0x80] sm:$0xff] %v4581
        %4614 = vst [vmem:[%s353 + $0x88] sm:$0xff] %v4582
        %4615 = vst [vmem:[%s353 + $0x90] sm:$0xff] %v4583
        %4616 = vst [vmem:[%s353 + $0x98] sm:$0xff] %v4584
        %4617 = vst [vmem:[%s353 + $0xa0] sm:$0xff] %v4585
        %4618 = vst [vmem:[%s353 + $0xa8] sm:$0xff] %v4586
        %4619 = vst [vmem:[%s353 + $0xb0] sm:$0xff] %v4587
        %4620 = vst [vmem:[%s353 + $0xb8] sm:$0xff] %v4588
        %4621 = vst [vmem:[%s353 + $0xc0] sm:$0xff] %v4589
        %4622 = vst [vmem:[%s353 + $0xc8] sm:$0xff] %v4590
        %4623 = vst [vmem:[%s353 + $0xd0] sm:$0xff] %v4591
        %4624 = vst [vmem:[%s353 + $0xd8] sm:$0xff] %v4592
        %4625 = vst [vmem:[%s353 + $0xe0] sm:$0xff] %v4593
        %4626 = vst [vmem:[%s353 + $0xe8] sm:$0xff] %v4594
        %4627 = vst [vmem:[%s353 + $0xf0] sm:$0xff] %v4595
        %4628 = vst [vmem:[%s353 + $0xf8] sm:$0xff] %v4596
        %s4629 = sand.u32 %s184, 1
        %s4630 = scalar_lea.sflag [#allocation4], %s4629
        %s4631 = sand.u32 %s184, 1
        %s4632 = smul.addr %s4631, 256
        %s4633 = scalar_lea.vmem [#allocation11], %s4632
        // Predicated region
        $region69: #{tpu_custom_call.1} parent=47 // pred_check
          %p4634 = pneg %p194
        $region70: #{tpu_custom_call.1} parent=47 // pred_check_branch
          %4636 = sbr.rel (%p4634) target = $region72
        $region71: #{tpu_custom_call.1} parent=47 // pred_region
          %s4637 = smul.u32 32, %s24
          %4639 = vsyncadd %s4630, 0
          %s4640 = smul.addr %s4637, 8
          %s4641 = scalar_lea.hbm %s7, %s4640
          %s4642 = sshll.u32 %s4633, 4
          %s4643 = int_to_ptr.vmem [resolvable:$true] %s4642
          %s4644 = sshll.u32 %s4641, 4
          %s4645 = int_to_ptr.hbm [resolvable:$true] %s4644
          %4650 = dma.vmem_to_hbm [thread:$0]  %s4643, 4096, %s4645, %s4630, 128, 128, 8
        $region72: #{tpu_custom_call.1} parent=47 // pred_fallthru
          _
      $region48: #{tpu_custom_call.1} parent=5 // pred_fallthru
        _
      %p4651 = scmp.le.s32.totalorder 2, %s19
      // Predicated region
      $region73: #{tpu_custom_call.1} parent=5 // pred_check
        %p4652 = pneg %p4651
      $region74: #{tpu_custom_call.1} parent=5 // pred_check_branch
        %4654 = sbr.rel (%p4652) target = $region76
      $region75: #{tpu_custom_call.1} parent=5 // pred_region
        %s4655 = ssub.s32 %s19, 2
        // Predicated region
        $region77: #{tpu_custom_call.1} parent=75 // pred_check
          %p4656 = pneg %p200
        $region78: #{tpu_custom_call.1} parent=75 // pred_check_branch
          %4658 = sbr.rel (%p4656) target = $region80
        $region79: #{tpu_custom_call.1} parent=75 // pred_region
          %s4659 = sand.u32 %s185, 1
          %s4660 = scalar_lea.sflag [#allocation4], %s4659
          %s4661 = sand.u32 %s185, 1
          %s4662 = smul.addr %s4661, 256
          %s4663 = scalar_lea.vmem [#allocation11], %s4662
          %4665 = dma.done %s4660, 4096
        $region80: #{tpu_custom_call.1} parent=75 // pred_fallthru
          _
      $region76: #{tpu_custom_call.1} parent=5 // pred_fallthru
        _
    $region6: #{tpu_custom_call.1} parent=1 // loop_footer
      %s23 = sadd.s32 1, %s19
    $region7: #{tpu_custom_call.1} parent=1 // loop_footer_branch
      %18 = sbr.rel target = $region3
    $region8: #{tpu_custom_call.1} parent=1 // loop_exit
      _
    %4666 = vsyncpa [#allocation3], 1
    %s4667 = scalar_lea.sflag [#allocation3], 1
    %4668 = vsyncpa %s4667, 1
    %4669 = vsyncpa [#allocation6], 1
    %4670 = vsyncpa [#allocation9], 1
    %4671 = vsyncpa [#allocation4], 1
    %s4672 = scalar_lea.sflag [#allocation4], 1
    %4673 = vsyncpa %s4672, 1

// kernel: tpu_custom_call.1
$region0: #{tpu_custom_call.1}
  #allocation0 [shape = 'u32[]', space=smem, size = 0x4, offset = 0x4, fixed_abs, tag = 'smem constant byte address 0x4 - core index']
  #allocation1 [shape = 'u32[72,128]{1,0:T(1,128)}', space=vmem, size = 0x9000, scoped, tag = 'internal scratch']
  %s0 = inlined_call_operand.vmem [shape: f32[512,128], index: 0, kind: input, shape index: {}]
  %s1 = inlined_call_operand.hbm [shape: f32[4,256], index: 1, kind: input, shape index: {}]
  %s2 = inlined_call_operand.vmem [shape: f32[512,1], index: 2, kind: input, shape index: {}]
  %s3 = inlined_call_operand.hbm [shape: bf16[256,256], index: 3, kind: input, shape index: {}]
  %s4 = inlined_call_operand.hbm [shape: bf16[256,256], index: 4, kind: input, shape index: {}]
  %s5 = inlined_call_operand.hbm [shape: bf16[128,256], index: 5, kind: input, shape index: {}]
  %s6 = inlined_call_operand.hbm [shape: bf16[256,128], index: 6, kind: input, shape index: {}]
  %s7 = inlined_call_operand.hbm [shape: f32[512,128], index: 7, kind: output, shape index: {}]
  %s8 = sld [smem:[#allocation0]]
  $region81: #{tpu_custom_call.1} parent=0
    _
  %s10 = ssub.s32 1, %s8
  %s11 = scalar_select 0, %s10, %s8
  $region1: #{tpu_custom_call.1} parent=0
    #allocation2 [shape = 'u8[4096]{0}', space=vmem, size = 0x1000, scoped, tag = 'input window, operand 1, single buffered']
    #allocation3 [shape = 's32[2]{0}', space=sflag, size = 0x8, scoped, tag = 'scoped memory for tpu_custom_call.1']
    #allocation4 [shape = 's32[2]{0}', space=sflag, size = 0x8, scoped, tag = 'scoped memory for tpu_custom_call.1']
    #allocation5 [shape = 'u8[131072]{0}', space=vmem, size = 0x20000, scoped, tag = 'input window, operand 3, single buffered']
    #allocation6 [shape = 's32[1]{0}', space=sflag, size = 0x4, scoped, tag = 'scoped memory for tpu_custom_call.1']
    #allocation7 [shape = 'u8[131072]{0}', space=vmem, size = 0x20000, scoped, tag = 'input window, operand 4, single buffered']
    #allocation8 [shape = 'u8[65536]{0}', space=vmem, size = 0x10000, scoped, tag = 'input window, operand 5, single buffered']
    #allocation9 [shape = 's32[1]{0}', space=sflag, size = 0x4, scoped, tag = 'scoped memory for tpu_custom_call.1']
    #allocation10 [shape = 'u8[65536]{0}', space=vmem, size = 0x10000, scoped, tag = 'input window, operand 6, single buffered']
    #allocation11 [shape = 'u8[262144]{0}', space=vmem, size = 0x40000, scoped, tag = 'output window, operand 0']
    %12 = vsyncpa [#allocation3], 0
    %13 = vsyncpa [#allocation6], 0
    %14 = vsyncpa [#allocation9], 0
    %15 = vsyncpa [#allocation4], 0
    %s16 = scalar_lea.sflag [#allocation4], 1
    %17 = vsyncpa %s16, 0
    loop: start=0, step=1, limit=4
    $region2: #{tpu_custom_call.1} parent=1 // loop_pre_header
      _
    $region3: #{tpu_custom_call.1} parent=1 // loop_header
      %s19 = sphi 0, %s23
      %p20 = scmp.ge.s32.totalorder %s19, 4
      %s29 = sphi 0, %s31
      %s32 = sphi 0, %s29
      %s33 = sphi 0, %s32
      %s49 = sphi 0, %s33
      %s53 = sphi 0, %s53
      %s55 = sphi 0, %s53
      %s56 = sphi 0, %s55
      %s70 = sphi 0, %s56
      %s74 = sphi 0, %s74
      %s76 = sphi 0, %s74
      %s77 = sphi 0, %s76
      %s91 = sphi 0, %s77
      %s95 = sphi 0, %s95
      %s97 = sphi 0, %s95
      %s98 = sphi 0, %s97
      %s112 = sphi 0, %s98
      %s116 = sphi 0, %s116
      %s118 = sphi 0, %s116
      %s119 = sphi 0, %s118
      %s133 = sphi 0, %s119
      %s137 = sphi 0, %s137
      %s139 = sphi 0, %s137
      %s140 = sphi 0, %s139
      %s154 = sphi 0, %s140
      %s158 = sphi 0, %s158
      %s160 = sphi 0, %s158
      %s161 = sphi 0, %s160
      %s175 = sphi 0, %s161
      %s181 = sphi 0, %s183
      %s184 = sphi 0, %s181
      %s185 = sphi 0, %s184
      %s201 = sphi 0, %s185
    $region4: #{tpu_custom_call.1} parent=1 // loop_header_branch
      %22 = sbr.rel (%p20) target = $region8
    $region5: #{tpu_custom_call.1} parent=1 // loop_body
      %s24 = ssub.s32 %s19, 1
      %s25 = ssub.s32 %s19, 2
      %s26 = sadd.s32 %s19, 1
      %s27 = ssub.s32 %s19, %s26
      %p28 = scmp.eq.s32.totalorder %s27, 0
      %s30 = sadd.s32 %s29, 1
      %s31 = scalar_select %p28, %s29, %s30
      %p34 = pneg %p28
      %p35 = scmp.eq.s32.totalorder %s19, 1
      %p36 = por %p34, %p35
      %p37 = scmp.ne.s32.totalorder %s29, %s32
      %p38 = scmp.eq.s32.totalorder %s19, 0
      %p39 = por %p37, %p38
      %p40 = scmp.ne.s32.totalorder %s29, %s32
      %p41 = scmp.eq.s32.totalorder %s24, 1
      %p42 = por %p40, %p41
      %p43 = scmp.ne.s32.totalorder %s32, %s33
      %p44 = scmp.eq.s32.totalorder %s24, 0
      %p45 = por %p43, %p44
      %p46 = scmp.ne.s32.totalorder %s32, %s33
      %p47 = scmp.eq.s32.totalorder %s25, 1
      %p48 = por %p46, %p47
      %p50 = scmp.ne.s32.totalorder %s33, %s49
      %p51 = scmp.eq.s32.totalorder %s25, 0
      %p52 = por %p50, %p51
      %s54 = sadd.s32 %s53, 1
      %p57 = scmp.eq.s32.totalorder %s19, 1
      %p58 = scmp.ne.s32.totalorder %s53, %s55
      %p59 = scmp.eq.s32.totalorder %s19, 0
      %p60 = por %p58, %p59
      %p61 = scmp.ne.s32.totalorder %s53, %s55
      %p62 = scmp.eq.s32.totalorder %s24, 1
      %p63 = por %p61, %p62
      %p64 = scmp.ne.s32.totalorder %s55, %s56
      %p65 = scmp.eq.s32.totalorder %s24, 0
      %p66 = por %p64, %p65
      %p67 = scmp.ne.s32.totalorder %s55, %s56
      %p68 = scmp.eq.s32.totalorder %s25, 1
      %p69 = por %p67, %p68
      %p71 = scmp.ne.s32.totalorder %s56, %s70
      %p72 = scmp.eq.s32.totalorder %s25, 0
      %p73 = por %p71, %p72
      %s75 = sadd.s32 %s74, 1
      %p78 = scmp.eq.s32.totalorder %s19, 1
      %p79 = scmp.ne.s32.totalorder %s74, %s76
      %p80 = scmp.eq.s32.totalorder %s19, 0
      %p81 = por %p79, %p80
      %p82 = scmp.ne.s32.totalorder %s74, %s76
      %p83 = scmp.eq.s32.totalorder %s24, 1
      %p84 = por %p82, %p83
      %p85 = scmp.ne.s32.totalorder %s76, %s77
      %p86 = scmp.eq.s32.totalorder %s24, 0
      %p87 = por %p85, %p86
      %p88 = scmp.ne.s32.totalorder %s76, %s77
      %p89 = scmp.eq.s32.totalorder %s25, 1
      %p90 = por %p88, %p89
      %p92 = scmp.ne.s32.totalorder %s77, %s91
      %p93 = scmp.eq.s32.totalorder %s25, 0
      %p94 = por %p92, %p93
      %s96 = sadd.s32 %s95, 1
      %p99 = scmp.eq.s32.totalorder %s19, 1
      %p100 = scmp.ne.s32.totalorder %s95, %s97
      %p101 = scmp.eq.s32.totalorder %s19, 0
      %p102 = por %p100, %p101
      %p103 = scmp.ne.s32.totalorder %s95, %s97
      %p104 = scmp.eq.s32.totalorder %s24, 1
      %p105 = por %p103, %p104
      %p106 = scmp.ne.s32.totalorder %s97, %s98
      %p107 = scmp.eq.s32.totalorder %s24, 0
      %p108 = por %p106, %p107
      %p109 = scmp.ne.s32.totalorder %s97, %s98
      %p110 = scmp.eq.s32.totalorder %s25, 1
      %p111 = por %p109, %p110
      %p113 = scmp.ne.s32.totalorder %s98, %s112
      %p114 = scmp.eq.s32.totalorder %s25, 0
      %p115 = por %p113, %p114
      %s117 = sadd.s32 %s116, 1
      %p120 = scmp.eq.s32.totalorder %s19, 1
      %p121 = scmp.ne.s32.totalorder %s116, %s118
      %p122 = scmp.eq.s32.totalorder %s19, 0
      %p123 = por %p121, %p122
      %p124 = scmp.ne.s32.totalorder %s116, %s118
      %p125 = scmp.eq.s32.totalorder %s24, 1
      %p126 = por %p124, %p125
      %p127 = scmp.ne.s32.totalorder %s118, %s119
      %p128 = scmp.eq.s32.totalorder %s24, 0
      %p129 = por %p127, %p128
      %p130 = scmp.ne.s32.totalorder %s118, %s119
      %p131 = scmp.eq.s32.totalorder %s25, 1
      %p132 = por %p130, %p131
      %p134 = scmp.ne.s32.totalorder %s119, %s133
      %p135 = scmp.eq.s32.totalorder %s25, 0
      %p136 = por %p134, %p135
      %s138 = sadd.s32 %s137, 1
      %p141 = scmp.eq.s32.totalorder %s19, 1
      %p142 = scmp.ne.s32.totalorder %s137, %s139
      %p143 = scmp.eq.s32.totalorder %s19, 0
      %p144 = por %p142, %p143
      %p145 = scmp.ne.s32.totalorder %s137, %s139
      %p146 = scmp.eq.s32.totalorder %s24, 1
      %p147 = por %p145, %p146
      %p148 = scmp.ne.s32.totalorder %s139, %s140
      %p149 = scmp.eq.s32.totalorder %s24, 0
      %p150 = por %p148, %p149
      %p151 = scmp.ne.s32.totalorder %s139, %s140
      %p152 = scmp.eq.s32.totalorder %s25, 1
      %p153 = por %p151, %p152
      %p155 = scmp.ne.s32.totalorder %s140, %s154
      %p156 = scmp.eq.s32.totalorder %s25, 0
      %p157 = por %p155, %p156
      %s159 = sadd.s32 %s158, 1
      %p162 = scmp.eq.s32.totalorder %s19, 1
      %p163 = scmp.ne.s32.totalorder %s158, %s160
      %p164 = scmp.eq.s32.totalorder %s19, 0
      %p165 = por %p163, %p164
      %p166 = scmp.ne.s32.totalorder %s158, %s160
      %p167 = scmp.eq.s32.totalorder %s24, 1
      %p168 = por %p166, %p167
      %p169 = scmp.ne.s32.totalorder %s160, %s161
      %p170 = scmp.eq.s32.totalorder %s24, 0
      %p171 = por %p169, %p170
      %p172 = scmp.ne.s32.totalorder %s160, %s161
      %p173 = scmp.eq.s32.totalorder %s25, 1
      %p174 = por %p172, %p173
      %p176 = scmp.ne.s32.totalorder %s161, %s175
      %p177 = scmp.eq.s32.totalorder %s25, 0
      %p178 = por %p176, %p177
      %s179 = ssub.s32 %s19, %s26
      %p180 = scmp.eq.s32.totalorder %s179, 0
      %s182 = sadd.s32 %s181, 1
      %s183 = scalar_select %p180, %s181, %s182
      %p186 = pneg %p180
      %p187 = scmp.eq.s32.totalorder %s19, 1
      %p188 = por %p186, %p187
      %p189 = scmp.ne.s32.totalorder %s181, %s184
      %p190 = scmp.eq.s32.totalorder %s19, 0
      %p191 = por %p189, %p190
      %p192 = scmp.ne.s32.totalorder %s181, %s184
      %p193 = scmp.eq.s32.totalorder %s24, 1
      %p194 = por %p192, %p193
      %p195 = scmp.ne.s32.totalorder %s184, %s185
      %p196 = scmp.eq.s32.totalorder %s24, 0
      %p197 = por %p195, %p196
      %p198 = scmp.ne.s32.totalorder %s184, %s185
      %p199 = scmp.eq.s32.totalorder %s25, 1
      %p200 = por %p198, %p199
      %p202 = scmp.ne.s32.totalorder %s185, %s201
      %p203 = scmp.eq.s32.totalorder %s25, 0
      %p204 = por %p202, %p203
      %p205 = scmp.le.s32.totalorder 1, %s19
      %p206 = scmp.lt.s32.totalorder %s19, 3
      %p207 = pnand %p205, %p206
      %p208 = pneg %p207
      // Predicated region
      $region9: #{tpu_custom_call.1} parent=5 // pred_check
        _
      $region10: #{tpu_custom_call.1} parent=5 // pred_check_branch
        %210 = sbr.rel (%p207) target = $region12
      $region11: #{tpu_custom_call.1} parent=5 // pred_region
        %s211 = ssub.s32 %s19, 1
        // Predicated region
        $region13: #{tpu_custom_call.1} parent=11 // pred_check
          %p212 = pneg %p66
        $region14: #{tpu_custom_call.1} parent=11 // pred_check_branch
          %214 = sbr.rel (%p212) target = $region16
        $region15: #{tpu_custom_call.1} parent=11 // pred_region
          %216 = vsyncadd [#allocation3], 0
          %s218 = sshll.u32 %s1, 4
          %s219 = int_to_ptr.hbm [resolvable:$true] %s218
          %s220 = sshll.u32 [#allocation2], 4
          %s221 = int_to_ptr.vmem [resolvable:$true] %s220
          %223 = dma.hbm_to_vmem [thread:$0]  %s219, 128, %s221, [#allocation3]
        $region16: #{tpu_custom_call.1} parent=11 // pred_fallthru
          _
        // Predicated region
        $region17: #{tpu_custom_call.1} parent=11 // pred_check
          %p224 = pneg %p87
        $region18: #{tpu_custom_call.1} parent=11 // pred_check_branch
          %226 = sbr.rel (%p224) target = $region20
        $region19: #{tpu_custom_call.1} parent=11 // pred_region
          _
        $region20: #{tpu_custom_call.1} parent=11 // pred_fallthru
          _
        // Predicated region
        $region21: #{tpu_custom_call.1} parent=11 // pred_check
          %p227 = pneg %p108
        $region22: #{tpu_custom_call.1} parent=11 // pred_check_branch
          %229 = sbr.rel (%p227) target = $region24
        $region23: #{tpu_custom_call.1} parent=11 // pred_region
          %231 = vsyncadd [#allocation6], 0
          %s232 = sshll.u32 %s3, 4
          %s233 = int_to_ptr.hbm [resolvable:$true] %s232
          %s234 = sshll.u32 [#allocation5], 4
          %s235 = int_to_ptr.vmem [resolvable:$true] %s234
          %240 = dma.hbm_to_vmem [thread:$0]  %s233, 4096, %s235, [#allocation6], 128, 128, 8
        $region24: #{tpu_custom_call.1} parent=11 // pred_fallthru
          _
        // Predicated region
        $region25: #{tpu_custom_call.1} parent=11 // pred_check
          %p241 = pneg %p129
        $region26: #{tpu_custom_call.1} parent=11 // pred_check_branch
          %243 = sbr.rel (%p241) target = $region28
        $region27: #{tpu_custom_call.1} parent=11 // pred_region
          %245 = vsyncadd [#allocation6], 0
          %s246 = sshll.u32 %s4, 4
          %s247 = int_to_ptr.hbm [resolvable:$true] %s246
          %s248 = sshll.u32 [#allocation7], 4
          %s249 = int_to_ptr.vmem [resolvable:$true] %s248
          %254 = dma.hbm_to_vmem [thread:$0]  %s247, 4096, %s249, [#allocation6], 128, 128, 8
        $region28: #{tpu_custom_call.1} parent=11 // pred_fallthru
          _
        // Predicated region
        $region29: #{tpu_custom_call.1} parent=11 // pred_check
          %p255 = pneg %p150
        $region30: #{tpu_custom_call.1} parent=11 // pred_check_branch
          %257 = sbr.rel (%p255) target = $region32
        $region31: #{tpu_custom_call.1} parent=11 // pred_region
          %259 = vsyncadd [#allocation9], 0
          %s260 = sshll.u32 %s5, 4
          %s261 = int_to_ptr.hbm [resolvable:$true] %s260
          %s262 = sshll.u32 [#allocation8], 4
          %s263 = int_to_ptr.vmem [resolvable:$true] %s262
          %268 = dma.hbm_to_vmem [thread:$0]  %s261, 2048, %s263, [#allocation9], 128, 128, 8
        $region32: #{tpu_custom_call.1} parent=11 // pred_fallthru
          _
        // Predicated region
        $region33: #{tpu_custom_call.1} parent=11 // pred_check
          %p269 = pneg %p171
        $region34: #{tpu_custom_call.1} parent=11 // pred_check_branch
          %271 = sbr.rel (%p269) target = $region36
        $region35: #{tpu_custom_call.1} parent=11 // pred_region
          %273 = vsyncadd [#allocation9], 0
          %s274 = sshll.u32 %s6, 4
          %s275 = int_to_ptr.hbm [resolvable:$true] %s274
          %s276 = sshll.u32 [#allocation10], 4
          %s277 = int_to_ptr.vmem [resolvable:$true] %s276
          %282 = dma.hbm_to_vmem [thread:$0]  %s275, 2048, %s277, [#allocation9], 64, 64, 4
        $region36: #{tpu_custom_call.1} parent=11 // pred_fallthru
          _
      $region12: #{tpu_custom_call.1} parent=5 // pred_fallthru
        _
      %p283 = scmp.lt.s32.totalorder %s19, 2
      // Predicated region
      $region37: #{tpu_custom_call.1} parent=5 // pred_check
        %p284 = pneg %p283
      $region38: #{tpu_custom_call.1} parent=5 // pred_check_branch
        %286 = sbr.rel (%p284) target = $region40
      $region39: #{tpu_custom_call.1} parent=5 // pred_region
        // Predicated region
        $region41: #{tpu_custom_call.1} parent=39 // pred_check
          %p287 = pneg %p39
        $region42: #{tpu_custom_call.1} parent=39 // pred_check_branch
          %289 = sbr.rel (%p287) target = $region44
        $region43: #{tpu_custom_call.1} parent=39 // pred_region
          %s290 = smul.u32 32, %s19
          %p291 = scmp.lt.s32.totalorder %s290, 63
          %s292 = scalar_select %p291, %s290, 63
          %s293 = smul.addr %s292, 8
          %s294 = scalar_lea.vmem %s0, %s293
          %s295 = smul.u32 32, %s19
        $region44: #{tpu_custom_call.1} parent=39 // pred_fallthru
          _
      $region40: #{tpu_custom_call.1} parent=5 // pred_fallthru
        _
      %p296 = scmp.le.s32.totalorder 1, %s19
      %p297 = scmp.lt.s32.totalorder %s19, 3
      %p298 = pnand %p296, %p297
      %p299 = pneg %p298
      // Predicated region
      $region45: #{tpu_custom_call.1} parent=5 // pred_check
        _
      $region46: #{tpu_custom_call.1} parent=5 // pred_check_branch
        %301 = sbr.rel (%p298) target = $region48
      $region47: #{tpu_custom_call.1} parent=5 // pred_region
        %s302 = ssub.s32 %s19, 1
        // Predicated region
        $region49: #{tpu_custom_call.1} parent=47 // pred_check
          %p303 = pneg %p66
        $region50: #{tpu_custom_call.1} parent=47 // pred_check_branch
          %305 = sbr.rel (%p303) target = $region52
        $region51: #{tpu_custom_call.1} parent=47 // pred_region
          %307 = dma.done [#allocation3], 128
        $region52: #{tpu_custom_call.1} parent=47 // pred_fallthru
          _
        // Predicated region
        $region53: #{tpu_custom_call.1} parent=47 // pred_check
          %p308 = pneg %p108
        $region54: #{tpu_custom_call.1} parent=47 // pred_check_branch
          %310 = sbr.rel (%p308) target = $region56
        $region55: #{tpu_custom_call.1} parent=47 // pred_region
          %312 = dma.done [#allocation6], 4096
        $region56: #{tpu_custom_call.1} parent=47 // pred_fallthru
          _
        // Predicated region
        $region57: #{tpu_custom_call.1} parent=47 // pred_check
          %p313 = pneg %p129
        $region58: #{tpu_custom_call.1} parent=47 // pred_check_branch
          %315 = sbr.rel (%p313) target = $region60
        $region59: #{tpu_custom_call.1} parent=47 // pred_region
          %317 = dma.done [#allocation6], 4096
        $region60: #{tpu_custom_call.1} parent=47 // pred_fallthru
          _
        // Predicated region
        $region61: #{tpu_custom_call.1} parent=47 // pred_check
          %p318 = pneg %p150
        $region62: #{tpu_custom_call.1} parent=47 // pred_check_branch
          %320 = sbr.rel (%p318) target = $region64
        $region63: #{tpu_custom_call.1} parent=47 // pred_region
          %322 = dma.done [#allocation9], 2048
        $region64: #{tpu_custom_call.1} parent=47 // pred_fallthru
          _
        // Predicated region
        $region65: #{tpu_custom_call.1} parent=47 // pred_check
          %p323 = pneg %p171
        $region66: #{tpu_custom_call.1} parent=47 // pred_check_branch
          %325 = sbr.rel (%p323) target = $region68
        $region67: #{tpu_custom_call.1} parent=47 // pred_region
          %327 = dma.done [#allocation9], 2048
        $region68: #{tpu_custom_call.1} parent=47 // pred_fallthru
          _
        %s328 = smul.u32 32, %s24
        %p329 = scmp.lt.s32.totalorder %s328, 63
        %s330 = scalar_select %p329, %s328, 63
        %s331 = smul.addr %s330, 8
        %s332 = scalar_lea.vmem %s0, %s331
        %p333 = pneg %p45
        %p334 = pneg %p42
        %p335 = pneg %p66
        %p336 = pneg %p63
        %p337 = pneg %p87
        %p338 = pneg %p84
        %p339 = pneg %p108
        %p340 = pneg %p105
        %p341 = pneg %p129
        %p342 = pneg %p126
        %p343 = pneg %p150
        %p344 = pneg %p147
        %p345 = pneg %p171
        %p346 = pneg %p168
        %p347 = pneg %p197
        %p348 = pneg %p194
        %s349 = sand.u32 %s184, 1
        %s350 = scalar_lea.sflag [#allocation4], %s349
        %s351 = sand.u32 %s184, 1
        %s352 = smul.addr %s351, 256
        %s353 = scalar_lea.vmem [#allocation11], %s352
        %s354 = smul.u32 32, %s24
        %p355 = scmp.lt.s32.totalorder %s354, 63
        %s356 = scalar_select %p355, %s354, 63
        %s357 = smul.addr %s356, 8
        %s358 = scalar_lea.vmem %s0, %s357
        %s359 = smul.u32 32, %s24
        %s360 = smul.u32 32, %s24
        %v361 = vld [vmem:[#allocation2] sm:$0x1]
        %v362 = vld [vmem:[#allocation2 + $0x1] sm:$0x1]
        %s363 = scalar_lea.vmem [#allocation2], 2
        %v364 = vld [vmem:[%s363] ss:$4 sm:$0x3]
        %v365 = vld [vmem:[#allocation2 + $0x3] sm:$0x1]
        %v366 = vld [vmem:[%s2] sm:$0xff]
        %v367 = vld [vmem:[%s2 + $0x8] sm:$0xff]
        %v368 = vld [vmem:[%s2 + $0x10] sm:$0xff]
        %v369 = vld [vmem:[%s2 + $0x18] sm:$0xff]
        %v370 = vld [vmem:[%s2 + $0x20] sm:$0xff]
        %v371 = vld [vmem:[%s2 + $0x28] sm:$0xff]
        %v372 = vld [vmem:[%s2 + $0x30] sm:$0xff]
        %v373 = vld [vmem:[%s2 + $0x38] sm:$0xff]
        %v374 = vld [vmem:[%s2 + $0x40] sm:$0xff]
        %v375 = vld [vmem:[%s2 + $0x48] sm:$0xff]
        %v376 = vld [vmem:[%s2 + $0x50] sm:$0xff]
        %v377 = vld [vmem:[%s2 + $0x58] sm:$0xff]
        %v378 = vld [vmem:[%s2 + $0x60] sm:$0xff]
        %v379 = vld [vmem:[%s2 + $0x68] sm:$0xff]
        %v380 = vld [vmem:[%s2 + $0x70] sm:$0xff]
        %v381 = vld [vmem:[%s2 + $0x78] sm:$0xff]
        %v382 = vld [vmem:[%s2 + $0x80] sm:$0xff]
        %v383 = vld [vmem:[%s2 + $0x88] sm:$0xff]
        %v384 = vld [vmem:[%s2 + $0x90] sm:$0xff]
        %v385 = vld [vmem:[%s2 + $0x98] sm:$0xff]
        %v386 = vld [vmem:[%s2 + $0xa0] sm:$0xff]
        %v387 = vld [vmem:[%s2 + $0xa8] sm:$0xff]
        %v388 = vld [vmem:[%s2 + $0xb0] sm:$0xff]
        %v389 = vld [vmem:[%s2 + $0xb8] sm:$0xff]
        %v390 = vld [vmem:[%s2 + $0xc0] sm:$0xff]
        %v391 = vld [vmem:[%s2 + $0xc8] sm:$0xff]
        %v392 = vld [vmem:[%s2 + $0xd0] sm:$0xff]
        %v393 = vld [vmem:[%s2 + $0xd8] sm:$0xff]
        %v394 = vld [vmem:[%s2 + $0xe0] sm:$0xff]
        %v395 = vld [vmem:[%s2 + $0xe8] sm:$0xff]
        %v396 = vld [vmem:[%s2 + $0xf0] sm:$0xff]
        %v397 = vld [vmem:[%s2 + $0xf8] sm:$0xff]
        %v398 = vld [vmem:[%s2 + $0x100] sm:$0xff]
        %v399 = vld [vmem:[%s2 + $0x108] sm:$0xff]
        %v400 = vld [vmem:[%s2 + $0x110] sm:$0xff]
        %v401 = vld [vmem:[%s2 + $0x118] sm:$0xff]
        %v402 = vld [vmem:[%s2 + $0x120] sm:$0xff]
        %v403 = vld [vmem:[%s2 + $0x128] sm:$0xff]
        %v404 = vld [vmem:[%s2 + $0x130] sm:$0xff]
        %v405 = vld [vmem:[%s2 + $0x138] sm:$0xff]
        %v406 = vld [vmem:[%s2 + $0x140] sm:$0xff]
        %v407 = vld [vmem:[%s2 + $0x148] sm:$0xff]
        %v408 = vld [vmem:[%s2 + $0x150] sm:$0xff]
        %v409 = vld [vmem:[%s2 + $0x158] sm:$0xff]
        %v410 = vld [vmem:[%s2 + $0x160] sm:$0xff]
        %v411 = vld [vmem:[%s2 + $0x168] sm:$0xff]
        %v412 = vld [vmem:[%s2 + $0x170] sm:$0xff]
        %v413 = vld [vmem:[%s2 + $0x178] sm:$0xff]
        %v414 = vld [vmem:[%s2 + $0x180] sm:$0xff]
        %v415 = vld [vmem:[%s2 + $0x188] sm:$0xff]
        %v416 = vld [vmem:[%s2 + $0x190] sm:$0xff]
        %v417 = vld [vmem:[%s2 + $0x198] sm:$0xff]
        %v418 = vld [vmem:[%s2 + $0x1a0] sm:$0xff]
        %v419 = vld [vmem:[%s2 + $0x1a8] sm:$0xff]
        %v420 = vld [vmem:[%s2 + $0x1b0] sm:$0xff]
        %v421 = vld [vmem:[%s2 + $0x1b8] sm:$0xff]
        %v422 = vld [vmem:[%s2 + $0x1c0] sm:$0xff]
        %v423 = vld [vmem:[%s2 + $0x1c8] sm:$0xff]
        %v424 = vld [vmem:[%s2 + $0x1d0] sm:$0xff]
        %v425 = vld [vmem:[%s2 + $0x1d8] sm:$0xff]
        %v426 = vld [vmem:[%s2 + $0x1e0] sm:$0xff]
        %v427 = vld [vmem:[%s2 + $0x1e8] sm:$0xff]
        %v428 = vld [vmem:[%s2 + $0x1f0] sm:$0xff]
        %v429 = vld [vmem:[%s2 + $0x1f8] sm:$0xff]
        %v430 = vld [vmem:[#allocation5] sm:$0xff]
        %v431 = vld [vmem:[#allocation5 + $0x8] sm:$0xff]
        %v432 = vld [vmem:[#allocation5 + $0x10] sm:$0xff]
        %v433 = vld [vmem:[#allocation5 + $0x18] sm:$0xff]
        %v434 = vld [vmem:[#allocation5 + $0x20] sm:$0xff]
        %v435 = vld [vmem:[#allocation5 + $0x28] sm:$0xff]
        %v436 = vld [vmem:[#allocation5 + $0x30] sm:$0xff]
        %v437 = vld [vmem:[#allocation5 + $0x38] sm:$0xff]
        %v438 = vld [vmem:[#allocation5 + $0x40] sm:$0xff]
        %v439 = vld [vmem:[#allocation5 + $0x48] sm:$0xff]
        %v440 = vld [vmem:[#allocation5 + $0x50] sm:$0xff]
        %v441 = vld [vmem:[#allocation5 + $0x58] sm:$0xff]
        %v442 = vld [vmem:[#allocation5 + $0x60] sm:$0xff]
        %v443 = vld [vmem:[#allocation5 + $0x68] sm:$0xff]
        %v444 = vld [vmem:[#allocation5 + $0x70] sm:$0xff]
        %v445 = vld [vmem:[#allocation5 + $0x78] sm:$0xff]
        %v446 = vld [vmem:[#allocation5 + $0x80] sm:$0xff]
        %v447 = vld [vmem:[#allocation5 + $0x88] sm:$0xff]
        %v448 = vld [vmem:[#allocation5 + $0x90] sm:$0xff]
        %v449 = vld [vmem:[#allocation5 + $0x98] sm:$0xff]
        %v450 = vld [vmem:[#allocation5 + $0xa0] sm:$0xff]
        %v451 = vld [vmem:[#allocation5 + $0xa8] sm:$0xff]
        %v452 = vld [vmem:[#allocation5 + $0xb0] sm:$0xff]
        %v453 = vld [vmem:[#allocation5 + $0xb8] sm:$0xff]
        %v454 = vld [vmem:[#allocation5 + $0xc0] sm:$0xff]
        %v455 = vld [vmem:[#allocation5 + $0xc8] sm:$0xff]
        %v456 = vld [vmem:[#allocation5 + $0xd0] sm:$0xff]
        %v457 = vld [vmem:[#allocation5 + $0xd8] sm:$0xff]
        %v458 = vld [vmem:[#allocation5 + $0xe0] sm:$0xff]
        %v459 = vld [vmem:[#allocation5 + $0xe8] sm:$0xff]
        %v460 = vld [vmem:[#allocation5 + $0xf0] sm:$0xff]
        %v461 = vld [vmem:[#allocation5 + $0xf8] sm:$0xff]
        %v462 = vld [vmem:[#allocation7] sm:$0xff]
        %v463 = vld [vmem:[#allocation7 + $0x8] sm:$0xff]
        %v464 = vld [vmem:[#allocation7 + $0x10] sm:$0xff]
        %v465 = vld [vmem:[#allocation7 + $0x18] sm:$0xff]
        %v466 = vld [vmem:[#allocation7 + $0x20] sm:$0xff]
        %v467 = vld [vmem:[#allocation7 + $0x28] sm:$0xff]
        %v468 = vld [vmem:[#allocation7 + $0x30] sm:$0xff]
        %v469 = vld [vmem:[#allocation7 + $0x38] sm:$0xff]
        %v470 = vld [vmem:[#allocation7 + $0x40] sm:$0xff]
        %v471 = vld [vmem:[#allocation7 + $0x48] sm:$0xff]
        %v472 = vld [vmem:[#allocation7 + $0x50] sm:$0xff]
        %v473 = vld [vmem:[#allocation7 + $0x58] sm:$0xff]
        %v474 = vld [vmem:[#allocation7 + $0x60] sm:$0xff]
        %v475 = vld [vmem:[#allocation7 + $0x68] sm:$0xff]
        %v476 = vld [vmem:[#allocation7 + $0x70] sm:$0xff]
        %v477 = vld [vmem:[#allocation7 + $0x78] sm:$0xff]
        %v478 = vld [vmem:[#allocation7 + $0x80] sm:$0xff]
        %v479 = vld [vmem:[#allocation7 + $0x88] sm:$0xff]
        %v480 = vld [vmem:[#allocation7 + $0x90] sm:$0xff]
        %v481 = vld [vmem:[#allocation7 + $0x98] sm:$0xff]
        %v482 = vld [vmem:[#allocation7 + $0xa0] sm:$0xff]
        %v483 = vld [vmem:[#allocation7 + $0xa8] sm:$0xff]
        %v484 = vld [vmem:[#allocation7 + $0xb0] sm:$0xff]
        %v485 = vld [vmem:[#allocation7 + $0xb8] sm:$0xff]
        %v486 = vld [vmem:[#allocation7 + $0xc0] sm:$0xff]
        %v487 = vld [vmem:[#allocation7 + $0xc8] sm:$0xff]
        %v488 = vld [vmem:[#allocation7 + $0xd0] sm:$0xff]
        %v489 = vld [vmem:[#allocation7 + $0xd8] sm:$0xff]
        %v490 = vld [vmem:[#allocation7 + $0xe0] sm:$0xff]
        %v491 = vld [vmem:[#allocation7 + $0xe8] sm:$0xff]
        %v492 = vld [vmem:[#allocation7 + $0xf0] sm:$0xff]
        %v493 = vld [vmem:[#allocation7 + $0xf8] sm:$0xff]
        %v494 = vld [vmem:[#allocation8] sm:$0xff]
        %v495 = vld [vmem:[#allocation8 + $0x8] sm:$0xff]
        %v496 = vld [vmem:[#allocation8 + $0x10] sm:$0xff]
        %v497 = vld [vmem:[#allocation8 + $0x18] sm:$0xff]
        %v498 = vld [vmem:[#allocation8 + $0x20] sm:$0xff]
        %v499 = vld [vmem:[#allocation8 + $0x28] sm:$0xff]
        %v500 = vld [vmem:[#allocation8 + $0x30] sm:$0xff]
        %v501 = vld [vmem:[#allocation8 + $0x38] sm:$0xff]
        %v502 = vld [vmem:[#allocation8 + $0x40] sm:$0xff]
        %v503 = vld [vmem:[#allocation8 + $0x48] sm:$0xff]
        %v504 = vld [vmem:[#allocation8 + $0x50] sm:$0xff]
        %v505 = vld [vmem:[#allocation8 + $0x58] sm:$0xff]
        %v506 = vld [vmem:[#allocation8 + $0x60] sm:$0xff]
        %v507 = vld [vmem:[#allocation8 + $0x68] sm:$0xff]
        %v508 = vld [vmem:[#allocation8 + $0x70] sm:$0xff]
        %v509 = vld [vmem:[#allocation8 + $0x78] sm:$0xff]
        %v510 = vld [vmem:[#allocation10] sm:$0xf]
        %v511 = vld [vmem:[#allocation10 + $0x4] sm:$0xf]
        %v512 = vld [vmem:[#allocation10 + $0x8] sm:$0xf]
        %v513 = vld [vmem:[#allocation10 + $0xc] sm:$0xf]
        %v514 = vld [vmem:[#allocation10 + $0x10] sm:$0xf]
        %v515 = vld [vmem:[#allocation10 + $0x14] sm:$0xf]
        %v516 = vld [vmem:[#allocation10 + $0x18] sm:$0xf]
        %v517 = vld [vmem:[#allocation10 + $0x1c] sm:$0xf]
        %v518 = vld [vmem:[#allocation10 + $0x20] sm:$0xf]
        %v519 = vld [vmem:[#allocation10 + $0x24] sm:$0xf]
        %v520 = vld [vmem:[#allocation10 + $0x28] sm:$0xf]
        %v521 = vld [vmem:[#allocation10 + $0x2c] sm:$0xf]
        %v522 = vld [vmem:[#allocation10 + $0x30] sm:$0xf]
        %v523 = vld [vmem:[#allocation10 + $0x34] sm:$0xf]
        %v524 = vld [vmem:[#allocation10 + $0x38] sm:$0xf]
        %v525 = vld [vmem:[#allocation10 + $0x3c] sm:$0xf]
        %v526 = vld [vmem:[#allocation10 + $0x40] sm:$0xf]
        %v527 = vld [vmem:[#allocation10 + $0x44] sm:$0xf]
        %v528 = vld [vmem:[#allocation10 + $0x48] sm:$0xf]
        %v529 = vld [vmem:[#allocation10 + $0x4c] sm:$0xf]
        %v530 = vld [vmem:[#allocation10 + $0x50] sm:$0xf]
        %v531 = vld [vmem:[#allocation10 + $0x54] sm:$0xf]
        %v532 = vld [vmem:[#allocation10 + $0x58] sm:$0xf]
        %v533 = vld [vmem:[#allocation10 + $0x5c] sm:$0xf]
        %v534 = vld [vmem:[#allocation10 + $0x60] sm:$0xf]
        %v535 = vld [vmem:[#allocation10 + $0x64] sm:$0xf]
        %v536 = vld [vmem:[#allocation10 + $0x68] sm:$0xf]
        %v537 = vld [vmem:[#allocation10 + $0x6c] sm:$0xf]
        %v538 = vld [vmem:[#allocation10 + $0x70] sm:$0xf]
        %v539 = vld [vmem:[#allocation10 + $0x74] sm:$0xf]
        %v540 = vld [vmem:[#allocation10 + $0x78] sm:$0xf]
        %v541 = vld [vmem:[#allocation10 + $0x7c] sm:$0xf]
        %v542 = vld [vmem:[%s358] sm:$0xff]
        %v543 = vld [vmem:[%s358 + $0x8] sm:$0xff]
        %v544 = vld [vmem:[%s358 + $0x10] sm:$0xff]
        %v545 = vld [vmem:[%s358 + $0x18] sm:$0xff]
        %v546 = vld [vmem:[%s358 + $0x20] sm:$0xff]
        %v547 = vld [vmem:[%s358 + $0x28] sm:$0xff]
        %v548 = vld [vmem:[%s358 + $0x30] sm:$0xff]
        %v549 = vld [vmem:[%s358 + $0x38] sm:$0xff]
        %v550 = vld [vmem:[%s358 + $0x40] sm:$0xff]
        %v551 = vld [vmem:[%s358 + $0x48] sm:$0xff]
        %v552 = vld [vmem:[%s358 + $0x50] sm:$0xff]
        %v553 = vld [vmem:[%s358 + $0x58] sm:$0xff]
        %v554 = vld [vmem:[%s358 + $0x60] sm:$0xff]
        %v555 = vld [vmem:[%s358 + $0x68] sm:$0xff]
        %v556 = vld [vmem:[%s358 + $0x70] sm:$0xff]
        %v557 = vld [vmem:[%s358 + $0x78] sm:$0xff]
        %v558 = vld [vmem:[%s358 + $0x80] sm:$0xff]
        %v559 = vld [vmem:[%s358 + $0x88] sm:$0xff]
        %v560 = vld [vmem:[%s358 + $0x90] sm:$0xff]
        %v561 = vld [vmem:[%s358 + $0x98] sm:$0xff]
        %v562 = vld [vmem:[%s358 + $0xa0] sm:$0xff]
        %v563 = vld [vmem:[%s358 + $0xa8] sm:$0xff]
        %v564 = vld [vmem:[%s358 + $0xb0] sm:$0xff]
        %v565 = vld [vmem:[%s358 + $0xb8] sm:$0xff]
        %v566 = vld [vmem:[%s358 + $0xc0] sm:$0xff]
        %v567 = vld [vmem:[%s358 + $0xc8] sm:$0xff]
        %v568 = vld [vmem:[%s358 + $0xd0] sm:$0xff]
        %v569 = vld [vmem:[%s358 + $0xd8] sm:$0xff]
        %v570 = vld [vmem:[%s358 + $0xe0] sm:$0xff]
        %v571 = vld [vmem:[%s358 + $0xe8] sm:$0xff]
        %v572 = vld [vmem:[%s358 + $0xf0] sm:$0xff]
        %v573 = vld [vmem:[%s358 + $0xf8] sm:$0xff]
        %574 = vadd.xlane.f32.xlu0 %v542
        %v575 = vpop.xlane.xlu0 %574
        %576 = vadd.xlane.f32.xlu0 %v543
        %v577 = vpop.xlane.xlu0 %576
        %578 = vadd.xlane.f32.xlu0 %v544
        %v579 = vpop.xlane.xlu0 %578
        %580 = vadd.xlane.f32.xlu0 %v545
        %v581 = vpop.xlane.xlu0 %580
        %582 = vadd.xlane.f32.xlu0 %v546
        %v583 = vpop.xlane.xlu0 %582
        %584 = vadd.xlane.f32.xlu0 %v547
        %v585 = vpop.xlane.xlu0 %584
        %586 = vadd.xlane.f32.xlu0 %v548
        %v587 = vpop.xlane.xlu0 %586
        %588 = vadd.xlane.f32.xlu0 %v549
        %v589 = vpop.xlane.xlu0 %588
        %590 = vadd.xlane.f32.xlu0 %v550
        %v591 = vpop.xlane.xlu0 %590
        %592 = vadd.xlane.f32.xlu0 %v551
        %v593 = vpop.xlane.xlu0 %592
        %594 = vadd.xlane.f32.xlu0 %v552
        %v595 = vpop.xlane.xlu0 %594
        %596 = vadd.xlane.f32.xlu0 %v553
        %v597 = vpop.xlane.xlu0 %596
        %598 = vadd.xlane.f32.xlu0 %v554
        %v599 = vpop.xlane.xlu0 %598
        %600 = vadd.xlane.f32.xlu0 %v555
        %v601 = vpop.xlane.xlu0 %600
        %602 = vadd.xlane.f32.xlu0 %v556
        %v603 = vpop.xlane.xlu0 %602
        %604 = vadd.xlane.f32.xlu0 %v557
        %v605 = vpop.xlane.xlu0 %604
        %606 = vadd.xlane.f32.xlu0 %v558
        %v607 = vpop.xlane.xlu0 %606
        %608 = vadd.xlane.f32.xlu0 %v559
        %v609 = vpop.xlane.xlu0 %608
        %610 = vadd.xlane.f32.xlu0 %v560
        %v611 = vpop.xlane.xlu0 %610
        %612 = vadd.xlane.f32.xlu0 %v561
        %v613 = vpop.xlane.xlu0 %612
        %614 = vadd.xlane.f32.xlu0 %v562
        %v615 = vpop.xlane.xlu0 %614
        %616 = vadd.xlane.f32.xlu0 %v563
        %v617 = vpop.xlane.xlu0 %616
        %618 = vadd.xlane.f32.xlu0 %v564
        %v619 = vpop.xlane.xlu0 %618
        %620 = vadd.xlane.f32.xlu0 %v565
        %v621 = vpop.xlane.xlu0 %620
        %622 = vadd.xlane.f32.xlu0 %v566
        %v623 = vpop.xlane.xlu0 %622
        %624 = vadd.xlane.f32.xlu0 %v567
        %v625 = vpop.xlane.xlu0 %624
        %626 = vadd.xlane.f32.xlu0 %v568
        %v627 = vpop.xlane.xlu0 %626
        %628 = vadd.xlane.f32.xlu0 %v569
        %v629 = vpop.xlane.xlu0 %628
        %630 = vadd.xlane.f32.xlu0 %v570
        %v631 = vpop.xlane.xlu0 %630
        %632 = vadd.xlane.f32.xlu0 %v571
        %v633 = vpop.xlane.xlu0 %632
        %634 = vadd.xlane.f32.xlu0 %v572
        %v635 = vpop.xlane.xlu0 %634
        %636 = vadd.xlane.f32.xlu0 %v573
        %v637 = vpop.xlane.xlu0 %636
        %v638 = vrcp.pop 128.0
        %v639 = vmul.f32 128.0, %v638
        %v640 = vsub.f32 1.0, %v639
        %v641 = vmul.f32 %v638, %v640
        %v642 = vadd.f32 %v638, %v641
        %vm643 = vweird.f32 %v638
        %v644 = vsel %vm643, %v638, %v642
        %v645 = vmul.f32 %v575, %v644
        %v646 = vmul.f32 %v577, %v644
        %v647 = vmul.f32 %v579, %v644
        %v648 = vmul.f32 %v581, %v644
        %v649 = vmul.f32 %v583, %v644
        %v650 = vmul.f32 %v585, %v644
        %v651 = vmul.f32 %v587, %v644
        %v652 = vmul.f32 %v589, %v644
        %v653 = vmul.f32 %v591, %v644
        %v654 = vmul.f32 %v593, %v644
        %v655 = vmul.f32 %v595, %v644
        %v656 = vmul.f32 %v597, %v644
        %v657 = vmul.f32 %v599, %v644
        %v658 = vmul.f32 %v601, %v644
        %v659 = vmul.f32 %v603, %v644
        %v660 = vmul.f32 %v605, %v644
        %v661 = vmul.f32 %v607, %v644
        %v662 = vmul.f32 %v609, %v644
        %v663 = vmul.f32 %v611, %v644
        %v664 = vmul.f32 %v613, %v644
        %v665 = vmul.f32 %v615, %v644
        %v666 = vmul.f32 %v617, %v644
        %v667 = vmul.f32 %v619, %v644
        %v668 = vmul.f32 %v621, %v644
        %v669 = vmul.f32 %v623, %v644
        %v670 = vmul.f32 %v625, %v644
        %v671 = vmul.f32 %v627, %v644
        %v672 = vmul.f32 %v629, %v644
        %v673 = vmul.f32 %v631, %v644
        %v674 = vmul.f32 %v633, %v644
        %v675 = vmul.f32 %v635, %v644
        %v676 = vmul.f32 %v637, %v644
        %v677 = vsub.f32 %v542, %v645
        %v678 = vsub.f32 %v543, %v646
        %v679 = vsub.f32 %v544, %v647
        %v680 = vsub.f32 %v545, %v648
        %v681 = vsub.f32 %v546, %v649
        %v682 = vsub.f32 %v547, %v650
        %v683 = vsub.f32 %v548, %v651
        %v684 = vsub.f32 %v549, %v652
        %v685 = vsub.f32 %v550, %v653
        %v686 = vsub.f32 %v551, %v654
        %v687 = vsub.f32 %v552, %v655
        %v688 = vsub.f32 %v553, %v656
        %v689 = vsub.f32 %v554, %v657
        %v690 = vsub.f32 %v555, %v658
        %v691 = vsub.f32 %v556, %v659
        %v692 = vsub.f32 %v557, %v660
        %v693 = vsub.f32 %v558, %v661
        %v694 = vsub.f32 %v559, %v662
        %v695 = vsub.f32 %v560, %v663
        %v696 = vsub.f32 %v561, %v664
        %v697 = vsub.f32 %v562, %v665
        %v698 = vsub.f32 %v563, %v666
        %v699 = vsub.f32 %v564, %v667
        %v700 = vsub.f32 %v565, %v668
        %v701 = vsub.f32 %v566, %v669
        %v702 = vsub.f32 %v567, %v670
        %v703 = vsub.f32 %v568, %v671
        %v704 = vsub.f32 %v569, %v672
        %v705 = vsub.f32 %v570, %v673
        %v706 = vsub.f32 %v571, %v674
        %v707 = vsub.f32 %v572, %v675
        %v708 = vsub.f32 %v573, %v676
        %v709 = vmul.f32 %v677, %v677
        %v710 = vmul.f32 %v678, %v678
        %v711 = vmul.f32 %v679, %v679
        %v712 = vmul.f32 %v680, %v680
        %v713 = vmul.f32 %v681, %v681
        %v714 = vmul.f32 %v682, %v682
        %v715 = vmul.f32 %v683, %v683
        %v716 = vmul.f32 %v684, %v684
        %v717 = vmul.f32 %v685, %v685
        %v718 = vmul.f32 %v686, %v686
        %v719 = vmul.f32 %v687, %v687
        %v720 = vmul.f32 %v688, %v688
        %v721 = vmul.f32 %v689, %v689
        %v722 = vmul.f32 %v690, %v690
        %v723 = vmul.f32 %v691, %v691
        %v724 = vmul.f32 %v692, %v692
        %v725 = vmul.f32 %v693, %v693
        %v726 = vmul.f32 %v694, %v694
        %v727 = vmul.f32 %v695, %v695
        %v728 = vmul.f32 %v696, %v696
        %v729 = vmul.f32 %v697, %v697
        %v730 = vmul.f32 %v698, %v698
        %v731 = vmul.f32 %v699, %v699
        %v732 = vmul.f32 %v700, %v700
        %v733 = vmul.f32 %v701, %v701
        %v734 = vmul.f32 %v702, %v702
        %v735 = vmul.f32 %v703, %v703
        %v736 = vmul.f32 %v704, %v704
        %v737 = vmul.f32 %v705, %v705
        %v738 = vmul.f32 %v706, %v706
        %v739 = vmul.f32 %v707, %v707
        %v740 = vmul.f32 %v708, %v708
        %741 = vadd.xlane.f32.xlu0 %v709
        %v742 = vpop.xlane.xlu0 %741
        %743 = vadd.xlane.f32.xlu0 %v710
        %v744 = vpop.xlane.xlu0 %743
        %745 = vadd.xlane.f32.xlu0 %v711
        %v746 = vpop.xlane.xlu0 %745
        %747 = vadd.xlane.f32.xlu0 %v712
        %v748 = vpop.xlane.xlu0 %747
        %749 = vadd.xlane.f32.xlu0 %v713
        %v750 = vpop.xlane.xlu0 %749
        %751 = vadd.xlane.f32.xlu0 %v714
        %v752 = vpop.xlane.xlu0 %751
        %753 = vadd.xlane.f32.xlu0 %v715
        %v754 = vpop.xlane.xlu0 %753
        %755 = vadd.xlane.f32.xlu0 %v716
        %v756 = vpop.xlane.xlu0 %755
        %757 = vadd.xlane.f32.xlu0 %v717
        %v758 = vpop.xlane.xlu0 %757
        %759 = vadd.xlane.f32.xlu0 %v718
        %v760 = vpop.xlane.xlu0 %759
        %761 = vadd.xlane.f32.xlu0 %v719
        %v762 = vpop.xlane.xlu0 %761
        %763 = vadd.xlane.f32.xlu0 %v720
        %v764 = vpop.xlane.xlu0 %763
        %765 = vadd.xlane.f32.xlu0 %v721
        %v766 = vpop.xlane.xlu0 %765
        %767 = vadd.xlane.f32.xlu0 %v722
        %v768 = vpop.xlane.xlu0 %767
        %769 = vadd.xlane.f32.xlu0 %v723
        %v770 = vpop.xlane.xlu0 %769
        %771 = vadd.xlane.f32.xlu0 %v724
        %v772 = vpop.xlane.xlu0 %771
        %773 = vadd.xlane.f32.xlu0 %v725
        %v774 = vpop.xlane.xlu0 %773
        %775 = vadd.xlane.f32.xlu0 %v726
        %v776 = vpop.xlane.xlu0 %775
        %777 = vadd.xlane.f32.xlu0 %v727
        %v778 = vpop.xlane.xlu0 %777
        %779 = vadd.xlane.f32.xlu0 %v728
        %v780 = vpop.xlane.xlu0 %779
        %781 = vadd.xlane.f32.xlu0 %v729
        %v782 = vpop.xlane.xlu0 %781
        %783 = vadd.xlane.f32.xlu0 %v730
        %v784 = vpop.xlane.xlu0 %783
        %785 = vadd.xlane.f32.xlu0 %v731
        %v786 = vpop.xlane.xlu0 %785
        %787 = vadd.xlane.f32.xlu0 %v732
        %v788 = vpop.xlane.xlu0 %787
        %789 = vadd.xlane.f32.xlu0 %v733
        %v790 = vpop.xlane.xlu0 %789
        %791 = vadd.xlane.f32.xlu0 %v734
        %v792 = vpop.xlane.xlu0 %791
        %793 = vadd.xlane.f32.xlu0 %v735
        %v794 = vpop.xlane.xlu0 %793
        %795 = vadd.xlane.f32.xlu0 %v736
        %v796 = vpop.xlane.xlu0 %795
        %797 = vadd.xlane.f32.xlu0 %v737
        %v798 = vpop.xlane.xlu0 %797
        %799 = vadd.xlane.f32.xlu0 %v738
        %v800 = vpop.xlane.xlu0 %799
        %801 = vadd.xlane.f32.xlu0 %v739
        %v802 = vpop.xlane.xlu0 %801
        %803 = vadd.xlane.f32.xlu0 %v740
        %v804 = vpop.xlane.xlu0 %803
        %v805 = vmul.f32 %v742, %v644
        %v806 = vmul.f32 %v744, %v644
        %v807 = vmul.f32 %v746, %v644
        %v808 = vmul.f32 %v748, %v644
        %v809 = vmul.f32 %v750, %v644
        %v810 = vmul.f32 %v752, %v644
        %v811 = vmul.f32 %v754, %v644
        %v812 = vmul.f32 %v756, %v644
        %v813 = vmul.f32 %v758, %v644
        %v814 = vmul.f32 %v760, %v644
        %v815 = vmul.f32 %v762, %v644
        %v816 = vmul.f32 %v764, %v644
        %v817 = vmul.f32 %v766, %v644
        %v818 = vmul.f32 %v768, %v644
        %v819 = vmul.f32 %v770, %v644
        %v820 = vmul.f32 %v772, %v644
        %v821 = vmul.f32 %v774, %v644
        %v822 = vmul.f32 %v776, %v644
        %v823 = vmul.f32 %v778, %v644
        %v824 = vmul.f32 %v780, %v644
        %v825 = vmul.f32 %v782, %v644
        %v826 = vmul.f32 %v784, %v644
        %v827 = vmul.f32 %v786, %v644
        %v828 = vmul.f32 %v788, %v644
        %v829 = vmul.f32 %v790, %v644
        %v830 = vmul.f32 %v792, %v644
        %v831 = vmul.f32 %v794, %v644
        %v832 = vmul.f32 %v796, %v644
        %v833 = vmul.f32 %v798, %v644
        %v834 = vmul.f32 %v800, %v644
        %v835 = vmul.f32 %v802, %v644
        %v836 = vmul.f32 %v804, %v644
        %v837 = vadd.f32 %v805, 1e-05
        %v838 = vadd.f32 %v806, 1e-05
        %v839 = vadd.f32 %v807, 1e-05
        %v840 = vadd.f32 %v808, 1e-05
        %v841 = vadd.f32 %v809, 1e-05
        %v842 = vadd.f32 %v810, 1e-05
        %v843 = vadd.f32 %v811, 1e-05
        %v844 = vadd.f32 %v812, 1e-05
        %v845 = vadd.f32 %v813, 1e-05
        %v846 = vadd.f32 %v814, 1e-05
        %v847 = vadd.f32 %v815, 1e-05
        %v848 = vadd.f32 %v816, 1e-05
        %v849 = vadd.f32 %v817, 1e-05
        %v850 = vadd.f32 %v818, 1e-05
        %v851 = vadd.f32 %v819, 1e-05
        %v852 = vadd.f32 %v820, 1e-05
        %v853 = vadd.f32 %v821, 1e-05
        %v854 = vadd.f32 %v822, 1e-05
        %v855 = vadd.f32 %v823, 1e-05
        %v856 = vadd.f32 %v824, 1e-05
        %v857 = vadd.f32 %v825, 1e-05
        %v858 = vadd.f32 %v826, 1e-05
        %v859 = vadd.f32 %v827, 1e-05
        %v860 = vadd.f32 %v828, 1e-05
        %v861 = vadd.f32 %v829, 1e-05
        %v862 = vadd.f32 %v830, 1e-05
        %v863 = vadd.f32 %v831, 1e-05
        %v864 = vadd.f32 %v832, 1e-05
        %v865 = vadd.f32 %v833, 1e-05
        %v866 = vadd.f32 %v834, 1e-05
        %v867 = vadd.f32 %v835, 1e-05
        %v868 = vadd.f32 %v836, 1e-05
        %v869 = vrsqrt.pop %v837
        %v870 = vmul.f32 %v869, %v837
        %v871 = vmul.f32 %v870, %v869
        %v872 = vmul.f32 0.5, %v871
        %v873 = vsub.f32 1.5, %v872
        %v874 = vmul.f32 %v869, %v873
        %vm875 = vweird.f32 %v837
        %vm876 = vweird.f32 %v869
        %vm877 = vmor %vm875, %vm876
        %v878 = vsel %vm877, %v869, %v874
        %v879 = vrsqrt.pop %v838
        %v880 = vmul.f32 %v879, %v838
        %v881 = vmul.f32 %v880, %v879
        %v882 = vmul.f32 0.5, %v881
        %v883 = vsub.f32 1.5, %v882
        %v884 = vmul.f32 %v879, %v883
        %vm885 = vweird.f32 %v838
        %vm886 = vweird.f32 %v879
        %vm887 = vmor %vm885, %vm886
        %v888 = vsel %vm887, %v879, %v884
        %v889 = vrsqrt.pop %v839
        %v890 = vmul.f32 %v889, %v839
        %v891 = vmul.f32 %v890, %v889
        %v892 = vmul.f32 0.5, %v891
        %v893 = vsub.f32 1.5, %v892
        %v894 = vmul.f32 %v889, %v893
        %vm895 = vweird.f32 %v839
        %vm896 = vweird.f32 %v889
        %vm897 = vmor %vm895, %vm896
        %v898 = vsel %vm897, %v889, %v894
        %v899 = vrsqrt.pop %v840
        %v900 = vmul.f32 %v899, %v840
        %v901 = vmul.f32 %v900, %v899
        %v902 = vmul.f32 0.5, %v901
        %v903 = vsub.f32 1.5, %v902
        %v904 = vmul.f32 %v899, %v903
        %vm905 = vweird.f32 %v840
        %vm906 = vweird.f32 %v899
        %vm907 = vmor %vm905, %vm906
        %v908 = vsel %vm907, %v899, %v904
        %v909 = vrsqrt.pop %v841
        %v910 = vmul.f32 %v909, %v841
        %v911 = vmul.f32 %v910, %v909
        %v912 = vmul.f32 0.5, %v911
        %v913 = vsub.f32 1.5, %v912
        %v914 = vmul.f32 %v909, %v913
        %vm915 = vweird.f32 %v841
        %vm916 = vweird.f32 %v909
        %vm917 = vmor %vm915, %vm916
        %v918 = vsel %vm917, %v909, %v914
        %v919 = vrsqrt.pop %v842
        %v920 = vmul.f32 %v919, %v842
        %v921 = vmul.f32 %v920, %v919
        %v922 = vmul.f32 0.5, %v921
        %v923 = vsub.f32 1.5, %v922
        %v924 = vmul.f32 %v919, %v923
        %vm925 = vweird.f32 %v842
        %vm926 = vweird.f32 %v919
        %vm927 = vmor %vm925, %vm926
        %v928 = vsel %vm927, %v919, %v924
        %v929 = vrsqrt.pop %v843
        %v930 = vmul.f32 %v929, %v843
        %v931 = vmul.f32 %v930, %v929
        %v932 = vmul.f32 0.5, %v931
        %v933 = vsub.f32 1.5, %v932
        %v934 = vmul.f32 %v929, %v933
        %vm935 = vweird.f32 %v843
        %vm936 = vweird.f32 %v929
        %vm937 = vmor %vm935, %vm936
        %v938 = vsel %vm937, %v929, %v934
        %v939 = vrsqrt.pop %v844
        %v940 = vmul.f32 %v939, %v844
        %v941 = vmul.f32 %v940, %v939
        %v942 = vmul.f32 0.5, %v941
        %v943 = vsub.f32 1.5, %v942
        %v944 = vmul.f32 %v939, %v943
        %vm945 = vweird.f32 %v844
        %vm946 = vweird.f32 %v939
        %vm947 = vmor %vm945, %vm946
        %v948 = vsel %vm947, %v939, %v944
        %v949 = vrsqrt.pop %v845
        %v950 = vmul.f32 %v949, %v845
        %v951 = vmul.f32 %v950, %v949
        %v952 = vmul.f32 0.5, %v951
        %v953 = vsub.f32 1.5, %v952
        %v954 = vmul.f32 %v949, %v953
        %vm955 = vweird.f32 %v845
        %vm956 = vweird.f32 %v949
        %vm957 = vmor %vm955, %vm956
        %v958 = vsel %vm957, %v949, %v954
        %v959 = vrsqrt.pop %v846
        %v960 = vmul.f32 %v959, %v846
        %v961 = vmul.f32 %v960, %v959
        %v962 = vmul.f32 0.5, %v961
        %v963 = vsub.f32 1.5, %v962
        %v964 = vmul.f32 %v959, %v963
        %vm965 = vweird.f32 %v846
        %vm966 = vweird.f32 %v959
        %vm967 = vmor %vm965, %vm966
        %v968 = vsel %vm967, %v959, %v964
        %v969 = vrsqrt.pop %v847
        %v970 = vmul.f32 %v969, %v847
        %v971 = vmul.f32 %v970, %v969
        %v972 = vmul.f32 0.5, %v971
        %v973 = vsub.f32 1.5, %v972
        %v974 = vmul.f32 %v969, %v973
        %vm975 = vweird.f32 %v847
        %vm976 = vweird.f32 %v969
        %vm977 = vmor %vm975, %vm976
        %v978 = vsel %vm977, %v969, %v974
        %v979 = vrsqrt.pop %v848
        %v980 = vmul.f32 %v979, %v848
        %v981 = vmul.f32 %v980, %v979
        %v982 = vmul.f32 0.5, %v981
        %v983 = vsub.f32 1.5, %v982
        %v984 = vmul.f32 %v979, %v983
        %vm985 = vweird.f32 %v848
        %vm986 = vweird.f32 %v979
        %vm987 = vmor %vm985, %vm986
        %v988 = vsel %vm987, %v979, %v984
        %v989 = vrsqrt.pop %v849
        %v990 = vmul.f32 %v989, %v849
        %v991 = vmul.f32 %v990, %v989
        %v992 = vmul.f32 0.5, %v991
        %v993 = vsub.f32 1.5, %v992
        %v994 = vmul.f32 %v989, %v993
        %vm995 = vweird.f32 %v849
        %vm996 = vweird.f32 %v989
        %vm997 = vmor %vm995, %vm996
        %v998 = vsel %vm997, %v989, %v994
        %v999 = vrsqrt.pop %v850
        %v1000 = vmul.f32 %v999, %v850
        %v1001 = vmul.f32 %v1000, %v999
        %v1002 = vmul.f32 0.5, %v1001
        %v1003 = vsub.f32 1.5, %v1002
        %v1004 = vmul.f32 %v999, %v1003
        %vm1005 = vweird.f32 %v850
        %vm1006 = vweird.f32 %v999
        %vm1007 = vmor %vm1005, %vm1006
        %v1008 = vsel %vm1007, %v999, %v1004
        %v1009 = vrsqrt.pop %v851
        %v1010 = vmul.f32 %v1009, %v851
        %v1011 = vmul.f32 %v1010, %v1009
        %v1012 = vmul.f32 0.5, %v1011
        %v1013 = vsub.f32 1.5, %v1012
        %v1014 = vmul.f32 %v1009, %v1013
        %vm1015 = vweird.f32 %v851
        %vm1016 = vweird.f32 %v1009
        %vm1017 = vmor %vm1015, %vm1016
        %v1018 = vsel %vm1017, %v1009, %v1014
        %v1019 = vrsqrt.pop %v852
        %v1020 = vmul.f32 %v1019, %v852
        %v1021 = vmul.f32 %v1020, %v1019
        %v1022 = vmul.f32 0.5, %v1021
        %v1023 = vsub.f32 1.5, %v1022
        %v1024 = vmul.f32 %v1019, %v1023
        %vm1025 = vweird.f32 %v852
        %vm1026 = vweird.f32 %v1019
        %vm1027 = vmor %vm1025, %vm1026
        %v1028 = vsel %vm1027, %v1019, %v1024
        %v1029 = vrsqrt.pop %v853
        %v1030 = vmul.f32 %v1029, %v853
        %v1031 = vmul.f32 %v1030, %v1029
        %v1032 = vmul.f32 0.5, %v1031
        %v1033 = vsub.f32 1.5, %v1032
        %v1034 = vmul.f32 %v1029, %v1033
        %vm1035 = vweird.f32 %v853
        %vm1036 = vweird.f32 %v1029
        %vm1037 = vmor %vm1035, %vm1036
        %v1038 = vsel %vm1037, %v1029, %v1034
        %v1039 = vrsqrt.pop %v854
        %v1040 = vmul.f32 %v1039, %v854
        %v1041 = vmul.f32 %v1040, %v1039
        %v1042 = vmul.f32 0.5, %v1041
        %v1043 = vsub.f32 1.5, %v1042
        %v1044 = vmul.f32 %v1039, %v1043
        %vm1045 = vweird.f32 %v854
        %vm1046 = vweird.f32 %v1039
        %vm1047 = vmor %vm1045, %vm1046
        %v1048 = vsel %vm1047, %v1039, %v1044
        %v1049 = vrsqrt.pop %v855
        %v1050 = vmul.f32 %v1049, %v855
        %v1051 = vmul.f32 %v1050, %v1049
        %v1052 = vmul.f32 0.5, %v1051
        %v1053 = vsub.f32 1.5, %v1052
        %v1054 = vmul.f32 %v1049, %v1053
        %vm1055 = vweird.f32 %v855
        %vm1056 = vweird.f32 %v1049
        %vm1057 = vmor %vm1055, %vm1056
        %v1058 = vsel %vm1057, %v1049, %v1054
        %v1059 = vrsqrt.pop %v856
        %v1060 = vmul.f32 %v1059, %v856
        %v1061 = vmul.f32 %v1060, %v1059
        %v1062 = vmul.f32 0.5, %v1061
        %v1063 = vsub.f32 1.5, %v1062
        %v1064 = vmul.f32 %v1059, %v1063
        %vm1065 = vweird.f32 %v856
        %vm1066 = vweird.f32 %v1059
        %vm1067 = vmor %vm1065, %vm1066
        %v1068 = vsel %vm1067, %v1059, %v1064
        %v1069 = vrsqrt.pop %v857
        %v1070 = vmul.f32 %v1069, %v857
        %v1071 = vmul.f32 %v1070, %v1069
        %v1072 = vmul.f32 0.5, %v1071
        %v1073 = vsub.f32 1.5, %v1072
        %v1074 = vmul.f32 %v1069, %v1073
        %vm1075 = vweird.f32 %v857
        %vm1076 = vweird.f32 %v1069
        %vm1077 = vmor %vm1075, %vm1076
        %v1078 = vsel %vm1077, %v1069, %v1074
        %v1079 = vrsqrt.pop %v858
        %v1080 = vmul.f32 %v1079, %v858
        %v1081 = vmul.f32 %v1080, %v1079
        %v1082 = vmul.f32 0.5, %v1081
        %v1083 = vsub.f32 1.5, %v1082
        %v1084 = vmul.f32 %v1079, %v1083
        %vm1085 = vweird.f32 %v858
        %vm1086 = vweird.f32 %v1079
        %vm1087 = vmor %vm1085, %vm1086
        %v1088 = vsel %vm1087, %v1079, %v1084
        %v1089 = vrsqrt.pop %v859
        %v1090 = vmul.f32 %v1089, %v859
        %v1091 = vmul.f32 %v1090, %v1089
        %v1092 = vmul.f32 0.5, %v1091
        %v1093 = vsub.f32 1.5, %v1092
        %v1094 = vmul.f32 %v1089, %v1093
        %vm1095 = vweird.f32 %v859
        %vm1096 = vweird.f32 %v1089
        %vm1097 = vmor %vm1095, %vm1096
        %v1098 = vsel %vm1097, %v1089, %v1094
        %v1099 = vrsqrt.pop %v860
        %v1100 = vmul.f32 %v1099, %v860
        %v1101 = vmul.f32 %v1100, %v1099
        %v1102 = vmul.f32 0.5, %v1101
        %v1103 = vsub.f32 1.5, %v1102
        %v1104 = vmul.f32 %v1099, %v1103
        %vm1105 = vweird.f32 %v860
        %vm1106 = vweird.f32 %v1099
        %vm1107 = vmor %vm1105, %vm1106
        %v1108 = vsel %vm1107, %v1099, %v1104
        %v1109 = vrsqrt.pop %v861
        %v1110 = vmul.f32 %v1109, %v861
        %v1111 = vmul.f32 %v1110, %v1109
        %v1112 = vmul.f32 0.5, %v1111
        %v1113 = vsub.f32 1.5, %v1112
        %v1114 = vmul.f32 %v1109, %v1113
        %vm1115 = vweird.f32 %v861
        %vm1116 = vweird.f32 %v1109
        %vm1117 = vmor %vm1115, %vm1116
        %v1118 = vsel %vm1117, %v1109, %v1114
        %v1119 = vrsqrt.pop %v862
        %v1120 = vmul.f32 %v1119, %v862
        %v1121 = vmul.f32 %v1120, %v1119
        %v1122 = vmul.f32 0.5, %v1121
        %v1123 = vsub.f32 1.5, %v1122
        %v1124 = vmul.f32 %v1119, %v1123
        %vm1125 = vweird.f32 %v862
        %vm1126 = vweird.f32 %v1119
        %vm1127 = vmor %vm1125, %vm1126
        %v1128 = vsel %vm1127, %v1119, %v1124
        %v1129 = vrsqrt.pop %v863
        %v1130 = vmul.f32 %v1129, %v863
        %v1131 = vmul.f32 %v1130, %v1129
        %v1132 = vmul.f32 0.5, %v1131
        %v1133 = vsub.f32 1.5, %v1132
        %v1134 = vmul.f32 %v1129, %v1133
        %vm1135 = vweird.f32 %v863
        %vm1136 = vweird.f32 %v1129
        %vm1137 = vmor %vm1135, %vm1136
        %v1138 = vsel %vm1137, %v1129, %v1134
        %v1139 = vrsqrt.pop %v864
        %v1140 = vmul.f32 %v1139, %v864
        %v1141 = vmul.f32 %v1140, %v1139
        %v1142 = vmul.f32 0.5, %v1141
        %v1143 = vsub.f32 1.5, %v1142
        %v1144 = vmul.f32 %v1139, %v1143
        %vm1145 = vweird.f32 %v864
        %vm1146 = vweird.f32 %v1139
        %vm1147 = vmor %vm1145, %vm1146
        %v1148 = vsel %vm1147, %v1139, %v1144
        %v1149 = vrsqrt.pop %v865
        %v1150 = vmul.f32 %v1149, %v865
        %v1151 = vmul.f32 %v1150, %v1149
        %v1152 = vmul.f32 0.5, %v1151
        %v1153 = vsub.f32 1.5, %v1152
        %v1154 = vmul.f32 %v1149, %v1153
        %vm1155 = vweird.f32 %v865
        %vm1156 = vweird.f32 %v1149
        %vm1157 = vmor %vm1155, %vm1156
        %v1158 = vsel %vm1157, %v1149, %v1154
        %v1159 = vrsqrt.pop %v866
        %v1160 = vmul.f32 %v1159, %v866
        %v1161 = vmul.f32 %v1160, %v1159
        %v1162 = vmul.f32 0.5, %v1161
        %v1163 = vsub.f32 1.5, %v1162
        %v1164 = vmul.f32 %v1159, %v1163
        %vm1165 = vweird.f32 %v866
        %vm1166 = vweird.f32 %v1159
        %vm1167 = vmor %vm1165, %vm1166
        %v1168 = vsel %vm1167, %v1159, %v1164
        %v1169 = vrsqrt.pop %v867
        %v1170 = vmul.f32 %v1169, %v867
        %v1171 = vmul.f32 %v1170, %v1169
        %v1172 = vmul.f32 0.5, %v1171
        %v1173 = vsub.f32 1.5, %v1172
        %v1174 = vmul.f32 %v1169, %v1173
        %vm1175 = vweird.f32 %v867
        %vm1176 = vweird.f32 %v1169
        %vm1177 = vmor %vm1175, %vm1176
        %v1178 = vsel %vm1177, %v1169, %v1174
        %v1179 = vrsqrt.pop %v868
        %v1180 = vmul.f32 %v1179, %v868
        %v1181 = vmul.f32 %v1180, %v1179
        %v1182 = vmul.f32 0.5, %v1181
        %v1183 = vsub.f32 1.5, %v1182
        %v1184 = vmul.f32 %v1179, %v1183
        %vm1185 = vweird.f32 %v868
        %vm1186 = vweird.f32 %v1179
        %vm1187 = vmor %vm1185, %vm1186
        %v1188 = vsel %vm1187, %v1179, %v1184
        %v1189 = vmul.f32 %v677, %v878
        %v1190 = vmul.f32 %v678, %v888
        %v1191 = vmul.f32 %v679, %v898
        %v1192 = vmul.f32 %v680, %v908
        %v1193 = vmul.f32 %v681, %v918
        %v1194 = vmul.f32 %v682, %v928
        %v1195 = vmul.f32 %v683, %v938
        %v1196 = vmul.f32 %v684, %v948
        %v1197 = vmul.f32 %v685, %v958
        %v1198 = vmul.f32 %v686, %v968
        %v1199 = vmul.f32 %v687, %v978
        %v1200 = vmul.f32 %v688, %v988
        %v1201 = vmul.f32 %v689, %v998
        %v1202 = vmul.f32 %v690, %v1008
        %v1203 = vmul.f32 %v691, %v1018
        %v1204 = vmul.f32 %v692, %v1028
        %v1205 = vmul.f32 %v693, %v1038
        %v1206 = vmul.f32 %v694, %v1048
        %v1207 = vmul.f32 %v695, %v1058
        %v1208 = vmul.f32 %v696, %v1068
        %v1209 = vmul.f32 %v697, %v1078
        %v1210 = vmul.f32 %v698, %v1088
        %v1211 = vmul.f32 %v699, %v1098
        %v1212 = vmul.f32 %v700, %v1108
        %v1213 = vmul.f32 %v701, %v1118
        %v1214 = vmul.f32 %v702, %v1128
        %v1215 = vmul.f32 %v703, %v1138
        %v1216 = vmul.f32 %v704, %v1148
        %v1217 = vmul.f32 %v705, %v1158
        %v1218 = vmul.f32 %v706, %v1168
        %v1219 = vmul.f32 %v707, %v1178
        %v1220 = vmul.f32 %v708, %v1188
        %v1221 = vperm.slane %v361, 0
        %v1222 = vmul.f32 %v1189, %v1221
        %v1223 = vmul.f32 %v1190, %v1221
        %v1224 = vmul.f32 %v1191, %v1221
        %v1225 = vmul.f32 %v1192, %v1221
        %v1226 = vmul.f32 %v1193, %v1221
        %v1227 = vmul.f32 %v1194, %v1221
        %v1228 = vmul.f32 %v1195, %v1221
        %v1229 = vmul.f32 %v1196, %v1221
        %v1230 = vmul.f32 %v1197, %v1221
        %v1231 = vmul.f32 %v1198, %v1221
        %v1232 = vmul.f32 %v1199, %v1221
        %v1233 = vmul.f32 %v1200, %v1221
        %v1234 = vmul.f32 %v1201, %v1221
        %v1235 = vmul.f32 %v1202, %v1221
        %v1236 = vmul.f32 %v1203, %v1221
        %v1237 = vmul.f32 %v1204, %v1221
        %v1238 = vmul.f32 %v1205, %v1221
        %v1239 = vmul.f32 %v1206, %v1221
        %v1240 = vmul.f32 %v1207, %v1221
        %v1241 = vmul.f32 %v1208, %v1221
        %v1242 = vmul.f32 %v1209, %v1221
        %v1243 = vmul.f32 %v1210, %v1221
        %v1244 = vmul.f32 %v1211, %v1221
        %v1245 = vmul.f32 %v1212, %v1221
        %v1246 = vmul.f32 %v1213, %v1221
        %v1247 = vmul.f32 %v1214, %v1221
        %v1248 = vmul.f32 %v1215, %v1221
        %v1249 = vmul.f32 %v1216, %v1221
        %v1250 = vmul.f32 %v1217, %v1221
        %v1251 = vmul.f32 %v1218, %v1221
        %v1252 = vmul.f32 %v1219, %v1221
        %v1253 = vmul.f32 %v1220, %v1221
        %v1254 = vperm.slane %v362, 0
        %v1255 = vadd.f32 %v1222, %v1254
        %v1256 = vadd.f32 %v1223, %v1254
        %v1257 = vadd.f32 %v1224, %v1254
        %v1258 = vadd.f32 %v1225, %v1254
        %v1259 = vadd.f32 %v1226, %v1254
        %v1260 = vadd.f32 %v1227, %v1254
        %v1261 = vadd.f32 %v1228, %v1254
        %v1262 = vadd.f32 %v1229, %v1254
        %v1263 = vadd.f32 %v1230, %v1254
        %v1264 = vadd.f32 %v1231, %v1254
        %v1265 = vadd.f32 %v1232, %v1254
        %v1266 = vadd.f32 %v1233, %v1254
        %v1267 = vadd.f32 %v1234, %v1254
        %v1268 = vadd.f32 %v1235, %v1254
        %v1269 = vadd.f32 %v1236, %v1254
        %v1270 = vadd.f32 %v1237, %v1254
        %v1271 = vadd.f32 %v1238, %v1254
        %v1272 = vadd.f32 %v1239, %v1254
        %v1273 = vadd.f32 %v1240, %v1254
        %v1274 = vadd.f32 %v1241, %v1254
        %v1275 = vadd.f32 %v1242, %v1254
        %v1276 = vadd.f32 %v1243, %v1254
        %v1277 = vadd.f32 %v1244, %v1254
        %v1278 = vadd.f32 %v1245, %v1254
        %v1279 = vadd.f32 %v1246, %v1254
        %v1280 = vadd.f32 %v1247, %v1254
        %v1281 = vadd.f32 %v1248, %v1254
        %v1282 = vadd.f32 %v1249, %v1254
        %v1283 = vadd.f32 %v1250, %v1254
        %v1284 = vadd.f32 %v1251, %v1254
        %v1285 = vadd.f32 %v1252, %v1254
        %v1286 = vadd.f32 %v1253, %v1254
        %v1287 = vpack.c.bf16 %v1256, %v1255
        %v1288 = vpack.c.bf16 %v1258, %v1257
        %v1289 = vpack.c.bf16 %v1260, %v1259
        %v1290 = vpack.c.bf16 %v1262, %v1261
        %v1291 = vpack.c.bf16 %v1264, %v1263
        %v1292 = vpack.c.bf16 %v1266, %v1265
        %v1293 = vpack.c.bf16 %v1268, %v1267
        %v1294 = vpack.c.bf16 %v1270, %v1269
        %v1295 = vpack.c.bf16 %v1272, %v1271
        %v1296 = vpack.c.bf16 %v1274, %v1273
        %v1297 = vpack.c.bf16 %v1276, %v1275
        %v1298 = vpack.c.bf16 %v1278, %v1277
        %v1299 = vpack.c.bf16 %v1280, %v1279
        %v1300 = vpack.c.bf16 %v1282, %v1281
        %v1301 = vpack.c.bf16 %v1284, %v1283
        %v1302 = vpack.c.bf16 %v1286, %v1285
        %1304 = vset.pattern.permute.xlu0 0
        %1305 = vperm.xlu0 %1304, %v366
        %v1306 = vpop.permute.xlu0 %1305
        %1309 = vset.pattern.permute.xlu0 0
        %1310 = vperm.xlu0 %1309, %v367
        %v1311 = vpop.permute.xlu0 %1310
        %1314 = vset.pattern.permute.xlu0 0
        %1315 = vperm.xlu0 %1314, %v368
        %v1316 = vpop.permute.xlu0 %1315
        %1319 = vset.pattern.permute.xlu0 0
        %1320 = vperm.xlu0 %1319, %v369
        %v1321 = vpop.permute.xlu0 %1320
        %1324 = vset.pattern.permute.xlu0 0
        %1325 = vperm.xlu0 %1324, %v370
        %v1326 = vpop.permute.xlu0 %1325
        %1329 = vset.pattern.permute.xlu0 0
        %1330 = vperm.xlu0 %1329, %v371
        %v1331 = vpop.permute.xlu0 %1330
        %1334 = vset.pattern.permute.xlu0 0
        %1335 = vperm.xlu0 %1334, %v372
        %v1336 = vpop.permute.xlu0 %1335
        %1339 = vset.pattern.permute.xlu0 0
        %1340 = vperm.xlu0 %1339, %v373
        %v1341 = vpop.permute.xlu0 %1340
        %1344 = vset.pattern.permute.xlu0 0
        %1345 = vperm.xlu0 %1344, %v374
        %v1346 = vpop.permute.xlu0 %1345
        %1349 = vset.pattern.permute.xlu0 0
        %1350 = vperm.xlu0 %1349, %v375
        %v1351 = vpop.permute.xlu0 %1350
        %1354 = vset.pattern.permute.xlu0 0
        %1355 = vperm.xlu0 %1354, %v376
        %v1356 = vpop.permute.xlu0 %1355
        %1359 = vset.pattern.permute.xlu0 0
        %1360 = vperm.xlu0 %1359, %v377
        %v1361 = vpop.permute.xlu0 %1360
        %1364 = vset.pattern.permute.xlu0 0
        %1365 = vperm.xlu0 %1364, %v378
        %v1366 = vpop.permute.xlu0 %1365
        %1369 = vset.pattern.permute.xlu0 0
        %1370 = vperm.xlu0 %1369, %v379
        %v1371 = vpop.permute.xlu0 %1370
        %1374 = vset.pattern.permute.xlu0 0
        %1375 = vperm.xlu0 %1374, %v380
        %v1376 = vpop.permute.xlu0 %1375
        %1379 = vset.pattern.permute.xlu0 0
        %1380 = vperm.xlu0 %1379, %v381
        %v1381 = vpop.permute.xlu0 %1380
        %1384 = vset.pattern.permute.xlu0 0
        %1385 = vperm.xlu0 %1384, %v382
        %v1386 = vpop.permute.xlu0 %1385
        %1389 = vset.pattern.permute.xlu0 0
        %1390 = vperm.xlu0 %1389, %v383
        %v1391 = vpop.permute.xlu0 %1390
        %1394 = vset.pattern.permute.xlu0 0
        %1395 = vperm.xlu0 %1394, %v384
        %v1396 = vpop.permute.xlu0 %1395
        %1399 = vset.pattern.permute.xlu0 0
        %1400 = vperm.xlu0 %1399, %v385
        %v1401 = vpop.permute.xlu0 %1400
        %1404 = vset.pattern.permute.xlu0 0
        %1405 = vperm.xlu0 %1404, %v386
        %v1406 = vpop.permute.xlu0 %1405
        %1409 = vset.pattern.permute.xlu0 0
        %1410 = vperm.xlu0 %1409, %v387
        %v1411 = vpop.permute.xlu0 %1410
        %1414 = vset.pattern.permute.xlu0 0
        %1415 = vperm.xlu0 %1414, %v388
        %v1416 = vpop.permute.xlu0 %1415
        %1419 = vset.pattern.permute.xlu0 0
        %1420 = vperm.xlu0 %1419, %v389
        %v1421 = vpop.permute.xlu0 %1420
        %1424 = vset.pattern.permute.xlu0 0
        %1425 = vperm.xlu0 %1424, %v390
        %v1426 = vpop.permute.xlu0 %1425
        %1429 = vset.pattern.permute.xlu0 0
        %1430 = vperm.xlu0 %1429, %v391
        %v1431 = vpop.permute.xlu0 %1430
        %1434 = vset.pattern.permute.xlu0 0
        %1435 = vperm.xlu0 %1434, %v392
        %v1436 = vpop.permute.xlu0 %1435
        %1439 = vset.pattern.permute.xlu0 0
        %1440 = vperm.xlu0 %1439, %v393
        %v1441 = vpop.permute.xlu0 %1440
        %1444 = vset.pattern.permute.xlu0 0
        %1445 = vperm.xlu0 %1444, %v394
        %v1446 = vpop.permute.xlu0 %1445
        %1449 = vset.pattern.permute.xlu0 0
        %1450 = vperm.xlu0 %1449, %v395
        %v1451 = vpop.permute.xlu0 %1450
        %1454 = vset.pattern.permute.xlu0 0
        %1455 = vperm.xlu0 %1454, %v396
        %v1456 = vpop.permute.xlu0 %1455
        %1459 = vset.pattern.permute.xlu0 0
        %1460 = vperm.xlu0 %1459, %v397
        %v1461 = vpop.permute.xlu0 %1460
        %v1495 = vunpack.c.l.b16 %v430
        %v1496 = vunpack.c.h.b16 %v430
        %v1497 = vunpack.c.l.b16 %v431
        %v1498 = vunpack.c.h.b16 %v431
        %v1499 = vunpack.c.l.b16 %v432
        %v1500 = vunpack.c.h.b16 %v432
        %v1501 = vunpack.c.l.b16 %v433
        %v1502 = vunpack.c.h.b16 %v433
        %v1503 = vunpack.c.l.b16 %v434
        %v1504 = vunpack.c.h.b16 %v434
        %v1505 = vunpack.c.l.b16 %v435
        %v1506 = vunpack.c.h.b16 %v435
        %v1507 = vunpack.c.l.b16 %v436
        %v1508 = vunpack.c.h.b16 %v436
        %v1509 = vunpack.c.l.b16 %v437
        %v1510 = vunpack.c.h.b16 %v437
        %v1511 = vunpack.c.l.b16 %v438
        %v1512 = vunpack.c.h.b16 %v438
        %v1513 = vunpack.c.l.b16 %v439
        %v1514 = vunpack.c.h.b16 %v439
        %v1515 = vunpack.c.l.b16 %v440
        %v1516 = vunpack.c.h.b16 %v440
        %v1517 = vunpack.c.l.b16 %v441
        %v1518 = vunpack.c.h.b16 %v441
        %v1519 = vunpack.c.l.b16 %v442
        %v1520 = vunpack.c.h.b16 %v442
        %v1521 = vunpack.c.l.b16 %v443
        %v1522 = vunpack.c.h.b16 %v443
        %v1523 = vunpack.c.l.b16 %v444
        %v1524 = vunpack.c.h.b16 %v444
        %v1525 = vunpack.c.l.b16 %v445
        %v1526 = vunpack.c.h.b16 %v445
        %v1527 = vunpack.c.l.b16 %v446
        %v1528 = vunpack.c.h.b16 %v446
        %v1529 = vunpack.c.l.b16 %v447
        %v1530 = vunpack.c.h.b16 %v447
        %v1531 = vunpack.c.l.b16 %v448
        %v1532 = vunpack.c.h.b16 %v448
        %v1533 = vunpack.c.l.b16 %v449
        %v1534 = vunpack.c.h.b16 %v449
        %v1535 = vunpack.c.l.b16 %v450
        %v1536 = vunpack.c.h.b16 %v450
        %v1537 = vunpack.c.l.b16 %v451
        %v1538 = vunpack.c.h.b16 %v451
        %v1539 = vunpack.c.l.b16 %v452
        %v1540 = vunpack.c.h.b16 %v452
        %v1541 = vunpack.c.l.b16 %v453
        %v1542 = vunpack.c.h.b16 %v453
        %v1543 = vunpack.c.l.b16 %v454
        %v1544 = vunpack.c.h.b16 %v454
        %v1545 = vunpack.c.l.b16 %v455
        %v1546 = vunpack.c.h.b16 %v455
        %v1547 = vunpack.c.l.b16 %v456
        %v1548 = vunpack.c.h.b16 %v456
        %v1549 = vunpack.c.l.b16 %v457
        %v1550 = vunpack.c.h.b16 %v457
        %v1551 = vunpack.c.l.b16 %v458
        %v1552 = vunpack.c.h.b16 %v458
        %v1553 = vunpack.c.l.b16 %v459
        %v1554 = vunpack.c.h.b16 %v459
        %v1555 = vunpack.c.l.b16 %v460
        %v1556 = vunpack.c.h.b16 %v460
        %v1557 = vunpack.c.l.b16 %v461
        %v1558 = vunpack.c.h.b16 %v461
        %v1559 = vpack.c.b16 %v1497, %v1495
        %v1560 = vpack.c.b16 %v1498, %v1496
        %v1561 = vpack.c.b16 %v1501, %v1499
        %v1562 = vpack.c.b16 %v1502, %v1500
        %v1563 = vpack.c.b16 %v1505, %v1503
        %v1564 = vpack.c.b16 %v1506, %v1504
        %v1565 = vpack.c.b16 %v1509, %v1507
        %v1566 = vpack.c.b16 %v1510, %v1508
        %v1567 = vpack.c.b16 %v1513, %v1511
        %v1568 = vpack.c.b16 %v1514, %v1512
        %v1569 = vpack.c.b16 %v1517, %v1515
        %v1570 = vpack.c.b16 %v1518, %v1516
        %v1571 = vpack.c.b16 %v1521, %v1519
        %v1572 = vpack.c.b16 %v1522, %v1520
        %v1573 = vpack.c.b16 %v1525, %v1523
        %v1574 = vpack.c.b16 %v1526, %v1524
        %v1575 = vpack.c.b16 %v1529, %v1527
        %v1576 = vpack.c.b16 %v1530, %v1528
        %v1577 = vpack.c.b16 %v1533, %v1531
        %v1578 = vpack.c.b16 %v1534, %v1532
        %v1579 = vpack.c.b16 %v1537, %v1535
        %v1580 = vpack.c.b16 %v1538, %v1536
        %v1581 = vpack.c.b16 %v1541, %v1539
        %v1582 = vpack.c.b16 %v1542, %v1540
        %v1583 = vpack.c.b16 %v1545, %v1543
        %v1584 = vpack.c.b16 %v1546, %v1544
        %v1585 = vpack.c.b16 %v1549, %v1547
        %v1586 = vpack.c.b16 %v1550, %v1548
        %v1587 = vpack.c.b16 %v1553, %v1551
        %v1588 = vpack.c.b16 %v1554, %v1552
        %v1589 = vpack.c.b16 %v1557, %v1555
        %v1590 = vpack.c.b16 %v1558, %v1556
        %1623 = vmatpush.bf16.msra.mxu0 %v1294
        %1624 = vmatpush.bf16.msra.mxu0 %v1293
        %1625 = vmatpush.bf16.msra.mxu0 %v1292
        %1626 = vmatpush.bf16.msra.mxu0 %v1291
        %1627 = vmatpush.bf16.msra.mxu0 %v1290
        %1628 = vmatpush.bf16.msra.mxu0 %v1289
        %1629 = vmatpush.bf16.msra.mxu0 %v1288
        %1630 = vmatpush.bf16.msra.mxu0 %v1287
        %1631 = vmatmul.bf16.gmra.mxu0 %v1559
        %v1632 = vpop.f32.mrf.mxu0
        %v1633 = vadd.f32 %v1306, %v1632
        %v1634 = vpop.f32.mrf.mxu0
        %v1635 = vadd.f32 %v1311, %v1634
        %1636 = vmatmul.bf16.gmra.mxu0 %v1561
        %v1637 = vpop.f32.mrf.mxu0
        %v1638 = vadd.f32 %v1316, %v1637
        %v1639 = vpop.f32.mrf.mxu0
        %v1640 = vadd.f32 %v1321, %v1639
        %1641 = vmatmul.bf16.gmra.mxu0 %v1563
        %v1642 = vpop.f32.mrf.mxu0
        %v1643 = vadd.f32 %v1326, %v1642
        %v1644 = vpop.f32.mrf.mxu0
        %v1645 = vadd.f32 %v1331, %v1644
        %1646 = vmatmul.bf16.gmra.mxu0 %v1565
        %v1647 = vpop.f32.mrf.mxu0
        %v1648 = vadd.f32 %v1336, %v1647
        %v1649 = vpop.f32.mrf.mxu0
        %v1650 = vadd.f32 %v1341, %v1649
        %1651 = vmatmul.bf16.gmra.mxu0 %v1567
        %v1652 = vpop.f32.mrf.mxu0
        %v1653 = vadd.f32 %v1346, %v1652
        %v1654 = vpop.f32.mrf.mxu0
        %v1655 = vadd.f32 %v1351, %v1654
        %1656 = vmatmul.bf16.gmra.mxu0 %v1569
        %v1657 = vpop.f32.mrf.mxu0
        %v1658 = vadd.f32 %v1356, %v1657
        %v1659 = vpop.f32.mrf.mxu0
        %v1660 = vadd.f32 %v1361, %v1659
        %1661 = vmatmul.bf16.gmra.mxu0 %v1571
        %v1662 = vpop.f32.mrf.mxu0
        %v1663 = vadd.f32 %v1366, %v1662
        %v1664 = vpop.f32.mrf.mxu0
        %v1665 = vadd.f32 %v1371, %v1664
        %1666 = vmatmul.bf16.gmra.mxu0 %v1573
        %v1667 = vpop.f32.mrf.mxu0
        %v1668 = vadd.f32 %v1376, %v1667
        %v1669 = vpop.f32.mrf.mxu0
        %v1670 = vadd.f32 %v1381, %v1669
        %1671 = vmatmul.bf16.gmra.mxu0 %v1575
        %v1672 = vpop.f32.mrf.mxu0
        %v1673 = vadd.f32 %v1386, %v1672
        %v1674 = vpop.f32.mrf.mxu0
        %v1675 = vadd.f32 %v1391, %v1674
        %1676 = vmatmul.bf16.gmra.mxu0 %v1577
        %v1677 = vpop.f32.mrf.mxu0
        %v1678 = vadd.f32 %v1396, %v1677
        %v1679 = vpop.f32.mrf.mxu0
        %v1680 = vadd.f32 %v1401, %v1679
        %1681 = vmatmul.bf16.gmra.mxu0 %v1579
        %v1682 = vpop.f32.mrf.mxu0
        %v1683 = vadd.f32 %v1406, %v1682
        %v1684 = vpop.f32.mrf.mxu0
        %v1685 = vadd.f32 %v1411, %v1684
        %1686 = vmatmul.bf16.gmra.mxu0 %v1581
        %v1687 = vpop.f32.mrf.mxu0
        %v1688 = vadd.f32 %v1416, %v1687
        %v1689 = vpop.f32.mrf.mxu0
        %v1690 = vadd.f32 %v1421, %v1689
        %1691 = vmatmul.bf16.gmra.mxu0 %v1583
        %v1692 = vpop.f32.mrf.mxu0
        %v1693 = vadd.f32 %v1426, %v1692
        %v1694 = vpop.f32.mrf.mxu0
        %v1695 = vadd.f32 %v1431, %v1694
        %1696 = vmatmul.bf16.gmra.mxu0 %v1585
        %v1697 = vpop.f32.mrf.mxu0
        %v1698 = vadd.f32 %v1436, %v1697
        %v1699 = vpop.f32.mrf.mxu0
        %v1700 = vadd.f32 %v1441, %v1699
        %1701 = vmatmul.bf16.gmra.mxu0 %v1587
        %v1702 = vpop.f32.mrf.mxu0
        %v1703 = vadd.f32 %v1446, %v1702
        %v1704 = vpop.f32.mrf.mxu0
        %v1705 = vadd.f32 %v1451, %v1704
        %1706 = vmatmul.bf16.gmra.mxu0 %v1589
        %v1707 = vpop.f32.mrf.mxu0
        %v1708 = vadd.f32 %v1456, %v1707
        %v1709 = vpop.f32.mrf.mxu0
        %v1710 = vadd.f32 %v1461, %v1709
        %1711 = vdwg.mxu0
        %1712 = vmatpush.bf16.msra.mxu0 %v1302
        %1713 = vmatpush.bf16.msra.mxu0 %v1301
        %1714 = vmatpush.bf16.msra.mxu0 %v1300
        %1715 = vmatpush.bf16.msra.mxu0 %v1299
        %1716 = vmatpush.bf16.msra.mxu0 %v1298
        %1717 = vmatpush.bf16.msra.mxu0 %v1297
        %1718 = vmatpush.bf16.msra.mxu0 %v1296
        %1719 = vmatpush.bf16.msra.mxu0 %v1295
        %1720 = vmatmul.bf16.gmra.mxu0 %v1560
        %v1721 = vpop.f32.mrf.mxu0
        %v1722 = vadd.f32 %v1633, %v1721
        %v1723 = vpop.f32.mrf.mxu0
        %v1724 = vadd.f32 %v1635, %v1723
        %1725 = vmatmul.bf16.gmra.mxu0 %v1562
        %v1726 = vpop.f32.mrf.mxu0
        %v1727 = vadd.f32 %v1638, %v1726
        %v1728 = vpop.f32.mrf.mxu0
        %v1729 = vadd.f32 %v1640, %v1728
        %1730 = vmatmul.bf16.gmra.mxu0 %v1564
        %v1731 = vpop.f32.mrf.mxu0
        %v1732 = vadd.f32 %v1643, %v1731
        %v1733 = vpop.f32.mrf.mxu0
        %v1734 = vadd.f32 %v1645, %v1733
        %1735 = vmatmul.bf16.gmra.mxu0 %v1566
        %v1736 = vpop.f32.mrf.mxu0
        %v1737 = vadd.f32 %v1648, %v1736
        %v1738 = vpop.f32.mrf.mxu0
        %v1739 = vadd.f32 %v1650, %v1738
        %1740 = vmatmul.bf16.gmra.mxu0 %v1568
        %v1741 = vpop.f32.mrf.mxu0
        %v1742 = vadd.f32 %v1653, %v1741
        %v1743 = vpop.f32.mrf.mxu0
        %v1744 = vadd.f32 %v1655, %v1743
        %1745 = vmatmul.bf16.gmra.mxu0 %v1570
        %v1746 = vpop.f32.mrf.mxu0
        %v1747 = vadd.f32 %v1658, %v1746
        %v1748 = vpop.f32.mrf.mxu0
        %v1749 = vadd.f32 %v1660, %v1748
        %1750 = vmatmul.bf16.gmra.mxu0 %v1572
        %v1751 = vpop.f32.mrf.mxu0
        %v1752 = vadd.f32 %v1663, %v1751
        %v1753 = vpop.f32.mrf.mxu0
        %v1754 = vadd.f32 %v1665, %v1753
        %1755 = vmatmul.bf16.gmra.mxu0 %v1574
        %v1756 = vpop.f32.mrf.mxu0
        %v1757 = vadd.f32 %v1668, %v1756
        %v1758 = vpop.f32.mrf.mxu0
        %v1759 = vadd.f32 %v1670, %v1758
        %1760 = vmatmul.bf16.gmra.mxu0 %v1576
        %v1761 = vpop.f32.mrf.mxu0
        %v1762 = vadd.f32 %v1673, %v1761
        %v1763 = vpop.f32.mrf.mxu0
        %v1764 = vadd.f32 %v1675, %v1763
        %1765 = vmatmul.bf16.gmra.mxu0 %v1578
        %v1766 = vpop.f32.mrf.mxu0
        %v1767 = vadd.f32 %v1678, %v1766
        %v1768 = vpop.f32.mrf.mxu0
        %v1769 = vadd.f32 %v1680, %v1768
        %1770 = vmatmul.bf16.gmra.mxu0 %v1580
        %v1771 = vpop.f32.mrf.mxu0
        %v1772 = vadd.f32 %v1683, %v1771
        %v1773 = vpop.f32.mrf.mxu0
        %v1774 = vadd.f32 %v1685, %v1773
        %1775 = vmatmul.bf16.gmra.mxu0 %v1582
        %v1776 = vpop.f32.mrf.mxu0
        %v1777 = vadd.f32 %v1688, %v1776
        %v1778 = vpop.f32.mrf.mxu0
        %v1779 = vadd.f32 %v1690, %v1778
        %1780 = vmatmul.bf16.gmra.mxu0 %v1584
        %v1781 = vpop.f32.mrf.mxu0
        %v1782 = vadd.f32 %v1693, %v1781
        %v1783 = vpop.f32.mrf.mxu0
        %v1784 = vadd.f32 %v1695, %v1783
        %1785 = vmatmul.bf16.gmra.mxu0 %v1586
        %v1786 = vpop.f32.mrf.mxu0
        %v1787 = vadd.f32 %v1698, %v1786
        %v1788 = vpop.f32.mrf.mxu0
        %v1789 = vadd.f32 %v1700, %v1788
        %1790 = vmatmul.bf16.gmra.mxu0 %v1588
        %v1791 = vpop.f32.mrf.mxu0
        %v1792 = vadd.f32 %v1703, %v1791
        %v1793 = vpop.f32.mrf.mxu0
        %v1794 = vadd.f32 %v1705, %v1793
        %1795 = vmatmul.bf16.gmra.mxu0 %v1590
        %v1796 = vpop.f32.mrf.mxu0
        %v1797 = vadd.f32 %v1708, %v1796
        %v1798 = vpop.f32.mrf.mxu0
        %v1799 = vadd.f32 %v1710, %v1798
        %1800 = vdwg.mxu0
        %v1801 = vmul.f32 %v1722, %v1722
        %v1802 = vmul.f32 %v1724, %v1724
        %v1803 = vmul.f32 %v1727, %v1727
        %v1804 = vmul.f32 %v1729, %v1729
        %v1805 = vmul.f32 %v1732, %v1732
        %v1806 = vmul.f32 %v1734, %v1734
        %v1807 = vmul.f32 %v1737, %v1737
        %v1808 = vmul.f32 %v1739, %v1739
        %v1809 = vmul.f32 %v1742, %v1742
        %v1810 = vmul.f32 %v1744, %v1744
        %v1811 = vmul.f32 %v1747, %v1747
        %v1812 = vmul.f32 %v1749, %v1749
        %v1813 = vmul.f32 %v1752, %v1752
        %v1814 = vmul.f32 %v1754, %v1754
        %v1815 = vmul.f32 %v1757, %v1757
        %v1816 = vmul.f32 %v1759, %v1759
        %v1817 = vmul.f32 %v1762, %v1762
        %v1818 = vmul.f32 %v1764, %v1764
        %v1819 = vmul.f32 %v1767, %v1767
        %v1820 = vmul.f32 %v1769, %v1769
        %v1821 = vmul.f32 %v1772, %v1772
        %v1822 = vmul.f32 %v1774, %v1774
        %v1823 = vmul.f32 %v1777, %v1777
        %v1824 = vmul.f32 %v1779, %v1779
        %v1825 = vmul.f32 %v1782, %v1782
        %v1826 = vmul.f32 %v1784, %v1784
        %v1827 = vmul.f32 %v1787, %v1787
        %v1828 = vmul.f32 %v1789, %v1789
        %v1829 = vmul.f32 %v1792, %v1792
        %v1830 = vmul.f32 %v1794, %v1794
        %v1831 = vmul.f32 %v1797, %v1797
        %v1832 = vmul.f32 %v1799, %v1799
        %v1833 = vmul.f32 %v1722, %v1801
        %v1834 = vmul.f32 %v1724, %v1802
        %v1835 = vmul.f32 %v1727, %v1803
        %v1836 = vmul.f32 %v1729, %v1804
        %v1837 = vmul.f32 %v1732, %v1805
        %v1838 = vmul.f32 %v1734, %v1806
        %v1839 = vmul.f32 %v1737, %v1807
        %v1840 = vmul.f32 %v1739, %v1808
        %v1841 = vmul.f32 %v1742, %v1809
        %v1842 = vmul.f32 %v1744, %v1810
        %v1843 = vmul.f32 %v1747, %v1811
        %v1844 = vmul.f32 %v1749, %v1812
        %v1845 = vmul.f32 %v1752, %v1813
        %v1846 = vmul.f32 %v1754, %v1814
        %v1847 = vmul.f32 %v1757, %v1815
        %v1848 = vmul.f32 %v1759, %v1816
        %v1849 = vmul.f32 %v1762, %v1817
        %v1850 = vmul.f32 %v1764, %v1818
        %v1851 = vmul.f32 %v1767, %v1819
        %v1852 = vmul.f32 %v1769, %v1820
        %v1853 = vmul.f32 %v1772, %v1821
        %v1854 = vmul.f32 %v1774, %v1822
        %v1855 = vmul.f32 %v1777, %v1823
        %v1856 = vmul.f32 %v1779, %v1824
        %v1857 = vmul.f32 %v1782, %v1825
        %v1858 = vmul.f32 %v1784, %v1826
        %v1859 = vmul.f32 %v1787, %v1827
        %v1860 = vmul.f32 %v1789, %v1828
        %v1861 = vmul.f32 %v1792, %v1829
        %v1862 = vmul.f32 %v1794, %v1830
        %v1863 = vmul.f32 %v1797, %v1831
        %v1864 = vmul.f32 %v1799, %v1832
        %v1865 = vmul.f32 %v1833, 0.044715
        %v1866 = vmul.f32 %v1834, 0.044715
        %v1867 = vmul.f32 %v1835, 0.044715
        %v1868 = vmul.f32 %v1836, 0.044715
        %v1869 = vmul.f32 %v1837, 0.044715
        %v1870 = vmul.f32 %v1838, 0.044715
        %v1871 = vmul.f32 %v1839, 0.044715
        %v1872 = vmul.f32 %v1840, 0.044715
        %v1873 = vmul.f32 %v1841, 0.044715
        %v1874 = vmul.f32 %v1842, 0.044715
        %v1875 = vmul.f32 %v1843, 0.044715
        %v1876 = vmul.f32 %v1844, 0.044715
        %v1877 = vmul.f32 %v1845, 0.044715
        %v1878 = vmul.f32 %v1846, 0.044715
        %v1879 = vmul.f32 %v1847, 0.044715
        %v1880 = vmul.f32 %v1848, 0.044715
        %v1881 = vmul.f32 %v1849, 0.044715
        %v1882 = vmul.f32 %v1850, 0.044715
        %v1883 = vmul.f32 %v1851, 0.044715
        %v1884 = vmul.f32 %v1852, 0.044715
        %v1885 = vmul.f32 %v1853, 0.044715
        %v1886 = vmul.f32 %v1854, 0.044715
        %v1887 = vmul.f32 %v1855, 0.044715
        %v1888 = vmul.f32 %v1856, 0.044715
        %v1889 = vmul.f32 %v1857, 0.044715
        %v1890 = vmul.f32 %v1858, 0.044715
        %v1891 = vmul.f32 %v1859, 0.044715
        %v1892 = vmul.f32 %v1860, 0.044715
        %v1893 = vmul.f32 %v1861, 0.044715
        %v1894 = vmul.f32 %v1862, 0.044715
        %v1895 = vmul.f32 %v1863, 0.044715
        %v1896 = vmul.f32 %v1864, 0.044715
        %v1897 = vadd.f32 %v1722, %v1865
        %v1898 = vadd.f32 %v1724, %v1866
        %v1899 = vadd.f32 %v1727, %v1867
        %v1900 = vadd.f32 %v1729, %v1868
        %v1901 = vadd.f32 %v1732, %v1869
        %v1902 = vadd.f32 %v1734, %v1870
        %v1903 = vadd.f32 %v1737, %v1871
        %v1904 = vadd.f32 %v1739, %v1872
        %v1905 = vadd.f32 %v1742, %v1873
        %v1906 = vadd.f32 %v1744, %v1874
        %v1907 = vadd.f32 %v1747, %v1875
        %v1908 = vadd.f32 %v1749, %v1876
        %v1909 = vadd.f32 %v1752, %v1877
        %v1910 = vadd.f32 %v1754, %v1878
        %v1911 = vadd.f32 %v1757, %v1879
        %v1912 = vadd.f32 %v1759, %v1880
        %v1913 = vadd.f32 %v1762, %v1881
        %v1914 = vadd.f32 %v1764, %v1882
        %v1915 = vadd.f32 %v1767, %v1883
        %v1916 = vadd.f32 %v1769, %v1884
        %v1917 = vadd.f32 %v1772, %v1885
        %v1918 = vadd.f32 %v1774, %v1886
        %v1919 = vadd.f32 %v1777, %v1887
        %v1920 = vadd.f32 %v1779, %v1888
        %v1921 = vadd.f32 %v1782, %v1889
        %v1922 = vadd.f32 %v1784, %v1890
        %v1923 = vadd.f32 %v1787, %v1891
        %v1924 = vadd.f32 %v1789, %v1892
        %v1925 = vadd.f32 %v1792, %v1893
        %v1926 = vadd.f32 %v1794, %v1894
        %v1927 = vadd.f32 %v1797, %v1895
        %v1928 = vadd.f32 %v1799, %v1896
        %v1929 = vmul.f32 %v1897, 0.7978846
        %v1930 = vmul.f32 %v1898, 0.7978846
        %v1931 = vmul.f32 %v1899, 0.7978846
        %v1932 = vmul.f32 %v1900, 0.7978846
        %v1933 = vmul.f32 %v1901, 0.7978846
        %v1934 = vmul.f32 %v1902, 0.7978846
        %v1935 = vmul.f32 %v1903, 0.7978846
        %v1936 = vmul.f32 %v1904, 0.7978846
        %v1937 = vmul.f32 %v1905, 0.7978846
        %v1938 = vmul.f32 %v1906, 0.7978846
        %v1939 = vmul.f32 %v1907, 0.7978846
        %v1940 = vmul.f32 %v1908, 0.7978846
        %v1941 = vmul.f32 %v1909, 0.7978846
        %v1942 = vmul.f32 %v1910, 0.7978846
        %v1943 = vmul.f32 %v1911, 0.7978846
        %v1944 = vmul.f32 %v1912, 0.7978846
        %v1945 = vmul.f32 %v1913, 0.7978846
        %v1946 = vmul.f32 %v1914, 0.7978846
        %v1947 = vmul.f32 %v1915, 0.7978846
        %v1948 = vmul.f32 %v1916, 0.7978846
        %v1949 = vmul.f32 %v1917, 0.7978846
        %v1950 = vmul.f32 %v1918, 0.7978846
        %v1951 = vmul.f32 %v1919, 0.7978846
        %v1952 = vmul.f32 %v1920, 0.7978846
        %v1953 = vmul.f32 %v1921, 0.7978846
        %v1954 = vmul.f32 %v1922, 0.7978846
        %v1955 = vmul.f32 %v1923, 0.7978846
        %v1956 = vmul.f32 %v1924, 0.7978846
        %v1957 = vmul.f32 %v1925, 0.7978846
        %v1958 = vmul.f32 %v1926, 0.7978846
        %v1959 = vmul.f32 %v1927, 0.7978846
        %v1960 = vmul.f32 %v1928, 0.7978846
        %v1961 = vtanh.pop %v1929
        %v1962 = vtanh.pop %v1930
        %v1963 = vtanh.pop %v1931
        %v1964 = vtanh.pop %v1932
        %v1965 = vtanh.pop %v1933
        %v1966 = vtanh.pop %v1934
        %v1967 = vtanh.pop %v1935
        %v1968 = vtanh.pop %v1936
        %v1969 = vtanh.pop %v1937
        %v1970 = vtanh.pop %v1938
        %v1971 = vtanh.pop %v1939
        %v1972 = vtanh.pop %v1940
        %v1973 = vtanh.pop %v1941
        %v1974 = vtanh.pop %v1942
        %v1975 = vtanh.pop %v1943
        %v1976 = vtanh.pop %v1944
        %v1977 = vtanh.pop %v1945
        %v1978 = vtanh.pop %v1946
        %v1979 = vtanh.pop %v1947
        %v1980 = vtanh.pop %v1948
        %v1981 = vtanh.pop %v1949
        %v1982 = vtanh.pop %v1950
        %v1983 = vtanh.pop %v1951
        %v1984 = vtanh.pop %v1952
        %v1985 = vtanh.pop %v1953
        %v1986 = vtanh.pop %v1954
        %v1987 = vtanh.pop %v1955
        %v1988 = vtanh.pop %v1956
        %v1989 = vtanh.pop %v1957
        %v1990 = vtanh.pop %v1958
        %v1991 = vtanh.pop %v1959
        %v1992 = vtanh.pop %v1960
        %v1993 = vadd.f32 %v1961, 1.0
        %v1994 = vadd.f32 %v1962, 1.0
        %v1995 = vadd.f32 %v1963, 1.0
        %v1996 = vadd.f32 %v1964, 1.0
        %v1997 = vadd.f32 %v1965, 1.0
        %v1998 = vadd.f32 %v1966, 1.0
        %v1999 = vadd.f32 %v1967, 1.0
        %v2000 = vadd.f32 %v1968, 1.0
        %v2001 = vadd.f32 %v1969, 1.0
        %v2002 = vadd.f32 %v1970, 1.0
        %v2003 = vadd.f32 %v1971, 1.0
        %v2004 = vadd.f32 %v1972, 1.0
        %v2005 = vadd.f32 %v1973, 1.0
        %v2006 = vadd.f32 %v1974, 1.0
        %v2007 = vadd.f32 %v1975, 1.0
        %v2008 = vadd.f32 %v1976, 1.0
        %v2009 = vadd.f32 %v1977, 1.0
        %v2010 = vadd.f32 %v1978, 1.0
        %v2011 = vadd.f32 %v1979, 1.0
        %v2012 = vadd.f32 %v1980, 1.0
        %v2013 = vadd.f32 %v1981, 1.0
        %v2014 = vadd.f32 %v1982, 1.0
        %v2015 = vadd.f32 %v1983, 1.0
        %v2016 = vadd.f32 %v1984, 1.0
        %v2017 = vadd.f32 %v1985, 1.0
        %v2018 = vadd.f32 %v1986, 1.0
        %v2019 = vadd.f32 %v1987, 1.0
        %v2020 = vadd.f32 %v1988, 1.0
        %v2021 = vadd.f32 %v1989, 1.0
        %v2022 = vadd.f32 %v1990, 1.0
        %v2023 = vadd.f32 %v1991, 1.0
        %v2024 = vadd.f32 %v1992, 1.0
        %v2025 = vmul.f32 %v1993, 0.5
        %v2026 = vmul.f32 %v1994, 0.5
        %v2027 = vmul.f32 %v1995, 0.5
        %v2028 = vmul.f32 %v1996, 0.5
        %v2029 = vmul.f32 %v1997, 0.5
        %v2030 = vmul.f32 %v1998, 0.5
        %v2031 = vmul.f32 %v1999, 0.5
        %v2032 = vmul.f32 %v2000, 0.5
        %v2033 = vmul.f32 %v2001, 0.5
        %v2034 = vmul.f32 %v2002, 0.5
        %v2035 = vmul.f32 %v2003, 0.5
        %v2036 = vmul.f32 %v2004, 0.5
        %v2037 = vmul.f32 %v2005, 0.5
        %v2038 = vmul.f32 %v2006, 0.5
        %v2039 = vmul.f32 %v2007, 0.5
        %v2040 = vmul.f32 %v2008, 0.5
        %v2041 = vmul.f32 %v2009, 0.5
        %v2042 = vmul.f32 %v2010, 0.5
        %v2043 = vmul.f32 %v2011, 0.5
        %v2044 = vmul.f32 %v2012, 0.5
        %v2045 = vmul.f32 %v2013, 0.5
        %v2046 = vmul.f32 %v2014, 0.5
        %v2047 = vmul.f32 %v2015, 0.5
        %v2048 = vmul.f32 %v2016, 0.5
        %v2049 = vmul.f32 %v2017, 0.5
        %v2050 = vmul.f32 %v2018, 0.5
        %v2051 = vmul.f32 %v2019, 0.5
        %v2052 = vmul.f32 %v2020, 0.5
        %v2053 = vmul.f32 %v2021, 0.5
        %v2054 = vmul.f32 %v2022, 0.5
        %v2055 = vmul.f32 %v2023, 0.5
        %v2056 = vmul.f32 %v2024, 0.5
        %v2057 = vmul.f32 %v1722, %v2025
        %v2058 = vmul.f32 %v1724, %v2026
        %v2059 = vmul.f32 %v1727, %v2027
        %v2060 = vmul.f32 %v1729, %v2028
        %v2061 = vmul.f32 %v1732, %v2029
        %v2062 = vmul.f32 %v1734, %v2030
        %v2063 = vmul.f32 %v1737, %v2031
        %v2064 = vmul.f32 %v1739, %v2032
        %v2065 = vmul.f32 %v1742, %v2033
        %v2066 = vmul.f32 %v1744, %v2034
        %v2067 = vmul.f32 %v1747, %v2035
        %v2068 = vmul.f32 %v1749, %v2036
        %v2069 = vmul.f32 %v1752, %v2037
        %v2070 = vmul.f32 %v1754, %v2038
        %v2071 = vmul.f32 %v1757, %v2039
        %v2072 = vmul.f32 %v1759, %v2040
        %v2073 = vmul.f32 %v1762, %v2041
        %v2074 = vmul.f32 %v1764, %v2042
        %v2075 = vmul.f32 %v1767, %v2043
        %v2076 = vmul.f32 %v1769, %v2044
        %v2077 = vmul.f32 %v1772, %v2045
        %v2078 = vmul.f32 %v1774, %v2046
        %v2079 = vmul.f32 %v1777, %v2047
        %v2080 = vmul.f32 %v1779, %v2048
        %v2081 = vmul.f32 %v1782, %v2049
        %v2082 = vmul.f32 %v1784, %v2050
        %v2083 = vmul.f32 %v1787, %v2051
        %v2084 = vmul.f32 %v1789, %v2052
        %v2085 = vmul.f32 %v1792, %v2053
        %v2086 = vmul.f32 %v1794, %v2054
        %v2087 = vmul.f32 %v1797, %v2055
        %v2088 = vmul.f32 %v1799, %v2056
        %v2089 = vpack.c.bf16 %v2058, %v2057
        %v2090 = vpack.c.bf16 %v2060, %v2059
        %v2091 = vpack.c.bf16 %v2062, %v2061
        %v2092 = vpack.c.bf16 %v2064, %v2063
        %v2093 = vpack.c.bf16 %v2066, %v2065
        %v2094 = vpack.c.bf16 %v2068, %v2067
        %v2095 = vpack.c.bf16 %v2070, %v2069
        %v2096 = vpack.c.bf16 %v2072, %v2071
        %v2097 = vpack.c.bf16 %v2074, %v2073
        %v2098 = vpack.c.bf16 %v2076, %v2075
        %v2099 = vpack.c.bf16 %v2078, %v2077
        %v2100 = vpack.c.bf16 %v2080, %v2079
        %v2101 = vpack.c.bf16 %v2082, %v2081
        %v2102 = vpack.c.bf16 %v2084, %v2083
        %v2103 = vpack.c.bf16 %v2086, %v2085
        %v2104 = vpack.c.bf16 %v2088, %v2087
        %v2137 = vunpack.c.l.b16 %v462
        %v2138 = vunpack.c.h.b16 %v462
        %v2139 = vunpack.c.l.b16 %v463
        %v2140 = vunpack.c.h.b16 %v463
        %v2141 = vunpack.c.l.b16 %v464
        %v2142 = vunpack.c.h.b16 %v464
        %v2143 = vunpack.c.l.b16 %v465
        %v2144 = vunpack.c.h.b16 %v465
        %v2145 = vunpack.c.l.b16 %v466
        %v2146 = vunpack.c.h.b16 %v466
        %v2147 = vunpack.c.l.b16 %v467
        %v2148 = vunpack.c.h.b16 %v467
        %v2149 = vunpack.c.l.b16 %v468
        %v2150 = vunpack.c.h.b16 %v468
        %v2151 = vunpack.c.l.b16 %v469
        %v2152 = vunpack.c.h.b16 %v469
        %v2153 = vunpack.c.l.b16 %v470
        %v2154 = vunpack.c.h.b16 %v470
        %v2155 = vunpack.c.l.b16 %v471
        %v2156 = vunpack.c.h.b16 %v471
        %v2157 = vunpack.c.l.b16 %v472
        %v2158 = vunpack.c.h.b16 %v472
        %v2159 = vunpack.c.l.b16 %v473
        %v2160 = vunpack.c.h.b16 %v473
        %v2161 = vunpack.c.l.b16 %v474
        %v2162 = vunpack.c.h.b16 %v474
        %v2163 = vunpack.c.l.b16 %v475
        %v2164 = vunpack.c.h.b16 %v475
        %v2165 = vunpack.c.l.b16 %v476
        %v2166 = vunpack.c.h.b16 %v476
        %v2167 = vunpack.c.l.b16 %v477
        %v2168 = vunpack.c.h.b16 %v477
        %v2169 = vunpack.c.l.b16 %v478
        %v2170 = vunpack.c.h.b16 %v478
        %v2171 = vunpack.c.l.b16 %v479
        %v2172 = vunpack.c.h.b16 %v479
        %v2173 = vunpack.c.l.b16 %v480
        %v2174 = vunpack.c.h.b16 %v480
        %v2175 = vunpack.c.l.b16 %v481
        %v2176 = vunpack.c.h.b16 %v481
        %v2177 = vunpack.c.l.b16 %v482
        %v2178 = vunpack.c.h.b16 %v482
        %v2179 = vunpack.c.l.b16 %v483
        %v2180 = vunpack.c.h.b16 %v483
        %v2181 = vunpack.c.l.b16 %v484
        %v2182 = vunpack.c.h.b16 %v484
        %v2183 = vunpack.c.l.b16 %v485
        %v2184 = vunpack.c.h.b16 %v485
        %v2185 = vunpack.c.l.b16 %v486
        %v2186 = vunpack.c.h.b16 %v486
        %v2187 = vunpack.c.l.b16 %v487
        %v2188 = vunpack.c.h.b16 %v487
        %v2189 = vunpack.c.l.b16 %v488
        %v2190 = vunpack.c.h.b16 %v488
        %v2191 = vunpack.c.l.b16 %v489
        %v2192 = vunpack.c.h.b16 %v489
        %v2193 = vunpack.c.l.b16 %v490
        %v2194 = vunpack.c.h.b16 %v490
        %v2195 = vunpack.c.l.b16 %v491
        %v2196 = vunpack.c.h.b16 %v491
        %v2197 = vunpack.c.l.b16 %v492
        %v2198 = vunpack.c.h.b16 %v492
        %v2199 = vunpack.c.l.b16 %v493
        %v2200 = vunpack.c.h.b16 %v493
        %v2201 = vpack.c.b16 %v2139, %v2137
        %v2202 = vpack.c.b16 %v2140, %v2138
        %v2203 = vpack.c.b16 %v2143, %v2141
        %v2204 = vpack.c.b16 %v2144, %v2142
        %v2205 = vpack.c.b16 %v2147, %v2145
        %v2206 = vpack.c.b16 %v2148, %v2146
        %v2207 = vpack.c.b16 %v2151, %v2149
        %v2208 = vpack.c.b16 %v2152, %v2150
        %v2209 = vpack.c.b16 %v2155, %v2153
        %v2210 = vpack.c.b16 %v2156, %v2154
        %v2211 = vpack.c.b16 %v2159, %v2157
        %v2212 = vpack.c.b16 %v2160, %v2158
        %v2213 = vpack.c.b16 %v2163, %v2161
        %v2214 = vpack.c.b16 %v2164, %v2162
        %v2215 = vpack.c.b16 %v2167, %v2165
        %v2216 = vpack.c.b16 %v2168, %v2166
        %v2217 = vpack.c.b16 %v2171, %v2169
        %v2218 = vpack.c.b16 %v2172, %v2170
        %v2219 = vpack.c.b16 %v2175, %v2173
        %v2220 = vpack.c.b16 %v2176, %v2174
        %v2221 = vpack.c.b16 %v2179, %v2177
        %v2222 = vpack.c.b16 %v2180, %v2178
        %v2223 = vpack.c.b16 %v2183, %v2181
        %v2224 = vpack.c.b16 %v2184, %v2182
        %v2225 = vpack.c.b16 %v2187, %v2185
        %v2226 = vpack.c.b16 %v2188, %v2186
        %v2227 = vpack.c.b16 %v2191, %v2189
        %v2228 = vpack.c.b16 %v2192, %v2190
        %v2229 = vpack.c.b16 %v2195, %v2193
        %v2230 = vpack.c.b16 %v2196, %v2194
        %v2231 = vpack.c.b16 %v2199, %v2197
        %v2232 = vpack.c.b16 %v2200, %v2198
        %2265 = vmatpush.bf16.msra.mxu0 %v2096
        %2266 = vmatpush.bf16.msra.mxu0 %v2095
        %2267 = vmatpush.bf16.msra.mxu0 %v2094
        %2268 = vmatpush.bf16.msra.mxu0 %v2093
        %2269 = vmatpush.bf16.msra.mxu0 %v2092
        %2270 = vmatpush.bf16.msra.mxu0 %v2091
        %2271 = vmatpush.bf16.msra.mxu0 %v2090
        %2272 = vmatpush.bf16.msra.mxu0 %v2089
        %2273 = vmatmul.bf16.gmra.mxu0 %v2201
        %v2274 = vpop.f32.mrf.mxu0
        %v2275 = vadd.f32 0.0, %v2274
        %v2276 = vpop.f32.mrf.mxu0
        %v2277 = vadd.f32 0.0, %v2276
        %2278 = vmatmul.bf16.gmra.mxu0 %v2203
        %v2279 = vpop.f32.mrf.mxu0
        %v2280 = vadd.f32 0.0, %v2279
        %v2281 = vpop.f32.mrf.mxu0
        %v2282 = vadd.f32 0.0, %v2281
        %2283 = vmatmul.bf16.gmra.mxu0 %v2205
        %v2284 = vpop.f32.mrf.mxu0
        %v2285 = vadd.f32 0.0, %v2284
        %v2286 = vpop.f32.mrf.mxu0
        %v2287 = vadd.f32 0.0, %v2286
        %2288 = vmatmul.bf16.gmra.mxu0 %v2207
        %v2289 = vpop.f32.mrf.mxu0
        %v2290 = vadd.f32 0.0, %v2289
        %v2291 = vpop.f32.mrf.mxu0
        %v2292 = vadd.f32 0.0, %v2291
        %2293 = vmatmul.bf16.gmra.mxu0 %v2209
        %v2294 = vpop.f32.mrf.mxu0
        %v2295 = vadd.f32 0.0, %v2294
        %v2296 = vpop.f32.mrf.mxu0
        %v2297 = vadd.f32 0.0, %v2296
        %2298 = vmatmul.bf16.gmra.mxu0 %v2211
        %v2299 = vpop.f32.mrf.mxu0
        %v2300 = vadd.f32 0.0, %v2299
        %v2301 = vpop.f32.mrf.mxu0
        %v2302 = vadd.f32 0.0, %v2301
        %2303 = vmatmul.bf16.gmra.mxu0 %v2213
        %v2304 = vpop.f32.mrf.mxu0
        %v2305 = vadd.f32 0.0, %v2304
        %v2306 = vpop.f32.mrf.mxu0
        %v2307 = vadd.f32 0.0, %v2306
        %2308 = vmatmul.bf16.gmra.mxu0 %v2215
        %v2309 = vpop.f32.mrf.mxu0
        %v2310 = vadd.f32 0.0, %v2309
        %v2311 = vpop.f32.mrf.mxu0
        %v2312 = vadd.f32 0.0, %v2311
        %2313 = vmatmul.bf16.gmra.mxu0 %v2217
        %v2314 = vpop.f32.mrf.mxu0
        %v2315 = vadd.f32 0.0, %v2314
        %v2316 = vpop.f32.mrf.mxu0
        %v2317 = vadd.f32 0.0, %v2316
        %2318 = vmatmul.bf16.gmra.mxu0 %v2219
        %v2319 = vpop.f32.mrf.mxu0
        %v2320 = vadd.f32 0.0, %v2319
        %v2321 = vpop.f32.mrf.mxu0
        %v2322 = vadd.f32 0.0, %v2321
        %2323 = vmatmul.bf16.gmra.mxu0 %v2221
        %v2324 = vpop.f32.mrf.mxu0
        %v2325 = vadd.f32 0.0, %v2324
        %v2326 = vpop.f32.mrf.mxu0
        %v2327 = vadd.f32 0.0, %v2326
        %2328 = vmatmul.bf16.gmra.mxu0 %v2223
        %v2329 = vpop.f32.mrf.mxu0
        %v2330 = vadd.f32 0.0, %v2329
        %v2331 = vpop.f32.mrf.mxu0
        %v2332 = vadd.f32 0.0, %v2331
        %2333 = vmatmul.bf16.gmra.mxu0 %v2225
        %v2334 = vpop.f32.mrf.mxu0
        %v2335 = vadd.f32 0.0, %v2334
        %v2336 = vpop.f32.mrf.mxu0
        %v2337 = vadd.f32 0.0, %v2336
        %2338 = vmatmul.bf16.gmra.mxu0 %v2227
        %v2339 = vpop.f32.mrf.mxu0
        %v2340 = vadd.f32 0.0, %v2339
        %v2341 = vpop.f32.mrf.mxu0
        %v2342 = vadd.f32 0.0, %v2341
        %2343 = vmatmul.bf16.gmra.mxu0 %v2229
        %v2344 = vpop.f32.mrf.mxu0
        %v2345 = vadd.f32 0.0, %v2344
        %v2346 = vpop.f32.mrf.mxu0
        %v2347 = vadd.f32 0.0, %v2346
        %2348 = vmatmul.bf16.gmra.mxu0 %v2231
        %v2349 = vpop.f32.mrf.mxu0
        %v2350 = vadd.f32 0.0, %v2349
        %v2351 = vpop.f32.mrf.mxu0
        %v2352 = vadd.f32 0.0, %v2351
        %2353 = vdwg.mxu0
        %2354 = vmatpush.bf16.msra.mxu0 %v2104
        %2355 = vmatpush.bf16.msra.mxu0 %v2103
        %2356 = vmatpush.bf16.msra.mxu0 %v2102
        %2357 = vmatpush.bf16.msra.mxu0 %v2101
        %2358 = vmatpush.bf16.msra.mxu0 %v2100
        %2359 = vmatpush.bf16.msra.mxu0 %v2099
        %2360 = vmatpush.bf16.msra.mxu0 %v2098
        %2361 = vmatpush.bf16.msra.mxu0 %v2097
        %2362 = vmatmul.bf16.gmra.mxu0 %v2202
        %v2363 = vpop.f32.mrf.mxu0
        %v2364 = vadd.f32 %v2275, %v2363
        %v2365 = vpop.f32.mrf.mxu0
        %v2366 = vadd.f32 %v2277, %v2365
        %2367 = vmatmul.bf16.gmra.mxu0 %v2204
        %v2368 = vpop.f32.mrf.mxu0
        %v2369 = vadd.f32 %v2280, %v2368
        %v2370 = vpop.f32.mrf.mxu0
        %v2371 = vadd.f32 %v2282, %v2370
        %2372 = vmatmul.bf16.gmra.mxu0 %v2206
        %v2373 = vpop.f32.mrf.mxu0
        %v2374 = vadd.f32 %v2285, %v2373
        %v2375 = vpop.f32.mrf.mxu0
        %v2376 = vadd.f32 %v2287, %v2375
        %2377 = vmatmul.bf16.gmra.mxu0 %v2208
        %v2378 = vpop.f32.mrf.mxu0
        %v2379 = vadd.f32 %v2290, %v2378
        %v2380 = vpop.f32.mrf.mxu0
        %v2381 = vadd.f32 %v2292, %v2380
        %2382 = vmatmul.bf16.gmra.mxu0 %v2210
        %v2383 = vpop.f32.mrf.mxu0
        %v2384 = vadd.f32 %v2295, %v2383
        %v2385 = vpop.f32.mrf.mxu0
        %v2386 = vadd.f32 %v2297, %v2385
        %2387 = vmatmul.bf16.gmra.mxu0 %v2212
        %v2388 = vpop.f32.mrf.mxu0
        %v2389 = vadd.f32 %v2300, %v2388
        %v2390 = vpop.f32.mrf.mxu0
        %v2391 = vadd.f32 %v2302, %v2390
        %2392 = vmatmul.bf16.gmra.mxu0 %v2214
        %v2393 = vpop.f32.mrf.mxu0
        %v2394 = vadd.f32 %v2305, %v2393
        %v2395 = vpop.f32.mrf.mxu0
        %v2396 = vadd.f32 %v2307, %v2395
        %2397 = vmatmul.bf16.gmra.mxu0 %v2216
        %v2398 = vpop.f32.mrf.mxu0
        %v2399 = vadd.f32 %v2310, %v2398
        %v2400 = vpop.f32.mrf.mxu0
        %v2401 = vadd.f32 %v2312, %v2400
        %2402 = vmatmul.bf16.gmra.mxu0 %v2218
        %v2403 = vpop.f32.mrf.mxu0
        %v2404 = vadd.f32 %v2315, %v2403
        %v2405 = vpop.f32.mrf.mxu0
        %v2406 = vadd.f32 %v2317, %v2405
        %2407 = vmatmul.bf16.gmra.mxu0 %v2220
        %v2408 = vpop.f32.mrf.mxu0
        %v2409 = vadd.f32 %v2320, %v2408
        %v2410 = vpop.f32.mrf.mxu0
        %v2411 = vadd.f32 %v2322, %v2410
        %2412 = vmatmul.bf16.gmra.mxu0 %v2222
        %v2413 = vpop.f32.mrf.mxu0
        %v2414 = vadd.f32 %v2325, %v2413
        %v2415 = vpop.f32.mrf.mxu0
        %v2416 = vadd.f32 %v2327, %v2415
        %2417 = vmatmul.bf16.gmra.mxu0 %v2224
        %v2418 = vpop.f32.mrf.mxu0
        %v2419 = vadd.f32 %v2330, %v2418
        %v2420 = vpop.f32.mrf.mxu0
        %v2421 = vadd.f32 %v2332, %v2420
        %2422 = vmatmul.bf16.gmra.mxu0 %v2226
        %v2423 = vpop.f32.mrf.mxu0
        %v2424 = vadd.f32 %v2335, %v2423
        %v2425 = vpop.f32.mrf.mxu0
        %v2426 = vadd.f32 %v2337, %v2425
        %2427 = vmatmul.bf16.gmra.mxu0 %v2228
        %v2428 = vpop.f32.mrf.mxu0
        %v2429 = vadd.f32 %v2340, %v2428
        %v2430 = vpop.f32.mrf.mxu0
        %v2431 = vadd.f32 %v2342, %v2430
        %2432 = vmatmul.bf16.gmra.mxu0 %v2230
        %v2433 = vpop.f32.mrf.mxu0
        %v2434 = vadd.f32 %v2345, %v2433
        %v2435 = vpop.f32.mrf.mxu0
        %v2436 = vadd.f32 %v2347, %v2435
        %2437 = vmatmul.bf16.gmra.mxu0 %v2232
        %v2438 = vpop.f32.mrf.mxu0
        %v2439 = vadd.f32 %v2350, %v2438
        %v2440 = vpop.f32.mrf.mxu0
        %v2441 = vadd.f32 %v2352, %v2440
        %2442 = vdwg.mxu0
        %v2443 = vadd.f32 %v542, %v2364
        %v2444 = vadd.f32 %v543, %v2366
        %v2445 = vadd.f32 %v544, %v2369
        %v2446 = vadd.f32 %v545, %v2371
        %v2447 = vadd.f32 %v546, %v2374
        %v2448 = vadd.f32 %v547, %v2376
        %v2449 = vadd.f32 %v548, %v2379
        %v2450 = vadd.f32 %v549, %v2381
        %v2451 = vadd.f32 %v550, %v2384
        %v2452 = vadd.f32 %v551, %v2386
        %v2453 = vadd.f32 %v552, %v2389
        %v2454 = vadd.f32 %v553, %v2391
        %v2455 = vadd.f32 %v554, %v2394
        %v2456 = vadd.f32 %v555, %v2396
        %v2457 = vadd.f32 %v556, %v2399
        %v2458 = vadd.f32 %v557, %v2401
        %v2459 = vadd.f32 %v558, %v2404
        %v2460 = vadd.f32 %v559, %v2406
        %v2461 = vadd.f32 %v560, %v2409
        %v2462 = vadd.f32 %v561, %v2411
        %v2463 = vadd.f32 %v562, %v2414
        %v2464 = vadd.f32 %v563, %v2416
        %v2465 = vadd.f32 %v564, %v2419
        %v2466 = vadd.f32 %v565, %v2421
        %v2467 = vadd.f32 %v566, %v2424
        %v2468 = vadd.f32 %v567, %v2426
        %v2469 = vadd.f32 %v568, %v2429
        %v2470 = vadd.f32 %v569, %v2431
        %v2471 = vadd.f32 %v570, %v2434
        %v2472 = vadd.f32 %v571, %v2436
        %v2473 = vadd.f32 %v572, %v2439
        %v2474 = vadd.f32 %v573, %v2441
        %2476 = vset.pattern.permute.xlu0 0
        %2477 = vperm.xlu0 %2476, %v398
        %v2478 = vpop.permute.xlu0 %2477
        %2481 = vset.pattern.permute.xlu0 0
        %2482 = vperm.xlu0 %2481, %v399
        %v2483 = vpop.permute.xlu0 %2482
        %2486 = vset.pattern.permute.xlu0 0
        %2487 = vperm.xlu0 %2486, %v400
        %v2488 = vpop.permute.xlu0 %2487
        %2491 = vset.pattern.permute.xlu0 0
        %2492 = vperm.xlu0 %2491, %v401
        %v2493 = vpop.permute.xlu0 %2492
        %2496 = vset.pattern.permute.xlu0 0
        %2497 = vperm.xlu0 %2496, %v402
        %v2498 = vpop.permute.xlu0 %2497
        %2501 = vset.pattern.permute.xlu0 0
        %2502 = vperm.xlu0 %2501, %v403
        %v2503 = vpop.permute.xlu0 %2502
        %2506 = vset.pattern.permute.xlu0 0
        %2507 = vperm.xlu0 %2506, %v404
        %v2508 = vpop.permute.xlu0 %2507
        %2511 = vset.pattern.permute.xlu0 0
        %2512 = vperm.xlu0 %2511, %v405
        %v2513 = vpop.permute.xlu0 %2512
        %2516 = vset.pattern.permute.xlu0 0
        %2517 = vperm.xlu0 %2516, %v406
        %v2518 = vpop.permute.xlu0 %2517
        %2521 = vset.pattern.permute.xlu0 0
        %2522 = vperm.xlu0 %2521, %v407
        %v2523 = vpop.permute.xlu0 %2522
        %2526 = vset.pattern.permute.xlu0 0
        %2527 = vperm.xlu0 %2526, %v408
        %v2528 = vpop.permute.xlu0 %2527
        %2531 = vset.pattern.permute.xlu0 0
        %2532 = vperm.xlu0 %2531, %v409
        %v2533 = vpop.permute.xlu0 %2532
        %2536 = vset.pattern.permute.xlu0 0
        %2537 = vperm.xlu0 %2536, %v410
        %v2538 = vpop.permute.xlu0 %2537
        %2541 = vset.pattern.permute.xlu0 0
        %2542 = vperm.xlu0 %2541, %v411
        %v2543 = vpop.permute.xlu0 %2542
        %2546 = vset.pattern.permute.xlu0 0
        %2547 = vperm.xlu0 %2546, %v412
        %v2548 = vpop.permute.xlu0 %2547
        %2551 = vset.pattern.permute.xlu0 0
        %2552 = vperm.xlu0 %2551, %v413
        %v2553 = vpop.permute.xlu0 %2552
        %2556 = vset.pattern.permute.xlu0 0
        %2557 = vperm.xlu0 %2556, %v414
        %v2558 = vpop.permute.xlu0 %2557
        %2561 = vset.pattern.permute.xlu0 0
        %2562 = vperm.xlu0 %2561, %v415
        %v2563 = vpop.permute.xlu0 %2562
        %2566 = vset.pattern.permute.xlu0 0
        %2567 = vperm.xlu0 %2566, %v416
        %v2568 = vpop.permute.xlu0 %2567
        %2571 = vset.pattern.permute.xlu0 0
        %2572 = vperm.xlu0 %2571, %v417
        %v2573 = vpop.permute.xlu0 %2572
        %2576 = vset.pattern.permute.xlu0 0
        %2577 = vperm.xlu0 %2576, %v418
        %v2578 = vpop.permute.xlu0 %2577
        %2581 = vset.pattern.permute.xlu0 0
        %2582 = vperm.xlu0 %2581, %v419
        %v2583 = vpop.permute.xlu0 %2582
        %2586 = vset.pattern.permute.xlu0 0
        %2587 = vperm.xlu0 %2586, %v420
        %v2588 = vpop.permute.xlu0 %2587
        %2591 = vset.pattern.permute.xlu0 0
        %2592 = vperm.xlu0 %2591, %v421
        %v2593 = vpop.permute.xlu0 %2592
        %2596 = vset.pattern.permute.xlu0 0
        %2597 = vperm.xlu0 %2596, %v422
        %v2598 = vpop.permute.xlu0 %2597
        %2601 = vset.pattern.permute.xlu0 0
        %2602 = vperm.xlu0 %2601, %v423
        %v2603 = vpop.permute.xlu0 %2602
        %2606 = vset.pattern.permute.xlu0 0
        %2607 = vperm.xlu0 %2606, %v424
        %v2608 = vpop.permute.xlu0 %2607
        %2611 = vset.pattern.permute.xlu0 0
        %2612 = vperm.xlu0 %2611, %v425
        %v2613 = vpop.permute.xlu0 %2612
        %2616 = vset.pattern.permute.xlu0 0
        %2617 = vperm.xlu0 %2616, %v426
        %v2618 = vpop.permute.xlu0 %2617
        %2621 = vset.pattern.permute.xlu0 0
        %2622 = vperm.xlu0 %2621, %v427
        %v2623 = vpop.permute.xlu0 %2622
        %2626 = vset.pattern.permute.xlu0 0
        %2627 = vperm.xlu0 %2626, %v428
        %v2628 = vpop.permute.xlu0 %2627
        %2631 = vset.pattern.permute.xlu0 0
        %2632 = vperm.xlu0 %2631, %v429
        %v2633 = vpop.permute.xlu0 %2632
        %v2635 = vadd.f32 %v2443, %v2478
        %v2636 = vadd.f32 %v2444, %v2483
        %v2637 = vadd.f32 %v2445, %v2488
        %v2638 = vadd.f32 %v2446, %v2493
        %v2639 = vadd.f32 %v2447, %v2498
        %v2640 = vadd.f32 %v2448, %v2503
        %v2641 = vadd.f32 %v2449, %v2508
        %v2642 = vadd.f32 %v2450, %v2513
        %v2643 = vadd.f32 %v2451, %v2518
        %v2644 = vadd.f32 %v2452, %v2523
        %v2645 = vadd.f32 %v2453, %v2528
        %v2646 = vadd.f32 %v2454, %v2533
        %v2647 = vadd.f32 %v2455, %v2538
        %v2648 = vadd.f32 %v2456, %v2543
        %v2649 = vadd.f32 %v2457, %v2548
        %v2650 = vadd.f32 %v2458, %v2553
        %v2651 = vadd.f32 %v2459, %v2558
        %v2652 = vadd.f32 %v2460, %v2563
        %v2653 = vadd.f32 %v2461, %v2568
        %v2654 = vadd.f32 %v2462, %v2573
        %v2655 = vadd.f32 %v2463, %v2578
        %v2656 = vadd.f32 %v2464, %v2583
        %v2657 = vadd.f32 %v2465, %v2588
        %v2658 = vadd.f32 %v2466, %v2593
        %v2659 = vadd.f32 %v2467, %v2598
        %v2660 = vadd.f32 %v2468, %v2603
        %v2661 = vadd.f32 %v2469, %v2608
        %v2662 = vadd.f32 %v2470, %v2613
        %v2663 = vadd.f32 %v2471, %v2618
        %v2664 = vadd.f32 %v2472, %v2623
        %v2665 = vadd.f32 %v2473, %v2628
        %v2666 = vadd.f32 %v2474, %v2633
        %2667 = vadd.xlane.f32.xlu0 %v2635
        %v2668 = vpop.xlane.xlu0 %2667
        %2669 = vadd.xlane.f32.xlu0 %v2636
        %v2670 = vpop.xlane.xlu0 %2669
        %2671 = vadd.xlane.f32.xlu0 %v2637
        %v2672 = vpop.xlane.xlu0 %2671
        %2673 = vadd.xlane.f32.xlu0 %v2638
        %v2674 = vpop.xlane.xlu0 %2673
        %2675 = vadd.xlane.f32.xlu0 %v2639
        %v2676 = vpop.xlane.xlu0 %2675
        %2677 = vadd.xlane.f32.xlu0 %v2640
        %v2678 = vpop.xlane.xlu0 %2677
        %2679 = vadd.xlane.f32.xlu0 %v2641
        %v2680 = vpop.xlane.xlu0 %2679
        %2681 = vadd.xlane.f32.xlu0 %v2642
        %v2682 = vpop.xlane.xlu0 %2681
        %2683 = vadd.xlane.f32.xlu0 %v2643
        %v2684 = vpop.xlane.xlu0 %2683
        %2685 = vadd.xlane.f32.xlu0 %v2644
        %v2686 = vpop.xlane.xlu0 %2685
        %2687 = vadd.xlane.f32.xlu0 %v2645
        %v2688 = vpop.xlane.xlu0 %2687
        %2689 = vadd.xlane.f32.xlu0 %v2646
        %v2690 = vpop.xlane.xlu0 %2689
        %2691 = vadd.xlane.f32.xlu0 %v2647
        %v2692 = vpop.xlane.xlu0 %2691
        %2693 = vadd.xlane.f32.xlu0 %v2648
        %v2694 = vpop.xlane.xlu0 %2693
        %2695 = vadd.xlane.f32.xlu0 %v2649
        %v2696 = vpop.xlane.xlu0 %2695
        %2697 = vadd.xlane.f32.xlu0 %v2650
        %v2698 = vpop.xlane.xlu0 %2697
        %2699 = vadd.xlane.f32.xlu0 %v2651
        %v2700 = vpop.xlane.xlu0 %2699
        %2701 = vadd.xlane.f32.xlu0 %v2652
        %v2702 = vpop.xlane.xlu0 %2701
        %2703 = vadd.xlane.f32.xlu0 %v2653
        %v2704 = vpop.xlane.xlu0 %2703
        %2705 = vadd.xlane.f32.xlu0 %v2654
        %v2706 = vpop.xlane.xlu0 %2705
        %2707 = vadd.xlane.f32.xlu0 %v2655
        %v2708 = vpop.xlane.xlu0 %2707
        %2709 = vadd.xlane.f32.xlu0 %v2656
        %v2710 = vpop.xlane.xlu0 %2709
        %2711 = vadd.xlane.f32.xlu0 %v2657
        %v2712 = vpop.xlane.xlu0 %2711
        %2713 = vadd.xlane.f32.xlu0 %v2658
        %v2714 = vpop.xlane.xlu0 %2713
        %2715 = vadd.xlane.f32.xlu0 %v2659
        %v2716 = vpop.xlane.xlu0 %2715
        %2717 = vadd.xlane.f32.xlu0 %v2660
        %v2718 = vpop.xlane.xlu0 %2717
        %2719 = vadd.xlane.f32.xlu0 %v2661
        %v2720 = vpop.xlane.xlu0 %2719
        %2721 = vadd.xlane.f32.xlu0 %v2662
        %v2722 = vpop.xlane.xlu0 %2721
        %2723 = vadd.xlane.f32.xlu0 %v2663
        %v2724 = vpop.xlane.xlu0 %2723
        %2725 = vadd.xlane.f32.xlu0 %v2664
        %v2726 = vpop.xlane.xlu0 %2725
        %2727 = vadd.xlane.f32.xlu0 %v2665
        %v2728 = vpop.xlane.xlu0 %2727
        %2729 = vadd.xlane.f32.xlu0 %v2666
        %v2730 = vpop.xlane.xlu0 %2729
        %v2731 = vmul.f32 %v2668, %v644
        %v2732 = vmul.f32 %v2670, %v644
        %v2733 = vmul.f32 %v2672, %v644
        %v2734 = vmul.f32 %v2674, %v644
        %v2735 = vmul.f32 %v2676, %v644
        %v2736 = vmul.f32 %v2678, %v644
        %v2737 = vmul.f32 %v2680, %v644
        %v2738 = vmul.f32 %v2682, %v644
        %v2739 = vmul.f32 %v2684, %v644
        %v2740 = vmul.f32 %v2686, %v644
        %v2741 = vmul.f32 %v2688, %v644
        %v2742 = vmul.f32 %v2690, %v644
        %v2743 = vmul.f32 %v2692, %v644
        %v2744 = vmul.f32 %v2694, %v644
        %v2745 = vmul.f32 %v2696, %v644
        %v2746 = vmul.f32 %v2698, %v644
        %v2747 = vmul.f32 %v2700, %v644
        %v2748 = vmul.f32 %v2702, %v644
        %v2749 = vmul.f32 %v2704, %v644
        %v2750 = vmul.f32 %v2706, %v644
        %v2751 = vmul.f32 %v2708, %v644
        %v2752 = vmul.f32 %v2710, %v644
        %v2753 = vmul.f32 %v2712, %v644
        %v2754 = vmul.f32 %v2714, %v644
        %v2755 = vmul.f32 %v2716, %v644
        %v2756 = vmul.f32 %v2718, %v644
        %v2757 = vmul.f32 %v2720, %v644
        %v2758 = vmul.f32 %v2722, %v644
        %v2759 = vmul.f32 %v2724, %v644
        %v2760 = vmul.f32 %v2726, %v644
        %v2761 = vmul.f32 %v2728, %v644
        %v2762 = vmul.f32 %v2730, %v644
        %v2763 = vsub.f32 %v2635, %v2731
        %v2764 = vsub.f32 %v2636, %v2732
        %v2765 = vsub.f32 %v2637, %v2733
        %v2766 = vsub.f32 %v2638, %v2734
        %v2767 = vsub.f32 %v2639, %v2735
        %v2768 = vsub.f32 %v2640, %v2736
        %v2769 = vsub.f32 %v2641, %v2737
        %v2770 = vsub.f32 %v2642, %v2738
        %v2771 = vsub.f32 %v2643, %v2739
        %v2772 = vsub.f32 %v2644, %v2740
        %v2773 = vsub.f32 %v2645, %v2741
        %v2774 = vsub.f32 %v2646, %v2742
        %v2775 = vsub.f32 %v2647, %v2743
        %v2776 = vsub.f32 %v2648, %v2744
        %v2777 = vsub.f32 %v2649, %v2745
        %v2778 = vsub.f32 %v2650, %v2746
        %v2779 = vsub.f32 %v2651, %v2747
        %v2780 = vsub.f32 %v2652, %v2748
        %v2781 = vsub.f32 %v2653, %v2749
        %v2782 = vsub.f32 %v2654, %v2750
        %v2783 = vsub.f32 %v2655, %v2751
        %v2784 = vsub.f32 %v2656, %v2752
        %v2785 = vsub.f32 %v2657, %v2753
        %v2786 = vsub.f32 %v2658, %v2754
        %v2787 = vsub.f32 %v2659, %v2755
        %v2788 = vsub.f32 %v2660, %v2756
        %v2789 = vsub.f32 %v2661, %v2757
        %v2790 = vsub.f32 %v2662, %v2758
        %v2791 = vsub.f32 %v2663, %v2759
        %v2792 = vsub.f32 %v2664, %v2760
        %v2793 = vsub.f32 %v2665, %v2761
        %v2794 = vsub.f32 %v2666, %v2762
        %v2795 = vmul.f32 %v2763, %v2763
        %v2796 = vmul.f32 %v2764, %v2764
        %v2797 = vmul.f32 %v2765, %v2765
        %v2798 = vmul.f32 %v2766, %v2766
        %v2799 = vmul.f32 %v2767, %v2767
        %v2800 = vmul.f32 %v2768, %v2768
        %v2801 = vmul.f32 %v2769, %v2769
        %v2802 = vmul.f32 %v2770, %v2770
        %v2803 = vmul.f32 %v2771, %v2771
        %v2804 = vmul.f32 %v2772, %v2772
        %v2805 = vmul.f32 %v2773, %v2773
        %v2806 = vmul.f32 %v2774, %v2774
        %v2807 = vmul.f32 %v2775, %v2775
        %v2808 = vmul.f32 %v2776, %v2776
        %v2809 = vmul.f32 %v2777, %v2777
        %v2810 = vmul.f32 %v2778, %v2778
        %v2811 = vmul.f32 %v2779, %v2779
        %v2812 = vmul.f32 %v2780, %v2780
        %v2813 = vmul.f32 %v2781, %v2781
        %v2814 = vmul.f32 %v2782, %v2782
        %v2815 = vmul.f32 %v2783, %v2783
        %v2816 = vmul.f32 %v2784, %v2784
        %v2817 = vmul.f32 %v2785, %v2785
        %v2818 = vmul.f32 %v2786, %v2786
        %v2819 = vmul.f32 %v2787, %v2787
        %v2820 = vmul.f32 %v2788, %v2788
        %v2821 = vmul.f32 %v2789, %v2789
        %v2822 = vmul.f32 %v2790, %v2790
        %v2823 = vmul.f32 %v2791, %v2791
        %v2824 = vmul.f32 %v2792, %v2792
        %v2825 = vmul.f32 %v2793, %v2793
        %v2826 = vmul.f32 %v2794, %v2794
        %2827 = vadd.xlane.f32.xlu0 %v2795
        %v2828 = vpop.xlane.xlu0 %2827
        %2829 = vadd.xlane.f32.xlu0 %v2796
        %v2830 = vpop.xlane.xlu0 %2829
        %2831 = vadd.xlane.f32.xlu0 %v2797
        %v2832 = vpop.xlane.xlu0 %2831
        %2833 = vadd.xlane.f32.xlu0 %v2798
        %v2834 = vpop.xlane.xlu0 %2833
        %2835 = vadd.xlane.f32.xlu0 %v2799
        %v2836 = vpop.xlane.xlu0 %2835
        %2837 = vadd.xlane.f32.xlu0 %v2800
        %v2838 = vpop.xlane.xlu0 %2837
        %2839 = vadd.xlane.f32.xlu0 %v2801
        %v2840 = vpop.xlane.xlu0 %2839
        %2841 = vadd.xlane.f32.xlu0 %v2802
        %v2842 = vpop.xlane.xlu0 %2841
        %2843 = vadd.xlane.f32.xlu0 %v2803
        %v2844 = vpop.xlane.xlu0 %2843
        %2845 = vadd.xlane.f32.xlu0 %v2804
        %v2846 = vpop.xlane.xlu0 %2845
        %2847 = vadd.xlane.f32.xlu0 %v2805
        %v2848 = vpop.xlane.xlu0 %2847
        %2849 = vadd.xlane.f32.xlu0 %v2806
        %v2850 = vpop.xlane.xlu0 %2849
        %2851 = vadd.xlane.f32.xlu0 %v2807
        %v2852 = vpop.xlane.xlu0 %2851
        %2853 = vadd.xlane.f32.xlu0 %v2808
        %v2854 = vpop.xlane.xlu0 %2853
        %2855 = vadd.xlane.f32.xlu0 %v2809
        %v2856 = vpop.xlane.xlu0 %2855
        %2857 = vadd.xlane.f32.xlu0 %v2810
        %v2858 = vpop.xlane.xlu0 %2857
        %2859 = vadd.xlane.f32.xlu0 %v2811
        %v2860 = vpop.xlane.xlu0 %2859
        %2861 = vadd.xlane.f32.xlu0 %v2812
        %v2862 = vpop.xlane.xlu0 %2861
        %2863 = vadd.xlane.f32.xlu0 %v2813
        %v2864 = vpop.xlane.xlu0 %2863
        %2865 = vadd.xlane.f32.xlu0 %v2814
        %v2866 = vpop.xlane.xlu0 %2865
        %2867 = vadd.xlane.f32.xlu0 %v2815
        %v2868 = vpop.xlane.xlu0 %2867
        %2869 = vadd.xlane.f32.xlu0 %v2816
        %v2870 = vpop.xlane.xlu0 %2869
        %2871 = vadd.xlane.f32.xlu0 %v2817
        %v2872 = vpop.xlane.xlu0 %2871
        %2873 = vadd.xlane.f32.xlu0 %v2818
        %v2874 = vpop.xlane.xlu0 %2873
        %2875 = vadd.xlane.f32.xlu0 %v2819
        %v2876 = vpop.xlane.xlu0 %2875
        %2877 = vadd.xlane.f32.xlu0 %v2820
        %v2878 = vpop.xlane.xlu0 %2877
        %2879 = vadd.xlane.f32.xlu0 %v2821
        %v2880 = vpop.xlane.xlu0 %2879
        %2881 = vadd.xlane.f32.xlu0 %v2822
        %v2882 = vpop.xlane.xlu0 %2881
        %2883 = vadd.xlane.f32.xlu0 %v2823
        %v2884 = vpop.xlane.xlu0 %2883
        %2885 = vadd.xlane.f32.xlu0 %v2824
        %v2886 = vpop.xlane.xlu0 %2885
        %2887 = vadd.xlane.f32.xlu0 %v2825
        %v2888 = vpop.xlane.xlu0 %2887
        %2889 = vadd.xlane.f32.xlu0 %v2826
        %v2890 = vpop.xlane.xlu0 %2889
        %v2891 = vmul.f32 %v2828, %v644
        %v2892 = vmul.f32 %v2830, %v644
        %v2893 = vmul.f32 %v2832, %v644
        %v2894 = vmul.f32 %v2834, %v644
        %v2895 = vmul.f32 %v2836, %v644
        %v2896 = vmul.f32 %v2838, %v644
        %v2897 = vmul.f32 %v2840, %v644
        %v2898 = vmul.f32 %v2842, %v644
        %v2899 = vmul.f32 %v2844, %v644
        %v2900 = vmul.f32 %v2846, %v644
        %v2901 = vmul.f32 %v2848, %v644
        %v2902 = vmul.f32 %v2850, %v644
        %v2903 = vmul.f32 %v2852, %v644
        %v2904 = vmul.f32 %v2854, %v644
        %v2905 = vmul.f32 %v2856, %v644
        %v2906 = vmul.f32 %v2858, %v644
        %v2907 = vmul.f32 %v2860, %v644
        %v2908 = vmul.f32 %v2862, %v644
        %v2909 = vmul.f32 %v2864, %v644
        %v2910 = vmul.f32 %v2866, %v644
        %v2911 = vmul.f32 %v2868, %v644
        %v2912 = vmul.f32 %v2870, %v644
        %v2913 = vmul.f32 %v2872, %v644
        %v2914 = vmul.f32 %v2874, %v644
        %v2915 = vmul.f32 %v2876, %v644
        %v2916 = vmul.f32 %v2878, %v644
        %v2917 = vmul.f32 %v2880, %v644
        %v2918 = vmul.f32 %v2882, %v644
        %v2919 = vmul.f32 %v2884, %v644
        %v2920 = vmul.f32 %v2886, %v644
        %v2921 = vmul.f32 %v2888, %v644
        %v2922 = vmul.f32 %v2890, %v644
        %v2923 = vadd.f32 %v2891, 1e-05
        %v2924 = vadd.f32 %v2892, 1e-05
        %v2925 = vadd.f32 %v2893, 1e-05
        %v2926 = vadd.f32 %v2894, 1e-05
        %v2927 = vadd.f32 %v2895, 1e-05
        %v2928 = vadd.f32 %v2896, 1e-05
        %v2929 = vadd.f32 %v2897, 1e-05
        %v2930 = vadd.f32 %v2898, 1e-05
        %v2931 = vadd.f32 %v2899, 1e-05
        %v2932 = vadd.f32 %v2900, 1e-05
        %v2933 = vadd.f32 %v2901, 1e-05
        %v2934 = vadd.f32 %v2902, 1e-05
        %v2935 = vadd.f32 %v2903, 1e-05
        %v2936 = vadd.f32 %v2904, 1e-05
        %v2937 = vadd.f32 %v2905, 1e-05
        %v2938 = vadd.f32 %v2906, 1e-05
        %v2939 = vadd.f32 %v2907, 1e-05
        %v2940 = vadd.f32 %v2908, 1e-05
        %v2941 = vadd.f32 %v2909, 1e-05
        %v2942 = vadd.f32 %v2910, 1e-05
        %v2943 = vadd.f32 %v2911, 1e-05
        %v2944 = vadd.f32 %v2912, 1e-05
        %v2945 = vadd.f32 %v2913, 1e-05
        %v2946 = vadd.f32 %v2914, 1e-05
        %v2947 = vadd.f32 %v2915, 1e-05
        %v2948 = vadd.f32 %v2916, 1e-05
        %v2949 = vadd.f32 %v2917, 1e-05
        %v2950 = vadd.f32 %v2918, 1e-05
        %v2951 = vadd.f32 %v2919, 1e-05
        %v2952 = vadd.f32 %v2920, 1e-05
        %v2953 = vadd.f32 %v2921, 1e-05
        %v2954 = vadd.f32 %v2922, 1e-05
        %v2955 = vrsqrt.pop %v2923
        %v2956 = vmul.f32 %v2955, %v2923
        %v2957 = vmul.f32 %v2956, %v2955
        %v2958 = vmul.f32 0.5, %v2957
        %v2959 = vsub.f32 1.5, %v2958
        %v2960 = vmul.f32 %v2955, %v2959
        %vm2961 = vweird.f32 %v2923
        %vm2962 = vweird.f32 %v2955
        %vm2963 = vmor %vm2961, %vm2962
        %v2964 = vsel %vm2963, %v2955, %v2960
        %v2965 = vrsqrt.pop %v2924
        %v2966 = vmul.f32 %v2965, %v2924
        %v2967 = vmul.f32 %v2966, %v2965
        %v2968 = vmul.f32 0.5, %v2967
        %v2969 = vsub.f32 1.5, %v2968
        %v2970 = vmul.f32 %v2965, %v2969
        %vm2971 = vweird.f32 %v2924
        %vm2972 = vweird.f32 %v2965
        %vm2973 = vmor %vm2971, %vm2972
        %v2974 = vsel %vm2973, %v2965, %v2970
        %v2975 = vrsqrt.pop %v2925
        %v2976 = vmul.f32 %v2975, %v2925
        %v2977 = vmul.f32 %v2976, %v2975
        %v2978 = vmul.f32 0.5, %v2977
        %v2979 = vsub.f32 1.5, %v2978
        %v2980 = vmul.f32 %v2975, %v2979
        %vm2981 = vweird.f32 %v2925
        %vm2982 = vweird.f32 %v2975
        %vm2983 = vmor %vm2981, %vm2982
        %v2984 = vsel %vm2983, %v2975, %v2980
        %v2985 = vrsqrt.pop %v2926
        %v2986 = vmul.f32 %v2985, %v2926
        %v2987 = vmul.f32 %v2986, %v2985
        %v2988 = vmul.f32 0.5, %v2987
        %v2989 = vsub.f32 1.5, %v2988
        %v2990 = vmul.f32 %v2985, %v2989
        %vm2991 = vweird.f32 %v2926
        %vm2992 = vweird.f32 %v2985
        %vm2993 = vmor %vm2991, %vm2992
        %v2994 = vsel %vm2993, %v2985, %v2990
        %v2995 = vrsqrt.pop %v2927
        %v2996 = vmul.f32 %v2995, %v2927
        %v2997 = vmul.f32 %v2996, %v2995
        %v2998 = vmul.f32 0.5, %v2997
        %v2999 = vsub.f32 1.5, %v2998
        %v3000 = vmul.f32 %v2995, %v2999
        %vm3001 = vweird.f32 %v2927
        %vm3002 = vweird.f32 %v2995
        %vm3003 = vmor %vm3001, %vm3002
        %v3004 = vsel %vm3003, %v2995, %v3000
        %v3005 = vrsqrt.pop %v2928
        %v3006 = vmul.f32 %v3005, %v2928
        %v3007 = vmul.f32 %v3006, %v3005
        %v3008 = vmul.f32 0.5, %v3007
        %v3009 = vsub.f32 1.5, %v3008
        %v3010 = vmul.f32 %v3005, %v3009
        %vm3011 = vweird.f32 %v2928
        %vm3012 = vweird.f32 %v3005
        %vm3013 = vmor %vm3011, %vm3012
        %v3014 = vsel %vm3013, %v3005, %v3010
        %v3015 = vrsqrt.pop %v2929
        %v3016 = vmul.f32 %v3015, %v2929
        %v3017 = vmul.f32 %v3016, %v3015
        %v3018 = vmul.f32 0.5, %v3017
        %v3019 = vsub.f32 1.5, %v3018
        %v3020 = vmul.f32 %v3015, %v3019
        %vm3021 = vweird.f32 %v2929
        %vm3022 = vweird.f32 %v3015
        %vm3023 = vmor %vm3021, %vm3022
        %v3024 = vsel %vm3023, %v3015, %v3020
        %v3025 = vrsqrt.pop %v2930
        %v3026 = vmul.f32 %v3025, %v2930
        %v3027 = vmul.f32 %v3026, %v3025
        %v3028 = vmul.f32 0.5, %v3027
        %v3029 = vsub.f32 1.5, %v3028
        %v3030 = vmul.f32 %v3025, %v3029
        %vm3031 = vweird.f32 %v2930
        %vm3032 = vweird.f32 %v3025
        %vm3033 = vmor %vm3031, %vm3032
        %v3034 = vsel %vm3033, %v3025, %v3030
        %v3035 = vrsqrt.pop %v2931
        %v3036 = vmul.f32 %v3035, %v2931
        %v3037 = vmul.f32 %v3036, %v3035
        %v3038 = vmul.f32 0.5, %v3037
        %v3039 = vsub.f32 1.5, %v3038
        %v3040 = vmul.f32 %v3035, %v3039
        %vm3041 = vweird.f32 %v2931
        %vm3042 = vweird.f32 %v3035
        %vm3043 = vmor %vm3041, %vm3042
        %v3044 = vsel %vm3043, %v3035, %v3040
        %v3045 = vrsqrt.pop %v2932
        %v3046 = vmul.f32 %v3045, %v2932
        %v3047 = vmul.f32 %v3046, %v3045
        %v3048 = vmul.f32 0.5, %v3047
        %v3049 = vsub.f32 1.5, %v3048
        %v3050 = vmul.f32 %v3045, %v3049
        %vm3051 = vweird.f32 %v2932
        %vm3052 = vweird.f32 %v3045
        %vm3053 = vmor %vm3051, %vm3052
        %v3054 = vsel %vm3053, %v3045, %v3050
        %v3055 = vrsqrt.pop %v2933
        %v3056 = vmul.f32 %v3055, %v2933
        %v3057 = vmul.f32 %v3056, %v3055
        %v3058 = vmul.f32 0.5, %v3057
        %v3059 = vsub.f32 1.5, %v3058
        %v3060 = vmul.f32 %v3055, %v3059
        %vm3061 = vweird.f32 %v2933
        %vm3062 = vweird.f32 %v3055
        %vm3063 = vmor %vm3061, %vm3062
        %v3064 = vsel %vm3063, %v3055, %v3060
        %v3065 = vrsqrt.pop %v2934
        %v3066 = vmul.f32 %v3065, %v2934
        %v3067 = vmul.f32 %v3066, %v3065
        %v3068 = vmul.f32 0.5, %v3067
        %v3069 = vsub.f32 1.5, %v3068
        %v3070 = vmul.f32 %v3065, %v3069
        %vm3071 = vweird.f32 %v2934
        %vm3072 = vweird.f32 %v3065
        %vm3073 = vmor %vm3071, %vm3072
        %v3074 = vsel %vm3073, %v3065, %v3070
        %v3075 = vrsqrt.pop %v2935
        %v3076 = vmul.f32 %v3075, %v2935
        %v3077 = vmul.f32 %v3076, %v3075
        %v3078 = vmul.f32 0.5, %v3077
        %v3079 = vsub.f32 1.5, %v3078
        %v3080 = vmul.f32 %v3075, %v3079
        %vm3081 = vweird.f32 %v2935
        %vm3082 = vweird.f32 %v3075
        %vm3083 = vmor %vm3081, %vm3082
        %v3084 = vsel %vm3083, %v3075, %v3080
        %v3085 = vrsqrt.pop %v2936
        %v3086 = vmul.f32 %v3085, %v2936
        %v3087 = vmul.f32 %v3086, %v3085
        %v3088 = vmul.f32 0.5, %v3087
        %v3089 = vsub.f32 1.5, %v3088
        %v3090 = vmul.f32 %v3085, %v3089
        %vm3091 = vweird.f32 %v2936
        %vm3092 = vweird.f32 %v3085
        %vm3093 = vmor %vm3091, %vm3092
        %v3094 = vsel %vm3093, %v3085, %v3090
        %v3095 = vrsqrt.pop %v2937
        %v3096 = vmul.f32 %v3095, %v2937
        %v3097 = vmul.f32 %v3096, %v3095
        %v3098 = vmul.f32 0.5, %v3097
        %v3099 = vsub.f32 1.5, %v3098
        %v3100 = vmul.f32 %v3095, %v3099
        %vm3101 = vweird.f32 %v2937
        %vm3102 = vweird.f32 %v3095
        %vm3103 = vmor %vm3101, %vm3102
        %v3104 = vsel %vm3103, %v3095, %v3100
        %v3105 = vrsqrt.pop %v2938
        %v3106 = vmul.f32 %v3105, %v2938
        %v3107 = vmul.f32 %v3106, %v3105
        %v3108 = vmul.f32 0.5, %v3107
        %v3109 = vsub.f32 1.5, %v3108
        %v3110 = vmul.f32 %v3105, %v3109
        %vm3111 = vweird.f32 %v2938
        %vm3112 = vweird.f32 %v3105
        %vm3113 = vmor %vm3111, %vm3112
        %v3114 = vsel %vm3113, %v3105, %v3110
        %v3115 = vrsqrt.pop %v2939
        %v3116 = vmul.f32 %v3115, %v2939
        %v3117 = vmul.f32 %v3116, %v3115
        %v3118 = vmul.f32 0.5, %v3117
        %v3119 = vsub.f32 1.5, %v3118
        %v3120 = vmul.f32 %v3115, %v3119
        %vm3121 = vweird.f32 %v2939
        %vm3122 = vweird.f32 %v3115
        %vm3123 = vmor %vm3121, %vm3122
        %v3124 = vsel %vm3123, %v3115, %v3120
        %v3125 = vrsqrt.pop %v2940
        %v3126 = vmul.f32 %v3125, %v2940
        %v3127 = vmul.f32 %v3126, %v3125
        %v3128 = vmul.f32 0.5, %v3127
        %v3129 = vsub.f32 1.5, %v3128
        %v3130 = vmul.f32 %v3125, %v3129
        %vm3131 = vweird.f32 %v2940
        %vm3132 = vweird.f32 %v3125
        %vm3133 = vmor %vm3131, %vm3132
        %v3134 = vsel %vm3133, %v3125, %v3130
        %v3135 = vrsqrt.pop %v2941
        %v3136 = vmul.f32 %v3135, %v2941
        %v3137 = vmul.f32 %v3136, %v3135
        %v3138 = vmul.f32 0.5, %v3137
        %v3139 = vsub.f32 1.5, %v3138
        %v3140 = vmul.f32 %v3135, %v3139
        %vm3141 = vweird.f32 %v2941
        %vm3142 = vweird.f32 %v3135
        %vm3143 = vmor %vm3141, %vm3142
        %v3144 = vsel %vm3143, %v3135, %v3140
        %v3145 = vrsqrt.pop %v2942
        %v3146 = vmul.f32 %v3145, %v2942
        %v3147 = vmul.f32 %v3146, %v3145
        %v3148 = vmul.f32 0.5, %v3147
        %v3149 = vsub.f32 1.5, %v3148
        %v3150 = vmul.f32 %v3145, %v3149
        %vm3151 = vweird.f32 %v2942
        %vm3152 = vweird.f32 %v3145
        %vm3153 = vmor %vm3151, %vm3152
        %v3154 = vsel %vm3153, %v3145, %v3150
        %v3155 = vrsqrt.pop %v2943
        %v3156 = vmul.f32 %v3155, %v2943
        %v3157 = vmul.f32 %v3156, %v3155
        %v3158 = vmul.f32 0.5, %v3157
        %v3159 = vsub.f32 1.5, %v3158
        %v3160 = vmul.f32 %v3155, %v3159
        %vm3161 = vweird.f32 %v2943
        %vm3162 = vweird.f32 %v3155
        %vm3163 = vmor %vm3161, %vm3162
        %v3164 = vsel %vm3163, %v3155, %v3160
        %v3165 = vrsqrt.pop %v2944
        %v3166 = vmul.f32 %v3165, %v2944
        %v3167 = vmul.f32 %v3166, %v3165
        %v3168 = vmul.f32 0.5, %v3167
        %v3169 = vsub.f32 1.5, %v3168
        %v3170 = vmul.f32 %v3165, %v3169
        %vm3171 = vweird.f32 %v2944
        %vm3172 = vweird.f32 %v3165
        %vm3173 = vmor %vm3171, %vm3172
        %v3174 = vsel %vm3173, %v3165, %v3170
        %v3175 = vrsqrt.pop %v2945
        %v3176 = vmul.f32 %v3175, %v2945
        %v3177 = vmul.f32 %v3176, %v3175
        %v3178 = vmul.f32 0.5, %v3177
        %v3179 = vsub.f32 1.5, %v3178
        %v3180 = vmul.f32 %v3175, %v3179
        %vm3181 = vweird.f32 %v2945
        %vm3182 = vweird.f32 %v3175
        %vm3183 = vmor %vm3181, %vm3182
        %v3184 = vsel %vm3183, %v3175, %v3180
        %v3185 = vrsqrt.pop %v2946
        %v3186 = vmul.f32 %v3185, %v2946
        %v3187 = vmul.f32 %v3186, %v3185
        %v3188 = vmul.f32 0.5, %v3187
        %v3189 = vsub.f32 1.5, %v3188
        %v3190 = vmul.f32 %v3185, %v3189
        %vm3191 = vweird.f32 %v2946
        %vm3192 = vweird.f32 %v3185
        %vm3193 = vmor %vm3191, %vm3192
        %v3194 = vsel %vm3193, %v3185, %v3190
        %v3195 = vrsqrt.pop %v2947
        %v3196 = vmul.f32 %v3195, %v2947
        %v3197 = vmul.f32 %v3196, %v3195
        %v3198 = vmul.f32 0.5, %v3197
        %v3199 = vsub.f32 1.5, %v3198
        %v3200 = vmul.f32 %v3195, %v3199
        %vm3201 = vweird.f32 %v2947
        %vm3202 = vweird.f32 %v3195
        %vm3203 = vmor %vm3201, %vm3202
        %v3204 = vsel %vm3203, %v3195, %v3200
        %v3205 = vrsqrt.pop %v2948
        %v3206 = vmul.f32 %v3205, %v2948
        %v3207 = vmul.f32 %v3206, %v3205
        %v3208 = vmul.f32 0.5, %v3207
        %v3209 = vsub.f32 1.5, %v3208
        %v3210 = vmul.f32 %v3205, %v3209
        %vm3211 = vweird.f32 %v2948
        %vm3212 = vweird.f32 %v3205
        %vm3213 = vmor %vm3211, %vm3212
        %v3214 = vsel %vm3213, %v3205, %v3210
        %v3215 = vrsqrt.pop %v2949
        %v3216 = vmul.f32 %v3215, %v2949
        %v3217 = vmul.f32 %v3216, %v3215
        %v3218 = vmul.f32 0.5, %v3217
        %v3219 = vsub.f32 1.5, %v3218
        %v3220 = vmul.f32 %v3215, %v3219
        %vm3221 = vweird.f32 %v2949
        %vm3222 = vweird.f32 %v3215
        %vm3223 = vmor %vm3221, %vm3222
        %v3224 = vsel %vm3223, %v3215, %v3220
        %v3225 = vrsqrt.pop %v2950
        %v3226 = vmul.f32 %v3225, %v2950
        %v3227 = vmul.f32 %v3226, %v3225
        %v3228 = vmul.f32 0.5, %v3227
        %v3229 = vsub.f32 1.5, %v3228
        %v3230 = vmul.f32 %v3225, %v3229
        %vm3231 = vweird.f32 %v2950
        %vm3232 = vweird.f32 %v3225
        %vm3233 = vmor %vm3231, %vm3232
        %v3234 = vsel %vm3233, %v3225, %v3230
        %v3235 = vrsqrt.pop %v2951
        %v3236 = vmul.f32 %v3235, %v2951
        %v3237 = vmul.f32 %v3236, %v3235
        %v3238 = vmul.f32 0.5, %v3237
        %v3239 = vsub.f32 1.5, %v3238
        %v3240 = vmul.f32 %v3235, %v3239
        %vm3241 = vweird.f32 %v2951
        %vm3242 = vweird.f32 %v3235
        %vm3243 = vmor %vm3241, %vm3242
        %v3244 = vsel %vm3243, %v3235, %v3240
        %v3245 = vrsqrt.pop %v2952
        %v3246 = vmul.f32 %v3245, %v2952
        %v3247 = vmul.f32 %v3246, %v3245
        %v3248 = vmul.f32 0.5, %v3247
        %v3249 = vsub.f32 1.5, %v3248
        %v3250 = vmul.f32 %v3245, %v3249
        %vm3251 = vweird.f32 %v2952
        %vm3252 = vweird.f32 %v3245
        %vm3253 = vmor %vm3251, %vm3252
        %v3254 = vsel %vm3253, %v3245, %v3250
        %v3255 = vrsqrt.pop %v2953
        %v3256 = vmul.f32 %v3255, %v2953
        %v3257 = vmul.f32 %v3256, %v3255
        %v3258 = vmul.f32 0.5, %v3257
        %v3259 = vsub.f32 1.5, %v3258
        %v3260 = vmul.f32 %v3255, %v3259
        %vm3261 = vweird.f32 %v2953
        %vm3262 = vweird.f32 %v3255
        %vm3263 = vmor %vm3261, %vm3262
        %v3264 = vsel %vm3263, %v3255, %v3260
        %v3265 = vrsqrt.pop %v2954
        %v3266 = vmul.f32 %v3265, %v2954
        %v3267 = vmul.f32 %v3266, %v3265
        %v3268 = vmul.f32 0.5, %v3267
        %v3269 = vsub.f32 1.5, %v3268
        %v3270 = vmul.f32 %v3265, %v3269
        %vm3271 = vweird.f32 %v2954
        %vm3272 = vweird.f32 %v3265
        %vm3273 = vmor %vm3271, %vm3272
        %v3274 = vsel %vm3273, %v3265, %v3270
        %v3275 = vmul.f32 %v2763, %v2964
        %v3276 = vmul.f32 %v2764, %v2974
        %v3277 = vmul.f32 %v2765, %v2984
        %v3278 = vmul.f32 %v2766, %v2994
        %v3279 = vmul.f32 %v2767, %v3004
        %v3280 = vmul.f32 %v2768, %v3014
        %v3281 = vmul.f32 %v2769, %v3024
        %v3282 = vmul.f32 %v2770, %v3034
        %v3283 = vmul.f32 %v2771, %v3044
        %v3284 = vmul.f32 %v2772, %v3054
        %v3285 = vmul.f32 %v2773, %v3064
        %v3286 = vmul.f32 %v2774, %v3074
        %v3287 = vmul.f32 %v2775, %v3084
        %v3288 = vmul.f32 %v2776, %v3094
        %v3289 = vmul.f32 %v2777, %v3104
        %v3290 = vmul.f32 %v2778, %v3114
        %v3291 = vmul.f32 %v2779, %v3124
        %v3292 = vmul.f32 %v2780, %v3134
        %v3293 = vmul.f32 %v2781, %v3144
        %v3294 = vmul.f32 %v2782, %v3154
        %v3295 = vmul.f32 %v2783, %v3164
        %v3296 = vmul.f32 %v2784, %v3174
        %v3297 = vmul.f32 %v2785, %v3184
        %v3298 = vmul.f32 %v2786, %v3194
        %v3299 = vmul.f32 %v2787, %v3204
        %v3300 = vmul.f32 %v2788, %v3214
        %v3301 = vmul.f32 %v2789, %v3224
        %v3302 = vmul.f32 %v2790, %v3234
        %v3303 = vmul.f32 %v2791, %v3244
        %v3304 = vmul.f32 %v2792, %v3254
        %v3305 = vmul.f32 %v2793, %v3264
        %v3306 = vmul.f32 %v2794, %v3274
        %v3307 = vmul.f32 %v3275, %v1221
        %v3308 = vmul.f32 %v3276, %v1221
        %v3309 = vmul.f32 %v3277, %v1221
        %v3310 = vmul.f32 %v3278, %v1221
        %v3311 = vmul.f32 %v3279, %v1221
        %v3312 = vmul.f32 %v3280, %v1221
        %v3313 = vmul.f32 %v3281, %v1221
        %v3314 = vmul.f32 %v3282, %v1221
        %v3315 = vmul.f32 %v3283, %v1221
        %v3316 = vmul.f32 %v3284, %v1221
        %v3317 = vmul.f32 %v3285, %v1221
        %v3318 = vmul.f32 %v3286, %v1221
        %v3319 = vmul.f32 %v3287, %v1221
        %v3320 = vmul.f32 %v3288, %v1221
        %v3321 = vmul.f32 %v3289, %v1221
        %v3322 = vmul.f32 %v3290, %v1221
        %v3323 = vmul.f32 %v3291, %v1221
        %v3324 = vmul.f32 %v3292, %v1221
        %v3325 = vmul.f32 %v3293, %v1221
        %v3326 = vmul.f32 %v3294, %v1221
        %v3327 = vmul.f32 %v3295, %v1221
        %v3328 = vmul.f32 %v3296, %v1221
        %v3329 = vmul.f32 %v3297, %v1221
        %v3330 = vmul.f32 %v3298, %v1221
        %v3331 = vmul.f32 %v3299, %v1221
        %v3332 = vmul.f32 %v3300, %v1221
        %v3333 = vmul.f32 %v3301, %v1221
        %v3334 = vmul.f32 %v3302, %v1221
        %v3335 = vmul.f32 %v3303, %v1221
        %v3336 = vmul.f32 %v3304, %v1221
        %v3337 = vmul.f32 %v3305, %v1221
        %v3338 = vmul.f32 %v3306, %v1221
        %v3339 = vadd.f32 %v3307, %v1254
        %v3340 = vadd.f32 %v3308, %v1254
        %v3341 = vadd.f32 %v3309, %v1254
        %v3342 = vadd.f32 %v3310, %v1254
        %v3343 = vadd.f32 %v3311, %v1254
        %v3344 = vadd.f32 %v3312, %v1254
        %v3345 = vadd.f32 %v3313, %v1254
        %v3346 = vadd.f32 %v3314, %v1254
        %v3347 = vadd.f32 %v3315, %v1254
        %v3348 = vadd.f32 %v3316, %v1254
        %v3349 = vadd.f32 %v3317, %v1254
        %v3350 = vadd.f32 %v3318, %v1254
        %v3351 = vadd.f32 %v3319, %v1254
        %v3352 = vadd.f32 %v3320, %v1254
        %v3353 = vadd.f32 %v3321, %v1254
        %v3354 = vadd.f32 %v3322, %v1254
        %v3355 = vadd.f32 %v3323, %v1254
        %v3356 = vadd.f32 %v3324, %v1254
        %v3357 = vadd.f32 %v3325, %v1254
        %v3358 = vadd.f32 %v3326, %v1254
        %v3359 = vadd.f32 %v3327, %v1254
        %v3360 = vadd.f32 %v3328, %v1254
        %v3361 = vadd.f32 %v3329, %v1254
        %v3362 = vadd.f32 %v3330, %v1254
        %v3363 = vadd.f32 %v3331, %v1254
        %v3364 = vadd.f32 %v3332, %v1254
        %v3365 = vadd.f32 %v3333, %v1254
        %v3366 = vadd.f32 %v3334, %v1254
        %v3367 = vadd.f32 %v3335, %v1254
        %v3368 = vadd.f32 %v3336, %v1254
        %v3369 = vadd.f32 %v3337, %v1254
        %v3370 = vadd.f32 %v3338, %v1254
        %v3371 = vpack.c.bf16 %v3340, %v3339
        %v3372 = vpack.c.bf16 %v3342, %v3341
        %v3373 = vpack.c.bf16 %v3344, %v3343
        %v3374 = vpack.c.bf16 %v3346, %v3345
        %v3375 = vpack.c.bf16 %v3348, %v3347
        %v3376 = vpack.c.bf16 %v3350, %v3349
        %v3377 = vpack.c.bf16 %v3352, %v3351
        %v3378 = vpack.c.bf16 %v3354, %v3353
        %v3379 = vpack.c.bf16 %v3356, %v3355
        %v3380 = vpack.c.bf16 %v3358, %v3357
        %v3381 = vpack.c.bf16 %v3360, %v3359
        %v3382 = vpack.c.bf16 %v3362, %v3361
        %v3383 = vpack.c.bf16 %v3364, %v3363
        %v3384 = vpack.c.bf16 %v3366, %v3365
        %v3385 = vpack.c.bf16 %v3368, %v3367
        %v3386 = vpack.c.bf16 %v3370, %v3369
        %v3388 = vperm.slane %v364, 0
        %v3389 = vperm.slane %v364, 1
        %v3408 = vunpack.c.l.b16 %v494
        %v3409 = vunpack.c.h.b16 %v494
        %v3410 = vunpack.c.l.b16 %v495
        %v3411 = vunpack.c.h.b16 %v495
        %v3412 = vunpack.c.l.b16 %v496
        %v3413 = vunpack.c.h.b16 %v496
        %v3414 = vunpack.c.l.b16 %v497
        %v3415 = vunpack.c.h.b16 %v497
        %v3416 = vunpack.c.l.b16 %v498
        %v3417 = vunpack.c.h.b16 %v498
        %v3418 = vunpack.c.l.b16 %v499
        %v3419 = vunpack.c.h.b16 %v499
        %v3420 = vunpack.c.l.b16 %v500
        %v3421 = vunpack.c.h.b16 %v500
        %v3422 = vunpack.c.l.b16 %v501
        %v3423 = vunpack.c.h.b16 %v501
        %v3424 = vunpack.c.l.b16 %v502
        %v3425 = vunpack.c.h.b16 %v502
        %v3426 = vunpack.c.l.b16 %v503
        %v3427 = vunpack.c.h.b16 %v503
        %v3428 = vunpack.c.l.b16 %v504
        %v3429 = vunpack.c.h.b16 %v504
        %v3430 = vunpack.c.l.b16 %v505
        %v3431 = vunpack.c.h.b16 %v505
        %v3432 = vunpack.c.l.b16 %v506
        %v3433 = vunpack.c.h.b16 %v506
        %v3434 = vunpack.c.l.b16 %v507
        %v3435 = vunpack.c.h.b16 %v507
        %v3436 = vunpack.c.l.b16 %v508
        %v3437 = vunpack.c.h.b16 %v508
        %v3438 = vunpack.c.l.b16 %v509
        %v3439 = vunpack.c.h.b16 %v509
        %v3440 = vpack.c.b16 %v3410, %v3408
        %v3441 = vpack.c.b16 %v3411, %v3409
        %v3442 = vpack.c.b16 %v3414, %v3412
        %v3443 = vpack.c.b16 %v3415, %v3413
        %v3444 = vpack.c.b16 %v3418, %v3416
        %v3445 = vpack.c.b16 %v3419, %v3417
        %v3446 = vpack.c.b16 %v3422, %v3420
        %v3447 = vpack.c.b16 %v3423, %v3421
        %v3448 = vpack.c.b16 %v3426, %v3424
        %v3449 = vpack.c.b16 %v3427, %v3425
        %v3450 = vpack.c.b16 %v3430, %v3428
        %v3451 = vpack.c.b16 %v3431, %v3429
        %v3452 = vpack.c.b16 %v3434, %v3432
        %v3453 = vpack.c.b16 %v3435, %v3433
        %v3454 = vpack.c.b16 %v3438, %v3436
        %v3455 = vpack.c.b16 %v3439, %v3437
        %3472 = vmatpush.bf16.msra.mxu0 %v3454
        %3473 = vmatpush.bf16.msra.mxu0 %v3452
        %3474 = vmatpush.bf16.msra.mxu0 %v3450
        %3475 = vmatpush.bf16.msra.mxu0 %v3448
        %3476 = vmatpush.bf16.msra.mxu0 %v3446
        %3477 = vmatpush.bf16.msra.mxu0 %v3444
        %3478 = vmatpush.bf16.msra.mxu0 %v3442
        %3479 = vmatpush.bf16.msra.mxu0 %v3440
        %3480 = vmatmul.bf16.gmra.mxu0 %v3371
        %v3481 = vpop.f32.mrf.mxu0
        %v3482 = vadd.f32 %v3388, %v3481
        %v3483 = vpop.f32.mrf.mxu0
        %v3484 = vadd.f32 %v3388, %v3483
        %3485 = vmatmul.bf16.gmra.mxu0 %v3372
        %v3486 = vpop.f32.mrf.mxu0
        %v3487 = vadd.f32 %v3388, %v3486
        %v3488 = vpop.f32.mrf.mxu0
        %v3489 = vadd.f32 %v3388, %v3488
        %3490 = vmatmul.bf16.gmra.mxu0 %v3373
        %v3491 = vpop.f32.mrf.mxu0
        %v3492 = vadd.f32 %v3388, %v3491
        %v3493 = vpop.f32.mrf.mxu0
        %v3494 = vadd.f32 %v3388, %v3493
        %3495 = vmatmul.bf16.gmra.mxu0 %v3374
        %v3496 = vpop.f32.mrf.mxu0
        %v3497 = vadd.f32 %v3388, %v3496
        %v3498 = vpop.f32.mrf.mxu0
        %v3499 = vadd.f32 %v3388, %v3498
        %3500 = vmatmul.bf16.gmra.mxu0 %v3375
        %v3501 = vpop.f32.mrf.mxu0
        %v3502 = vadd.f32 %v3388, %v3501
        %v3503 = vpop.f32.mrf.mxu0
        %v3504 = vadd.f32 %v3388, %v3503
        %3505 = vmatmul.bf16.gmra.mxu0 %v3376
        %v3506 = vpop.f32.mrf.mxu0
        %v3507 = vadd.f32 %v3388, %v3506
        %v3508 = vpop.f32.mrf.mxu0
        %v3509 = vadd.f32 %v3388, %v3508
        %3510 = vmatmul.bf16.gmra.mxu0 %v3377
        %v3511 = vpop.f32.mrf.mxu0
        %v3512 = vadd.f32 %v3388, %v3511
        %v3513 = vpop.f32.mrf.mxu0
        %v3514 = vadd.f32 %v3388, %v3513
        %3515 = vmatmul.bf16.gmra.mxu0 %v3378
        %v3516 = vpop.f32.mrf.mxu0
        %v3517 = vadd.f32 %v3388, %v3516
        %v3518 = vpop.f32.mrf.mxu0
        %v3519 = vadd.f32 %v3388, %v3518
        %3520 = vmatmul.bf16.gmra.mxu0 %v3379
        %v3521 = vpop.f32.mrf.mxu0
        %v3522 = vadd.f32 %v3388, %v3521
        %v3523 = vpop.f32.mrf.mxu0
        %v3524 = vadd.f32 %v3388, %v3523
        %3525 = vmatmul.bf16.gmra.mxu0 %v3380
        %v3526 = vpop.f32.mrf.mxu0
        %v3527 = vadd.f32 %v3388, %v3526
        %v3528 = vpop.f32.mrf.mxu0
        %v3529 = vadd.f32 %v3388, %v3528
        %3530 = vmatmul.bf16.gmra.mxu0 %v3381
        %v3531 = vpop.f32.mrf.mxu0
        %v3532 = vadd.f32 %v3388, %v3531
        %v3533 = vpop.f32.mrf.mxu0
        %v3534 = vadd.f32 %v3388, %v3533
        %3535 = vmatmul.bf16.gmra.mxu0 %v3382
        %v3536 = vpop.f32.mrf.mxu0
        %v3537 = vadd.f32 %v3388, %v3536
        %v3538 = vpop.f32.mrf.mxu0
        %v3539 = vadd.f32 %v3388, %v3538
        %3540 = vmatmul.bf16.gmra.mxu0 %v3383
        %v3541 = vpop.f32.mrf.mxu0
        %v3542 = vadd.f32 %v3388, %v3541
        %v3543 = vpop.f32.mrf.mxu0
        %v3544 = vadd.f32 %v3388, %v3543
        %3545 = vmatmul.bf16.gmra.mxu0 %v3384
        %v3546 = vpop.f32.mrf.mxu0
        %v3547 = vadd.f32 %v3388, %v3546
        %v3548 = vpop.f32.mrf.mxu0
        %v3549 = vadd.f32 %v3388, %v3548
        %3550 = vmatmul.bf16.gmra.mxu0 %v3385
        %v3551 = vpop.f32.mrf.mxu0
        %v3552 = vadd.f32 %v3388, %v3551
        %v3553 = vpop.f32.mrf.mxu0
        %v3554 = vadd.f32 %v3388, %v3553
        %3555 = vmatmul.bf16.gmra.mxu0 %v3386
        %v3556 = vpop.f32.mrf.mxu0
        %v3557 = vadd.f32 %v3388, %v3556
        %v3558 = vpop.f32.mrf.mxu0
        %v3559 = vadd.f32 %v3388, %v3558
        %3560 = vdwg.mxu0
        %3561 = vmatpush.bf16.msra.mxu0 %v3455
        %3562 = vmatpush.bf16.msra.mxu0 %v3453
        %3563 = vmatpush.bf16.msra.mxu0 %v3451
        %3564 = vmatpush.bf16.msra.mxu0 %v3449
        %3565 = vmatpush.bf16.msra.mxu0 %v3447
        %3566 = vmatpush.bf16.msra.mxu0 %v3445
        %3567 = vmatpush.bf16.msra.mxu0 %v3443
        %3568 = vmatpush.bf16.msra.mxu0 %v3441
        %3569 = vmatmul.bf16.gmra.mxu0 %v3371
        %v3570 = vpop.f32.mrf.mxu0
        %v3571 = vadd.f32 %v3389, %v3570
        %v3572 = vpop.f32.mrf.mxu0
        %v3573 = vadd.f32 %v3389, %v3572
        %3574 = vmatmul.bf16.gmra.mxu0 %v3372
        %v3575 = vpop.f32.mrf.mxu0
        %v3576 = vadd.f32 %v3389, %v3575
        %v3577 = vpop.f32.mrf.mxu0
        %v3578 = vadd.f32 %v3389, %v3577
        %3579 = vmatmul.bf16.gmra.mxu0 %v3373
        %v3580 = vpop.f32.mrf.mxu0
        %v3581 = vadd.f32 %v3389, %v3580
        %v3582 = vpop.f32.mrf.mxu0
        %v3583 = vadd.f32 %v3389, %v3582
        %3584 = vmatmul.bf16.gmra.mxu0 %v3374
        %v3585 = vpop.f32.mrf.mxu0
        %v3586 = vadd.f32 %v3389, %v3585
        %v3587 = vpop.f32.mrf.mxu0
        %v3588 = vadd.f32 %v3389, %v3587
        %3589 = vmatmul.bf16.gmra.mxu0 %v3375
        %v3590 = vpop.f32.mrf.mxu0
        %v3591 = vadd.f32 %v3389, %v3590
        %v3592 = vpop.f32.mrf.mxu0
        %v3593 = vadd.f32 %v3389, %v3592
        %3594 = vmatmul.bf16.gmra.mxu0 %v3376
        %v3595 = vpop.f32.mrf.mxu0
        %v3596 = vadd.f32 %v3389, %v3595
        %v3597 = vpop.f32.mrf.mxu0
        %v3598 = vadd.f32 %v3389, %v3597
        %3599 = vmatmul.bf16.gmra.mxu0 %v3377
        %v3600 = vpop.f32.mrf.mxu0
        %v3601 = vadd.f32 %v3389, %v3600
        %v3602 = vpop.f32.mrf.mxu0
        %v3603 = vadd.f32 %v3389, %v3602
        %3604 = vmatmul.bf16.gmra.mxu0 %v3378
        %v3605 = vpop.f32.mrf.mxu0
        %v3606 = vadd.f32 %v3389, %v3605
        %v3607 = vpop.f32.mrf.mxu0
        %v3608 = vadd.f32 %v3389, %v3607
        %3609 = vmatmul.bf16.gmra.mxu0 %v3379
        %v3610 = vpop.f32.mrf.mxu0
        %v3611 = vadd.f32 %v3389, %v3610
        %v3612 = vpop.f32.mrf.mxu0
        %v3613 = vadd.f32 %v3389, %v3612
        %3614 = vmatmul.bf16.gmra.mxu0 %v3380
        %v3615 = vpop.f32.mrf.mxu0
        %v3616 = vadd.f32 %v3389, %v3615
        %v3617 = vpop.f32.mrf.mxu0
        %v3618 = vadd.f32 %v3389, %v3617
        %3619 = vmatmul.bf16.gmra.mxu0 %v3381
        %v3620 = vpop.f32.mrf.mxu0
        %v3621 = vadd.f32 %v3389, %v3620
        %v3622 = vpop.f32.mrf.mxu0
        %v3623 = vadd.f32 %v3389, %v3622
        %3624 = vmatmul.bf16.gmra.mxu0 %v3382
        %v3625 = vpop.f32.mrf.mxu0
        %v3626 = vadd.f32 %v3389, %v3625
        %v3627 = vpop.f32.mrf.mxu0
        %v3628 = vadd.f32 %v3389, %v3627
        %3629 = vmatmul.bf16.gmra.mxu0 %v3383
        %v3630 = vpop.f32.mrf.mxu0
        %v3631 = vadd.f32 %v3389, %v3630
        %v3632 = vpop.f32.mrf.mxu0
        %v3633 = vadd.f32 %v3389, %v3632
        %3634 = vmatmul.bf16.gmra.mxu0 %v3384
        %v3635 = vpop.f32.mrf.mxu0
        %v3636 = vadd.f32 %v3389, %v3635
        %v3637 = vpop.f32.mrf.mxu0
        %v3638 = vadd.f32 %v3389, %v3637
        %3639 = vmatmul.bf16.gmra.mxu0 %v3385
        %v3640 = vpop.f32.mrf.mxu0
        %v3641 = vadd.f32 %v3389, %v3640
        %v3642 = vpop.f32.mrf.mxu0
        %v3643 = vadd.f32 %v3389, %v3642
        %3644 = vmatmul.bf16.gmra.mxu0 %v3386
        %v3645 = vpop.f32.mrf.mxu0
        %v3646 = vadd.f32 %v3389, %v3645
        %v3647 = vpop.f32.mrf.mxu0
        %v3648 = vadd.f32 %v3389, %v3647
        %3649 = vdwg.mxu0
        %v3650 = vmul.f32 %v3482, %v3482
        %v3651 = vmul.f32 %v3571, %v3571
        %v3652 = vmul.f32 %v3484, %v3484
        %v3653 = vmul.f32 %v3573, %v3573
        %v3654 = vmul.f32 %v3487, %v3487
        %v3655 = vmul.f32 %v3576, %v3576
        %v3656 = vmul.f32 %v3489, %v3489
        %v3657 = vmul.f32 %v3578, %v3578
        %v3658 = vmul.f32 %v3492, %v3492
        %v3659 = vmul.f32 %v3581, %v3581
        %v3660 = vmul.f32 %v3494, %v3494
        %v3661 = vmul.f32 %v3583, %v3583
        %v3662 = vmul.f32 %v3497, %v3497
        %v3663 = vmul.f32 %v3586, %v3586
        %v3664 = vmul.f32 %v3499, %v3499
        %v3665 = vmul.f32 %v3588, %v3588
        %v3666 = vmul.f32 %v3502, %v3502
        %v3667 = vmul.f32 %v3591, %v3591
        %v3668 = vmul.f32 %v3504, %v3504
        %v3669 = vmul.f32 %v3593, %v3593
        %v3670 = vmul.f32 %v3507, %v3507
        %v3671 = vmul.f32 %v3596, %v3596
        %v3672 = vmul.f32 %v3509, %v3509
        %v3673 = vmul.f32 %v3598, %v3598
        %v3674 = vmul.f32 %v3512, %v3512
        %v3675 = vmul.f32 %v3601, %v3601
        %v3676 = vmul.f32 %v3514, %v3514
        %v3677 = vmul.f32 %v3603, %v3603
        %v3678 = vmul.f32 %v3517, %v3517
        %v3679 = vmul.f32 %v3606, %v3606
        %v3680 = vmul.f32 %v3519, %v3519
        %v3681 = vmul.f32 %v3608, %v3608
        %v3682 = vmul.f32 %v3522, %v3522
        %v3683 = vmul.f32 %v3611, %v3611
        %v3684 = vmul.f32 %v3524, %v3524
        %v3685 = vmul.f32 %v3613, %v3613
        %v3686 = vmul.f32 %v3527, %v3527
        %v3687 = vmul.f32 %v3616, %v3616
        %v3688 = vmul.f32 %v3529, %v3529
        %v3689 = vmul.f32 %v3618, %v3618
        %v3690 = vmul.f32 %v3532, %v3532
        %v3691 = vmul.f32 %v3621, %v3621
        %v3692 = vmul.f32 %v3534, %v3534
        %v3693 = vmul.f32 %v3623, %v3623
        %v3694 = vmul.f32 %v3537, %v3537
        %v3695 = vmul.f32 %v3626, %v3626
        %v3696 = vmul.f32 %v3539, %v3539
        %v3697 = vmul.f32 %v3628, %v3628
        %v3698 = vmul.f32 %v3542, %v3542
        %v3699 = vmul.f32 %v3631, %v3631
        %v3700 = vmul.f32 %v3544, %v3544
        %v3701 = vmul.f32 %v3633, %v3633
        %v3702 = vmul.f32 %v3547, %v3547
        %v3703 = vmul.f32 %v3636, %v3636
        %v3704 = vmul.f32 %v3549, %v3549
        %v3705 = vmul.f32 %v3638, %v3638
        %v3706 = vmul.f32 %v3552, %v3552
        %v3707 = vmul.f32 %v3641, %v3641
        %v3708 = vmul.f32 %v3554, %v3554
        %v3709 = vmul.f32 %v3643, %v3643
        %v3710 = vmul.f32 %v3557, %v3557
        %v3711 = vmul.f32 %v3646, %v3646
        %v3712 = vmul.f32 %v3559, %v3559
        %v3713 = vmul.f32 %v3648, %v3648
        %v3714 = vmul.f32 %v3482, %v3650
        %v3715 = vmul.f32 %v3571, %v3651
        %v3716 = vmul.f32 %v3484, %v3652
        %v3717 = vmul.f32 %v3573, %v3653
        %v3718 = vmul.f32 %v3487, %v3654
        %v3719 = vmul.f32 %v3576, %v3655
        %v3720 = vmul.f32 %v3489, %v3656
        %v3721 = vmul.f32 %v3578, %v3657
        %v3722 = vmul.f32 %v3492, %v3658
        %v3723 = vmul.f32 %v3581, %v3659
        %v3724 = vmul.f32 %v3494, %v3660
        %v3725 = vmul.f32 %v3583, %v3661
        %v3726 = vmul.f32 %v3497, %v3662
        %v3727 = vmul.f32 %v3586, %v3663
        %v3728 = vmul.f32 %v3499, %v3664
        %v3729 = vmul.f32 %v3588, %v3665
        %v3730 = vmul.f32 %v3502, %v3666
        %v3731 = vmul.f32 %v3591, %v3667
        %v3732 = vmul.f32 %v3504, %v3668
        %v3733 = vmul.f32 %v3593, %v3669
        %v3734 = vmul.f32 %v3507, %v3670
        %v3735 = vmul.f32 %v3596, %v3671
        %v3736 = vmul.f32 %v3509, %v3672
        %v3737 = vmul.f32 %v3598, %v3673
        %v3738 = vmul.f32 %v3512, %v3674
        %v3739 = vmul.f32 %v3601, %v3675
        %v3740 = vmul.f32 %v3514, %v3676
        %v3741 = vmul.f32 %v3603, %v3677
        %v3742 = vmul.f32 %v3517, %v3678
        %v3743 = vmul.f32 %v3606, %v3679
        %v3744 = vmul.f32 %v3519, %v3680
        %v3745 = vmul.f32 %v3608, %v3681
        %v3746 = vmul.f32 %v3522, %v3682
        %v3747 = vmul.f32 %v3611, %v3683
        %v3748 = vmul.f32 %v3524, %v3684
        %v3749 = vmul.f32 %v3613, %v3685
        %v3750 = vmul.f32 %v3527, %v3686
        %v3751 = vmul.f32 %v3616, %v3687
        %v3752 = vmul.f32 %v3529, %v3688
        %v3753 = vmul.f32 %v3618, %v3689
        %v3754 = vmul.f32 %v3532, %v3690
        %v3755 = vmul.f32 %v3621, %v3691
        %v3756 = vmul.f32 %v3534, %v3692
        %v3757 = vmul.f32 %v3623, %v3693
        %v3758 = vmul.f32 %v3537, %v3694
        %v3759 = vmul.f32 %v3626, %v3695
        %v3760 = vmul.f32 %v3539, %v3696
        %v3761 = vmul.f32 %v3628, %v3697
        %v3762 = vmul.f32 %v3542, %v3698
        %v3763 = vmul.f32 %v3631, %v3699
        %v3764 = vmul.f32 %v3544, %v3700
        %v3765 = vmul.f32 %v3633, %v3701
        %v3766 = vmul.f32 %v3547, %v3702
        %v3767 = vmul.f32 %v3636, %v3703
        %v3768 = vmul.f32 %v3549, %v3704
        %v3769 = vmul.f32 %v3638, %v3705
        %v3770 = vmul.f32 %v3552, %v3706
        %v3771 = vmul.f32 %v3641, %v3707
        %v3772 = vmul.f32 %v3554, %v3708
        %v3773 = vmul.f32 %v3643, %v3709
        %v3774 = vmul.f32 %v3557, %v3710
        %v3775 = vmul.f32 %v3646, %v3711
        %v3776 = vmul.f32 %v3559, %v3712
        %v3777 = vmul.f32 %v3648, %v3713
        %v3778 = vmul.f32 %v3714, 0.044715
        %v3779 = vmul.f32 %v3715, 0.044715
        %v3780 = vmul.f32 %v3716, 0.044715
        %v3781 = vmul.f32 %v3717, 0.044715
        %v3782 = vmul.f32 %v3718, 0.044715
        %v3783 = vmul.f32 %v3719, 0.044715
        %v3784 = vmul.f32 %v3720, 0.044715
        %v3785 = vmul.f32 %v3721, 0.044715
        %v3786 = vmul.f32 %v3722, 0.044715
        %v3787 = vmul.f32 %v3723, 0.044715
        %v3788 = vmul.f32 %v3724, 0.044715
        %v3789 = vmul.f32 %v3725, 0.044715
        %v3790 = vmul.f32 %v3726, 0.044715
        %v3791 = vmul.f32 %v3727, 0.044715
        %v3792 = vmul.f32 %v3728, 0.044715
        %v3793 = vmul.f32 %v3729, 0.044715
        %v3794 = vmul.f32 %v3730, 0.044715
        %v3795 = vmul.f32 %v3731, 0.044715
        %v3796 = vmul.f32 %v3732, 0.044715
        %v3797 = vmul.f32 %v3733, 0.044715
        %v3798 = vmul.f32 %v3734, 0.044715
        %v3799 = vmul.f32 %v3735, 0.044715
        %v3800 = vmul.f32 %v3736, 0.044715
        %v3801 = vmul.f32 %v3737, 0.044715
        %v3802 = vmul.f32 %v3738, 0.044715
        %v3803 = vmul.f32 %v3739, 0.044715
        %v3804 = vmul.f32 %v3740, 0.044715
        %v3805 = vmul.f32 %v3741, 0.044715
        %v3806 = vmul.f32 %v3742, 0.044715
        %v3807 = vmul.f32 %v3743, 0.044715
        %v3808 = vmul.f32 %v3744, 0.044715
        %v3809 = vmul.f32 %v3745, 0.044715
        %v3810 = vmul.f32 %v3746, 0.044715
        %v3811 = vmul.f32 %v3747, 0.044715
        %v3812 = vmul.f32 %v3748, 0.044715
        %v3813 = vmul.f32 %v3749, 0.044715
        %v3814 = vmul.f32 %v3750, 0.044715
        %v3815 = vmul.f32 %v3751, 0.044715
        %v3816 = vmul.f32 %v3752, 0.044715
        %v3817 = vmul.f32 %v3753, 0.044715
        %v3818 = vmul.f32 %v3754, 0.044715
        %v3819 = vmul.f32 %v3755, 0.044715
        %v3820 = vmul.f32 %v3756, 0.044715
        %v3821 = vmul.f32 %v3757, 0.044715
        %v3822 = vmul.f32 %v3758, 0.044715
        %v3823 = vmul.f32 %v3759, 0.044715
        %v3824 = vmul.f32 %v3760, 0.044715
        %v3825 = vmul.f32 %v3761, 0.044715
        %v3826 = vmul.f32 %v3762, 0.044715
        %v3827 = vmul.f32 %v3763, 0.044715
        %v3828 = vmul.f32 %v3764, 0.044715
        %v3829 = vmul.f32 %v3765, 0.044715
        %v3830 = vmul.f32 %v3766, 0.044715
        %v3831 = vmul.f32 %v3767, 0.044715
        %v3832 = vmul.f32 %v3768, 0.044715
        %v3833 = vmul.f32 %v3769, 0.044715
        %v3834 = vmul.f32 %v3770, 0.044715
        %v3835 = vmul.f32 %v3771, 0.044715
        %v3836 = vmul.f32 %v3772, 0.044715
        %v3837 = vmul.f32 %v3773, 0.044715
        %v3838 = vmul.f32 %v3774, 0.044715
        %v3839 = vmul.f32 %v3775, 0.044715
        %v3840 = vmul.f32 %v3776, 0.044715
        %v3841 = vmul.f32 %v3777, 0.044715
        %v3842 = vadd.f32 %v3482, %v3778
        %v3843 = vadd.f32 %v3571, %v3779
        %v3844 = vadd.f32 %v3484, %v3780
        %v3845 = vadd.f32 %v3573, %v3781
        %v3846 = vadd.f32 %v3487, %v3782
        %v3847 = vadd.f32 %v3576, %v3783
        %v3848 = vadd.f32 %v3489, %v3784
        %v3849 = vadd.f32 %v3578, %v3785
        %v3850 = vadd.f32 %v3492, %v3786
        %v3851 = vadd.f32 %v3581, %v3787
        %v3852 = vadd.f32 %v3494, %v3788
        %v3853 = vadd.f32 %v3583, %v3789
        %v3854 = vadd.f32 %v3497, %v3790
        %v3855 = vadd.f32 %v3586, %v3791
        %v3856 = vadd.f32 %v3499, %v3792
        %v3857 = vadd.f32 %v3588, %v3793
        %v3858 = vadd.f32 %v3502, %v3794
        %v3859 = vadd.f32 %v3591, %v3795
        %v3860 = vadd.f32 %v3504, %v3796
        %v3861 = vadd.f32 %v3593, %v3797
        %v3862 = vadd.f32 %v3507, %v3798
        %v3863 = vadd.f32 %v3596, %v3799
        %v3864 = vadd.f32 %v3509, %v3800
        %v3865 = vadd.f32 %v3598, %v3801
        %v3866 = vadd.f32 %v3512, %v3802
        %v3867 = vadd.f32 %v3601, %v3803
        %v3868 = vadd.f32 %v3514, %v3804
        %v3869 = vadd.f32 %v3603, %v3805
        %v3870 = vadd.f32 %v3517, %v3806
        %v3871 = vadd.f32 %v3606, %v3807
        %v3872 = vadd.f32 %v3519, %v3808
        %v3873 = vadd.f32 %v3608, %v3809
        %v3874 = vadd.f32 %v3522, %v3810
        %v3875 = vadd.f32 %v3611, %v3811
        %v3876 = vadd.f32 %v3524, %v3812
        %v3877 = vadd.f32 %v3613, %v3813
        %v3878 = vadd.f32 %v3527, %v3814
        %v3879 = vadd.f32 %v3616, %v3815
        %v3880 = vadd.f32 %v3529, %v3816
        %v3881 = vadd.f32 %v3618, %v3817
        %v3882 = vadd.f32 %v3532, %v3818
        %v3883 = vadd.f32 %v3621, %v3819
        %v3884 = vadd.f32 %v3534, %v3820
        %v3885 = vadd.f32 %v3623, %v3821
        %v3886 = vadd.f32 %v3537, %v3822
        %v3887 = vadd.f32 %v3626, %v3823
        %v3888 = vadd.f32 %v3539, %v3824
        %v3889 = vadd.f32 %v3628, %v3825
        %v3890 = vadd.f32 %v3542, %v3826
        %v3891 = vadd.f32 %v3631, %v3827
        %v3892 = vadd.f32 %v3544, %v3828
        %v3893 = vadd.f32 %v3633, %v3829
        %v3894 = vadd.f32 %v3547, %v3830
        %v3895 = vadd.f32 %v3636, %v3831
        %v3896 = vadd.f32 %v3549, %v3832
        %v3897 = vadd.f32 %v3638, %v3833
        %v3898 = vadd.f32 %v3552, %v3834
        %v3899 = vadd.f32 %v3641, %v3835
        %v3900 = vadd.f32 %v3554, %v3836
        %v3901 = vadd.f32 %v3643, %v3837
        %v3902 = vadd.f32 %v3557, %v3838
        %v3903 = vadd.f32 %v3646, %v3839
        %v3904 = vadd.f32 %v3559, %v3840
        %v3905 = vadd.f32 %v3648, %v3841
        %v3906 = vmul.f32 %v3842, 0.7978846
        %v3907 = vmul.f32 %v3843, 0.7978846
        %v3908 = vmul.f32 %v3844, 0.7978846
        %v3909 = vmul.f32 %v3845, 0.7978846
        %v3910 = vmul.f32 %v3846, 0.7978846
        %v3911 = vmul.f32 %v3847, 0.7978846
        %v3912 = vmul.f32 %v3848, 0.7978846
        %v3913 = vmul.f32 %v3849, 0.7978846
        %v3914 = vmul.f32 %v3850, 0.7978846
        %v3915 = vmul.f32 %v3851, 0.7978846
        %v3916 = vmul.f32 %v3852, 0.7978846
        %v3917 = vmul.f32 %v3853, 0.7978846
        %v3918 = vmul.f32 %v3854, 0.7978846
        %v3919 = vmul.f32 %v3855, 0.7978846
        %v3920 = vmul.f32 %v3856, 0.7978846
        %v3921 = vmul.f32 %v3857, 0.7978846
        %v3922 = vmul.f32 %v3858, 0.7978846
        %v3923 = vmul.f32 %v3859, 0.7978846
        %v3924 = vmul.f32 %v3860, 0.7978846
        %v3925 = vmul.f32 %v3861, 0.7978846
        %v3926 = vmul.f32 %v3862, 0.7978846
        %v3927 = vmul.f32 %v3863, 0.7978846
        %v3928 = vmul.f32 %v3864, 0.7978846
        %v3929 = vmul.f32 %v3865, 0.7978846
        %v3930 = vmul.f32 %v3866, 0.7978846
        %v3931 = vmul.f32 %v3867, 0.7978846
        %v3932 = vmul.f32 %v3868, 0.7978846
        %v3933 = vmul.f32 %v3869, 0.7978846
        %v3934 = vmul.f32 %v3870, 0.7978846
        %v3935 = vmul.f32 %v3871, 0.7978846
        %v3936 = vmul.f32 %v3872, 0.7978846
        %v3937 = vmul.f32 %v3873, 0.7978846
        %v3938 = vmul.f32 %v3874, 0.7978846
        %v3939 = vmul.f32 %v3875, 0.7978846
        %v3940 = vmul.f32 %v3876, 0.7978846
        %v3941 = vmul.f32 %v3877, 0.7978846
        %v3942 = vmul.f32 %v3878, 0.7978846
        %v3943 = vmul.f32 %v3879, 0.7978846
        %v3944 = vmul.f32 %v3880, 0.7978846
        %v3945 = vmul.f32 %v3881, 0.7978846
        %v3946 = vmul.f32 %v3882, 0.7978846
        %v3947 = vmul.f32 %v3883, 0.7978846
        %v3948 = vmul.f32 %v3884, 0.7978846
        %v3949 = vmul.f32 %v3885, 0.7978846
        %v3950 = vmul.f32 %v3886, 0.7978846
        %v3951 = vmul.f32 %v3887, 0.7978846
        %v3952 = vmul.f32 %v3888, 0.7978846
        %v3953 = vmul.f32 %v3889, 0.7978846
        %v3954 = vmul.f32 %v3890, 0.7978846
        %v3955 = vmul.f32 %v3891, 0.7978846
        %v3956 = vmul.f32 %v3892, 0.7978846
        %v3957 = vmul.f32 %v3893, 0.7978846
        %v3958 = vmul.f32 %v3894, 0.7978846
        %v3959 = vmul.f32 %v3895, 0.7978846
        %v3960 = vmul.f32 %v3896, 0.7978846
        %v3961 = vmul.f32 %v3897, 0.7978846
        %v3962 = vmul.f32 %v3898, 0.7978846
        %v3963 = vmul.f32 %v3899, 0.7978846
        %v3964 = vmul.f32 %v3900, 0.7978846
        %v3965 = vmul.f32 %v3901, 0.7978846
        %v3966 = vmul.f32 %v3902, 0.7978846
        %v3967 = vmul.f32 %v3903, 0.7978846
        %v3968 = vmul.f32 %v3904, 0.7978846
        %v3969 = vmul.f32 %v3905, 0.7978846
        %v3970 = vtanh.pop %v3906
        %v3971 = vtanh.pop %v3907
        %v3972 = vtanh.pop %v3908
        %v3973 = vtanh.pop %v3909
        %v3974 = vtanh.pop %v3910
        %v3975 = vtanh.pop %v3911
        %v3976 = vtanh.pop %v3912
        %v3977 = vtanh.pop %v3913
        %v3978 = vtanh.pop %v3914
        %v3979 = vtanh.pop %v3915
        %v3980 = vtanh.pop %v3916
        %v3981 = vtanh.pop %v3917
        %v3982 = vtanh.pop %v3918
        %v3983 = vtanh.pop %v3919
        %v3984 = vtanh.pop %v3920
        %v3985 = vtanh.pop %v3921
        %v3986 = vtanh.pop %v3922
        %v3987 = vtanh.pop %v3923
        %v3988 = vtanh.pop %v3924
        %v3989 = vtanh.pop %v3925
        %v3990 = vtanh.pop %v3926
        %v3991 = vtanh.pop %v3927
        %v3992 = vtanh.pop %v3928
        %v3993 = vtanh.pop %v3929
        %v3994 = vtanh.pop %v3930
        %v3995 = vtanh.pop %v3931
        %v3996 = vtanh.pop %v3932
        %v3997 = vtanh.pop %v3933
        %v3998 = vtanh.pop %v3934
        %v3999 = vtanh.pop %v3935
        %v4000 = vtanh.pop %v3936
        %v4001 = vtanh.pop %v3937
        %v4002 = vtanh.pop %v3938
        %v4003 = vtanh.pop %v3939
        %v4004 = vtanh.pop %v3940
        %v4005 = vtanh.pop %v3941
        %v4006 = vtanh.pop %v3942
        %v4007 = vtanh.pop %v3943
        %v4008 = vtanh.pop %v3944
        %v4009 = vtanh.pop %v3945
        %v4010 = vtanh.pop %v3946
        %v4011 = vtanh.pop %v3947
        %v4012 = vtanh.pop %v3948
        %v4013 = vtanh.pop %v3949
        %v4014 = vtanh.pop %v3950
        %v4015 = vtanh.pop %v3951
        %v4016 = vtanh.pop %v3952
        %v4017 = vtanh.pop %v3953
        %v4018 = vtanh.pop %v3954
        %v4019 = vtanh.pop %v3955
        %v4020 = vtanh.pop %v3956
        %v4021 = vtanh.pop %v3957
        %v4022 = vtanh.pop %v3958
        %v4023 = vtanh.pop %v3959
        %v4024 = vtanh.pop %v3960
        %v4025 = vtanh.pop %v3961
        %v4026 = vtanh.pop %v3962
        %v4027 = vtanh.pop %v3963
        %v4028 = vtanh.pop %v3964
        %v4029 = vtanh.pop %v3965
        %v4030 = vtanh.pop %v3966
        %v4031 = vtanh.pop %v3967
        %v4032 = vtanh.pop %v3968
        %v4033 = vtanh.pop %v3969
        %v4034 = vadd.f32 %v3970, 1.0
        %v4035 = vadd.f32 %v3971, 1.0
        %v4036 = vadd.f32 %v3972, 1.0
        %v4037 = vadd.f32 %v3973, 1.0
        %v4038 = vadd.f32 %v3974, 1.0
        %v4039 = vadd.f32 %v3975, 1.0
        %v4040 = vadd.f32 %v3976, 1.0
        %v4041 = vadd.f32 %v3977, 1.0
        %v4042 = vadd.f32 %v3978, 1.0
        %v4043 = vadd.f32 %v3979, 1.0
        %v4044 = vadd.f32 %v3980, 1.0
        %v4045 = vadd.f32 %v3981, 1.0
        %v4046 = vadd.f32 %v3982, 1.0
        %v4047 = vadd.f32 %v3983, 1.0
        %v4048 = vadd.f32 %v3984, 1.0
        %v4049 = vadd.f32 %v3985, 1.0
        %v4050 = vadd.f32 %v3986, 1.0
        %v4051 = vadd.f32 %v3987, 1.0
        %v4052 = vadd.f32 %v3988, 1.0
        %v4053 = vadd.f32 %v3989, 1.0
        %v4054 = vadd.f32 %v3990, 1.0
        %v4055 = vadd.f32 %v3991, 1.0
        %v4056 = vadd.f32 %v3992, 1.0
        %v4057 = vadd.f32 %v3993, 1.0
        %v4058 = vadd.f32 %v3994, 1.0
        %v4059 = vadd.f32 %v3995, 1.0
        %v4060 = vadd.f32 %v3996, 1.0
        %v4061 = vadd.f32 %v3997, 1.0
        %v4062 = vadd.f32 %v3998, 1.0
        %v4063 = vadd.f32 %v3999, 1.0
        %v4064 = vadd.f32 %v4000, 1.0
        %v4065 = vadd.f32 %v4001, 1.0
        %v4066 = vadd.f32 %v4002, 1.0
        %v4067 = vadd.f32 %v4003, 1.0
        %v4068 = vadd.f32 %v4004, 1.0
        %v4069 = vadd.f32 %v4005, 1.0
        %v4070 = vadd.f32 %v4006, 1.0
        %v4071 = vadd.f32 %v4007, 1.0
        %v4072 = vadd.f32 %v4008, 1.0
        %v4073 = vadd.f32 %v4009, 1.0
        %v4074 = vadd.f32 %v4010, 1.0
        %v4075 = vadd.f32 %v4011, 1.0
        %v4076 = vadd.f32 %v4012, 1.0
        %v4077 = vadd.f32 %v4013, 1.0
        %v4078 = vadd.f32 %v4014, 1.0
        %v4079 = vadd.f32 %v4015, 1.0
        %v4080 = vadd.f32 %v4016, 1.0
        %v4081 = vadd.f32 %v4017, 1.0
        %v4082 = vadd.f32 %v4018, 1.0
        %v4083 = vadd.f32 %v4019, 1.0
        %v4084 = vadd.f32 %v4020, 1.0
        %v4085 = vadd.f32 %v4021, 1.0
        %v4086 = vadd.f32 %v4022, 1.0
        %v4087 = vadd.f32 %v4023, 1.0
        %v4088 = vadd.f32 %v4024, 1.0
        %v4089 = vadd.f32 %v4025, 1.0
        %v4090 = vadd.f32 %v4026, 1.0
        %v4091 = vadd.f32 %v4027, 1.0
        %v4092 = vadd.f32 %v4028, 1.0
        %v4093 = vadd.f32 %v4029, 1.0
        %v4094 = vadd.f32 %v4030, 1.0
        %v4095 = vadd.f32 %v4031, 1.0
        %v4096 = vadd.f32 %v4032, 1.0
        %v4097 = vadd.f32 %v4033, 1.0
        %v4098 = vmul.f32 %v4034, 0.5
        %v4099 = vmul.f32 %v4035, 0.5
        %v4100 = vmul.f32 %v4036, 0.5
        %v4101 = vmul.f32 %v4037, 0.5
        %v4102 = vmul.f32 %v4038, 0.5
        %v4103 = vmul.f32 %v4039, 0.5
        %v4104 = vmul.f32 %v4040, 0.5
        %v4105 = vmul.f32 %v4041, 0.5
        %v4106 = vmul.f32 %v4042, 0.5
        %v4107 = vmul.f32 %v4043, 0.5
        %v4108 = vmul.f32 %v4044, 0.5
        %v4109 = vmul.f32 %v4045, 0.5
        %v4110 = vmul.f32 %v4046, 0.5
        %v4111 = vmul.f32 %v4047, 0.5
        %v4112 = vmul.f32 %v4048, 0.5
        %v4113 = vmul.f32 %v4049, 0.5
        %v4114 = vmul.f32 %v4050, 0.5
        %v4115 = vmul.f32 %v4051, 0.5
        %v4116 = vmul.f32 %v4052, 0.5
        %v4117 = vmul.f32 %v4053, 0.5
        %v4118 = vmul.f32 %v4054, 0.5
        %v4119 = vmul.f32 %v4055, 0.5
        %v4120 = vmul.f32 %v4056, 0.5
        %v4121 = vmul.f32 %v4057, 0.5
        %v4122 = vmul.f32 %v4058, 0.5
        %v4123 = vmul.f32 %v4059, 0.5
        %v4124 = vmul.f32 %v4060, 0.5
        %v4125 = vmul.f32 %v4061, 0.5
        %v4126 = vmul.f32 %v4062, 0.5
        %v4127 = vmul.f32 %v4063, 0.5
        %v4128 = vmul.f32 %v4064, 0.5
        %v4129 = vmul.f32 %v4065, 0.5
        %v4130 = vmul.f32 %v4066, 0.5
        %v4131 = vmul.f32 %v4067, 0.5
        %v4132 = vmul.f32 %v4068, 0.5
        %v4133 = vmul.f32 %v4069, 0.5
        %v4134 = vmul.f32 %v4070, 0.5
        %v4135 = vmul.f32 %v4071, 0.5
        %v4136 = vmul.f32 %v4072, 0.5
        %v4137 = vmul.f32 %v4073, 0.5
        %v4138 = vmul.f32 %v4074, 0.5
        %v4139 = vmul.f32 %v4075, 0.5
        %v4140 = vmul.f32 %v4076, 0.5
        %v4141 = vmul.f32 %v4077, 0.5
        %v4142 = vmul.f32 %v4078, 0.5
        %v4143 = vmul.f32 %v4079, 0.5
        %v4144 = vmul.f32 %v4080, 0.5
        %v4145 = vmul.f32 %v4081, 0.5
        %v4146 = vmul.f32 %v4082, 0.5
        %v4147 = vmul.f32 %v4083, 0.5
        %v4148 = vmul.f32 %v4084, 0.5
        %v4149 = vmul.f32 %v4085, 0.5
        %v4150 = vmul.f32 %v4086, 0.5
        %v4151 = vmul.f32 %v4087, 0.5
        %v4152 = vmul.f32 %v4088, 0.5
        %v4153 = vmul.f32 %v4089, 0.5
        %v4154 = vmul.f32 %v4090, 0.5
        %v4155 = vmul.f32 %v4091, 0.5
        %v4156 = vmul.f32 %v4092, 0.5
        %v4157 = vmul.f32 %v4093, 0.5
        %v4158 = vmul.f32 %v4094, 0.5
        %v4159 = vmul.f32 %v4095, 0.5
        %v4160 = vmul.f32 %v4096, 0.5
        %v4161 = vmul.f32 %v4097, 0.5
        %v4162 = vmul.f32 %v3482, %v4098
        %v4163 = vmul.f32 %v3571, %v4099
        %v4164 = vmul.f32 %v3484, %v4100
        %v4165 = vmul.f32 %v3573, %v4101
        %v4166 = vmul.f32 %v3487, %v4102
        %v4167 = vmul.f32 %v3576, %v4103
        %v4168 = vmul.f32 %v3489, %v4104
        %v4169 = vmul.f32 %v3578, %v4105
        %v4170 = vmul.f32 %v3492, %v4106
        %v4171 = vmul.f32 %v3581, %v4107
        %v4172 = vmul.f32 %v3494, %v4108
        %v4173 = vmul.f32 %v3583, %v4109
        %v4174 = vmul.f32 %v3497, %v4110
        %v4175 = vmul.f32 %v3586, %v4111
        %v4176 = vmul.f32 %v3499, %v4112
        %v4177 = vmul.f32 %v3588, %v4113
        %v4178 = vmul.f32 %v3502, %v4114
        %v4179 = vmul.f32 %v3591, %v4115
        %v4180 = vmul.f32 %v3504, %v4116
        %v4181 = vmul.f32 %v3593, %v4117
        %v4182 = vmul.f32 %v3507, %v4118
        %v4183 = vmul.f32 %v3596, %v4119
        %v4184 = vmul.f32 %v3509, %v4120
        %v4185 = vmul.f32 %v3598, %v4121
        %v4186 = vmul.f32 %v3512, %v4122
        %v4187 = vmul.f32 %v3601, %v4123
        %v4188 = vmul.f32 %v3514, %v4124
        %v4189 = vmul.f32 %v3603, %v4125
        %v4190 = vmul.f32 %v3517, %v4126
        %v4191 = vmul.f32 %v3606, %v4127
        %v4192 = vmul.f32 %v3519, %v4128
        %v4193 = vmul.f32 %v3608, %v4129
        %v4194 = vmul.f32 %v3522, %v4130
        %v4195 = vmul.f32 %v3611, %v4131
        %v4196 = vmul.f32 %v3524, %v4132
        %v4197 = vmul.f32 %v3613, %v4133
        %v4198 = vmul.f32 %v3527, %v4134
        %v4199 = vmul.f32 %v3616, %v4135
        %v4200 = vmul.f32 %v3529, %v4136
        %v4201 = vmul.f32 %v3618, %v4137
        %v4202 = vmul.f32 %v3532, %v4138
        %v4203 = vmul.f32 %v3621, %v4139
        %v4204 = vmul.f32 %v3534, %v4140
        %v4205 = vmul.f32 %v3623, %v4141
        %v4206 = vmul.f32 %v3537, %v4142
        %v4207 = vmul.f32 %v3626, %v4143
        %v4208 = vmul.f32 %v3539, %v4144
        %v4209 = vmul.f32 %v3628, %v4145
        %v4210 = vmul.f32 %v3542, %v4146
        %v4211 = vmul.f32 %v3631, %v4147
        %v4212 = vmul.f32 %v3544, %v4148
        %v4213 = vmul.f32 %v3633, %v4149
        %v4214 = vmul.f32 %v3547, %v4150
        %v4215 = vmul.f32 %v3636, %v4151
        %v4216 = vmul.f32 %v3549, %v4152
        %v4217 = vmul.f32 %v3638, %v4153
        %v4218 = vmul.f32 %v3552, %v4154
        %v4219 = vmul.f32 %v3641, %v4155
        %v4220 = vmul.f32 %v3554, %v4156
        %v4221 = vmul.f32 %v3643, %v4157
        %v4222 = vmul.f32 %v3557, %v4158
        %v4223 = vmul.f32 %v3646, %v4159
        %v4224 = vmul.f32 %v3559, %v4160
        %v4225 = vmul.f32 %v3648, %v4161
        %v4226 = vpack.c.bf16 %v4164, %v4162
        %v4227 = vpack.c.bf16 %v4165, %v4163
        %v4228 = vpack.c.bf16 %v4168, %v4166
        %v4229 = vpack.c.bf16 %v4169, %v4167
        %v4230 = vpack.c.bf16 %v4172, %v4170
        %v4231 = vpack.c.bf16 %v4173, %v4171
        %v4232 = vpack.c.bf16 %v4176, %v4174
        %v4233 = vpack.c.bf16 %v4177, %v4175
        %v4234 = vpack.c.bf16 %v4180, %v4178
        %v4235 = vpack.c.bf16 %v4181, %v4179
        %v4236 = vpack.c.bf16 %v4184, %v4182
        %v4237 = vpack.c.bf16 %v4185, %v4183
        %v4238 = vpack.c.bf16 %v4188, %v4186
        %v4239 = vpack.c.bf16 %v4189, %v4187
        %v4240 = vpack.c.bf16 %v4192, %v4190
        %v4241 = vpack.c.bf16 %v4193, %v4191
        %v4242 = vpack.c.bf16 %v4196, %v4194
        %v4243 = vpack.c.bf16 %v4197, %v4195
        %v4244 = vpack.c.bf16 %v4200, %v4198
        %v4245 = vpack.c.bf16 %v4201, %v4199
        %v4246 = vpack.c.bf16 %v4204, %v4202
        %v4247 = vpack.c.bf16 %v4205, %v4203
        %v4248 = vpack.c.bf16 %v4208, %v4206
        %v4249 = vpack.c.bf16 %v4209, %v4207
        %v4250 = vpack.c.bf16 %v4212, %v4210
        %v4251 = vpack.c.bf16 %v4213, %v4211
        %v4252 = vpack.c.bf16 %v4216, %v4214
        %v4253 = vpack.c.bf16 %v4217, %v4215
        %v4254 = vpack.c.bf16 %v4220, %v4218
        %v4255 = vpack.c.bf16 %v4221, %v4219
        %v4256 = vpack.c.bf16 %v4224, %v4222
        %v4257 = vpack.c.bf16 %v4225, %v4223
        %v4290 = vunpack.c.l.b16 %v510
        %v4291 = vunpack.c.l.b16 %v511
        %v4292 = vunpack.c.l.b16 %v512
        %v4293 = vunpack.c.l.b16 %v513
        %v4294 = vunpack.c.l.b16 %v514
        %v4295 = vunpack.c.l.b16 %v515
        %v4296 = vunpack.c.l.b16 %v516
        %v4297 = vunpack.c.l.b16 %v517
        %v4298 = vunpack.c.l.b16 %v518
        %v4299 = vunpack.c.l.b16 %v519
        %v4300 = vunpack.c.l.b16 %v520
        %v4301 = vunpack.c.l.b16 %v521
        %v4302 = vunpack.c.l.b16 %v522
        %v4303 = vunpack.c.l.b16 %v523
        %v4304 = vunpack.c.l.b16 %v524
        %v4305 = vunpack.c.l.b16 %v525
        %v4306 = vunpack.c.l.b16 %v526
        %v4307 = vunpack.c.l.b16 %v527
        %v4308 = vunpack.c.l.b16 %v528
        %v4309 = vunpack.c.l.b16 %v529
        %v4310 = vunpack.c.l.b16 %v530
        %v4311 = vunpack.c.l.b16 %v531
        %v4312 = vunpack.c.l.b16 %v532
        %v4313 = vunpack.c.l.b16 %v533
        %v4314 = vunpack.c.l.b16 %v534
        %v4315 = vunpack.c.l.b16 %v535
        %v4316 = vunpack.c.l.b16 %v536
        %v4317 = vunpack.c.l.b16 %v537
        %v4318 = vunpack.c.l.b16 %v538
        %v4319 = vunpack.c.l.b16 %v539
        %v4320 = vunpack.c.l.b16 %v540
        %v4321 = vunpack.c.l.b16 %v541
        %v4322 = vpack.c.b16 %v4291, %v4290
        %v4323 = vpack.c.b16 %v4293, %v4292
        %v4324 = vpack.c.b16 %v4295, %v4294
        %v4325 = vpack.c.b16 %v4297, %v4296
        %v4326 = vpack.c.b16 %v4299, %v4298
        %v4327 = vpack.c.b16 %v4301, %v4300
        %v4328 = vpack.c.b16 %v4303, %v4302
        %v4329 = vpack.c.b16 %v4305, %v4304
        %v4330 = vpack.c.b16 %v4307, %v4306
        %v4331 = vpack.c.b16 %v4309, %v4308
        %v4332 = vpack.c.b16 %v4311, %v4310
        %v4333 = vpack.c.b16 %v4313, %v4312
        %v4334 = vpack.c.b16 %v4315, %v4314
        %v4335 = vpack.c.b16 %v4317, %v4316
        %v4336 = vpack.c.b16 %v4319, %v4318
        %v4337 = vpack.c.b16 %v4321, %v4320
        %4354 = vmatpush.bf16.msra.mxu0 %v4329
        %4355 = vmatpush.bf16.msra.mxu0 %v4328
        %4356 = vmatpush.bf16.msra.mxu0 %v4327
        %4357 = vmatpush.bf16.msra.mxu0 %v4326
        %4358 = vmatpush.bf16.msra.mxu0 %v4325
        %4359 = vmatpush.bf16.msra.mxu0 %v4324
        %4360 = vmatpush.bf16.msra.mxu0 %v4323
        %4361 = vmatpush.bf16.msra.mxu0 %v4322
        %4362 = vmatmul.bf16.gmra.mxu0 %v4226
        %v4363 = vpop.f32.mrf.mxu0
        %v4364 = vadd.f32 0.0, %v4363
        %v4365 = vpop.f32.mrf.mxu0
        %v4366 = vadd.f32 0.0, %v4365
        %4367 = vmatmul.bf16.gmra.mxu0 %v4228
        %v4368 = vpop.f32.mrf.mxu0
        %v4369 = vadd.f32 0.0, %v4368
        %v4370 = vpop.f32.mrf.mxu0
        %v4371 = vadd.f32 0.0, %v4370
        %4372 = vmatmul.bf16.gmra.mxu0 %v4230
        %v4373 = vpop.f32.mrf.mxu0
        %v4374 = vadd.f32 0.0, %v4373
        %v4375 = vpop.f32.mrf.mxu0
        %v4376 = vadd.f32 0.0, %v4375
        %4377 = vmatmul.bf16.gmra.mxu0 %v4232
        %v4378 = vpop.f32.mrf.mxu0
        %v4379 = vadd.f32 0.0, %v4378
        %v4380 = vpop.f32.mrf.mxu0
        %v4381 = vadd.f32 0.0, %v4380
        %4382 = vmatmul.bf16.gmra.mxu0 %v4234
        %v4383 = vpop.f32.mrf.mxu0
        %v4384 = vadd.f32 0.0, %v4383
        %v4385 = vpop.f32.mrf.mxu0
        %v4386 = vadd.f32 0.0, %v4385
        %4387 = vmatmul.bf16.gmra.mxu0 %v4236
        %v4388 = vpop.f32.mrf.mxu0
        %v4389 = vadd.f32 0.0, %v4388
        %v4390 = vpop.f32.mrf.mxu0
        %v4391 = vadd.f32 0.0, %v4390
        %4392 = vmatmul.bf16.gmra.mxu0 %v4238
        %v4393 = vpop.f32.mrf.mxu0
        %v4394 = vadd.f32 0.0, %v4393
        %v4395 = vpop.f32.mrf.mxu0
        %v4396 = vadd.f32 0.0, %v4395
        %4397 = vmatmul.bf16.gmra.mxu0 %v4240
        %v4398 = vpop.f32.mrf.mxu0
        %v4399 = vadd.f32 0.0, %v4398
        %v4400 = vpop.f32.mrf.mxu0
        %v4401 = vadd.f32 0.0, %v4400
        %4402 = vmatmul.bf16.gmra.mxu0 %v4242
        %v4403 = vpop.f32.mrf.mxu0
        %v4404 = vadd.f32 0.0, %v4403
        %v4405 = vpop.f32.mrf.mxu0
        %v4406 = vadd.f32 0.0, %v4405
        %4407 = vmatmul.bf16.gmra.mxu0 %v4244
        %v4408 = vpop.f32.mrf.mxu0
        %v4409 = vadd.f32 0.0, %v4408
        %v4410 = vpop.f32.mrf.mxu0
        %v4411 = vadd.f32 0.0, %v4410
        %4412 = vmatmul.bf16.gmra.mxu0 %v4246
        %v4413 = vpop.f32.mrf.mxu0
        %v4414 = vadd.f32 0.0, %v4413
        %v4415 = vpop.f32.mrf.mxu0
        %v4416 = vadd.f32 0.0, %v4415
        %4417 = vmatmul.bf16.gmra.mxu0 %v4248
        %v4418 = vpop.f32.mrf.mxu0
        %v4419 = vadd.f32 0.0, %v4418
        %v4420 = vpop.f32.mrf.mxu0
        %v4421 = vadd.f32 0.0, %v4420
        %4422 = vmatmul.bf16.gmra.mxu0 %v4250
        %v4423 = vpop.f32.mrf.mxu0
        %v4424 = vadd.f32 0.0, %v4423
        %v4425 = vpop.f32.mrf.mxu0
        %v4426 = vadd.f32 0.0, %v4425
        %4427 = vmatmul.bf16.gmra.mxu0 %v4252
        %v4428 = vpop.f32.mrf.mxu0
        %v4429 = vadd.f32 0.0, %v4428
        %v4430 = vpop.f32.mrf.mxu0
        %v4431 = vadd.f32 0.0, %v4430
        %4432 = vmatmul.bf16.gmra.mxu0 %v4254
        %v4433 = vpop.f32.mrf.mxu0
        %v4434 = vadd.f32 0.0, %v4433
        %v4435 = vpop.f32.mrf.mxu0
        %v4436 = vadd.f32 0.0, %v4435
        %4437 = vmatmul.bf16.gmra.mxu0 %v4256
        %v4438 = vpop.f32.mrf.mxu0
        %v4439 = vadd.f32 0.0, %v4438
        %v4440 = vpop.f32.mrf.mxu0
        %v4441 = vadd.f32 0.0, %v4440
        %4442 = vdwg.mxu0
        %4443 = vmatpush.bf16.msra.mxu0 %v4337
        %4444 = vmatpush.bf16.msra.mxu0 %v4336
        %4445 = vmatpush.bf16.msra.mxu0 %v4335
        %4446 = vmatpush.bf16.msra.mxu0 %v4334
        %4447 = vmatpush.bf16.msra.mxu0 %v4333
        %4448 = vmatpush.bf16.msra.mxu0 %v4332
        %4449 = vmatpush.bf16.msra.mxu0 %v4331
        %4450 = vmatpush.bf16.msra.mxu0 %v4330
        %4451 = vmatmul.bf16.gmra.mxu0 %v4227
        %v4452 = vpop.f32.mrf.mxu0
        %v4453 = vadd.f32 %v4364, %v4452
        %v4454 = vpop.f32.mrf.mxu0
        %v4455 = vadd.f32 %v4366, %v4454
        %4456 = vmatmul.bf16.gmra.mxu0 %v4229
        %v4457 = vpop.f32.mrf.mxu0
        %v4458 = vadd.f32 %v4369, %v4457
        %v4459 = vpop.f32.mrf.mxu0
        %v4460 = vadd.f32 %v4371, %v4459
        %4461 = vmatmul.bf16.gmra.mxu0 %v4231
        %v4462 = vpop.f32.mrf.mxu0
        %v4463 = vadd.f32 %v4374, %v4462
        %v4464 = vpop.f32.mrf.mxu0
        %v4465 = vadd.f32 %v4376, %v4464
        %4466 = vmatmul.bf16.gmra.mxu0 %v4233
        %v4467 = vpop.f32.mrf.mxu0
        %v4468 = vadd.f32 %v4379, %v4467
        %v4469 = vpop.f32.mrf.mxu0
        %v4470 = vadd.f32 %v4381, %v4469
        %4471 = vmatmul.bf16.gmra.mxu0 %v4235
        %v4472 = vpop.f32.mrf.mxu0
        %v4473 = vadd.f32 %v4384, %v4472
        %v4474 = vpop.f32.mrf.mxu0
        %v4475 = vadd.f32 %v4386, %v4474
        %4476 = vmatmul.bf16.gmra.mxu0 %v4237
        %v4477 = vpop.f32.mrf.mxu0
        %v4478 = vadd.f32 %v4389, %v4477
        %v4479 = vpop.f32.mrf.mxu0
        %v4480 = vadd.f32 %v4391, %v4479
        %4481 = vmatmul.bf16.gmra.mxu0 %v4239
        %v4482 = vpop.f32.mrf.mxu0
        %v4483 = vadd.f32 %v4394, %v4482
        %v4484 = vpop.f32.mrf.mxu0
        %v4485 = vadd.f32 %v4396, %v4484
        %4486 = vmatmul.bf16.gmra.mxu0 %v4241
        %v4487 = vpop.f32.mrf.mxu0
        %v4488 = vadd.f32 %v4399, %v4487
        %v4489 = vpop.f32.mrf.mxu0
        %v4490 = vadd.f32 %v4401, %v4489
        %4491 = vmatmul.bf16.gmra.mxu0 %v4243
        %v4492 = vpop.f32.mrf.mxu0
        %v4493 = vadd.f32 %v4404, %v4492
        %v4494 = vpop.f32.mrf.mxu0
        %v4495 = vadd.f32 %v4406, %v4494
        %4496 = vmatmul.bf16.gmra.mxu0 %v4245
        %v4497 = vpop.f32.mrf.mxu0
        %v4498 = vadd.f32 %v4409, %v4497
        %v4499 = vpop.f32.mrf.mxu0
        %v4500 = vadd.f32 %v4411, %v4499
        %4501 = vmatmul.bf16.gmra.mxu0 %v4247
        %v4502 = vpop.f32.mrf.mxu0
        %v4503 = vadd.f32 %v4414, %v4502
        %v4504 = vpop.f32.mrf.mxu0
        %v4505 = vadd.f32 %v4416, %v4504
        %4506 = vmatmul.bf16.gmra.mxu0 %v4249
        %v4507 = vpop.f32.mrf.mxu0
        %v4508 = vadd.f32 %v4419, %v4507
        %v4509 = vpop.f32.mrf.mxu0
        %v4510 = vadd.f32 %v4421, %v4509
        %4511 = vmatmul.bf16.gmra.mxu0 %v4251
        %v4512 = vpop.f32.mrf.mxu0
        %v4513 = vadd.f32 %v4424, %v4512
        %v4514 = vpop.f32.mrf.mxu0
        %v4515 = vadd.f32 %v4426, %v4514
        %4516 = vmatmul.bf16.gmra.mxu0 %v4253
        %v4517 = vpop.f32.mrf.mxu0
        %v4518 = vadd.f32 %v4429, %v4517
        %v4519 = vpop.f32.mrf.mxu0
        %v4520 = vadd.f32 %v4431, %v4519
        %4521 = vmatmul.bf16.gmra.mxu0 %v4255
        %v4522 = vpop.f32.mrf.mxu0
        %v4523 = vadd.f32 %v4434, %v4522
        %v4524 = vpop.f32.mrf.mxu0
        %v4525 = vadd.f32 %v4436, %v4524
        %4526 = vmatmul.bf16.gmra.mxu0 %v4257
        %v4527 = vpop.f32.mrf.mxu0
        %v4528 = vadd.f32 %v4439, %v4527
        %v4529 = vpop.f32.mrf.mxu0
        %v4530 = vadd.f32 %v4441, %v4529
        %4531 = vdwg.mxu0
        %v4532 = vadd.f32 %v2635, %v4453
        %v4533 = vadd.f32 %v2636, %v4455
        %v4534 = vadd.f32 %v2637, %v4458
        %v4535 = vadd.f32 %v2638, %v4460
        %v4536 = vadd.f32 %v2639, %v4463
        %v4537 = vadd.f32 %v2640, %v4465
        %v4538 = vadd.f32 %v2641, %v4468
        %v4539 = vadd.f32 %v2642, %v4470
        %v4540 = vadd.f32 %v2643, %v4473
        %v4541 = vadd.f32 %v2644, %v4475
        %v4542 = vadd.f32 %v2645, %v4478
        %v4543 = vadd.f32 %v2646, %v4480
        %v4544 = vadd.f32 %v2647, %v4483
        %v4545 = vadd.f32 %v2648, %v4485
        %v4546 = vadd.f32 %v2649, %v4488
        %v4547 = vadd.f32 %v2650, %v4490
        %v4548 = vadd.f32 %v2651, %v4493
        %v4549 = vadd.f32 %v2652, %v4495
        %v4550 = vadd.f32 %v2653, %v4498
        %v4551 = vadd.f32 %v2654, %v4500
        %v4552 = vadd.f32 %v2655, %v4503
        %v4553 = vadd.f32 %v2656, %v4505
        %v4554 = vadd.f32 %v2657, %v4508
        %v4555 = vadd.f32 %v2658, %v4510
        %v4556 = vadd.f32 %v2659, %v4513
        %v4557 = vadd.f32 %v2660, %v4515
        %v4558 = vadd.f32 %v2661, %v4518
        %v4559 = vadd.f32 %v2662, %v4520
        %v4560 = vadd.f32 %v2663, %v4523
        %v4561 = vadd.f32 %v2664, %v4525
        %v4562 = vadd.f32 %v2665, %v4528
        %v4563 = vadd.f32 %v2666, %v4530
        %v4564 = vperm.slane %v365, 0
        %v4565 = vadd.f32 %v4532, %v4564
        %v4566 = vadd.f32 %v4533, %v4564
        %v4567 = vadd.f32 %v4534, %v4564
        %v4568 = vadd.f32 %v4535, %v4564
        %v4569 = vadd.f32 %v4536, %v4564
        %v4570 = vadd.f32 %v4537, %v4564
        %v4571 = vadd.f32 %v4538, %v4564
        %v4572 = vadd.f32 %v4539, %v4564
        %v4573 = vadd.f32 %v4540, %v4564
        %v4574 = vadd.f32 %v4541, %v4564
        %v4575 = vadd.f32 %v4542, %v4564
        %v4576 = vadd.f32 %v4543, %v4564
        %v4577 = vadd.f32 %v4544, %v4564
        %v4578 = vadd.f32 %v4545, %v4564
        %v4579 = vadd.f32 %v4546, %v4564
        %v4580 = vadd.f32 %v4547, %v4564
        %v4581 = vadd.f32 %v4548, %v4564
        %v4582 = vadd.f32 %v4549, %v4564
        %v4583 = vadd.f32 %v4550, %v4564
        %v4584 = vadd.f32 %v4551, %v4564
        %v4585 = vadd.f32 %v4552, %v4564
        %v4586 = vadd.f32 %v4553, %v4564
        %v4587 = vadd.f32 %v4554, %v4564
        %v4588 = vadd.f32 %v4555, %v4564
        %v4589 = vadd.f32 %v4556, %v4564
        %v4590 = vadd.f32 %v4557, %v4564
        %v4591 = vadd.f32 %v4558, %v4564
        %v4592 = vadd.f32 %v4559, %v4564
        %v4593 = vadd.f32 %v4560, %v4564
        %v4594 = vadd.f32 %v4561, %v4564
        %v4595 = vadd.f32 %v4562, %v4564
        %v4596 = vadd.f32 %v4563, %v4564
        %4597 = vst [vmem:[%s353] sm:$0xff] %v4565
        %4598 = vst [vmem:[%s353 + $0x8] sm:$0xff] %v4566
        %4599 = vst [vmem:[%s353 + $0x10] sm:$0xff] %v4567
        %4600 = vst [vmem:[%s353 + $0x18] sm:$0xff] %v4568
        %4601 = vst [vmem:[%s353 + $0x20] sm:$0xff] %v4569
        %4602 = vst [vmem:[%s353 + $0x28] sm:$0xff] %v4570
        %4603 = vst [vmem:[%s353 + $0x30] sm:$0xff] %v4571
        %4604 = vst [vmem:[%s353 + $0x38] sm:$0xff] %v4572
        %4605 = vst [vmem:[%s353 + $0x40] sm:$0xff] %v4573
        %4606 = vst [vmem:[%s353 + $0x48] sm:$0xff] %v4574
        %4607 = vst [vmem:[%s353 + $0x50] sm:$0xff] %v4575
        %4608 = vst [vmem:[%s353 + $0x58] sm:$0xff] %v4576
        %4609 = vst [vmem:[%s353 + $0x60] sm:$0xff] %v4577
        %4610 = vst [vmem:[%s353 + $0x68] sm:$0xff] %v4578
        %4611 = vst [vmem:[%s353 + $0x70] sm:$0xff] %v4579
        %4612 = vst [vmem:[%s353 + $0x78] sm:$0xff] %v4580
        %4613 = vst [vmem:[%s353 + $0x80] sm:$0xff] %v4581
        %4614 = vst [vmem:[%s353 + $0x88] sm:$0xff] %v4582
        %4615 = vst [vmem:[%s353 + $0x90] sm:$0xff] %v4583
        %4616 = vst [vmem:[%s353 + $0x98] sm:$0xff] %v4584
        %4617 = vst [vmem:[%s353 + $0xa0] sm:$0xff] %v4585
        %4618 = vst [vmem:[%s353 + $0xa8] sm:$0xff] %v4586
        %4619 = vst [vmem:[%s353 + $0xb0] sm:$0xff] %v4587
        %4620 = vst [vmem:[%s353 + $0xb8] sm:$0xff] %v4588
        %4621 = vst [vmem:[%s353 + $0xc0] sm:$0xff] %v4589
        %4622 = vst [vmem:[%s353 + $0xc8] sm:$0xff] %v4590
        %4623 = vst [vmem:[%s353 + $0xd0] sm:$0xff] %v4591
        %4624 = vst [vmem:[%s353 + $0xd8] sm:$0xff] %v4592
        %4625 = vst [vmem:[%s353 + $0xe0] sm:$0xff] %v4593
        %4626 = vst [vmem:[%s353 + $0xe8] sm:$0xff] %v4594
        %4627 = vst [vmem:[%s353 + $0xf0] sm:$0xff] %v4595
        %4628 = vst [vmem:[%s353 + $0xf8] sm:$0xff] %v4596
        %s4629 = sand.u32 %s184, 1
        %s4630 = scalar_lea.sflag [#allocation4], %s4629
        %s4631 = sand.u32 %s184, 1
        %s4632 = smul.addr %s4631, 256
        %s4633 = scalar_lea.vmem [#allocation11], %s4632
        // Predicated region
        $region69: #{tpu_custom_call.1} parent=47 // pred_check
          %p4634 = pneg %p194
        $region70: #{tpu_custom_call.1} parent=47 // pred_check_branch
          %4636 = sbr.rel (%p4634) target = $region72
        $region71: #{tpu_custom_call.1} parent=47 // pred_region
          %s4637 = smul.u32 32, %s24
          %4639 = vsyncadd %s4630, 0
          %s4640 = smul.addr %s4637, 8
          %s4641 = scalar_lea.hbm %s7, %s4640
          %s4642 = sshll.u32 %s4633, 4
          %s4643 = int_to_ptr.vmem [resolvable:$true] %s4642
          %s4644 = sshll.u32 %s4641, 4
          %s4645 = int_to_ptr.hbm [resolvable:$true] %s4644
          %4650 = dma.vmem_to_hbm [thread:$0]  %s4643, 4096, %s4645, %s4630, 128, 128, 8
        $region72: #{tpu_custom_call.1} parent=47 // pred_fallthru
          _
      $region48: #{tpu_custom_call.1} parent=5 // pred_fallthru
        _
      %p4651 = scmp.le.s32.totalorder 2, %s19
      // Predicated region
      $region73: #{tpu_custom_call.1} parent=5 // pred_check
        %p4652 = pneg %p4651
      $region74: #{tpu_custom_call.1} parent=5 // pred_check_branch
        %4654 = sbr.rel (%p4652) target = $region76
      $region75: #{tpu_custom_call.1} parent=5 // pred_region
        %s4655 = ssub.s32 %s19, 2
        // Predicated region
        $region77: #{tpu_custom_call.1} parent=75 // pred_check
          %p4656 = pneg %p200
        $region78: #{tpu_custom_call.1} parent=75 // pred_check_branch
          %4658 = sbr.rel (%p4656) target = $region80
        $region79: #{tpu_custom_call.1} parent=75 // pred_region
          %s4659 = sand.u32 %s185, 1
          %s4660 = scalar_lea.sflag [#allocation4], %s4659
          %s4661 = sand.u32 %s185, 1
          %s4662 = smul.addr %s4661, 256
          %s4663 = scalar_lea.vmem [#allocation11], %s4662
          %4665 = dma.done %s4660, 4096
        $region80: #{tpu_custom_call.1} parent=75 // pred_fallthru
          _
      $region76: #{tpu_custom_call.1} parent=5 // pred_fallthru
        _
    $region6: #{tpu_custom_call.1} parent=1 // loop_footer
      %s23 = sadd.s32 1, %s19
    $region7: #{tpu_custom_call.1} parent=1 // loop_footer_branch
      %18 = sbr.rel target = $region3
    $region8: #{tpu_custom_call.1} parent=1 // loop_exit
      _
    %4666 = vsyncpa [#allocation3], 1
    %s4667 = scalar_lea.sflag [#allocation3], 1
    %4668 = vsyncpa %s4667, 1
    %4669 = vsyncpa [#allocation6], 1
    %4670 = vsyncpa [#allocation9], 1
    %4671 = vsyncpa [#allocation4], 1
    %s4672 = scalar_lea.sflag [#allocation4], 1
    %4673 = vsyncpa %s4672, 1

</llo_original>
